<compile_context>
chip_gen: v7x
topology: tpu7x:2x2x1
jax: 0.10.0
libtpu: 0.0.40
codegen_flags: <defaults>
</compile_context>

<pallas_src>
import jax
import jax.numpy as jnp
import numpy as np
from jax.experimental import pallas as pl
from jax.experimental.pallas import tpu as pltpu

LN_EPS = 1e-12
PAIR_EPS = 1e-10


def attributes_kernel(means_ref, gw_ref, cen_ref, cent_ref,
                      w1_ref, b1_ref, g_ref, beta_ref,
                      wpc_ref, wpp_ref, bp_ref, out_ref):
    """One grid step = bt batch elements. All hot-path math is tile-wide (no per-batch loop)."""
    C, N, _ = means_ref.shape          # GMM components, bt*L rows, 3 color coords
    Bt, L, _ = cen_ref.shape
    H = w1_ref.shape[1]

    # ---- ft_linear: Linear(3->H) + ReLU + LayerNorm(H), all C*bt*L rows at once ----
    # K=3 contraction as 3 VPU broadcast-FMAs (no MXU fill/drain at depth 3; MXU is kept for
    # the projection dots below).
    x = means_ref[...]                                          # (C, N, 3) component-major
    w1 = w1_ref[...]                                            # (3, H)
    h = (x[:, :, 0:1] * w1[0, :]
         + x[:, :, 1:2] * w1[1, :]
         + x[:, :, 2:3] * w1[2, :]
         + b1_ref[...])                                         # (C, N, H)
    h = jnp.maximum(h, 0.0)
    mu = jnp.mean(h, axis=-1, keepdims=True)
    var = jnp.maximum(jnp.mean(h * h, axis=-1, keepdims=True) - mu * mu, 0.0)
    scale = jax.lax.rsqrt(var + LN_EPS) * g_ref[...]            # gamma folded into rsqrt
    h = (h - mu) * scale + beta_ref[...]                        # (C, N, H)

    # ---- weighted sum over GMM components: tile-wide static slices + VPU FMAs ----
    gw = gw_ref[...]                                            # (N, C)
    color = gw[:, 0:1] * h[0]
    for c in range(1, C):                                       # tiny static unroll over C
        color = color + gw[:, c:c + 1] * h[c]                   # (N, H)

    # ---- pairwise 'center' relative location features, whole batch tile at once ----
    cen = cen_ref[...]                                          # (Bt, L, 3)
    cent = cent_ref[...]                                        # (Bt, 3, L)
    dx = cen[:, :, 0:1] - cent[:, 0:1, :]                       # (Bt, L, L)
    dy = cen[:, :, 1:2] - cent[:, 1:2, :]
    dz = cen[:, :, 2:3] - cent[:, 2:3, :]
    ss2 = dx * dx + dy * dy + PAIR_EPS
    ss3 = ss2 + dz * dz
    inv3 = jax.lax.rsqrt(ss3)                                   # EUP
    inv2 = jax.lax.rsqrt(ss2)
    d3 = ss3 * inv3                                             # == sqrt(ss3)
    d2 = ss2 * inv2                                             # == sqrt(ss2)
    dmax = jnp.max(jnp.max(d3, axis=2, keepdims=True), axis=1, keepdims=True)  # (Bt,1,1)
    nd = d3 * pl.reciprocal(dmax, approx=True)                  # EUP reciprocal
    pair = jnp.concatenate(
        [nd, dz * inv3, d2 * inv3, dy * inv2, dx * inv2],
        axis=2).reshape(Bt * L, 5 * L)                          # (N, 5L)

    # ---- projection: two accumulating MXU dots (K=H dense + K=5L), no (N, H+5L) concat ----
    acc = jnp.dot(color.astype(wpc_ref.dtype), wpc_ref[...],
                  preferred_element_type=jnp.float32)           # (N, H)
    acc = acc + jnp.dot(pair.astype(wpp_ref.dtype), wpp_ref[...],
                        preferred_element_type=jnp.float32)
    acc = acc + bp_ref[...]
    out_ref[...] = acc.reshape(Bt, L, H).astype(out_ref.dtype)  # split leading dim only (free)


def attributes_forward(obj_colors, obj_locs, params, *, batch_tile=None,
                       proj_dtype=jnp.float32):
    B, L, C, four = obj_colors.shape
    assert four == 4
    H = params["w1"].shape[1]
    F = H + 5 * L
    assert params["wp"].shape == (F, H)
    assert L % 8 == 0, "object axis must stay sublane aligned"
    assert H % 128 == 0, "keep the output lane-dense (H a multiple of 128)"

    if batch_tile is None:
        # Fill the MXU M dim: bt*L ~ 256 rows (>=128 is enough on v5e).
        bt = max(1, min(B, 256 // L))
        while B % bt:
            bt -= 1
    else:
        bt = batch_tile
    assert B % bt == 0, "batch tile must divide batch"
    N = bt * L

    # Glue (plain JAX, outside the kernel): component-major GMM layout over the full batch,
    # flattened GMM weights, and pre-transposed centers.
    means3 = jnp.transpose(obj_colors[..., 1:].astype(jnp.float32),
                           (2, 0, 1, 3)).reshape(C, B * L, 3)            # (C, B*L, 3)
    gw = obj_colors[..., 0].astype(jnp.float32).reshape(B * L, C)        # (B*L, C)
    centers = obj_locs[:, :, :3].astype(jnp.float32)                     # (B, L, 3)
    centers_t = jnp.transpose(centers, (0, 2, 1))                        # (B, 3, L)

    wp = params["wp"].astype(jnp.float32)
    wp_color = wp[:H].astype(proj_dtype)                                 # (H, H)
    wp_pair = wp[H:].astype(proj_dtype)                                  # (5L, H)

    in_specs = [
        pl.BlockSpec((C, N, 3), lambda i: (0, i, 0)),      # GMM means (component-major, tile-wide)
        pl.BlockSpec((N, C), lambda i: (i, 0)),            # GMM weights (rows = (b, l))
        pl.BlockSpec((bt, L, 3), lambda i: (i, 0, 0)),     # centers
        pl.BlockSpec((bt, 3, L), lambda i: (i, 0, 0)),     # centers^T
        pl.BlockSpec((3, H), lambda i: (0, 0)),            # ft_linear weight
        pl.BlockSpec((1, H), lambda i: (0, 0)),            # ft_linear bias
        pl.BlockSpec((1, H), lambda i: (0, 0)),            # LayerNorm gamma
        pl.BlockSpec((1, H), lambda i: (0, 0)),            # LayerNorm beta
        pl.BlockSpec((H, H), lambda i: (0, 0)),            # project W, color rows
        pl.BlockSpec((5 * L, H), lambda i: (0, 0)),        # project W, pairwise rows [nd|rz|r2d|ry|rx]
        pl.BlockSpec((1, H), lambda i: (0, 0)),            # project bias
    ]
    out_specs = pl.BlockSpec((bt, L, H), lambda i: (i, 0, 0))

    return pl.pallas_call(
        attributes_kernel,
        out_shape=jax.ShapeDtypeStruct((B, L, H), jnp.float32),
        grid_spec=pltpu.PrefetchScalarGridSpec(
            num_scalar_prefetch=0,
            grid=(B // bt,),
            in_specs=in_specs,
            out_specs=out_specs,
        ),
        compiler_params=pltpu.CompilerParams(
            dimension_semantics=("parallel",),
            vmem_limit_bytes=32 * 1024 * 1024,
        ),
    )(means3, gw, centers, centers_t,
      params["w1"].astype(jnp.float32), params["b1"].astype(jnp.float32),
      params["gamma"].astype(jnp.float32), params["beta"].astype(jnp.float32),
      wp_color, wp_pair, params["bp"].astype(jnp.float32))


def attributes_reference(obj_colors, obj_locs, params):
    """Pure-JAX reference mirroring the (fixed-up) PyTorch forward."""
    gmm_w = obj_colors[..., :1]
    gmm_m = obj_colors[..., 1:]
    h = jnp.einsum("blcd,dh->blch", gmm_m, params["w1"],
                   precision=jax.lax.Precision.HIGHEST) + params["b1"][0]
    h = jnp.maximum(h, 0.0)
    mu = h.mean(-1, keepdims=True)
    var = ((h - mu) ** 2).mean(-1, keepdims=True)
    h = (h - mu) / jnp.sqrt(var + LN_EPS) * params["gamma"][0] + params["beta"][0]
    color = (h * gmm_w).sum(2)                                           # (B, L, H)

    c = obj_locs[..., :3]
    diff = c[:, :, None, :] - c[:, None, :, :]                           # (B, L, L, 3)
    d3 = jnp.sqrt((diff ** 2).sum(-1) + PAIR_EPS)
    d2 = jnp.sqrt((diff[..., :2] ** 2).sum(-1) + PAIR_EPS)
    B = d3.shape[0]
    dmax = d3.reshape(B, -1).max(-1)[:, None, None]
    nd = d3 / dmax
    pair_flat = jnp.concatenate(
        [nd, diff[..., 2] / d3, d2 / d3, diff[..., 1] / d2, diff[..., 0] / d2], axis=-1)
    attrs = jnp.concatenate([color, pair_flat], axis=-1)
    return jnp.einsum("blf,fh->blh", attrs, params["wp"],
                      precision=jax.lax.Precision.HIGHEST) + params["bp"][0]


if __name__ == "__main__":
    B, L, C, H = 64, 8, 3, 128        # batch, objects, GMM components, hidden_size
    BT = 32                           # batch tile -> M = BT*L = 256 rows, grid = (2,) (even, v7x)
    F = H + 5 * L                     # project input_size

    key = jax.random.PRNGKey(0)
    ks = jax.random.split(key, 8)
    params = {
        "w1": jax.random.normal(ks[0], (3, H), jnp.float32) * 0.5,
        "b1": jax.random.normal(ks[1], (1, H), jnp.float32) * 0.1,
        "gamma": jnp.ones((1, H), jnp.float32),
        "beta": jnp.zeros((1, H), jnp.float32),
        "wp": jax.random.normal(ks[2], (F, H), jnp.float32) * 0.1,
        "bp": jax.random.normal(ks[3], (1, H), jnp.float32) * 0.1,
    }

    gmm_w = jax.random.uniform(ks[4], (B, L, C, 1), jnp.float32)
    gmm_w = gmm_w / gmm_w.sum(2, keepdims=True)
    gmm_m = jax.random.normal(ks[5], (B, L, C, 3), jnp.float32)
    obj_colors = jnp.concatenate([gmm_w, gmm_m], axis=-1)                # (B, L, C, 4)
    obj_locs = jax.random.normal(ks[6], (B, L, 6), jnp.float32)          # (B, L, 6)

    out = attributes_forward(obj_colors, obj_locs, params, batch_tile=BT)
    out = jax.block_until_ready(out)

    ref = attributes_reference(obj_colors, obj_locs, params)
    np.testing.assert_allclose(np.asarray(out), np.asarray(ref), rtol=2e-2, atol=2e-2)
    print("KERNEL_OK")
</pallas_src>

<mosaic_0001>
module attributes {stable_mosaic.version = 11 : i64} {
  func.func @attributes_kernel(%arg0: i32, %arg1: memref<3x256x3xf32, #tpu.memory_space<vmem>>, %arg2: memref<256x3xf32, #tpu.memory_space<vmem>>, %arg3: memref<32x8x3xf32, #tpu.memory_space<vmem>>, %arg4: memref<32x3x8xf32, #tpu.memory_space<vmem>>, %arg5: memref<3x128xf32, #tpu.memory_space<vmem>>, %arg6: memref<1x128xf32, #tpu.memory_space<vmem>>, %arg7: memref<1x128xf32, #tpu.memory_space<vmem>>, %arg8: memref<1x128xf32, #tpu.memory_space<vmem>>, %arg9: memref<128x128xf32, #tpu.memory_space<vmem>>, %arg10: memref<40x128xf32, #tpu.memory_space<vmem>>, %arg11: memref<1x128xf32, #tpu.memory_space<vmem>>, %arg12: memref<32x8x128xf32, #tpu.memory_space<vmem>>) attributes {dimension_semantics = [#tpu.dimension_semantics<parallel>], iteration_bounds = array<i64: 2>, scalar_prefetch = 0 : i64, scratch_operands = 0 : i64, tpu.core_type = #tpu.core_type<tc>, window_params = [{transform_indices = @transform_0, window_bounds = array<i64: 3, 256, 3>}, {transform_indices = @transform_1, window_bounds = array<i64: 256, 3>}, {transform_indices = @transform_2, window_bounds = array<i64: 32, 8, 3>}, {transform_indices = @transform_3, window_bounds = array<i64: 32, 3, 8>}, {pipeline_mode = #tpu.pipeline_mode<synchronous>, transform_indices = @transform_4, window_bounds = array<i64: 3, 128>}, {pipeline_mode = #tpu.pipeline_mode<synchronous>, transform_indices = @transform_5, window_bounds = array<i64: 1, 128>}, {pipeline_mode = #tpu.pipeline_mode<synchronous>, transform_indices = @transform_6, window_bounds = array<i64: 1, 128>}, {pipeline_mode = #tpu.pipeline_mode<synchronous>, transform_indices = @transform_7, window_bounds = array<i64: 1, 128>}, {pipeline_mode = #tpu.pipeline_mode<synchronous>, transform_indices = @transform_8, window_bounds = array<i64: 128, 128>}, {pipeline_mode = #tpu.pipeline_mode<synchronous>, transform_indices = @transform_9, window_bounds = array<i64: 40, 128>}, {pipeline_mode = #tpu.pipeline_mode<synchronous>, transform_indices = @transform_10, window_bounds = array<i64: 1, 128>}, {transform_indices = @transform_11, window_bounds = array<i64: 32, 8, 128>}]} {
    %c0 = arith.constant 0 : index
    %c0_0 = arith.constant 0 : index
    %c0_1 = arith.constant 0 : index
    %0 = vector.load %arg1[%c0, %c0_0, %c0_1] : memref<3x256x3xf32, #tpu.memory_space<vmem>>, vector<3x256x3xf32>
    %c0_2 = arith.constant 0 : index
    %c0_3 = arith.constant 0 : index
    %1 = vector.load %arg5[%c0_2, %c0_3] : memref<3x128xf32, #tpu.memory_space<vmem>>, vector<3x128xf32>
    %2 = vector.extract_strided_slice %0 {offsets = [0, 0, 0], sizes = [3, 256, 1], strides = [1, 1, 1]} : vector<3x256x3xf32> to vector<3x256x1xf32>
    %3 = vector.extract_strided_slice %1 {offsets = [0, 0], sizes = [1, 128], strides = [1, 1]} : vector<3x128xf32> to vector<1x128xf32>
    %4 = vector.shape_cast %3 : vector<1x128xf32> to vector<128xf32>
    %5 = vector.shape_cast %4 : vector<128xf32> to vector<1x1x128xf32>
    %6 = vector.broadcast %2 : vector<3x256x1xf32> to vector<3x256x128xf32>
    %7 = vector.broadcast %5 : vector<1x1x128xf32> to vector<3x256x128xf32>
    %8 = arith.mulf %6, %7 : vector<3x256x128xf32>
    %9 = vector.extract_strided_slice %0 {offsets = [0, 0, 1], sizes = [3, 256, 1], strides = [1, 1, 1]} : vector<3x256x3xf32> to vector<3x256x1xf32>
    %10 = vector.extract_strided_slice %1 {offsets = [1, 0], sizes = [1, 128], strides = [1, 1]} : vector<3x128xf32> to vector<1x128xf32>
    %11 = vector.shape_cast %10 : vector<1x128xf32> to vector<128xf32>
    %12 = vector.shape_cast %11 : vector<128xf32> to vector<1x1x128xf32>
    %13 = vector.broadcast %9 : vector<3x256x1xf32> to vector<3x256x128xf32>
    %14 = vector.broadcast %12 : vector<1x1x128xf32> to vector<3x256x128xf32>
    %15 = arith.mulf %13, %14 : vector<3x256x128xf32>
    %16 = arith.addf %8, %15 : vector<3x256x128xf32>
    %17 = vector.extract_strided_slice %0 {offsets = [0, 0, 2], sizes = [3, 256, 1], strides = [1, 1, 1]} : vector<3x256x3xf32> to vector<3x256x1xf32>
    %18 = vector.extract_strided_slice %1 {offsets = [2, 0], sizes = [1, 128], strides = [1, 1]} : vector<3x128xf32> to vector<1x128xf32>
    %19 = vector.shape_cast %18 : vector<1x128xf32> to vector<128xf32>
    %20 = vector.shape_cast %19 : vector<128xf32> to vector<1x1x128xf32>
    %21 = vector.broadcast %17 : vector<3x256x1xf32> to vector<3x256x128xf32>
    %22 = vector.broadcast %20 : vector<1x1x128xf32> to vector<3x256x128xf32>
    %23 = arith.mulf %21, %22 : vector<3x256x128xf32>
    %24 = arith.addf %16, %23 : vector<3x256x128xf32>
    %c0_4 = arith.constant 0 : index
    %c0_5 = arith.constant 0 : index
    %25 = vector.load %arg6[%c0_4, %c0_5] : memref<1x128xf32, #tpu.memory_space<vmem>>, vector<1x128xf32>
    %26 = vector.shape_cast %25 : vector<1x128xf32> to vector<1x1x128xf32>
    %27 = vector.broadcast %26 : vector<1x1x128xf32> to vector<3x256x128xf32>
    %28 = arith.addf %24, %27 : vector<3x256x128xf32>
    %cst = arith.constant 0.000000e+00 : f32
    %29 = vector.broadcast %cst : f32 to vector<3x256x128xf32>
    %30 = arith.maximumf %28, %29 : vector<3x256x128xf32>
    %cst_6 = arith.constant dense<0.000000e+00> : vector<3x256xf32>
    %31 = vector.multi_reduction <add>, %30, %cst_6 [2] : vector<3x256x128xf32> to vector<3x256xf32>
    %32 = vector.shape_cast %31 : vector<3x256xf32> to vector<3x256x1xf32>
    %cst_7 = arith.constant 1.280000e+02 : f32
    %33 = vector.broadcast %cst_7 : f32 to vector<3x256x1xf32>
    %34 = arith.divf %32, %33 : vector<3x256x1xf32>
    %35 = arith.mulf %30, %30 : vector<3x256x128xf32>
    %cst_8 = arith.constant dense<0.000000e+00> : vector<3x256xf32>
    %36 = vector.multi_reduction <add>, %35, %cst_8 [2] : vector<3x256x128xf32> to vector<3x256xf32>
    %37 = vector.shape_cast %36 : vector<3x256xf32> to vector<3x256x1xf32>
    %cst_9 = arith.constant 1.280000e+02 : f32
    %38 = vector.broadcast %cst_9 : f32 to vector<3x256x1xf32>
    %39 = arith.divf %37, %38 : vector<3x256x1xf32>
    %40 = arith.mulf %34, %34 : vector<3x256x1xf32>
    %41 = arith.subf %39, %40 : vector<3x256x1xf32>
    %cst_10 = arith.constant 0.000000e+00 : f32
    %42 = vector.broadcast %cst_10 : f32 to vector<3x256x1xf32>
    %43 = arith.maximumf %41, %42 : vector<3x256x1xf32>
    %cst_11 = arith.constant 9.99999996E-13 : f32
    %44 = vector.broadcast %cst_11 : f32 to vector<3x256x1xf32>
    %45 = arith.addf %43, %44 : vector<3x256x1xf32>
    %46 = math.rsqrt %45 : vector<3x256x1xf32>
    %c0_12 = arith.constant 0 : index
    %c0_13 = arith.constant 0 : index
    %47 = vector.load %arg7[%c0_12, %c0_13] : memref<1x128xf32, #tpu.memory_space<vmem>>, vector<1x128xf32>
    %48 = vector.shape_cast %47 : vector<1x128xf32> to vector<1x1x128xf32>
    %49 = vector.broadcast %46 : vector<3x256x1xf32> to vector<3x256x128xf32>
    %50 = vector.broadcast %48 : vector<1x1x128xf32> to vector<3x256x128xf32>
    %51 = arith.mulf %49, %50 : vector<3x256x128xf32>
    %52 = vector.broadcast %34 : vector<3x256x1xf32> to vector<3x256x128xf32>
    %53 = arith.subf %30, %52 : vector<3x256x128xf32>
    %54 = arith.mulf %53, %51 : vector<3x256x128xf32>
    %c0_14 = arith.constant 0 : index
    %c0_15 = arith.constant 0 : index
    %55 = vector.load %arg8[%c0_14, %c0_15] : memref<1x128xf32, #tpu.memory_space<vmem>>, vector<1x128xf32>
    %56 = vector.shape_cast %55 : vector<1x128xf32> to vector<1x1x128xf32>
    %57 = vector.broadcast %56 : vector<1x1x128xf32> to vector<3x256x128xf32>
    %58 = arith.addf %54, %57 : vector<3x256x128xf32>
    %c0_16 = arith.constant 0 : index
    %c0_17 = arith.constant 0 : index
    %59 = vector.load %arg2[%c0_16, %c0_17] : memref<256x3xf32, #tpu.memory_space<vmem>>, vector<256x3xf32>
    %60 = vector.extract_strided_slice %59 {offsets = [0, 0], sizes = [256, 1], strides = [1, 1]} : vector<256x3xf32> to vector<256x1xf32>
    %61 = vector.extract_strided_slice %58 {offsets = [0, 0, 0], sizes = [1, 256, 128], strides = [1, 1, 1]} : vector<3x256x128xf32> to vector<1x256x128xf32>
    %62 = vector.shape_cast %61 : vector<1x256x128xf32> to vector<256x128xf32>
    %63 = vector.broadcast %60 : vector<256x1xf32> to vector<256x128xf32>
    %64 = arith.mulf %63, %62 : vector<256x128xf32>
    %65 = vector.extract_strided_slice %59 {offsets = [0, 1], sizes = [256, 1], strides = [1, 1]} : vector<256x3xf32> to vector<256x1xf32>
    %66 = vector.extract_strided_slice %58 {offsets = [1, 0, 0], sizes = [1, 256, 128], strides = [1, 1, 1]} : vector<3x256x128xf32> to vector<1x256x128xf32>
    %67 = vector.shape_cast %66 : vector<1x256x128xf32> to vector<256x128xf32>
    %68 = vector.broadcast %65 : vector<256x1xf32> to vector<256x128xf32>
    %69 = arith.mulf %68, %67 : vector<256x128xf32>
    %70 = arith.addf %64, %69 : vector<256x128xf32>
    %71 = vector.extract_strided_slice %59 {offsets = [0, 2], sizes = [256, 1], strides = [1, 1]} : vector<256x3xf32> to vector<256x1xf32>
    %72 = vector.extract_strided_slice %58 {offsets = [2, 0, 0], sizes = [1, 256, 128], strides = [1, 1, 1]} : vector<3x256x128xf32> to vector<1x256x128xf32>
    %73 = vector.shape_cast %72 : vector<1x256x128xf32> to vector<256x128xf32>
    %74 = vector.broadcast %71 : vector<256x1xf32> to vector<256x128xf32>
    %75 = arith.mulf %74, %73 : vector<256x128xf32>
    %76 = arith.addf %70, %75 : vector<256x128xf32>
    %c0_18 = arith.constant 0 : index
    %c0_19 = arith.constant 0 : index
    %c0_20 = arith.constant 0 : index
    %77 = vector.load %arg3[%c0_18, %c0_19, %c0_20] : memref<32x8x3xf32, #tpu.memory_space<vmem>>, vector<32x8x3xf32>
    %c0_21 = arith.constant 0 : index
    %c0_22 = arith.constant 0 : index
    %c0_23 = arith.constant 0 : index
    %78 = vector.load %arg4[%c0_21, %c0_22, %c0_23] : memref<32x3x8xf32, #tpu.memory_space<vmem>>, vector<32x3x8xf32>
    %79 = vector.extract_strided_slice %77 {offsets = [0, 0, 0], sizes = [32, 8, 1], strides = [1, 1, 1]} : vector<32x8x3xf32> to vector<32x8x1xf32>
    %80 = vector.extract_strided_slice %78 {offsets = [0, 0, 0], sizes = [32, 1, 8], strides = [1, 1, 1]} : vector<32x3x8xf32> to vector<32x1x8xf32>
    %81 = vector.broadcast %79 : vector<32x8x1xf32> to vector<32x8x8xf32>
    %82 = vector.broadcast %80 : vector<32x1x8xf32> to vector<32x8x8xf32>
    %83 = arith.subf %81, %82 : vector<32x8x8xf32>
    %84 = vector.extract_strided_slice %77 {offsets = [0, 0, 1], sizes = [32, 8, 1], strides = [1, 1, 1]} : vector<32x8x3xf32> to vector<32x8x1xf32>
    %85 = vector.extract_strided_slice %78 {offsets = [0, 1, 0], sizes = [32, 1, 8], strides = [1, 1, 1]} : vector<32x3x8xf32> to vector<32x1x8xf32>
    %86 = vector.broadcast %84 : vector<32x8x1xf32> to vector<32x8x8xf32>
    %87 = vector.broadcast %85 : vector<32x1x8xf32> to vector<32x8x8xf32>
    %88 = arith.subf %86, %87 : vector<32x8x8xf32>
    %89 = vector.extract_strided_slice %77 {offsets = [0, 0, 2], sizes = [32, 8, 1], strides = [1, 1, 1]} : vector<32x8x3xf32> to vector<32x8x1xf32>
    %90 = vector.extract_strided_slice %78 {offsets = [0, 2, 0], sizes = [32, 1, 8], strides = [1, 1, 1]} : vector<32x3x8xf32> to vector<32x1x8xf32>
    %91 = vector.broadcast %89 : vector<32x8x1xf32> to vector<32x8x8xf32>
    %92 = vector.broadcast %90 : vector<32x1x8xf32> to vector<32x8x8xf32>
    %93 = arith.subf %91, %92 : vector<32x8x8xf32>
    %94 = arith.mulf %83, %83 : vector<32x8x8xf32>
    %95 = arith.mulf %88, %88 : vector<32x8x8xf32>
    %96 = arith.addf %94, %95 : vector<32x8x8xf32>
    %cst_24 = arith.constant 1.000000e-10 : f32
    %97 = vector.broadcast %cst_24 : f32 to vector<32x8x8xf32>
    %98 = arith.addf %96, %97 : vector<32x8x8xf32>
    %99 = arith.mulf %93, %93 : vector<32x8x8xf32>
    %100 = arith.addf %98, %99 : vector<32x8x8xf32>
    %101 = math.rsqrt %100 : vector<32x8x8xf32>
    %102 = math.rsqrt %98 : vector<32x8x8xf32>
    %103 = arith.mulf %100, %101 : vector<32x8x8xf32>
    %104 = arith.mulf %98, %102 : vector<32x8x8xf32>
    %cst_25 = arith.constant dense<0xFF800000> : vector<32x8xf32>
    %105 = vector.multi_reduction <maximumf>, %103, %cst_25 [2] : vector<32x8x8xf32> to vector<32x8xf32>
    %106 = vector.shape_cast %105 : vector<32x8xf32> to vector<32x8x1xf32>
    %cst_26 = arith.constant dense<0xFF800000> : vector<32x1xf32>
    %107 = vector.multi_reduction <maximumf>, %106, %cst_26 [1] : vector<32x8x1xf32> to vector<32x1xf32>
    %108 = vector.shape_cast %107 : vector<32x1xf32> to vector<32x1x1xf32>
    %109 = tpu.reciprocal %108 {approx = true} : vector<32x1x1xf32> -> vector<32x1x1xf32>
    %110 = vector.broadcast %109 : vector<32x1x1xf32> to vector<32x8x8xf32>
    %111 = arith.mulf %103, %110 : vector<32x8x8xf32>
    %112 = arith.mulf %93, %101 : vector<32x8x8xf32>
    %113 = arith.mulf %104, %101 : vector<32x8x8xf32>
    %114 = arith.mulf %88, %102 : vector<32x8x8xf32>
    %115 = arith.mulf %83, %102 : vector<32x8x8xf32>
    %116 = tpu.concatenate %111, %112, %113, %114, %115 in 2 : vector<32x8x8xf32>, vector<32x8x8xf32>, vector<32x8x8xf32>, vector<32x8x8xf32>, vector<32x8x8xf32> -> vector<32x8x40xf32>
    %117 = vector.shape_cast %116 : vector<32x8x40xf32> to vector<256x40xf32>
    %c0_27 = arith.constant 0 : index
    %c0_28 = arith.constant 0 : index
    %118 = vector.load %arg9[%c0_27, %c0_28] : memref<128x128xf32, #tpu.memory_space<vmem>>, vector<128x128xf32>
    %cst_29 = arith.constant dense<0.000000e+00> : vector<256x128xf32>
    %119 = tpu.matmul %76, %118, %cst_29 {dimension_numbers = #tpu.dot_dimension_numbers<[1], [0], [0], [1], [0, 0, 1, 1], [], []>} : vector<256x128xf32>, vector<128x128xf32>, vector<256x128xf32> -> vector<256x128xf32>
    %c0_30 = arith.constant 0 : index
    %c0_31 = arith.constant 0 : index
    %120 = vector.load %arg10[%c0_30, %c0_31] : memref<40x128xf32, #tpu.memory_space<vmem>>, vector<40x128xf32>
    %cst_32 = arith.constant dense<0.000000e+00> : vector<256x128xf32>
    %121 = tpu.matmul %117, %120, %cst_32 {dimension_numbers = #tpu.dot_dimension_numbers<[1], [0], [0], [1], [0, 0, 1, 1], [], []>} : vector<256x40xf32>, vector<40x128xf32>, vector<256x128xf32> -> vector<256x128xf32>
    %122 = arith.addf %119, %121 : vector<256x128xf32>
    %c0_33 = arith.constant 0 : index
    %c0_34 = arith.constant 0 : index
    %123 = vector.load %arg11[%c0_33, %c0_34] : memref<1x128xf32, #tpu.memory_space<vmem>>, vector<1x128xf32>
    %124 = vector.broadcast %123 : vector<1x128xf32> to vector<256x128xf32>
    %125 = arith.addf %122, %124 : vector<256x128xf32>
    %126 = vector.shape_cast %125 : vector<256x128xf32> to vector<32x8x128xf32>
    %c0_35 = arith.constant 0 : index
    %c0_36 = arith.constant 0 : index
    %c0_37 = arith.constant 0 : index
    %127 = vector.load %arg12[%c0_35, %c0_36, %c0_37] : memref<32x8x128xf32, #tpu.memory_space<vmem>>, vector<32x8x128xf32>
    tpu.vector_store %arg12[%c0_35, %c0_36, %c0_37], %126 {strides = array<i32>} : memref<32x8x128xf32, #tpu.memory_space<vmem>>, vector<32x8x128xf32>,
    return
  }
  func.func @transform_0(%arg0: i32) -> (i32, i32, i32) {
    %c0_i32 = arith.constant 0 : i32
    %c0_i32_0 = arith.constant 0 : i32
    %c0_i32_1 = arith.constant 0 : i32
    return %c0_i32, %arg0, %c0_i32_0 : i32, i32, i32
  }
  func.func @transform_1(%arg0: i32) -> (i32, i32) {
    %c0_i32 = arith.constant 0 : i32
    %c0_i32_0 = arith.constant 0 : i32
    return %arg0, %c0_i32 : i32, i32
  }
  func.func @transform_2(%arg0: i32) -> (i32, i32, i32) {
    %c0_i32 = arith.constant 0 : i32
    %c0_i32_0 = arith.constant 0 : i32
    %c0_i32_1 = arith.constant 0 : i32
    return %arg0, %c0_i32, %c0_i32_0 : i32, i32, i32
  }
  func.func @transform_3(%arg0: i32) -> (i32, i32, i32) {
    %c0_i32 = arith.constant 0 : i32
    %c0_i32_0 = arith.constant 0 : i32
    %c0_i32_1 = arith.constant 0 : i32
    return %arg0, %c0_i32, %c0_i32_0 : i32, i32, i32
  }
  func.func @transform_4(%arg0: i32) -> (i32, i32) {
    %c0_i32 = arith.constant 0 : i32
    %c0_i32_0 = arith.constant 0 : i32
    %c0_i32_1 = arith.constant 0 : i32
    return %c0_i32, %c0_i32_0 : i32, i32
  }
  func.func @transform_5(%arg0: i32) -> (i32, i32) {
    %c0_i32 = arith.constant 0 : i32
    %c0_i32_0 = arith.constant 0 : i32
    %c0_i32_1 = arith.constant 0 : i32
    return %c0_i32, %c0_i32_0 : i32, i32
  }
  func.func @transform_6(%arg0: i32) -> (i32, i32) {
    %c0_i32 = arith.constant 0 : i32
    %c0_i32_0 = arith.constant 0 : i32
    %c0_i32_1 = arith.constant 0 : i32
    return %c0_i32, %c0_i32_0 : i32, i32
  }
  func.func @transform_7(%arg0: i32) -> (i32, i32) {
    %c0_i32 = arith.constant 0 : i32
    %c0_i32_0 = arith.constant 0 : i32
    %c0_i32_1 = arith.constant 0 : i32
    return %c0_i32, %c0_i32_0 : i32, i32
  }
  func.func @transform_8(%arg0: i32) -> (i32, i32) {
    %c0_i32 = arith.constant 0 : i32
    %c0_i32_0 = arith.constant 0 : i32
    %c0_i32_1 = arith.constant 0 : i32
    return %c0_i32, %c0_i32_0 : i32, i32
  }
  func.func @transform_9(%arg0: i32) -> (i32, i32) {
    %c0_i32 = arith.constant 0 : i32
    %c0_i32_0 = arith.constant 0 : i32
    %c0_i32_1 = arith.constant 0 : i32
    return %c0_i32, %c0_i32_0 : i32, i32
  }
  func.func @transform_10(%arg0: i32) -> (i32, i32) {
    %c0_i32 = arith.constant 0 : i32
    %c0_i32_0 = arith.constant 0 : i32
    %c0_i32_1 = arith.constant 0 : i32
    return %c0_i32, %c0_i32_0 : i32, i32
  }
  func.func @transform_11(%arg0: i32) -> (i32, i32, i32) {
    %c0_i32 = arith.constant 0 : i32
    %c0_i32_0 = arith.constant 0 : i32
    %c0_i32_1 = arith.constant 0 : i32
    return %arg0, %c0_i32, %c0_i32_0 : i32, i32, i32
  }
}

</mosaic_0001>

<llo_original>
// kernel: tpu_custom_call.1
$region0: #{tpu_custom_call.1}
  #allocation0 [shape = 'u32[]', space=smem, size = 0x4, offset = 0x4, fixed_abs, tag = 'smem constant byte address 0x4 - core index']
  #allocation1 [shape = 'u32[144,128]{1,0:T(1,128)}', space=vmem, size = 0x12000, scoped, tag = 'internal scratch']
  %s0 = inlined_call_operand.vmem [shape: f32[3,512,3], index: 0, kind: input, shape index: {}]
  %s1 = inlined_call_operand.vmem [shape: f32[512,3], index: 1, kind: input, shape index: {}]
  %s2 = inlined_call_operand.vmem [shape: f32[64,8,3], index: 2, kind: input, shape index: {}]
  %s3 = inlined_call_operand.vmem [shape: f32[64,3,8], index: 3, kind: input, shape index: {}]
  %s4 = inlined_call_operand.vmem [shape: f32[3,128], index: 4, kind: input, shape index: {}]
  %s5 = inlined_call_operand.vmem [shape: f32[1,128], index: 5, kind: input, shape index: {}]
  %s6 = inlined_call_operand.vmem [shape: f32[1,128], index: 6, kind: input, shape index: {}]
  %s7 = inlined_call_operand.vmem [shape: f32[1,128], index: 7, kind: input, shape index: {}]
  %s8 = inlined_call_operand.vmem [shape: f32[128,128], index: 8, kind: input, shape index: {}]
  %s9 = inlined_call_operand.vmem [shape: f32[40,128], index: 9, kind: input, shape index: {}]
  %s10 = inlined_call_operand.vmem [shape: f32[1,128], index: 10, kind: input, shape index: {}]
  %s11 = inlined_call_operand.hbm [shape: f32[64,8,128], index: 11, kind: output, shape index: {}]
  %s12 = sld [smem:[#allocation0]]
  $region115: #{tpu_custom_call.1} parent=0
    _
  %s14 = ssub.s32 1, %s12
  %s15 = scalar_select 0, %s14, %s12
  $region1: #{tpu_custom_call.1} parent=0
    #allocation2 [shape = 'u8[786432]{0}', space=vmem, size = 0xc0000, scoped, tag = 'input window, operand 0']
    #allocation3 [shape = 'u8[262144]{0}', space=vmem, size = 0x40000, scoped, tag = 'output window, operand 0']
    #allocation4 [shape = 's32[2]{0}', space=sflag, size = 0x8, scoped, tag = 'scoped memory for tpu_custom_call.1']
    %16 = vsyncpa [#allocation4], 0
    %s17 = scalar_lea.sflag [#allocation4], 1
    %18 = vsyncpa %s17, 0
    loop: start=0, step=1, limit=4
    $region2: #{tpu_custom_call.1} parent=1 // loop_pre_header
      _
    $region3: #{tpu_custom_call.1} parent=1 // loop_header
      %s20 = sphi 0, %s24
      %p21 = scmp.ge.s32.totalorder %s20, 4
      %s30 = sphi 0, %s32
      %s33 = sphi 0, %s30
      %s34 = sphi 0, %s33
      %s50 = sphi 0, %s34
      %s56 = sphi 0, %s58
      %s59 = sphi 0, %s56
      %s60 = sphi 0, %s59
      %s76 = sphi 0, %s60
      %s82 = sphi 0, %s84
      %s85 = sphi 0, %s82
      %s86 = sphi 0, %s85
      %s102 = sphi 0, %s86
      %s108 = sphi 0, %s110
      %s111 = sphi 0, %s108
      %s112 = sphi 0, %s111
      %s128 = sphi 0, %s112
      %s132 = sphi 0, %s132
      %s134 = sphi 0, %s132
      %s135 = sphi 0, %s134
      %s149 = sphi 0, %s135
      %s153 = sphi 0, %s153
      %s155 = sphi 0, %s153
      %s156 = sphi 0, %s155
      %s170 = sphi 0, %s156
      %s174 = sphi 0, %s174
      %s176 = sphi 0, %s174
      %s177 = sphi 0, %s176
      %s191 = sphi 0, %s177
      %s195 = sphi 0, %s195
      %s197 = sphi 0, %s195
      %s198 = sphi 0, %s197
      %s212 = sphi 0, %s198
      %s216 = sphi 0, %s216
      %s218 = sphi 0, %s216
      %s219 = sphi 0, %s218
      %s233 = sphi 0, %s219
      %s237 = sphi 0, %s237
      %s239 = sphi 0, %s237
      %s240 = sphi 0, %s239
      %s254 = sphi 0, %s240
      %s258 = sphi 0, %s258
      %s260 = sphi 0, %s258
      %s261 = sphi 0, %s260
      %s275 = sphi 0, %s261
      %s281 = sphi 0, %s283
      %s284 = sphi 0, %s281
      %s285 = sphi 0, %s284
      %s301 = sphi 0, %s285
    $region4: #{tpu_custom_call.1} parent=1 // loop_header_branch
      %23 = sbr.rel (%p21) target = $region8
    $region5: #{tpu_custom_call.1} parent=1 // loop_body
      %s25 = ssub.s32 %s20, 1
      %s26 = ssub.s32 %s20, 2
      %s27 = sadd.s32 %s20, 1
      %s28 = ssub.s32 %s20, %s27
      %p29 = scmp.eq.s32.totalorder %s28, 0
      %s31 = sadd.s32 %s30, 1
      %s32 = scalar_select %p29, %s30, %s31
      %p35 = pneg %p29
      %p36 = scmp.eq.s32.totalorder %s20, 1
      %p37 = por %p35, %p36
      %p38 = scmp.ne.s32.totalorder %s30, %s33
      %p39 = scmp.eq.s32.totalorder %s20, 0
      %p40 = por %p38, %p39
      %p41 = scmp.ne.s32.totalorder %s30, %s33
      %p42 = scmp.eq.s32.totalorder %s25, 1
      %p43 = por %p41, %p42
      %p44 = scmp.ne.s32.totalorder %s33, %s34
      %p45 = scmp.eq.s32.totalorder %s25, 0
      %p46 = por %p44, %p45
      %p47 = scmp.ne.s32.totalorder %s33, %s34
      %p48 = scmp.eq.s32.totalorder %s26, 1
      %p49 = por %p47, %p48
      %p51 = scmp.ne.s32.totalorder %s34, %s50
      %p52 = scmp.eq.s32.totalorder %s26, 0
      %p53 = por %p51, %p52
      %s54 = ssub.s32 %s20, %s27
      %p55 = scmp.eq.s32.totalorder %s54, 0
      %s57 = sadd.s32 %s56, 1
      %s58 = scalar_select %p55, %s56, %s57
      %p61 = pneg %p55
      %p62 = scmp.eq.s32.totalorder %s20, 1
      %p63 = por %p61, %p62
      %p64 = scmp.ne.s32.totalorder %s56, %s59
      %p65 = scmp.eq.s32.totalorder %s20, 0
      %p66 = por %p64, %p65
      %p67 = scmp.ne.s32.totalorder %s56, %s59
      %p68 = scmp.eq.s32.totalorder %s25, 1
      %p69 = por %p67, %p68
      %p70 = scmp.ne.s32.totalorder %s59, %s60
      %p71 = scmp.eq.s32.totalorder %s25, 0
      %p72 = por %p70, %p71
      %p73 = scmp.ne.s32.totalorder %s59, %s60
      %p74 = scmp.eq.s32.totalorder %s26, 1
      %p75 = por %p73, %p74
      %p77 = scmp.ne.s32.totalorder %s60, %s76
      %p78 = scmp.eq.s32.totalorder %s26, 0
      %p79 = por %p77, %p78
      %s80 = ssub.s32 %s20, %s27
      %p81 = scmp.eq.s32.totalorder %s80, 0
      %s83 = sadd.s32 %s82, 1
      %s84 = scalar_select %p81, %s82, %s83
      %p87 = pneg %p81
      %p88 = scmp.eq.s32.totalorder %s20, 1
      %p89 = por %p87, %p88
      %p90 = scmp.ne.s32.totalorder %s82, %s85
      %p91 = scmp.eq.s32.totalorder %s20, 0
      %p92 = por %p90, %p91
      %p93 = scmp.ne.s32.totalorder %s82, %s85
      %p94 = scmp.eq.s32.totalorder %s25, 1
      %p95 = por %p93, %p94
      %p96 = scmp.ne.s32.totalorder %s85, %s86
      %p97 = scmp.eq.s32.totalorder %s25, 0
      %p98 = por %p96, %p97
      %p99 = scmp.ne.s32.totalorder %s85, %s86
      %p100 = scmp.eq.s32.totalorder %s26, 1
      %p101 = por %p99, %p100
      %p103 = scmp.ne.s32.totalorder %s86, %s102
      %p104 = scmp.eq.s32.totalorder %s26, 0
      %p105 = por %p103, %p104
      %s106 = ssub.s32 %s20, %s27
      %p107 = scmp.eq.s32.totalorder %s106, 0
      %s109 = sadd.s32 %s108, 1
      %s110 = scalar_select %p107, %s108, %s109
      %p113 = pneg %p107
      %p114 = scmp.eq.s32.totalorder %s20, 1
      %p115 = por %p113, %p114
      %p116 = scmp.ne.s32.totalorder %s108, %s111
      %p117 = scmp.eq.s32.totalorder %s20, 0
      %p118 = por %p116, %p117
      %p119 = scmp.ne.s32.totalorder %s108, %s111
      %p120 = scmp.eq.s32.totalorder %s25, 1
      %p121 = por %p119, %p120
      %p122 = scmp.ne.s32.totalorder %s111, %s112
      %p123 = scmp.eq.s32.totalorder %s25, 0
      %p124 = por %p122, %p123
      %p125 = scmp.ne.s32.totalorder %s111, %s112
      %p126 = scmp.eq.s32.totalorder %s26, 1
      %p127 = por %p125, %p126
      %p129 = scmp.ne.s32.totalorder %s112, %s128
      %p130 = scmp.eq.s32.totalorder %s26, 0
      %p131 = por %p129, %p130
      %s133 = sadd.s32 %s132, 1
      %p136 = scmp.eq.s32.totalorder %s20, 1
      %p137 = scmp.ne.s32.totalorder %s132, %s134
      %p138 = scmp.eq.s32.totalorder %s20, 0
      %p139 = por %p137, %p138
      %p140 = scmp.ne.s32.totalorder %s132, %s134
      %p141 = scmp.eq.s32.totalorder %s25, 1
      %p142 = por %p140, %p141
      %p143 = scmp.ne.s32.totalorder %s134, %s135
      %p144 = scmp.eq.s32.totalorder %s25, 0
      %p145 = por %p143, %p144
      %p146 = scmp.ne.s32.totalorder %s134, %s135
      %p147 = scmp.eq.s32.totalorder %s26, 1
      %p148 = por %p146, %p147
      %p150 = scmp.ne.s32.totalorder %s135, %s149
      %p151 = scmp.eq.s32.totalorder %s26, 0
      %p152 = por %p150, %p151
      %s154 = sadd.s32 %s153, 1
      %p157 = scmp.eq.s32.totalorder %s20, 1
      %p158 = scmp.ne.s32.totalorder %s153, %s155
      %p159 = scmp.eq.s32.totalorder %s20, 0
      %p160 = por %p158, %p159
      %p161 = scmp.ne.s32.totalorder %s153, %s155
      %p162 = scmp.eq.s32.totalorder %s25, 1
      %p163 = por %p161, %p162
      %p164 = scmp.ne.s32.totalorder %s155, %s156
      %p165 = scmp.eq.s32.totalorder %s25, 0
      %p166 = por %p164, %p165
      %p167 = scmp.ne.s32.totalorder %s155, %s156
      %p168 = scmp.eq.s32.totalorder %s26, 1
      %p169 = por %p167, %p168
      %p171 = scmp.ne.s32.totalorder %s156, %s170
      %p172 = scmp.eq.s32.totalorder %s26, 0
      %p173 = por %p171, %p172
      %s175 = sadd.s32 %s174, 1
      %p178 = scmp.eq.s32.totalorder %s20, 1
      %p179 = scmp.ne.s32.totalorder %s174, %s176
      %p180 = scmp.eq.s32.totalorder %s20, 0
      %p181 = por %p179, %p180
      %p182 = scmp.ne.s32.totalorder %s174, %s176
      %p183 = scmp.eq.s32.totalorder %s25, 1
      %p184 = por %p182, %p183
      %p185 = scmp.ne.s32.totalorder %s176, %s177
      %p186 = scmp.eq.s32.totalorder %s25, 0
      %p187 = por %p185, %p186
      %p188 = scmp.ne.s32.totalorder %s176, %s177
      %p189 = scmp.eq.s32.totalorder %s26, 1
      %p190 = por %p188, %p189
      %p192 = scmp.ne.s32.totalorder %s177, %s191
      %p193 = scmp.eq.s32.totalorder %s26, 0
      %p194 = por %p192, %p193
      %s196 = sadd.s32 %s195, 1
      %p199 = scmp.eq.s32.totalorder %s20, 1
      %p200 = scmp.ne.s32.totalorder %s195, %s197
      %p201 = scmp.eq.s32.totalorder %s20, 0
      %p202 = por %p200, %p201
      %p203 = scmp.ne.s32.totalorder %s195, %s197
      %p204 = scmp.eq.s32.totalorder %s25, 1
      %p205 = por %p203, %p204
      %p206 = scmp.ne.s32.totalorder %s197, %s198
      %p207 = scmp.eq.s32.totalorder %s25, 0
      %p208 = por %p206, %p207
      %p209 = scmp.ne.s32.totalorder %s197, %s198
      %p210 = scmp.eq.s32.totalorder %s26, 1
      %p211 = por %p209, %p210
      %p213 = scmp.ne.s32.totalorder %s198, %s212
      %p214 = scmp.eq.s32.totalorder %s26, 0
      %p215 = por %p213, %p214
      %s217 = sadd.s32 %s216, 1
      %p220 = scmp.eq.s32.totalorder %s20, 1
      %p221 = scmp.ne.s32.totalorder %s216, %s218
      %p222 = scmp.eq.s32.totalorder %s20, 0
      %p223 = por %p221, %p222
      %p224 = scmp.ne.s32.totalorder %s216, %s218
      %p225 = scmp.eq.s32.totalorder %s25, 1
      %p226 = por %p224, %p225
      %p227 = scmp.ne.s32.totalorder %s218, %s219
      %p228 = scmp.eq.s32.totalorder %s25, 0
      %p229 = por %p227, %p228
      %p230 = scmp.ne.s32.totalorder %s218, %s219
      %p231 = scmp.eq.s32.totalorder %s26, 1
      %p232 = por %p230, %p231
      %p234 = scmp.ne.s32.totalorder %s219, %s233
      %p235 = scmp.eq.s32.totalorder %s26, 0
      %p236 = por %p234, %p235
      %s238 = sadd.s32 %s237, 1
      %p241 = scmp.eq.s32.totalorder %s20, 1
      %p242 = scmp.ne.s32.totalorder %s237, %s239
      %p243 = scmp.eq.s32.totalorder %s20, 0
      %p244 = por %p242, %p243
      %p245 = scmp.ne.s32.totalorder %s237, %s239
      %p246 = scmp.eq.s32.totalorder %s25, 1
      %p247 = por %p245, %p246
      %p248 = scmp.ne.s32.totalorder %s239, %s240
      %p249 = scmp.eq.s32.totalorder %s25, 0
      %p250 = por %p248, %p249
      %p251 = scmp.ne.s32.totalorder %s239, %s240
      %p252 = scmp.eq.s32.totalorder %s26, 1
      %p253 = por %p251, %p252
      %p255 = scmp.ne.s32.totalorder %s240, %s254
      %p256 = scmp.eq.s32.totalorder %s26, 0
      %p257 = por %p255, %p256
      %s259 = sadd.s32 %s258, 1
      %p262 = scmp.eq.s32.totalorder %s20, 1
      %p263 = scmp.ne.s32.totalorder %s258, %s260
      %p264 = scmp.eq.s32.totalorder %s20, 0
      %p265 = por %p263, %p264
      %p266 = scmp.ne.s32.totalorder %s258, %s260
      %p267 = scmp.eq.s32.totalorder %s25, 1
      %p268 = por %p266, %p267
      %p269 = scmp.ne.s32.totalorder %s260, %s261
      %p270 = scmp.eq.s32.totalorder %s25, 0
      %p271 = por %p269, %p270
      %p272 = scmp.ne.s32.totalorder %s260, %s261
      %p273 = scmp.eq.s32.totalorder %s26, 1
      %p274 = por %p272, %p273
      %p276 = scmp.ne.s32.totalorder %s261, %s275
      %p277 = scmp.eq.s32.totalorder %s26, 0
      %p278 = por %p276, %p277
      %s279 = ssub.s32 %s20, %s27
      %p280 = scmp.eq.s32.totalorder %s279, 0
      %s282 = sadd.s32 %s281, 1
      %s283 = scalar_select %p280, %s281, %s282
      %p286 = pneg %p280
      %p287 = scmp.eq.s32.totalorder %s20, 1
      %p288 = por %p286, %p287
      %p289 = scmp.ne.s32.totalorder %s281, %s284
      %p290 = scmp.eq.s32.totalorder %s20, 0
      %p291 = por %p289, %p290
      %p292 = scmp.ne.s32.totalorder %s281, %s284
      %p293 = scmp.eq.s32.totalorder %s25, 1
      %p294 = por %p292, %p293
      %p295 = scmp.ne.s32.totalorder %s284, %s285
      %p296 = scmp.eq.s32.totalorder %s25, 0
      %p297 = por %p295, %p296
      %p298 = scmp.ne.s32.totalorder %s284, %s285
      %p299 = scmp.eq.s32.totalorder %s26, 1
      %p300 = por %p298, %p299
      %p302 = scmp.ne.s32.totalorder %s285, %s301
      %p303 = scmp.eq.s32.totalorder %s26, 0
      %p304 = por %p302, %p303
      %p305 = scmp.le.s32.totalorder 1, %s20
      %p306 = scmp.lt.s32.totalorder %s20, 3
      %p307 = pnand %p305, %p306
      %p308 = pneg %p307
      // Predicated region
      $region9: #{tpu_custom_call.1} parent=5 // pred_check
        _
      $region10: #{tpu_custom_call.1} parent=5 // pred_check_branch
        %310 = sbr.rel (%p307) target = $region12
      $region11: #{tpu_custom_call.1} parent=5 // pred_region
        %s311 = ssub.s32 %s20, 1
        // Predicated region
        $region13: #{tpu_custom_call.1} parent=11 // pred_check
          %p312 = pneg %p145
        $region14: #{tpu_custom_call.1} parent=11 // pred_check_branch
          %314 = sbr.rel (%p312) target = $region16
        $region15: #{tpu_custom_call.1} parent=11 // pred_region
          _
        $region16: #{tpu_custom_call.1} parent=11 // pred_fallthru
          _
        // Predicated region
        $region17: #{tpu_custom_call.1} parent=11 // pred_check
          %p315 = pneg %p166
        $region18: #{tpu_custom_call.1} parent=11 // pred_check_branch
          %317 = sbr.rel (%p315) target = $region20
        $region19: #{tpu_custom_call.1} parent=11 // pred_region
          _
        $region20: #{tpu_custom_call.1} parent=11 // pred_fallthru
          _
        // Predicated region
        $region21: #{tpu_custom_call.1} parent=11 // pred_check
          %p318 = pneg %p187
        $region22: #{tpu_custom_call.1} parent=11 // pred_check_branch
          %320 = sbr.rel (%p318) target = $region24
        $region23: #{tpu_custom_call.1} parent=11 // pred_region
          _
        $region24: #{tpu_custom_call.1} parent=11 // pred_fallthru
          _
        // Predicated region
        $region25: #{tpu_custom_call.1} parent=11 // pred_check
          %p321 = pneg %p208
        $region26: #{tpu_custom_call.1} parent=11 // pred_check_branch
          %323 = sbr.rel (%p321) target = $region28
        $region27: #{tpu_custom_call.1} parent=11 // pred_region
          _
        $region28: #{tpu_custom_call.1} parent=11 // pred_fallthru
          _
        // Predicated region
        $region29: #{tpu_custom_call.1} parent=11 // pred_check
          %p324 = pneg %p229
        $region30: #{tpu_custom_call.1} parent=11 // pred_check_branch
          %326 = sbr.rel (%p324) target = $region32
        $region31: #{tpu_custom_call.1} parent=11 // pred_region
          _
        $region32: #{tpu_custom_call.1} parent=11 // pred_fallthru
          _
        // Predicated region
        $region33: #{tpu_custom_call.1} parent=11 // pred_check
          %p327 = pneg %p250
        $region34: #{tpu_custom_call.1} parent=11 // pred_check_branch
          %329 = sbr.rel (%p327) target = $region36
        $region35: #{tpu_custom_call.1} parent=11 // pred_region
          _
        $region36: #{tpu_custom_call.1} parent=11 // pred_fallthru
          _
        // Predicated region
        $region37: #{tpu_custom_call.1} parent=11 // pred_check
          %p330 = pneg %p271
        $region38: #{tpu_custom_call.1} parent=11 // pred_check_branch
          %332 = sbr.rel (%p330) target = $region40
        $region39: #{tpu_custom_call.1} parent=11 // pred_region
          _
        $region40: #{tpu_custom_call.1} parent=11 // pred_fallthru
          _
      $region12: #{tpu_custom_call.1} parent=5 // pred_fallthru
        _
      %p333 = scmp.lt.s32.totalorder %s20, 2
      // Predicated region
      $region41: #{tpu_custom_call.1} parent=5 // pred_check
        %p334 = pneg %p333
      $region42: #{tpu_custom_call.1} parent=5 // pred_check_branch
        %336 = sbr.rel (%p334) target = $region44
      $region43: #{tpu_custom_call.1} parent=5 // pred_region
        // Predicated region
        $region45: #{tpu_custom_call.1} parent=43 // pred_check
          %p337 = pneg %p40
        $region46: #{tpu_custom_call.1} parent=43 // pred_check_branch
          %339 = sbr.rel (%p337) target = $region48
        $region47: #{tpu_custom_call.1} parent=43 // pred_region
          %s340 = sand.u32 %s30, 1
          %s341 = sand.u32 %s30, 1
          %s342 = smul.addr %s341, 768
          %s343 = scalar_lea.vmem [#allocation2], %s342
          %s344 = smul.u32 32, %s20
          %s345 = smul.addr %s344, 8
          %s346 = scalar_lea.vmem %s0, %s345
          // Predicated region
          $region49: #{tpu_custom_call.1} parent=47 // pred_check
            _
          $region50: #{tpu_custom_call.1} parent=47 // pred_check_branch
            %348 = sbr.rel (0) target = $region52
          $region51: #{tpu_custom_call.1} parent=47 // pred_region
            // Predicated region
            $region53: #{tpu_custom_call.1} parent=51 // pred_check
              _
            $region54: #{tpu_custom_call.1} parent=51 // pred_check_branch
              %350 = sbr.rel (0) target = $region56
            $region55: #{tpu_custom_call.1} parent=51 // pred_region
              // Predicated region
              $region68: #{tpu_custom_call.1} parent=55 // pred_check
                _
              $region69: #{tpu_custom_call.1} parent=55 // pred_check_branch
                %555 = sbr.rel (0) target = $region71
              $region70: #{tpu_custom_call.1} parent=55 // pred_region
                loop: start=0, step=1, limit=1
                $region72: #{tpu_custom_call.1} parent=70 // loop_pre_header
                  _
                $region73: #{tpu_custom_call.1} parent=70 // loop_header
                  %s557 = sphi 0, %s561
                  %p558 = scmp.ge.s32.totalorder %s557, 1
                  %s562 = sphi %s346, %s346
                  %s563 = sphi %s343, %s343
                $region74: #{tpu_custom_call.1} parent=70 // loop_header_branch
                  %560 = sbr.rel (%p558) target = $region78
                $region75: #{tpu_custom_call.1} parent=70 // loop_body
                  %v564 = vld [vmem:[%s562] sm:$0xff]
                  %565 = vst [vmem:[%s563] sm:$0xff] %v564
                  %v566 = vld [vmem:[%s562 + $0x8] sm:$0xff]
                  %567 = vst [vmem:[%s563 + $0x8] sm:$0xff] %v566
                  %v568 = vld [vmem:[%s562 + $0x10] sm:$0xff]
                  %569 = vst [vmem:[%s563 + $0x10] sm:$0xff] %v568
                  %v570 = vld [vmem:[%s562 + $0x18] sm:$0xff]
                  %571 = vst [vmem:[%s563 + $0x18] sm:$0xff] %v570
                  %v572 = vld [vmem:[%s562 + $0x20] sm:$0xff]
                  %573 = vst [vmem:[%s563 + $0x20] sm:$0xff] %v572
                  %v574 = vld [vmem:[%s562 + $0x28] sm:$0xff]
                  %575 = vst [vmem:[%s563 + $0x28] sm:$0xff] %v574
                  %v576 = vld [vmem:[%s562 + $0x30] sm:$0xff]
                  %577 = vst [vmem:[%s563 + $0x30] sm:$0xff] %v576
                  %v578 = vld [vmem:[%s562 + $0x38] sm:$0xff]
                  %579 = vst [vmem:[%s563 + $0x38] sm:$0xff] %v578
                  %v580 = vld [vmem:[%s562 + $0x40] sm:$0xff]
                  %581 = vst [vmem:[%s563 + $0x40] sm:$0xff] %v580
                  %v582 = vld [vmem:[%s562 + $0x48] sm:$0xff]
                  %583 = vst [vmem:[%s563 + $0x48] sm:$0xff] %v582
                  %v584 = vld [vmem:[%s562 + $0x50] sm:$0xff]
                  %585 = vst [vmem:[%s563 + $0x50] sm:$0xff] %v584
                  %v586 = vld [vmem:[%s562 + $0x58] sm:$0xff]
                  %587 = vst [vmem:[%s563 + $0x58] sm:$0xff] %v586
                  %v588 = vld [vmem:[%s562 + $0x60] sm:$0xff]
                  %589 = vst [vmem:[%s563 + $0x60] sm:$0xff] %v588
                  %v590 = vld [vmem:[%s562 + $0x68] sm:$0xff]
                  %591 = vst [vmem:[%s563 + $0x68] sm:$0xff] %v590
                  %v592 = vld [vmem:[%s562 + $0x70] sm:$0xff]
                  %593 = vst [vmem:[%s563 + $0x70] sm:$0xff] %v592
                  %v594 = vld [vmem:[%s562 + $0x78] sm:$0xff]
                  %595 = vst [vmem:[%s563 + $0x78] sm:$0xff] %v594
                  %v596 = vld [vmem:[%s562 + $0x80] sm:$0xff]
                  %597 = vst [vmem:[%s563 + $0x80] sm:$0xff] %v596
                  %v598 = vld [vmem:[%s562 + $0x88] sm:$0xff]
                  %599 = vst [vmem:[%s563 + $0x88] sm:$0xff] %v598
                  %v600 = vld [vmem:[%s562 + $0x90] sm:$0xff]
                  %601 = vst [vmem:[%s563 + $0x90] sm:$0xff] %v600
                  %v602 = vld [vmem:[%s562 + $0x98] sm:$0xff]
                  %603 = vst [vmem:[%s563 + $0x98] sm:$0xff] %v602
                  %v604 = vld [vmem:[%s562 + $0xa0] sm:$0xff]
                  %605 = vst [vmem:[%s563 + $0xa0] sm:$0xff] %v604
                  %v606 = vld [vmem:[%s562 + $0xa8] sm:$0xff]
                  %607 = vst [vmem:[%s563 + $0xa8] sm:$0xff] %v606
                  %v608 = vld [vmem:[%s562 + $0xb0] sm:$0xff]
                  %609 = vst [vmem:[%s563 + $0xb0] sm:$0xff] %v608
                  %v610 = vld [vmem:[%s562 + $0xb8] sm:$0xff]
                  %611 = vst [vmem:[%s563 + $0xb8] sm:$0xff] %v610
                  %v612 = vld [vmem:[%s562 + $0xc0] sm:$0xff]
                  %613 = vst [vmem:[%s563 + $0xc0] sm:$0xff] %v612
                  %v614 = vld [vmem:[%s562 + $0xc8] sm:$0xff]
                  %615 = vst [vmem:[%s563 + $0xc8] sm:$0xff] %v614
                  %v616 = vld [vmem:[%s562 + $0xd0] sm:$0xff]
                  %617 = vst [vmem:[%s563 + $0xd0] sm:$0xff] %v616
                  %v618 = vld [vmem:[%s562 + $0xd8] sm:$0xff]
                  %619 = vst [vmem:[%s563 + $0xd8] sm:$0xff] %v618
                  %v620 = vld [vmem:[%s562 + $0xe0] sm:$0xff]
                  %621 = vst [vmem:[%s563 + $0xe0] sm:$0xff] %v620
                  %v622 = vld [vmem:[%s562 + $0xe8] sm:$0xff]
                  %623 = vst [vmem:[%s563 + $0xe8] sm:$0xff] %v622
                  %v624 = vld [vmem:[%s562 + $0xf0] sm:$0xff]
                  %625 = vst [vmem:[%s563 + $0xf0] sm:$0xff] %v624
                  %v626 = vld [vmem:[%s562 + $0xf8] sm:$0xff]
                  %627 = vst [vmem:[%s563 + $0xf8] sm:$0xff] %v626
                  %v628 = vld [vmem:[%s562 + $0x200] sm:$0xff]
                  %629 = vst [vmem:[%s563 + $0x100] sm:$0xff] %v628
                  %v630 = vld [vmem:[%s562 + $0x208] sm:$0xff]
                  %631 = vst [vmem:[%s563 + $0x108] sm:$0xff] %v630
                  %v632 = vld [vmem:[%s562 + $0x210] sm:$0xff]
                  %633 = vst [vmem:[%s563 + $0x110] sm:$0xff] %v632
                  %v634 = vld [vmem:[%s562 + $0x218] sm:$0xff]
                  %635 = vst [vmem:[%s563 + $0x118] sm:$0xff] %v634
                  %v636 = vld [vmem:[%s562 + $0x220] sm:$0xff]
                  %637 = vst [vmem:[%s563 + $0x120] sm:$0xff] %v636
                  %v638 = vld [vmem:[%s562 + $0x228] sm:$0xff]
                  %639 = vst [vmem:[%s563 + $0x128] sm:$0xff] %v638
                  %v640 = vld [vmem:[%s562 + $0x230] sm:$0xff]
                  %641 = vst [vmem:[%s563 + $0x130] sm:$0xff] %v640
                  %v642 = vld [vmem:[%s562 + $0x238] sm:$0xff]
                  %643 = vst [vmem:[%s563 + $0x138] sm:$0xff] %v642
                  %v644 = vld [vmem:[%s562 + $0x240] sm:$0xff]
                  %645 = vst [vmem:[%s563 + $0x140] sm:$0xff] %v644
                  %v646 = vld [vmem:[%s562 + $0x248] sm:$0xff]
                  %647 = vst [vmem:[%s563 + $0x148] sm:$0xff] %v646
                  %v648 = vld [vmem:[%s562 + $0x250] sm:$0xff]
                  %649 = vst [vmem:[%s563 + $0x150] sm:$0xff] %v648
                  %v650 = vld [vmem:[%s562 + $0x258] sm:$0xff]
                  %651 = vst [vmem:[%s563 + $0x158] sm:$0xff] %v650
                  %v652 = vld [vmem:[%s562 + $0x260] sm:$0xff]
                  %653 = vst [vmem:[%s563 + $0x160] sm:$0xff] %v652
                  %v654 = vld [vmem:[%s562 + $0x268] sm:$0xff]
                  %655 = vst [vmem:[%s563 + $0x168] sm:$0xff] %v654
                  %v656 = vld [vmem:[%s562 + $0x270] sm:$0xff]
                  %657 = vst [vmem:[%s563 + $0x170] sm:$0xff] %v656
                  %v658 = vld [vmem:[%s562 + $0x278] sm:$0xff]
                  %659 = vst [vmem:[%s563 + $0x178] sm:$0xff] %v658
                  %v660 = vld [vmem:[%s562 + $0x280] sm:$0xff]
                  %661 = vst [vmem:[%s563 + $0x180] sm:$0xff] %v660
                  %v662 = vld [vmem:[%s562 + $0x288] sm:$0xff]
                  %663 = vst [vmem:[%s563 + $0x188] sm:$0xff] %v662
                  %v664 = vld [vmem:[%s562 + $0x290] sm:$0xff]
                  %665 = vst [vmem:[%s563 + $0x190] sm:$0xff] %v664
                  %v666 = vld [vmem:[%s562 + $0x298] sm:$0xff]
                  %667 = vst [vmem:[%s563 + $0x198] sm:$0xff] %v666
                  %v668 = vld [vmem:[%s562 + $0x2a0] sm:$0xff]
                  %669 = vst [vmem:[%s563 + $0x1a0] sm:$0xff] %v668
                  %v670 = vld [vmem:[%s562 + $0x2a8] sm:$0xff]
                  %671 = vst [vmem:[%s563 + $0x1a8] sm:$0xff] %v670
                  %v672 = vld [vmem:[%s562 + $0x2b0] sm:$0xff]
                  %673 = vst [vmem:[%s563 + $0x1b0] sm:$0xff] %v672
                  %v674 = vld [vmem:[%s562 + $0x2b8] sm:$0xff]
                  %675 = vst [vmem:[%s563 + $0x1b8] sm:$0xff] %v674
                  %v676 = vld [vmem:[%s562 + $0x2c0] sm:$0xff]
                  %677 = vst [vmem:[%s563 + $0x1c0] sm:$0xff] %v676
                  %v678 = vld [vmem:[%s562 + $0x2c8] sm:$0xff]
                  %679 = vst [vmem:[%s563 + $0x1c8] sm:$0xff] %v678
                  %v680 = vld [vmem:[%s562 + $0x2d0] sm:$0xff]
                  %681 = vst [vmem:[%s563 + $0x1d0] sm:$0xff] %v680
                  %v682 = vld [vmem:[%s562 + $0x2d8] sm:$0xff]
                  %683 = vst [vmem:[%s563 + $0x1d8] sm:$0xff] %v682
                  %v684 = vld [vmem:[%s562 + $0x2e0] sm:$0xff]
                  %685 = vst [vmem:[%s563 + $0x1e0] sm:$0xff] %v684
                  %v686 = vld [vmem:[%s562 + $0x2e8] sm:$0xff]
                  %687 = vst [vmem:[%s563 + $0x1e8] sm:$0xff] %v686
                  %v688 = vld [vmem:[%s562 + $0x2f0] sm:$0xff]
                  %689 = vst [vmem:[%s563 + $0x1f0] sm:$0xff] %v688
                  %v690 = vld [vmem:[%s562 + $0x2f8] sm:$0xff]
                  %691 = vst [vmem:[%s563 + $0x1f8] sm:$0xff] %v690
                  %v692 = vld [vmem:[%s562 + $0x400] sm:$0xff]
                  %693 = vst [vmem:[%s563 + $0x200] sm:$0xff] %v692
                  %v694 = vld [vmem:[%s562 + $0x408] sm:$0xff]
                  %695 = vst [vmem:[%s563 + $0x208] sm:$0xff] %v694
                  %v696 = vld [vmem:[%s562 + $0x410] sm:$0xff]
                  %697 = vst [vmem:[%s563 + $0x210] sm:$0xff] %v696
                  %v698 = vld [vmem:[%s562 + $0x418] sm:$0xff]
                  %699 = vst [vmem:[%s563 + $0x218] sm:$0xff] %v698
                  %v700 = vld [vmem:[%s562 + $0x420] sm:$0xff]
                  %701 = vst [vmem:[%s563 + $0x220] sm:$0xff] %v700
                  %v702 = vld [vmem:[%s562 + $0x428] sm:$0xff]
                  %703 = vst [vmem:[%s563 + $0x228] sm:$0xff] %v702
                  %v704 = vld [vmem:[%s562 + $0x430] sm:$0xff]
                  %705 = vst [vmem:[%s563 + $0x230] sm:$0xff] %v704
                  %v706 = vld [vmem:[%s562 + $0x438] sm:$0xff]
                  %707 = vst [vmem:[%s563 + $0x238] sm:$0xff] %v706
                  %v708 = vld [vmem:[%s562 + $0x440] sm:$0xff]
                  %709 = vst [vmem:[%s563 + $0x240] sm:$0xff] %v708
                  %v710 = vld [vmem:[%s562 + $0x448] sm:$0xff]
                  %711 = vst [vmem:[%s563 + $0x248] sm:$0xff] %v710
                  %v712 = vld [vmem:[%s562 + $0x450] sm:$0xff]
                  %713 = vst [vmem:[%s563 + $0x250] sm:$0xff] %v712
                  %v714 = vld [vmem:[%s562 + $0x458] sm:$0xff]
                  %715 = vst [vmem:[%s563 + $0x258] sm:$0xff] %v714
                  %v716 = vld [vmem:[%s562 + $0x460] sm:$0xff]
                  %717 = vst [vmem:[%s563 + $0x260] sm:$0xff] %v716
                  %v718 = vld [vmem:[%s562 + $0x468] sm:$0xff]
                  %719 = vst [vmem:[%s563 + $0x268] sm:$0xff] %v718
                  %v720 = vld [vmem:[%s562 + $0x470] sm:$0xff]
                  %721 = vst [vmem:[%s563 + $0x270] sm:$0xff] %v720
                  %v722 = vld [vmem:[%s562 + $0x478] sm:$0xff]
                  %723 = vst [vmem:[%s563 + $0x278] sm:$0xff] %v722
                  %v724 = vld [vmem:[%s562 + $0x480] sm:$0xff]
                  %725 = vst [vmem:[%s563 + $0x280] sm:$0xff] %v724
                  %v726 = vld [vmem:[%s562 + $0x488] sm:$0xff]
                  %727 = vst [vmem:[%s563 + $0x288] sm:$0xff] %v726
                  %v728 = vld [vmem:[%s562 + $0x490] sm:$0xff]
                  %729 = vst [vmem:[%s563 + $0x290] sm:$0xff] %v728
                  %v730 = vld [vmem:[%s562 + $0x498] sm:$0xff]
                  %731 = vst [vmem:[%s563 + $0x298] sm:$0xff] %v730
                  %v732 = vld [vmem:[%s562 + $0x4a0] sm:$0xff]
                  %733 = vst [vmem:[%s563 + $0x2a0] sm:$0xff] %v732
                  %v734 = vld [vmem:[%s562 + $0x4a8] sm:$0xff]
                  %735 = vst [vmem:[%s563 + $0x2a8] sm:$0xff] %v734
                  %v736 = vld [vmem:[%s562 + $0x4b0] sm:$0xff]
                  %737 = vst [vmem:[%s563 + $0x2b0] sm:$0xff] %v736
                  %v738 = vld [vmem:[%s562 + $0x4b8] sm:$0xff]
                  %739 = vst [vmem:[%s563 + $0x2b8] sm:$0xff] %v738
                  %v740 = vld [vmem:[%s562 + $0x4c0] sm:$0xff]
                  %741 = vst [vmem:[%s563 + $0x2c0] sm:$0xff] %v740
                  %v742 = vld [vmem:[%s562 + $0x4c8] sm:$0xff]
                  %743 = vst [vmem:[%s563 + $0x2c8] sm:$0xff] %v742
                  %v744 = vld [vmem:[%s562 + $0x4d0] sm:$0xff]
                  %745 = vst [vmem:[%s563 + $0x2d0] sm:$0xff] %v744
                  %v746 = vld [vmem:[%s562 + $0x4d8] sm:$0xff]
                  %747 = vst [vmem:[%s563 + $0x2d8] sm:$0xff] %v746
                  %v748 = vld [vmem:[%s562 + $0x4e0] sm:$0xff]
                  %749 = vst [vmem:[%s563 + $0x2e0] sm:$0xff] %v748
                  %v750 = vld [vmem:[%s562 + $0x4e8] sm:$0xff]
                  %751 = vst [vmem:[%s563 + $0x2e8] sm:$0xff] %v750
                  %v752 = vld [vmem:[%s562 + $0x4f0] sm:$0xff]
                  %753 = vst [vmem:[%s563 + $0x2f0] sm:$0xff] %v752
                  %v754 = vld [vmem:[%s562 + $0x4f8] sm:$0xff]
                  %755 = vst [vmem:[%s563 + $0x2f8] sm:$0xff] %v754
                $region76: #{tpu_custom_call.1} parent=70 // loop_footer
                  %s561 = sadd.s32 1, %s557
                $region77: #{tpu_custom_call.1} parent=70 // loop_footer_branch
                  %556 = sbr.rel target = $region73
                $region78: #{tpu_custom_call.1} parent=70 // loop_exit
                  _
              $region71: #{tpu_custom_call.1} parent=55 // pred_fallthru
                _
              // Predicated region
              $region79: #{tpu_custom_call.1} parent=55 // pred_check
                _
              $region80: #{tpu_custom_call.1} parent=55 // pred_check_branch
                %757 = sbr.rel target = $region82
              $region81: #{tpu_custom_call.1} parent=55 // pred_region
                _
              $region82: #{tpu_custom_call.1} parent=55 // pred_fallthru
                _
            $region56: #{tpu_custom_call.1} parent=51 // pred_fallthru
              _
            // Predicated region
            $region57: #{tpu_custom_call.1} parent=51 // pred_check
              _
            $region58: #{tpu_custom_call.1} parent=51 // pred_check_branch
              %352 = sbr.rel target = $region60
            $region59: #{tpu_custom_call.1} parent=51 // pred_region
              loop: start=0, step=1, limit=1
              $region61: #{tpu_custom_call.1} parent=59 // loop_pre_header
                _
              $region62: #{tpu_custom_call.1} parent=59 // loop_header
                %s355 = sphi 0, %s359
                %p356 = scmp.ge.s32.totalorder %s355, 1
                %s360 = sphi %s346, %s346
                %s361 = sphi %s343, %s343
              $region63: #{tpu_custom_call.1} parent=59 // loop_header_branch
                %358 = sbr.rel (%p356) target = $region67
              $region64: #{tpu_custom_call.1} parent=59 // loop_body
                %v362 = vld [vmem:[%s360] sm:$0xff]
                %363 = vst [vmem:[%s361] sm:$0xff] %v362
                %v364 = vld [vmem:[%s360 + $0x8] sm:$0xff]
                %365 = vst [vmem:[%s361 + $0x8] sm:$0xff] %v364
                %v366 = vld [vmem:[%s360 + $0x10] sm:$0xff]
                %367 = vst [vmem:[%s361 + $0x10] sm:$0xff] %v366
                %v368 = vld [vmem:[%s360 + $0x18] sm:$0xff]
                %369 = vst [vmem:[%s361 + $0x18] sm:$0xff] %v368
                %v370 = vld [vmem:[%s360 + $0x20] sm:$0xff]
                %371 = vst [vmem:[%s361 + $0x20] sm:$0xff] %v370
                %v372 = vld [vmem:[%s360 + $0x28] sm:$0xff]
                %373 = vst [vmem:[%s361 + $0x28] sm:$0xff] %v372
                %v374 = vld [vmem:[%s360 + $0x30] sm:$0xff]
                %375 = vst [vmem:[%s361 + $0x30] sm:$0xff] %v374
                %v376 = vld [vmem:[%s360 + $0x38] sm:$0xff]
                %377 = vst [vmem:[%s361 + $0x38] sm:$0xff] %v376
                %v378 = vld [vmem:[%s360 + $0x40] sm:$0xff]
                %379 = vst [vmem:[%s361 + $0x40] sm:$0xff] %v378
                %v380 = vld [vmem:[%s360 + $0x48] sm:$0xff]
                %381 = vst [vmem:[%s361 + $0x48] sm:$0xff] %v380
                %v382 = vld [vmem:[%s360 + $0x50] sm:$0xff]
                %383 = vst [vmem:[%s361 + $0x50] sm:$0xff] %v382
                %v384 = vld [vmem:[%s360 + $0x58] sm:$0xff]
                %385 = vst [vmem:[%s361 + $0x58] sm:$0xff] %v384
                %v386 = vld [vmem:[%s360 + $0x60] sm:$0xff]
                %387 = vst [vmem:[%s361 + $0x60] sm:$0xff] %v386
                %v388 = vld [vmem:[%s360 + $0x68] sm:$0xff]
                %389 = vst [vmem:[%s361 + $0x68] sm:$0xff] %v388
                %v390 = vld [vmem:[%s360 + $0x70] sm:$0xff]
                %391 = vst [vmem:[%s361 + $0x70] sm:$0xff] %v390
                %v392 = vld [vmem:[%s360 + $0x78] sm:$0xff]
                %393 = vst [vmem:[%s361 + $0x78] sm:$0xff] %v392
                %v394 = vld [vmem:[%s360 + $0x80] sm:$0xff]
                %395 = vst [vmem:[%s361 + $0x80] sm:$0xff] %v394
                %v396 = vld [vmem:[%s360 + $0x88] sm:$0xff]
                %397 = vst [vmem:[%s361 + $0x88] sm:$0xff] %v396
                %v398 = vld [vmem:[%s360 + $0x90] sm:$0xff]
                %399 = vst [vmem:[%s361 + $0x90] sm:$0xff] %v398
                %v400 = vld [vmem:[%s360 + $0x98] sm:$0xff]
                %401 = vst [vmem:[%s361 + $0x98] sm:$0xff] %v400
                %v402 = vld [vmem:[%s360 + $0xa0] sm:$0xff]
                %403 = vst [vmem:[%s361 + $0xa0] sm:$0xff] %v402
                %v404 = vld [vmem:[%s360 + $0xa8] sm:$0xff]
                %405 = vst [vmem:[%s361 + $0xa8] sm:$0xff] %v404
                %v406 = vld [vmem:[%s360 + $0xb0] sm:$0xff]
                %407 = vst [vmem:[%s361 + $0xb0] sm:$0xff] %v406
                %v408 = vld [vmem:[%s360 + $0xb8] sm:$0xff]
                %409 = vst [vmem:[%s361 + $0xb8] sm:$0xff] %v408
                %v410 = vld [vmem:[%s360 + $0xc0] sm:$0xff]
                %411 = vst [vmem:[%s361 + $0xc0] sm:$0xff] %v410
                %v412 = vld [vmem:[%s360 + $0xc8] sm:$0xff]
                %413 = vst [vmem:[%s361 + $0xc8] sm:$0xff] %v412
                %v414 = vld [vmem:[%s360 + $0xd0] sm:$0xff]
                %415 = vst [vmem:[%s361 + $0xd0] sm:$0xff] %v414
                %v416 = vld [vmem:[%s360 + $0xd8] sm:$0xff]
                %417 = vst [vmem:[%s361 + $0xd8] sm:$0xff] %v416
                %v418 = vld [vmem:[%s360 + $0xe0] sm:$0xff]
                %419 = vst [vmem:[%s361 + $0xe0] sm:$0xff] %v418
                %v420 = vld [vmem:[%s360 + $0xe8] sm:$0xff]
                %421 = vst [vmem:[%s361 + $0xe8] sm:$0xff] %v420
                %v422 = vld [vmem:[%s360 + $0xf0] sm:$0xff]
                %423 = vst [vmem:[%s361 + $0xf0] sm:$0xff] %v422
                %v424 = vld [vmem:[%s360 + $0xf8] sm:$0xff]
                %425 = vst [vmem:[%s361 + $0xf8] sm:$0xff] %v424
                %v426 = vld [vmem:[%s360 + $0x200] sm:$0xff]
                %427 = vst [vmem:[%s361 + $0x100] sm:$0xff] %v426
                %v428 = vld [vmem:[%s360 + $0x208] sm:$0xff]
                %429 = vst [vmem:[%s361 + $0x108] sm:$0xff] %v428
                %v430 = vld [vmem:[%s360 + $0x210] sm:$0xff]
                %431 = vst [vmem:[%s361 + $0x110] sm:$0xff] %v430
                %v432 = vld [vmem:[%s360 + $0x218] sm:$0xff]
                %433 = vst [vmem:[%s361 + $0x118] sm:$0xff] %v432
                %v434 = vld [vmem:[%s360 + $0x220] sm:$0xff]
                %435 = vst [vmem:[%s361 + $0x120] sm:$0xff] %v434
                %v436 = vld [vmem:[%s360 + $0x228] sm:$0xff]
                %437 = vst [vmem:[%s361 + $0x128] sm:$0xff] %v436
                %v438 = vld [vmem:[%s360 + $0x230] sm:$0xff]
                %439 = vst [vmem:[%s361 + $0x130] sm:$0xff] %v438
                %v440 = vld [vmem:[%s360 + $0x238] sm:$0xff]
                %441 = vst [vmem:[%s361 + $0x138] sm:$0xff] %v440
                %v442 = vld [vmem:[%s360 + $0x240] sm:$0xff]
                %443 = vst [vmem:[%s361 + $0x140] sm:$0xff] %v442
                %v444 = vld [vmem:[%s360 + $0x248] sm:$0xff]
                %445 = vst [vmem:[%s361 + $0x148] sm:$0xff] %v444
                %v446 = vld [vmem:[%s360 + $0x250] sm:$0xff]
                %447 = vst [vmem:[%s361 + $0x150] sm:$0xff] %v446
                %v448 = vld [vmem:[%s360 + $0x258] sm:$0xff]
                %449 = vst [vmem:[%s361 + $0x158] sm:$0xff] %v448
                %v450 = vld [vmem:[%s360 + $0x260] sm:$0xff]
                %451 = vst [vmem:[%s361 + $0x160] sm:$0xff] %v450
                %v452 = vld [vmem:[%s360 + $0x268] sm:$0xff]
                %453 = vst [vmem:[%s361 + $0x168] sm:$0xff] %v452
                %v454 = vld [vmem:[%s360 + $0x270] sm:$0xff]
                %455 = vst [vmem:[%s361 + $0x170] sm:$0xff] %v454
                %v456 = vld [vmem:[%s360 + $0x278] sm:$0xff]
                %457 = vst [vmem:[%s361 + $0x178] sm:$0xff] %v456
                %v458 = vld [vmem:[%s360 + $0x280] sm:$0xff]
                %459 = vst [vmem:[%s361 + $0x180] sm:$0xff] %v458
                %v460 = vld [vmem:[%s360 + $0x288] sm:$0xff]
                %461 = vst [vmem:[%s361 + $0x188] sm:$0xff] %v460
                %v462 = vld [vmem:[%s360 + $0x290] sm:$0xff]
                %463 = vst [vmem:[%s361 + $0x190] sm:$0xff] %v462
                %v464 = vld [vmem:[%s360 + $0x298] sm:$0xff]
                %465 = vst [vmem:[%s361 + $0x198] sm:$0xff] %v464
                %v466 = vld [vmem:[%s360 + $0x2a0] sm:$0xff]
                %467 = vst [vmem:[%s361 + $0x1a0] sm:$0xff] %v466
                %v468 = vld [vmem:[%s360 + $0x2a8] sm:$0xff]
                %469 = vst [vmem:[%s361 + $0x1a8] sm:$0xff] %v468
                %v470 = vld [vmem:[%s360 + $0x2b0] sm:$0xff]
                %471 = vst [vmem:[%s361 + $0x1b0] sm:$0xff] %v470
                %v472 = vld [vmem:[%s360 + $0x2b8] sm:$0xff]
                %473 = vst [vmem:[%s361 + $0x1b8] sm:$0xff] %v472
                %v474 = vld [vmem:[%s360 + $0x2c0] sm:$0xff]
                %475 = vst [vmem:[%s361 + $0x1c0] sm:$0xff] %v474
                %v476 = vld [vmem:[%s360 + $0x2c8] sm:$0xff]
                %477 = vst [vmem:[%s361 + $0x1c8] sm:$0xff] %v476
                %v478 = vld [vmem:[%s360 + $0x2d0] sm:$0xff]
                %479 = vst [vmem:[%s361 + $0x1d0] sm:$0xff] %v478
                %v480 = vld [vmem:[%s360 + $0x2d8] sm:$0xff]
                %481 = vst [vmem:[%s361 + $0x1d8] sm:$0xff] %v480
                %v482 = vld [vmem:[%s360 + $0x2e0] sm:$0xff]
                %483 = vst [vmem:[%s361 + $0x1e0] sm:$0xff] %v482
                %v484 = vld [vmem:[%s360 + $0x2e8] sm:$0xff]
                %485 = vst [vmem:[%s361 + $0x1e8] sm:$0xff] %v484
                %v486 = vld [vmem:[%s360 + $0x2f0] sm:$0xff]
                %487 = vst [vmem:[%s361 + $0x1f0] sm:$0xff] %v486
                %v488 = vld [vmem:[%s360 + $0x2f8] sm:$0xff]
                %489 = vst [vmem:[%s361 + $0x1f8] sm:$0xff] %v488
                %v490 = vld [vmem:[%s360 + $0x400] sm:$0xff]
                %491 = vst [vmem:[%s361 + $0x200] sm:$0xff] %v490
                %v492 = vld [vmem:[%s360 + $0x408] sm:$0xff]
                %493 = vst [vmem:[%s361 + $0x208] sm:$0xff] %v492
                %v494 = vld [vmem:[%s360 + $0x410] sm:$0xff]
                %495 = vst [vmem:[%s361 + $0x210] sm:$0xff] %v494
                %v496 = vld [vmem:[%s360 + $0x418] sm:$0xff]
                %497 = vst [vmem:[%s361 + $0x218] sm:$0xff] %v496
                %v498 = vld [vmem:[%s360 + $0x420] sm:$0xff]
                %499 = vst [vmem:[%s361 + $0x220] sm:$0xff] %v498
                %v500 = vld [vmem:[%s360 + $0x428] sm:$0xff]
                %501 = vst [vmem:[%s361 + $0x228] sm:$0xff] %v500
                %v502 = vld [vmem:[%s360 + $0x430] sm:$0xff]
                %503 = vst [vmem:[%s361 + $0x230] sm:$0xff] %v502
                %v504 = vld [vmem:[%s360 + $0x438] sm:$0xff]
                %505 = vst [vmem:[%s361 + $0x238] sm:$0xff] %v504
                %v506 = vld [vmem:[%s360 + $0x440] sm:$0xff]
                %507 = vst [vmem:[%s361 + $0x240] sm:$0xff] %v506
                %v508 = vld [vmem:[%s360 + $0x448] sm:$0xff]
                %509 = vst [vmem:[%s361 + $0x248] sm:$0xff] %v508
                %v510 = vld [vmem:[%s360 + $0x450] sm:$0xff]
                %511 = vst [vmem:[%s361 + $0x250] sm:$0xff] %v510
                %v512 = vld [vmem:[%s360 + $0x458] sm:$0xff]
                %513 = vst [vmem:[%s361 + $0x258] sm:$0xff] %v512
                %v514 = vld [vmem:[%s360 + $0x460] sm:$0xff]
                %515 = vst [vmem:[%s361 + $0x260] sm:$0xff] %v514
                %v516 = vld [vmem:[%s360 + $0x468] sm:$0xff]
                %517 = vst [vmem:[%s361 + $0x268] sm:$0xff] %v516
                %v518 = vld [vmem:[%s360 + $0x470] sm:$0xff]
                %519 = vst [vmem:[%s361 + $0x270] sm:$0xff] %v518
                %v520 = vld [vmem:[%s360 + $0x478] sm:$0xff]
                %521 = vst [vmem:[%s361 + $0x278] sm:$0xff] %v520
                %v522 = vld [vmem:[%s360 + $0x480] sm:$0xff]
                %523 = vst [vmem:[%s361 + $0x280] sm:$0xff] %v522
                %v524 = vld [vmem:[%s360 + $0x488] sm:$0xff]
                %525 = vst [vmem:[%s361 + $0x288] sm:$0xff] %v524
                %v526 = vld [vmem:[%s360 + $0x490] sm:$0xff]
                %527 = vst [vmem:[%s361 + $0x290] sm:$0xff] %v526
                %v528 = vld [vmem:[%s360 + $0x498] sm:$0xff]
                %529 = vst [vmem:[%s361 + $0x298] sm:$0xff] %v528
                %v530 = vld [vmem:[%s360 + $0x4a0] sm:$0xff]
                %531 = vst [vmem:[%s361 + $0x2a0] sm:$0xff] %v530
                %v532 = vld [vmem:[%s360 + $0x4a8] sm:$0xff]
                %533 = vst [vmem:[%s361 + $0x2a8] sm:$0xff] %v532
                %v534 = vld [vmem:[%s360 + $0x4b0] sm:$0xff]
                %535 = vst [vmem:[%s361 + $0x2b0] sm:$0xff] %v534
                %v536 = vld [vmem:[%s360 + $0x4b8] sm:$0xff]
                %537 = vst [vmem:[%s361 + $0x2b8] sm:$0xff] %v536
                %v538 = vld [vmem:[%s360 + $0x4c0] sm:$0xff]
                %539 = vst [vmem:[%s361 + $0x2c0] sm:$0xff] %v538
                %v540 = vld [vmem:[%s360 + $0x4c8] sm:$0xff]
                %541 = vst [vmem:[%s361 + $0x2c8] sm:$0xff] %v540
                %v542 = vld [vmem:[%s360 + $0x4d0] sm:$0xff]
                %543 = vst [vmem:[%s361 + $0x2d0] sm:$0xff] %v542
                %v544 = vld [vmem:[%s360 + $0x4d8] sm:$0xff]
                %545 = vst [vmem:[%s361 + $0x2d8] sm:$0xff] %v544
                %v546 = vld [vmem:[%s360 + $0x4e0] sm:$0xff]
                %547 = vst [vmem:[%s361 + $0x2e0] sm:$0xff] %v546
                %v548 = vld [vmem:[%s360 + $0x4e8] sm:$0xff]
                %549 = vst [vmem:[%s361 + $0x2e8] sm:$0xff] %v548
                %v550 = vld [vmem:[%s360 + $0x4f0] sm:$0xff]
                %551 = vst [vmem:[%s361 + $0x2f0] sm:$0xff] %v550
                %v552 = vld [vmem:[%s360 + $0x4f8] sm:$0xff]
                %553 = vst [vmem:[%s361 + $0x2f8] sm:$0xff] %v552
              $region65: #{tpu_custom_call.1} parent=59 // loop_footer
                %s359 = sadd.s32 1, %s355
              $region66: #{tpu_custom_call.1} parent=59 // loop_footer_branch
                %354 = sbr.rel target = $region62
              $region67: #{tpu_custom_call.1} parent=59 // loop_exit
                _
            $region60: #{tpu_custom_call.1} parent=51 // pred_fallthru
              _
          $region52: #{tpu_custom_call.1} parent=47 // pred_fallthru
            _
          %758 = vnop
        $region48: #{tpu_custom_call.1} parent=43 // pred_fallthru
          _
        // Predicated region
        $region83: #{tpu_custom_call.1} parent=43 // pred_check
          %p759 = pneg %p66
        $region84: #{tpu_custom_call.1} parent=43 // pred_check_branch
          %761 = sbr.rel (%p759) target = $region86
        $region85: #{tpu_custom_call.1} parent=43 // pred_region
          %s762 = smul.u32 32, %s20
          %p763 = scmp.lt.s32.totalorder %s762, 63
          %s764 = scalar_select %p763, %s762, 63
          %s765 = smul.addr %s764, 8
          %s766 = scalar_lea.vmem %s1, %s765
          %s767 = smul.u32 32, %s20
        $region86: #{tpu_custom_call.1} parent=43 // pred_fallthru
          _
        // Predicated region
        $region87: #{tpu_custom_call.1} parent=43 // pred_check
          %p768 = pneg %p92
        $region88: #{tpu_custom_call.1} parent=43 // pred_check_branch
          %770 = sbr.rel (%p768) target = $region90
        $region89: #{tpu_custom_call.1} parent=43 // pred_region
          %s771 = smul.u32 32, %s20
          %p772 = scmp.lt.s32.totalorder %s771, 63
          %s773 = scalar_select %p772, %s771, 63
          %s774 = smul.addr %s773, 8
          %s775 = scalar_lea.vmem %s2, %s774
          %s776 = smul.u32 32, %s20
        $region90: #{tpu_custom_call.1} parent=43 // pred_fallthru
          _
        // Predicated region
        $region91: #{tpu_custom_call.1} parent=43 // pred_check
          %p777 = pneg %p118
        $region92: #{tpu_custom_call.1} parent=43 // pred_check_branch
          %779 = sbr.rel (%p777) target = $region94
        $region93: #{tpu_custom_call.1} parent=43 // pred_region
          %s780 = smul.u32 32, %s20
          %p781 = scmp.lt.s32.totalorder %s780, 63
          %s782 = scalar_select %p781, %s780, 63
          %s783 = smul.addr %s782, 4
          %s784 = scalar_lea.vmem %s3, %s783
          %s785 = smul.u32 32, %s20
        $region94: #{tpu_custom_call.1} parent=43 // pred_fallthru
          _
      $region44: #{tpu_custom_call.1} parent=5 // pred_fallthru
        _
      %p786 = scmp.le.s32.totalorder 1, %s20
      %p787 = scmp.lt.s32.totalorder %s20, 3
      %p788 = pnand %p786, %p787
      %p789 = pneg %p788
      // Predicated region
      $region95: #{tpu_custom_call.1} parent=5 // pred_check
        _
      $region96: #{tpu_custom_call.1} parent=5 // pred_check_branch
        %791 = sbr.rel (%p788) target = $region98
      $region97: #{tpu_custom_call.1} parent=5 // pred_region
        %s792 = ssub.s32 %s20, 1
        %s793 = sand.u32 %s33, 1
        %s794 = sand.u32 %s33, 1
        %s795 = smul.addr %s794, 768
        %s796 = scalar_lea.vmem [#allocation2], %s795
        // Predicated region
        $region99: #{tpu_custom_call.1} parent=97 // pred_check
          %p797 = pneg %p46
        $region100: #{tpu_custom_call.1} parent=97 // pred_check_branch
          %799 = sbr.rel (%p797) target = $region102
        $region101: #{tpu_custom_call.1} parent=97 // pred_region
          _
        $region102: #{tpu_custom_call.1} parent=97 // pred_fallthru
          _
        %s800 = sand.u32 %s33, 1
        %s801 = sand.u32 %s33, 1
        %s802 = smul.addr %s801, 768
        %s803 = scalar_lea.vmem [#allocation2], %s802
        %p804 = pneg %p46
        %p805 = pneg %p43
        %s806 = smul.u32 32, %s25
        %p807 = scmp.lt.s32.totalorder %s806, 63
        %s808 = scalar_select %p807, %s806, 63
        %s809 = smul.addr %s808, 8
        %s810 = scalar_lea.vmem %s1, %s809
        %p811 = pneg %p72
        %p812 = pneg %p69
        %s813 = smul.u32 32, %s25
        %p814 = scmp.lt.s32.totalorder %s813, 63
        %s815 = scalar_select %p814, %s813, 63
        %s816 = smul.addr %s815, 8
        %s817 = scalar_lea.vmem %s2, %s816
        %p818 = pneg %p98
        %p819 = pneg %p95
        %s820 = smul.u32 32, %s25
        %p821 = scmp.lt.s32.totalorder %s820, 63
        %s822 = scalar_select %p821, %s820, 63
        %s823 = smul.addr %s822, 4
        %s824 = scalar_lea.vmem %s3, %s823
        %p825 = pneg %p124
        %p826 = pneg %p121
        %p827 = pneg %p145
        %p828 = pneg %p142
        %p829 = pneg %p166
        %p830 = pneg %p163
        %p831 = pneg %p187
        %p832 = pneg %p184
        %p833 = pneg %p208
        %p834 = pneg %p205
        %p835 = pneg %p229
        %p836 = pneg %p226
        %p837 = pneg %p250
        %p838 = pneg %p247
        %p839 = pneg %p271
        %p840 = pneg %p268
        %p841 = pneg %p297
        %p842 = pneg %p294
        %s843 = sand.u32 %s284, 1
        %s844 = scalar_lea.sflag [#allocation4], %s843
        %s845 = sand.u32 %s284, 1
        %s846 = smul.addr %s845, 256
        %s847 = scalar_lea.vmem [#allocation3], %s846
        %s848 = smul.u32 32, %s25
        %s849 = smul.u32 32, %s25
        %p850 = scmp.lt.s32.totalorder %s849, 63
        %s851 = scalar_select %p850, %s849, 63
        %s852 = smul.addr %s851, 8
        %s853 = scalar_lea.vmem %s1, %s852
        %s854 = smul.u32 32, %s25
        %s855 = smul.u32 32, %s25
        %p856 = scmp.lt.s32.totalorder %s855, 63
        %s857 = scalar_select %p856, %s855, 63
        %s858 = smul.addr %s857, 8
        %s859 = scalar_lea.vmem %s2, %s858
        %s860 = smul.u32 32, %s25
        %s861 = smul.u32 32, %s25
        %p862 = scmp.lt.s32.totalorder %s861, 63
        %s863 = scalar_select %p862, %s861, 63
        %s864 = smul.addr %s863, 4
        %s865 = scalar_lea.vmem %s3, %s864
        %s866 = smul.u32 32, %s25
        %s867 = smul.u32 32, %s25
        %v868 = vld [vmem:[%s796] sm:$0xff]
        %v869 = vld [vmem:[%s796 + $0x8] sm:$0xff]
        %v870 = vld [vmem:[%s796 + $0x10] sm:$0xff]
        %v871 = vld [vmem:[%s796 + $0x18] sm:$0xff]
        %v872 = vld [vmem:[%s796 + $0x20] sm:$0xff]
        %v873 = vld [vmem:[%s796 + $0x28] sm:$0xff]
        %v874 = vld [vmem:[%s796 + $0x30] sm:$0xff]
        %v875 = vld [vmem:[%s796 + $0x38] sm:$0xff]
        %v876 = vld [vmem:[%s796 + $0x40] sm:$0xff]
        %v877 = vld [vmem:[%s796 + $0x48] sm:$0xff]
        %v878 = vld [vmem:[%s796 + $0x50] sm:$0xff]
        %v879 = vld [vmem:[%s796 + $0x58] sm:$0xff]
        %v880 = vld [vmem:[%s796 + $0x60] sm:$0xff]
        %v881 = vld [vmem:[%s796 + $0x68] sm:$0xff]
        %v882 = vld [vmem:[%s796 + $0x70] sm:$0xff]
        %v883 = vld [vmem:[%s796 + $0x78] sm:$0xff]
        %v884 = vld [vmem:[%s796 + $0x80] sm:$0xff]
        %v885 = vld [vmem:[%s796 + $0x88] sm:$0xff]
        %v886 = vld [vmem:[%s796 + $0x90] sm:$0xff]
        %v887 = vld [vmem:[%s796 + $0x98] sm:$0xff]
        %v888 = vld [vmem:[%s796 + $0xa0] sm:$0xff]
        %v889 = vld [vmem:[%s796 + $0xa8] sm:$0xff]
        %v890 = vld [vmem:[%s796 + $0xb0] sm:$0xff]
        %v891 = vld [vmem:[%s796 + $0xb8] sm:$0xff]
        %v892 = vld [vmem:[%s796 + $0xc0] sm:$0xff]
        %v893 = vld [vmem:[%s796 + $0xc8] sm:$0xff]
        %v894 = vld [vmem:[%s796 + $0xd0] sm:$0xff]
        %v895 = vld [vmem:[%s796 + $0xd8] sm:$0xff]
        %v896 = vld [vmem:[%s796 + $0xe0] sm:$0xff]
        %v897 = vld [vmem:[%s796 + $0xe8] sm:$0xff]
        %v898 = vld [vmem:[%s796 + $0xf0] sm:$0xff]
        %v899 = vld [vmem:[%s796 + $0xf8] sm:$0xff]
        %v900 = vld [vmem:[%s796 + $0x100] sm:$0xff]
        %v901 = vld [vmem:[%s796 + $0x108] sm:$0xff]
        %v902 = vld [vmem:[%s796 + $0x110] sm:$0xff]
        %v903 = vld [vmem:[%s796 + $0x118] sm:$0xff]
        %v904 = vld [vmem:[%s796 + $0x120] sm:$0xff]
        %v905 = vld [vmem:[%s796 + $0x128] sm:$0xff]
        %v906 = vld [vmem:[%s796 + $0x130] sm:$0xff]
        %v907 = vld [vmem:[%s796 + $0x138] sm:$0xff]
        %v908 = vld [vmem:[%s796 + $0x140] sm:$0xff]
        %v909 = vld [vmem:[%s796 + $0x148] sm:$0xff]
        %v910 = vld [vmem:[%s796 + $0x150] sm:$0xff]
        %v911 = vld [vmem:[%s796 + $0x158] sm:$0xff]
        %v912 = vld [vmem:[%s796 + $0x160] sm:$0xff]
        %v913 = vld [vmem:[%s796 + $0x168] sm:$0xff]
        %v914 = vld [vmem:[%s796 + $0x170] sm:$0xff]
        %v915 = vld [vmem:[%s796 + $0x178] sm:$0xff]
        %v916 = vld [vmem:[%s796 + $0x180] sm:$0xff]
        %v917 = vld [vmem:[%s796 + $0x188] sm:$0xff]
        %v918 = vld [vmem:[%s796 + $0x190] sm:$0xff]
        %v919 = vld [vmem:[%s796 + $0x198] sm:$0xff]
        %v920 = vld [vmem:[%s796 + $0x1a0] sm:$0xff]
        %v921 = vld [vmem:[%s796 + $0x1a8] sm:$0xff]
        %v922 = vld [vmem:[%s796 + $0x1b0] sm:$0xff]
        %v923 = vld [vmem:[%s796 + $0x1b8] sm:$0xff]
        %v924 = vld [vmem:[%s796 + $0x1c0] sm:$0xff]
        %v925 = vld [vmem:[%s796 + $0x1c8] sm:$0xff]
        %v926 = vld [vmem:[%s796 + $0x1d0] sm:$0xff]
        %v927 = vld [vmem:[%s796 + $0x1d8] sm:$0xff]
        %v928 = vld [vmem:[%s796 + $0x1e0] sm:$0xff]
        %v929 = vld [vmem:[%s796 + $0x1e8] sm:$0xff]
        %v930 = vld [vmem:[%s796 + $0x1f0] sm:$0xff]
        %v931 = vld [vmem:[%s796 + $0x1f8] sm:$0xff]
        %v932 = vld [vmem:[%s796 + $0x200] sm:$0xff]
        %v933 = vld [vmem:[%s796 + $0x208] sm:$0xff]
        %v934 = vld [vmem:[%s796 + $0x210] sm:$0xff]
        %v935 = vld [vmem:[%s796 + $0x218] sm:$0xff]
        %v936 = vld [vmem:[%s796 + $0x220] sm:$0xff]
        %v937 = vld [vmem:[%s796 + $0x228] sm:$0xff]
        %v938 = vld [vmem:[%s796 + $0x230] sm:$0xff]
        %v939 = vld [vmem:[%s796 + $0x238] sm:$0xff]
        %v940 = vld [vmem:[%s796 + $0x240] sm:$0xff]
        %v941 = vld [vmem:[%s796 + $0x248] sm:$0xff]
        %v942 = vld [vmem:[%s796 + $0x250] sm:$0xff]
        %v943 = vld [vmem:[%s796 + $0x258] sm:$0xff]
        %v944 = vld [vmem:[%s796 + $0x260] sm:$0xff]
        %v945 = vld [vmem:[%s796 + $0x268] sm:$0xff]
        %v946 = vld [vmem:[%s796 + $0x270] sm:$0xff]
        %v947 = vld [vmem:[%s796 + $0x278] sm:$0xff]
        %v948 = vld [vmem:[%s796 + $0x280] sm:$0xff]
        %v949 = vld [vmem:[%s796 + $0x288] sm:$0xff]
        %v950 = vld [vmem:[%s796 + $0x290] sm:$0xff]
        %v951 = vld [vmem:[%s796 + $0x298] sm:$0xff]
        %v952 = vld [vmem:[%s796 + $0x2a0] sm:$0xff]
        %v953 = vld [vmem:[%s796 + $0x2a8] sm:$0xff]
        %v954 = vld [vmem:[%s796 + $0x2b0] sm:$0xff]
        %v955 = vld [vmem:[%s796 + $0x2b8] sm:$0xff]
        %v956 = vld [vmem:[%s796 + $0x2c0] sm:$0xff]
        %v957 = vld [vmem:[%s796 + $0x2c8] sm:$0xff]
        %v958 = vld [vmem:[%s796 + $0x2d0] sm:$0xff]
        %v959 = vld [vmem:[%s796 + $0x2d8] sm:$0xff]
        %v960 = vld [vmem:[%s796 + $0x2e0] sm:$0xff]
        %v961 = vld [vmem:[%s796 + $0x2e8] sm:$0xff]
        %v962 = vld [vmem:[%s796 + $0x2f0] sm:$0xff]
        %v963 = vld [vmem:[%s796 + $0x2f8] sm:$0xff]
        %v964 = vld [vmem:[%s4] sm:$0x7]
        %966 = vset.pattern.permute.xlu0 0
        %967 = vperm.xlu0 %966, %v868
        %v968 = vpop.permute.xlu0 %967
        %971 = vset.pattern.permute.xlu0 0
        %972 = vperm.xlu0 %971, %v869
        %v973 = vpop.permute.xlu0 %972
        %976 = vset.pattern.permute.xlu0 0
        %977 = vperm.xlu0 %976, %v870
        %v978 = vpop.permute.xlu0 %977
        %981 = vset.pattern.permute.xlu0 0
        %982 = vperm.xlu0 %981, %v871
        %v983 = vpop.permute.xlu0 %982
        %986 = vset.pattern.permute.xlu0 0
        %987 = vperm.xlu0 %986, %v872
        %v988 = vpop.permute.xlu0 %987
        %991 = vset.pattern.permute.xlu0 0
        %992 = vperm.xlu0 %991, %v873
        %v993 = vpop.permute.xlu0 %992
        %996 = vset.pattern.permute.xlu0 0
        %997 = vperm.xlu0 %996, %v874
        %v998 = vpop.permute.xlu0 %997
        %1001 = vset.pattern.permute.xlu0 0
        %1002 = vperm.xlu0 %1001, %v875
        %v1003 = vpop.permute.xlu0 %1002
        %1006 = vset.pattern.permute.xlu0 0
        %1007 = vperm.xlu0 %1006, %v876
        %v1008 = vpop.permute.xlu0 %1007
        %1011 = vset.pattern.permute.xlu0 0
        %1012 = vperm.xlu0 %1011, %v877
        %v1013 = vpop.permute.xlu0 %1012
        %1016 = vset.pattern.permute.xlu0 0
        %1017 = vperm.xlu0 %1016, %v878
        %v1018 = vpop.permute.xlu0 %1017
        %1021 = vset.pattern.permute.xlu0 0
        %1022 = vperm.xlu0 %1021, %v879
        %v1023 = vpop.permute.xlu0 %1022
        %1026 = vset.pattern.permute.xlu0 0
        %1027 = vperm.xlu0 %1026, %v880
        %v1028 = vpop.permute.xlu0 %1027
        %1031 = vset.pattern.permute.xlu0 0
        %1032 = vperm.xlu0 %1031, %v881
        %v1033 = vpop.permute.xlu0 %1032
        %1036 = vset.pattern.permute.xlu0 0
        %1037 = vperm.xlu0 %1036, %v882
        %v1038 = vpop.permute.xlu0 %1037
        %1041 = vset.pattern.permute.xlu0 0
        %1042 = vperm.xlu0 %1041, %v883
        %v1043 = vpop.permute.xlu0 %1042
        %1046 = vset.pattern.permute.xlu0 0
        %1047 = vperm.xlu0 %1046, %v884
        %v1048 = vpop.permute.xlu0 %1047
        %1051 = vset.pattern.permute.xlu0 0
        %1052 = vperm.xlu0 %1051, %v885
        %v1053 = vpop.permute.xlu0 %1052
        %1056 = vset.pattern.permute.xlu0 0
        %1057 = vperm.xlu0 %1056, %v886
        %v1058 = vpop.permute.xlu0 %1057
        %1061 = vset.pattern.permute.xlu0 0
        %1062 = vperm.xlu0 %1061, %v887
        %v1063 = vpop.permute.xlu0 %1062
        %1066 = vset.pattern.permute.xlu0 0
        %1067 = vperm.xlu0 %1066, %v888
        %v1068 = vpop.permute.xlu0 %1067
        %1071 = vset.pattern.permute.xlu0 0
        %1072 = vperm.xlu0 %1071, %v889
        %v1073 = vpop.permute.xlu0 %1072
        %1076 = vset.pattern.permute.xlu0 0
        %1077 = vperm.xlu0 %1076, %v890
        %v1078 = vpop.permute.xlu0 %1077
        %1081 = vset.pattern.permute.xlu0 0
        %1082 = vperm.xlu0 %1081, %v891
        %v1083 = vpop.permute.xlu0 %1082
        %1086 = vset.pattern.permute.xlu0 0
        %1087 = vperm.xlu0 %1086, %v892
        %v1088 = vpop.permute.xlu0 %1087
        %1091 = vset.pattern.permute.xlu0 0
        %1092 = vperm.xlu0 %1091, %v893
        %v1093 = vpop.permute.xlu0 %1092
        %1096 = vset.pattern.permute.xlu0 0
        %1097 = vperm.xlu0 %1096, %v894
        %v1098 = vpop.permute.xlu0 %1097
        %1101 = vset.pattern.permute.xlu0 0
        %1102 = vperm.xlu0 %1101, %v895
        %v1103 = vpop.permute.xlu0 %1102
        %1106 = vset.pattern.permute.xlu0 0
        %1107 = vperm.xlu0 %1106, %v896
        %v1108 = vpop.permute.xlu0 %1107
        %1111 = vset.pattern.permute.xlu0 0
        %1112 = vperm.xlu0 %1111, %v897
        %v1113 = vpop.permute.xlu0 %1112
        %1116 = vset.pattern.permute.xlu0 0
        %1117 = vperm.xlu0 %1116, %v898
        %v1118 = vpop.permute.xlu0 %1117
        %1121 = vset.pattern.permute.xlu0 0
        %1122 = vperm.xlu0 %1121, %v899
        %v1123 = vpop.permute.xlu0 %1122
        %1126 = vset.pattern.permute.xlu0 0
        %1127 = vperm.xlu0 %1126, %v900
        %v1128 = vpop.permute.xlu0 %1127
        %1131 = vset.pattern.permute.xlu0 0
        %1132 = vperm.xlu0 %1131, %v901
        %v1133 = vpop.permute.xlu0 %1132
        %1136 = vset.pattern.permute.xlu0 0
        %1137 = vperm.xlu0 %1136, %v902
        %v1138 = vpop.permute.xlu0 %1137
        %1141 = vset.pattern.permute.xlu0 0
        %1142 = vperm.xlu0 %1141, %v903
        %v1143 = vpop.permute.xlu0 %1142
        %1146 = vset.pattern.permute.xlu0 0
        %1147 = vperm.xlu0 %1146, %v904
        %v1148 = vpop.permute.xlu0 %1147
        %1151 = vset.pattern.permute.xlu0 0
        %1152 = vperm.xlu0 %1151, %v905
        %v1153 = vpop.permute.xlu0 %1152
        %1156 = vset.pattern.permute.xlu0 0
        %1157 = vperm.xlu0 %1156, %v906
        %v1158 = vpop.permute.xlu0 %1157
        %1161 = vset.pattern.permute.xlu0 0
        %1162 = vperm.xlu0 %1161, %v907
        %v1163 = vpop.permute.xlu0 %1162
        %1166 = vset.pattern.permute.xlu0 0
        %1167 = vperm.xlu0 %1166, %v908
        %v1168 = vpop.permute.xlu0 %1167
        %1171 = vset.pattern.permute.xlu0 0
        %1172 = vperm.xlu0 %1171, %v909
        %v1173 = vpop.permute.xlu0 %1172
        %1176 = vset.pattern.permute.xlu0 0
        %1177 = vperm.xlu0 %1176, %v910
        %v1178 = vpop.permute.xlu0 %1177
        %1181 = vset.pattern.permute.xlu0 0
        %1182 = vperm.xlu0 %1181, %v911
        %v1183 = vpop.permute.xlu0 %1182
        %1186 = vset.pattern.permute.xlu0 0
        %1187 = vperm.xlu0 %1186, %v912
        %v1188 = vpop.permute.xlu0 %1187
        %1191 = vset.pattern.permute.xlu0 0
        %1192 = vperm.xlu0 %1191, %v913
        %v1193 = vpop.permute.xlu0 %1192
        %1196 = vset.pattern.permute.xlu0 0
        %1197 = vperm.xlu0 %1196, %v914
        %v1198 = vpop.permute.xlu0 %1197
        %1201 = vset.pattern.permute.xlu0 0
        %1202 = vperm.xlu0 %1201, %v915
        %v1203 = vpop.permute.xlu0 %1202
        %1206 = vset.pattern.permute.xlu0 0
        %1207 = vperm.xlu0 %1206, %v916
        %v1208 = vpop.permute.xlu0 %1207
        %1211 = vset.pattern.permute.xlu0 0
        %1212 = vperm.xlu0 %1211, %v917
        %v1213 = vpop.permute.xlu0 %1212
        %1216 = vset.pattern.permute.xlu0 0
        %1217 = vperm.xlu0 %1216, %v918
        %v1218 = vpop.permute.xlu0 %1217
        %1221 = vset.pattern.permute.xlu0 0
        %1222 = vperm.xlu0 %1221, %v919
        %v1223 = vpop.permute.xlu0 %1222
        %1226 = vset.pattern.permute.xlu0 0
        %1227 = vperm.xlu0 %1226, %v920
        %v1228 = vpop.permute.xlu0 %1227
        %1231 = vset.pattern.permute.xlu0 0
        %1232 = vperm.xlu0 %1231, %v921
        %v1233 = vpop.permute.xlu0 %1232
        %1236 = vset.pattern.permute.xlu0 0
        %1237 = vperm.xlu0 %1236, %v922
        %v1238 = vpop.permute.xlu0 %1237
        %1241 = vset.pattern.permute.xlu0 0
        %1242 = vperm.xlu0 %1241, %v923
        %v1243 = vpop.permute.xlu0 %1242
        %1246 = vset.pattern.permute.xlu0 0
        %1247 = vperm.xlu0 %1246, %v924
        %v1248 = vpop.permute.xlu0 %1247
        %1251 = vset.pattern.permute.xlu0 0
        %1252 = vperm.xlu0 %1251, %v925
        %v1253 = vpop.permute.xlu0 %1252
        %1256 = vset.pattern.permute.xlu0 0
        %1257 = vperm.xlu0 %1256, %v926
        %v1258 = vpop.permute.xlu0 %1257
        %1261 = vset.pattern.permute.xlu0 0
        %1262 = vperm.xlu0 %1261, %v927
        %v1263 = vpop.permute.xlu0 %1262
        %1266 = vset.pattern.permute.xlu0 0
        %1267 = vperm.xlu0 %1266, %v928
        %v1268 = vpop.permute.xlu0 %1267
        %1271 = vset.pattern.permute.xlu0 0
        %1272 = vperm.xlu0 %1271, %v929
        %v1273 = vpop.permute.xlu0 %1272
        %1276 = vset.pattern.permute.xlu0 0
        %1277 = vperm.xlu0 %1276, %v930
        %v1278 = vpop.permute.xlu0 %1277
        %1281 = vset.pattern.permute.xlu0 0
        %1282 = vperm.xlu0 %1281, %v931
        %v1283 = vpop.permute.xlu0 %1282
        %1286 = vset.pattern.permute.xlu0 0
        %1287 = vperm.xlu0 %1286, %v932
        %v1288 = vpop.permute.xlu0 %1287
        %1291 = vset.pattern.permute.xlu0 0
        %1292 = vperm.xlu0 %1291, %v933
        %v1293 = vpop.permute.xlu0 %1292
        %1296 = vset.pattern.permute.xlu0 0
        %1297 = vperm.xlu0 %1296, %v934
        %v1298 = vpop.permute.xlu0 %1297
        %1301 = vset.pattern.permute.xlu0 0
        %1302 = vperm.xlu0 %1301, %v935
        %v1303 = vpop.permute.xlu0 %1302
        %1306 = vset.pattern.permute.xlu0 0
        %1307 = vperm.xlu0 %1306, %v936
        %v1308 = vpop.permute.xlu0 %1307
        %1311 = vset.pattern.permute.xlu0 0
        %1312 = vperm.xlu0 %1311, %v937
        %v1313 = vpop.permute.xlu0 %1312
        %1316 = vset.pattern.permute.xlu0 0
        %1317 = vperm.xlu0 %1316, %v938
        %v1318 = vpop.permute.xlu0 %1317
        %1321 = vset.pattern.permute.xlu0 0
        %1322 = vperm.xlu0 %1321, %v939
        %v1323 = vpop.permute.xlu0 %1322
        %1326 = vset.pattern.permute.xlu0 0
        %1327 = vperm.xlu0 %1326, %v940
        %v1328 = vpop.permute.xlu0 %1327
        %1331 = vset.pattern.permute.xlu0 0
        %1332 = vperm.xlu0 %1331, %v941
        %v1333 = vpop.permute.xlu0 %1332
        %1336 = vset.pattern.permute.xlu0 0
        %1337 = vperm.xlu0 %1336, %v942
        %v1338 = vpop.permute.xlu0 %1337
        %1341 = vset.pattern.permute.xlu0 0
        %1342 = vperm.xlu0 %1341, %v943
        %v1343 = vpop.permute.xlu0 %1342
        %1346 = vset.pattern.permute.xlu0 0
        %1347 = vperm.xlu0 %1346, %v944
        %v1348 = vpop.permute.xlu0 %1347
        %1351 = vset.pattern.permute.xlu0 0
        %1352 = vperm.xlu0 %1351, %v945
        %v1353 = vpop.permute.xlu0 %1352
        %1356 = vset.pattern.permute.xlu0 0
        %1357 = vperm.xlu0 %1356, %v946
        %v1358 = vpop.permute.xlu0 %1357
        %1361 = vset.pattern.permute.xlu0 0
        %1362 = vperm.xlu0 %1361, %v947
        %v1363 = vpop.permute.xlu0 %1362
        %1366 = vset.pattern.permute.xlu0 0
        %1367 = vperm.xlu0 %1366, %v948
        %v1368 = vpop.permute.xlu0 %1367
        %1371 = vset.pattern.permute.xlu0 0
        %1372 = vperm.xlu0 %1371, %v949
        %v1373 = vpop.permute.xlu0 %1372
        %1376 = vset.pattern.permute.xlu0 0
        %1377 = vperm.xlu0 %1376, %v950
        %v1378 = vpop.permute.xlu0 %1377
        %1381 = vset.pattern.permute.xlu0 0
        %1382 = vperm.xlu0 %1381, %v951
        %v1383 = vpop.permute.xlu0 %1382
        %1386 = vset.pattern.permute.xlu0 0
        %1387 = vperm.xlu0 %1386, %v952
        %v1388 = vpop.permute.xlu0 %1387
        %1391 = vset.pattern.permute.xlu0 0
        %1392 = vperm.xlu0 %1391, %v953
        %v1393 = vpop.permute.xlu0 %1392
        %1396 = vset.pattern.permute.xlu0 0
        %1397 = vperm.xlu0 %1396, %v954
        %v1398 = vpop.permute.xlu0 %1397
        %1401 = vset.pattern.permute.xlu0 0
        %1402 = vperm.xlu0 %1401, %v955
        %v1403 = vpop.permute.xlu0 %1402
        %1406 = vset.pattern.permute.xlu0 0
        %1407 = vperm.xlu0 %1406, %v956
        %v1408 = vpop.permute.xlu0 %1407
        %1411 = vset.pattern.permute.xlu0 0
        %1412 = vperm.xlu0 %1411, %v957
        %v1413 = vpop.permute.xlu0 %1412
        %1416 = vset.pattern.permute.xlu0 0
        %1417 = vperm.xlu0 %1416, %v958
        %v1418 = vpop.permute.xlu0 %1417
        %1421 = vset.pattern.permute.xlu0 0
        %1422 = vperm.xlu0 %1421, %v959
        %v1423 = vpop.permute.xlu0 %1422
        %1426 = vset.pattern.permute.xlu0 0
        %1427 = vperm.xlu0 %1426, %v960
        %v1428 = vpop.permute.xlu0 %1427
        %1431 = vset.pattern.permute.xlu0 0
        %1432 = vperm.xlu0 %1431, %v961
        %v1433 = vpop.permute.xlu0 %1432
        %1436 = vset.pattern.permute.xlu0 0
        %1437 = vperm.xlu0 %1436, %v962
        %v1438 = vpop.permute.xlu0 %1437
        %1441 = vset.pattern.permute.xlu0 0
        %1442 = vperm.xlu0 %1441, %v963
        %v1443 = vpop.permute.xlu0 %1442
        %v1445 = vlaneseq
        %v1446 = vshrl.u32 %v1445, 7
        %v1447 = vsub.s32 0, %v1446
        %v1448 = vrot.slane %v964, %v1447
        %v1449 = vmul.f32 %v968, %v1448
        %v1450 = vmul.f32 %v973, %v1448
        %v1451 = vmul.f32 %v978, %v1448
        %v1452 = vmul.f32 %v983, %v1448
        %v1453 = vmul.f32 %v988, %v1448
        %v1454 = vmul.f32 %v993, %v1448
        %v1455 = vmul.f32 %v998, %v1448
        %v1456 = vmul.f32 %v1003, %v1448
        %v1457 = vmul.f32 %v1008, %v1448
        %v1458 = vmul.f32 %v1013, %v1448
        %v1459 = vmul.f32 %v1018, %v1448
        %v1460 = vmul.f32 %v1023, %v1448
        %v1461 = vmul.f32 %v1028, %v1448
        %v1462 = vmul.f32 %v1033, %v1448
        %v1463 = vmul.f32 %v1038, %v1448
        %v1464 = vmul.f32 %v1043, %v1448
        %v1465 = vmul.f32 %v1048, %v1448
        %v1466 = vmul.f32 %v1053, %v1448
        %v1467 = vmul.f32 %v1058, %v1448
        %v1468 = vmul.f32 %v1063, %v1448
        %v1469 = vmul.f32 %v1068, %v1448
        %v1470 = vmul.f32 %v1073, %v1448
        %v1471 = vmul.f32 %v1078, %v1448
        %v1472 = vmul.f32 %v1083, %v1448
        %v1473 = vmul.f32 %v1088, %v1448
        %v1474 = vmul.f32 %v1093, %v1448
        %v1475 = vmul.f32 %v1098, %v1448
        %v1476 = vmul.f32 %v1103, %v1448
        %v1477 = vmul.f32 %v1108, %v1448
        %v1478 = vmul.f32 %v1113, %v1448
        %v1479 = vmul.f32 %v1118, %v1448
        %v1480 = vmul.f32 %v1123, %v1448
        %v1481 = vmul.f32 %v1128, %v1448
        %v1482 = vmul.f32 %v1133, %v1448
        %v1483 = vmul.f32 %v1138, %v1448
        %v1484 = vmul.f32 %v1143, %v1448
        %v1485 = vmul.f32 %v1148, %v1448
        %v1486 = vmul.f32 %v1153, %v1448
        %v1487 = vmul.f32 %v1158, %v1448
        %v1488 = vmul.f32 %v1163, %v1448
        %v1489 = vmul.f32 %v1168, %v1448
        %v1490 = vmul.f32 %v1173, %v1448
        %v1491 = vmul.f32 %v1178, %v1448
        %v1492 = vmul.f32 %v1183, %v1448
        %v1493 = vmul.f32 %v1188, %v1448
        %v1494 = vmul.f32 %v1193, %v1448
        %v1495 = vmul.f32 %v1198, %v1448
        %v1496 = vmul.f32 %v1203, %v1448
        %v1497 = vmul.f32 %v1208, %v1448
        %v1498 = vmul.f32 %v1213, %v1448
        %v1499 = vmul.f32 %v1218, %v1448
        %v1500 = vmul.f32 %v1223, %v1448
        %v1501 = vmul.f32 %v1228, %v1448
        %v1502 = vmul.f32 %v1233, %v1448
        %v1503 = vmul.f32 %v1238, %v1448
        %v1504 = vmul.f32 %v1243, %v1448
        %v1505 = vmul.f32 %v1248, %v1448
        %v1506 = vmul.f32 %v1253, %v1448
        %v1507 = vmul.f32 %v1258, %v1448
        %v1508 = vmul.f32 %v1263, %v1448
        %v1509 = vmul.f32 %v1268, %v1448
        %v1510 = vmul.f32 %v1273, %v1448
        %v1511 = vmul.f32 %v1278, %v1448
        %v1512 = vmul.f32 %v1283, %v1448
        %v1513 = vmul.f32 %v1288, %v1448
        %v1514 = vmul.f32 %v1293, %v1448
        %v1515 = vmul.f32 %v1298, %v1448
        %v1516 = vmul.f32 %v1303, %v1448
        %v1517 = vmul.f32 %v1308, %v1448
        %v1518 = vmul.f32 %v1313, %v1448
        %v1519 = vmul.f32 %v1318, %v1448
        %v1520 = vmul.f32 %v1323, %v1448
        %v1521 = vmul.f32 %v1328, %v1448
        %v1522 = vmul.f32 %v1333, %v1448
        %v1523 = vmul.f32 %v1338, %v1448
        %v1524 = vmul.f32 %v1343, %v1448
        %v1525 = vmul.f32 %v1348, %v1448
        %v1526 = vmul.f32 %v1353, %v1448
        %v1527 = vmul.f32 %v1358, %v1448
        %v1528 = vmul.f32 %v1363, %v1448
        %v1529 = vmul.f32 %v1368, %v1448
        %v1530 = vmul.f32 %v1373, %v1448
        %v1531 = vmul.f32 %v1378, %v1448
        %v1532 = vmul.f32 %v1383, %v1448
        %v1533 = vmul.f32 %v1388, %v1448
        %v1534 = vmul.f32 %v1393, %v1448
        %v1535 = vmul.f32 %v1398, %v1448
        %v1536 = vmul.f32 %v1403, %v1448
        %v1537 = vmul.f32 %v1408, %v1448
        %v1538 = vmul.f32 %v1413, %v1448
        %v1539 = vmul.f32 %v1418, %v1448
        %v1540 = vmul.f32 %v1423, %v1448
        %v1541 = vmul.f32 %v1428, %v1448
        %v1542 = vmul.f32 %v1433, %v1448
        %v1543 = vmul.f32 %v1438, %v1448
        %v1544 = vmul.f32 %v1443, %v1448
        %1545 = vset.pattern.permute.xlu0 1
        %1546 = vperm.xlu0 %1545, %v868
        %v1547 = vpop.permute.xlu0 %1546
        %1549 = vset.pattern.permute.xlu0 1
        %1550 = vperm.xlu0 %1549, %v869
        %v1551 = vpop.permute.xlu0 %1550
        %1553 = vset.pattern.permute.xlu0 1
        %1554 = vperm.xlu0 %1553, %v870
        %v1555 = vpop.permute.xlu0 %1554
        %1557 = vset.pattern.permute.xlu0 1
        %1558 = vperm.xlu0 %1557, %v871
        %v1559 = vpop.permute.xlu0 %1558
        %1561 = vset.pattern.permute.xlu0 1
        %1562 = vperm.xlu0 %1561, %v872
        %v1563 = vpop.permute.xlu0 %1562
        %1565 = vset.pattern.permute.xlu0 1
        %1566 = vperm.xlu0 %1565, %v873
        %v1567 = vpop.permute.xlu0 %1566
        %1569 = vset.pattern.permute.xlu0 1
        %1570 = vperm.xlu0 %1569, %v874
        %v1571 = vpop.permute.xlu0 %1570
        %1573 = vset.pattern.permute.xlu0 1
        %1574 = vperm.xlu0 %1573, %v875
        %v1575 = vpop.permute.xlu0 %1574
        %1577 = vset.pattern.permute.xlu0 1
        %1578 = vperm.xlu0 %1577, %v876
        %v1579 = vpop.permute.xlu0 %1578
        %1581 = vset.pattern.permute.xlu0 1
        %1582 = vperm.xlu0 %1581, %v877
        %v1583 = vpop.permute.xlu0 %1582
        %1585 = vset.pattern.permute.xlu0 1
        %1586 = vperm.xlu0 %1585, %v878
        %v1587 = vpop.permute.xlu0 %1586
        %1589 = vset.pattern.permute.xlu0 1
        %1590 = vperm.xlu0 %1589, %v879
        %v1591 = vpop.permute.xlu0 %1590
        %1593 = vset.pattern.permute.xlu0 1
        %1594 = vperm.xlu0 %1593, %v880
        %v1595 = vpop.permute.xlu0 %1594
        %1597 = vset.pattern.permute.xlu0 1
        %1598 = vperm.xlu0 %1597, %v881
        %v1599 = vpop.permute.xlu0 %1598
        %1601 = vset.pattern.permute.xlu0 1
        %1602 = vperm.xlu0 %1601, %v882
        %v1603 = vpop.permute.xlu0 %1602
        %1605 = vset.pattern.permute.xlu0 1
        %1606 = vperm.xlu0 %1605, %v883
        %v1607 = vpop.permute.xlu0 %1606
        %1609 = vset.pattern.permute.xlu0 1
        %1610 = vperm.xlu0 %1609, %v884
        %v1611 = vpop.permute.xlu0 %1610
        %1613 = vset.pattern.permute.xlu0 1
        %1614 = vperm.xlu0 %1613, %v885
        %v1615 = vpop.permute.xlu0 %1614
        %1617 = vset.pattern.permute.xlu0 1
        %1618 = vperm.xlu0 %1617, %v886
        %v1619 = vpop.permute.xlu0 %1618
        %1621 = vset.pattern.permute.xlu0 1
        %1622 = vperm.xlu0 %1621, %v887
        %v1623 = vpop.permute.xlu0 %1622
        %1625 = vset.pattern.permute.xlu0 1
        %1626 = vperm.xlu0 %1625, %v888
        %v1627 = vpop.permute.xlu0 %1626
        %1629 = vset.pattern.permute.xlu0 1
        %1630 = vperm.xlu0 %1629, %v889
        %v1631 = vpop.permute.xlu0 %1630
        %1633 = vset.pattern.permute.xlu0 1
        %1634 = vperm.xlu0 %1633, %v890
        %v1635 = vpop.permute.xlu0 %1634
        %1637 = vset.pattern.permute.xlu0 1
        %1638 = vperm.xlu0 %1637, %v891
        %v1639 = vpop.permute.xlu0 %1638
        %1641 = vset.pattern.permute.xlu0 1
        %1642 = vperm.xlu0 %1641, %v892
        %v1643 = vpop.permute.xlu0 %1642
        %1645 = vset.pattern.permute.xlu0 1
        %1646 = vperm.xlu0 %1645, %v893
        %v1647 = vpop.permute.xlu0 %1646
        %1649 = vset.pattern.permute.xlu0 1
        %1650 = vperm.xlu0 %1649, %v894
        %v1651 = vpop.permute.xlu0 %1650
        %1653 = vset.pattern.permute.xlu0 1
        %1654 = vperm.xlu0 %1653, %v895
        %v1655 = vpop.permute.xlu0 %1654
        %1657 = vset.pattern.permute.xlu0 1
        %1658 = vperm.xlu0 %1657, %v896
        %v1659 = vpop.permute.xlu0 %1658
        %1661 = vset.pattern.permute.xlu0 1
        %1662 = vperm.xlu0 %1661, %v897
        %v1663 = vpop.permute.xlu0 %1662
        %1665 = vset.pattern.permute.xlu0 1
        %1666 = vperm.xlu0 %1665, %v898
        %v1667 = vpop.permute.xlu0 %1666
        %1669 = vset.pattern.permute.xlu0 1
        %1670 = vperm.xlu0 %1669, %v899
        %v1671 = vpop.permute.xlu0 %1670
        %1673 = vset.pattern.permute.xlu0 1
        %1674 = vperm.xlu0 %1673, %v900
        %v1675 = vpop.permute.xlu0 %1674
        %1677 = vset.pattern.permute.xlu0 1
        %1678 = vperm.xlu0 %1677, %v901
        %v1679 = vpop.permute.xlu0 %1678
        %1681 = vset.pattern.permute.xlu0 1
        %1682 = vperm.xlu0 %1681, %v902
        %v1683 = vpop.permute.xlu0 %1682
        %1685 = vset.pattern.permute.xlu0 1
        %1686 = vperm.xlu0 %1685, %v903
        %v1687 = vpop.permute.xlu0 %1686
        %1689 = vset.pattern.permute.xlu0 1
        %1690 = vperm.xlu0 %1689, %v904
        %v1691 = vpop.permute.xlu0 %1690
        %1693 = vset.pattern.permute.xlu0 1
        %1694 = vperm.xlu0 %1693, %v905
        %v1695 = vpop.permute.xlu0 %1694
        %1697 = vset.pattern.permute.xlu0 1
        %1698 = vperm.xlu0 %1697, %v906
        %v1699 = vpop.permute.xlu0 %1698
        %1701 = vset.pattern.permute.xlu0 1
        %1702 = vperm.xlu0 %1701, %v907
        %v1703 = vpop.permute.xlu0 %1702
        %1705 = vset.pattern.permute.xlu0 1
        %1706 = vperm.xlu0 %1705, %v908
        %v1707 = vpop.permute.xlu0 %1706
        %1709 = vset.pattern.permute.xlu0 1
        %1710 = vperm.xlu0 %1709, %v909
        %v1711 = vpop.permute.xlu0 %1710
        %1713 = vset.pattern.permute.xlu0 1
        %1714 = vperm.xlu0 %1713, %v910
        %v1715 = vpop.permute.xlu0 %1714
        %1717 = vset.pattern.permute.xlu0 1
        %1718 = vperm.xlu0 %1717, %v911
        %v1719 = vpop.permute.xlu0 %1718
        %1721 = vset.pattern.permute.xlu0 1
        %1722 = vperm.xlu0 %1721, %v912
        %v1723 = vpop.permute.xlu0 %1722
        %1725 = vset.pattern.permute.xlu0 1
        %1726 = vperm.xlu0 %1725, %v913
        %v1727 = vpop.permute.xlu0 %1726
        %1729 = vset.pattern.permute.xlu0 1
        %1730 = vperm.xlu0 %1729, %v914
        %v1731 = vpop.permute.xlu0 %1730
        %1733 = vset.pattern.permute.xlu0 1
        %1734 = vperm.xlu0 %1733, %v915
        %v1735 = vpop.permute.xlu0 %1734
        %1737 = vset.pattern.permute.xlu0 1
        %1738 = vperm.xlu0 %1737, %v916
        %v1739 = vpop.permute.xlu0 %1738
        %1741 = vset.pattern.permute.xlu0 1
        %1742 = vperm.xlu0 %1741, %v917
        %v1743 = vpop.permute.xlu0 %1742
        %1745 = vset.pattern.permute.xlu0 1
        %1746 = vperm.xlu0 %1745, %v918
        %v1747 = vpop.permute.xlu0 %1746
        %1749 = vset.pattern.permute.xlu0 1
        %1750 = vperm.xlu0 %1749, %v919
        %v1751 = vpop.permute.xlu0 %1750
        %1753 = vset.pattern.permute.xlu0 1
        %1754 = vperm.xlu0 %1753, %v920
        %v1755 = vpop.permute.xlu0 %1754
        %1757 = vset.pattern.permute.xlu0 1
        %1758 = vperm.xlu0 %1757, %v921
        %v1759 = vpop.permute.xlu0 %1758
        %1761 = vset.pattern.permute.xlu0 1
        %1762 = vperm.xlu0 %1761, %v922
        %v1763 = vpop.permute.xlu0 %1762
        %1765 = vset.pattern.permute.xlu0 1
        %1766 = vperm.xlu0 %1765, %v923
        %v1767 = vpop.permute.xlu0 %1766
        %1769 = vset.pattern.permute.xlu0 1
        %1770 = vperm.xlu0 %1769, %v924
        %v1771 = vpop.permute.xlu0 %1770
        %1773 = vset.pattern.permute.xlu0 1
        %1774 = vperm.xlu0 %1773, %v925
        %v1775 = vpop.permute.xlu0 %1774
        %1777 = vset.pattern.permute.xlu0 1
        %1778 = vperm.xlu0 %1777, %v926
        %v1779 = vpop.permute.xlu0 %1778
        %1781 = vset.pattern.permute.xlu0 1
        %1782 = vperm.xlu0 %1781, %v927
        %v1783 = vpop.permute.xlu0 %1782
        %1785 = vset.pattern.permute.xlu0 1
        %1786 = vperm.xlu0 %1785, %v928
        %v1787 = vpop.permute.xlu0 %1786
        %1789 = vset.pattern.permute.xlu0 1
        %1790 = vperm.xlu0 %1789, %v929
        %v1791 = vpop.permute.xlu0 %1790
        %1793 = vset.pattern.permute.xlu0 1
        %1794 = vperm.xlu0 %1793, %v930
        %v1795 = vpop.permute.xlu0 %1794
        %1797 = vset.pattern.permute.xlu0 1
        %1798 = vperm.xlu0 %1797, %v931
        %v1799 = vpop.permute.xlu0 %1798
        %1801 = vset.pattern.permute.xlu0 1
        %1802 = vperm.xlu0 %1801, %v932
        %v1803 = vpop.permute.xlu0 %1802
        %1805 = vset.pattern.permute.xlu0 1
        %1806 = vperm.xlu0 %1805, %v933
        %v1807 = vpop.permute.xlu0 %1806
        %1809 = vset.pattern.permute.xlu0 1
        %1810 = vperm.xlu0 %1809, %v934
        %v1811 = vpop.permute.xlu0 %1810
        %1813 = vset.pattern.permute.xlu0 1
        %1814 = vperm.xlu0 %1813, %v935
        %v1815 = vpop.permute.xlu0 %1814
        %1817 = vset.pattern.permute.xlu0 1
        %1818 = vperm.xlu0 %1817, %v936
        %v1819 = vpop.permute.xlu0 %1818
        %1821 = vset.pattern.permute.xlu0 1
        %1822 = vperm.xlu0 %1821, %v937
        %v1823 = vpop.permute.xlu0 %1822
        %1825 = vset.pattern.permute.xlu0 1
        %1826 = vperm.xlu0 %1825, %v938
        %v1827 = vpop.permute.xlu0 %1826
        %1829 = vset.pattern.permute.xlu0 1
        %1830 = vperm.xlu0 %1829, %v939
        %v1831 = vpop.permute.xlu0 %1830
        %1833 = vset.pattern.permute.xlu0 1
        %1834 = vperm.xlu0 %1833, %v940
        %v1835 = vpop.permute.xlu0 %1834
        %1837 = vset.pattern.permute.xlu0 1
        %1838 = vperm.xlu0 %1837, %v941
        %v1839 = vpop.permute.xlu0 %1838
        %1841 = vset.pattern.permute.xlu0 1
        %1842 = vperm.xlu0 %1841, %v942
        %v1843 = vpop.permute.xlu0 %1842
        %1845 = vset.pattern.permute.xlu0 1
        %1846 = vperm.xlu0 %1845, %v943
        %v1847 = vpop.permute.xlu0 %1846
        %1849 = vset.pattern.permute.xlu0 1
        %1850 = vperm.xlu0 %1849, %v944
        %v1851 = vpop.permute.xlu0 %1850
        %1853 = vset.pattern.permute.xlu0 1
        %1854 = vperm.xlu0 %1853, %v945
        %v1855 = vpop.permute.xlu0 %1854
        %1857 = vset.pattern.permute.xlu0 1
        %1858 = vperm.xlu0 %1857, %v946
        %v1859 = vpop.permute.xlu0 %1858
        %1861 = vset.pattern.permute.xlu0 1
        %1862 = vperm.xlu0 %1861, %v947
        %v1863 = vpop.permute.xlu0 %1862
        %1865 = vset.pattern.permute.xlu0 1
        %1866 = vperm.xlu0 %1865, %v948
        %v1867 = vpop.permute.xlu0 %1866
        %1869 = vset.pattern.permute.xlu0 1
        %1870 = vperm.xlu0 %1869, %v949
        %v1871 = vpop.permute.xlu0 %1870
        %1873 = vset.pattern.permute.xlu0 1
        %1874 = vperm.xlu0 %1873, %v950
        %v1875 = vpop.permute.xlu0 %1874
        %1877 = vset.pattern.permute.xlu0 1
        %1878 = vperm.xlu0 %1877, %v951
        %v1879 = vpop.permute.xlu0 %1878
        %1881 = vset.pattern.permute.xlu0 1
        %1882 = vperm.xlu0 %1881, %v952
        %v1883 = vpop.permute.xlu0 %1882
        %1885 = vset.pattern.permute.xlu0 1
        %1886 = vperm.xlu0 %1885, %v953
        %v1887 = vpop.permute.xlu0 %1886
        %1889 = vset.pattern.permute.xlu0 1
        %1890 = vperm.xlu0 %1889, %v954
        %v1891 = vpop.permute.xlu0 %1890
        %1893 = vset.pattern.permute.xlu0 1
        %1894 = vperm.xlu0 %1893, %v955
        %v1895 = vpop.permute.xlu0 %1894
        %1897 = vset.pattern.permute.xlu0 1
        %1898 = vperm.xlu0 %1897, %v956
        %v1899 = vpop.permute.xlu0 %1898
        %1901 = vset.pattern.permute.xlu0 1
        %1902 = vperm.xlu0 %1901, %v957
        %v1903 = vpop.permute.xlu0 %1902
        %1905 = vset.pattern.permute.xlu0 1
        %1906 = vperm.xlu0 %1905, %v958
        %v1907 = vpop.permute.xlu0 %1906
        %1909 = vset.pattern.permute.xlu0 1
        %1910 = vperm.xlu0 %1909, %v959
        %v1911 = vpop.permute.xlu0 %1910
        %1913 = vset.pattern.permute.xlu0 1
        %1914 = vperm.xlu0 %1913, %v960
        %v1915 = vpop.permute.xlu0 %1914
        %1917 = vset.pattern.permute.xlu0 1
        %1918 = vperm.xlu0 %1917, %v961
        %v1919 = vpop.permute.xlu0 %1918
        %1921 = vset.pattern.permute.xlu0 1
        %1922 = vperm.xlu0 %1921, %v962
        %v1923 = vpop.permute.xlu0 %1922
        %1925 = vset.pattern.permute.xlu0 1
        %1926 = vperm.xlu0 %1925, %v963
        %v1927 = vpop.permute.xlu0 %1926
        %v1929 = vlaneseq
        %v1930 = vshrl.u32 %v1929, 7
        %v1931 = vsub.s32 1, %v1930
        %v1932 = vrot.slane %v964, %v1931
        %v1933 = vmul.f32 %v1547, %v1932
        %v1934 = vmul.f32 %v1551, %v1932
        %v1935 = vmul.f32 %v1555, %v1932
        %v1936 = vmul.f32 %v1559, %v1932
        %v1937 = vmul.f32 %v1563, %v1932
        %v1938 = vmul.f32 %v1567, %v1932
        %v1939 = vmul.f32 %v1571, %v1932
        %v1940 = vmul.f32 %v1575, %v1932
        %v1941 = vmul.f32 %v1579, %v1932
        %v1942 = vmul.f32 %v1583, %v1932
        %v1943 = vmul.f32 %v1587, %v1932
        %v1944 = vmul.f32 %v1591, %v1932
        %v1945 = vmul.f32 %v1595, %v1932
        %v1946 = vmul.f32 %v1599, %v1932
        %v1947 = vmul.f32 %v1603, %v1932
        %v1948 = vmul.f32 %v1607, %v1932
        %v1949 = vmul.f32 %v1611, %v1932
        %v1950 = vmul.f32 %v1615, %v1932
        %v1951 = vmul.f32 %v1619, %v1932
        %v1952 = vmul.f32 %v1623, %v1932
        %v1953 = vmul.f32 %v1627, %v1932
        %v1954 = vmul.f32 %v1631, %v1932
        %v1955 = vmul.f32 %v1635, %v1932
        %v1956 = vmul.f32 %v1639, %v1932
        %v1957 = vmul.f32 %v1643, %v1932
        %v1958 = vmul.f32 %v1647, %v1932
        %v1959 = vmul.f32 %v1651, %v1932
        %v1960 = vmul.f32 %v1655, %v1932
        %v1961 = vmul.f32 %v1659, %v1932
        %v1962 = vmul.f32 %v1663, %v1932
        %v1963 = vmul.f32 %v1667, %v1932
        %v1964 = vmul.f32 %v1671, %v1932
        %v1965 = vmul.f32 %v1675, %v1932
        %v1966 = vmul.f32 %v1679, %v1932
        %v1967 = vmul.f32 %v1683, %v1932
        %v1968 = vmul.f32 %v1687, %v1932
        %v1969 = vmul.f32 %v1691, %v1932
        %v1970 = vmul.f32 %v1695, %v1932
        %v1971 = vmul.f32 %v1699, %v1932
        %v1972 = vmul.f32 %v1703, %v1932
        %v1973 = vmul.f32 %v1707, %v1932
        %v1974 = vmul.f32 %v1711, %v1932
        %v1975 = vmul.f32 %v1715, %v1932
        %v1976 = vmul.f32 %v1719, %v1932
        %v1977 = vmul.f32 %v1723, %v1932
        %v1978 = vmul.f32 %v1727, %v1932
        %v1979 = vmul.f32 %v1731, %v1932
        %v1980 = vmul.f32 %v1735, %v1932
        %v1981 = vmul.f32 %v1739, %v1932
        %v1982 = vmul.f32 %v1743, %v1932
        %v1983 = vmul.f32 %v1747, %v1932
        %v1984 = vmul.f32 %v1751, %v1932
        %v1985 = vmul.f32 %v1755, %v1932
        %v1986 = vmul.f32 %v1759, %v1932
        %v1987 = vmul.f32 %v1763, %v1932
        %v1988 = vmul.f32 %v1767, %v1932
        %v1989 = vmul.f32 %v1771, %v1932
        %v1990 = vmul.f32 %v1775, %v1932
        %v1991 = vmul.f32 %v1779, %v1932
        %v1992 = vmul.f32 %v1783, %v1932
        %v1993 = vmul.f32 %v1787, %v1932
        %v1994 = vmul.f32 %v1791, %v1932
        %v1995 = vmul.f32 %v1795, %v1932
        %v1996 = vmul.f32 %v1799, %v1932
        %v1997 = vmul.f32 %v1803, %v1932
        %v1998 = vmul.f32 %v1807, %v1932
        %v1999 = vmul.f32 %v1811, %v1932
        %v2000 = vmul.f32 %v1815, %v1932
        %v2001 = vmul.f32 %v1819, %v1932
        %v2002 = vmul.f32 %v1823, %v1932
        %v2003 = vmul.f32 %v1827, %v1932
        %v2004 = vmul.f32 %v1831, %v1932
        %v2005 = vmul.f32 %v1835, %v1932
        %v2006 = vmul.f32 %v1839, %v1932
        %v2007 = vmul.f32 %v1843, %v1932
        %v2008 = vmul.f32 %v1847, %v1932
        %v2009 = vmul.f32 %v1851, %v1932
        %v2010 = vmul.f32 %v1855, %v1932
        %v2011 = vmul.f32 %v1859, %v1932
        %v2012 = vmul.f32 %v1863, %v1932
        %v2013 = vmul.f32 %v1867, %v1932
        %v2014 = vmul.f32 %v1871, %v1932
        %v2015 = vmul.f32 %v1875, %v1932
        %v2016 = vmul.f32 %v1879, %v1932
        %v2017 = vmul.f32 %v1883, %v1932
        %v2018 = vmul.f32 %v1887, %v1932
        %v2019 = vmul.f32 %v1891, %v1932
        %v2020 = vmul.f32 %v1895, %v1932
        %v2021 = vmul.f32 %v1899, %v1932
        %v2022 = vmul.f32 %v1903, %v1932
        %v2023 = vmul.f32 %v1907, %v1932
        %v2024 = vmul.f32 %v1911, %v1932
        %v2025 = vmul.f32 %v1915, %v1932
        %v2026 = vmul.f32 %v1919, %v1932
        %v2027 = vmul.f32 %v1923, %v1932
        %v2028 = vmul.f32 %v1927, %v1932
        %v2029 = vadd.f32 %v1449, %v1933
        %v2030 = vadd.f32 %v1450, %v1934
        %v2031 = vadd.f32 %v1451, %v1935
        %v2032 = vadd.f32 %v1452, %v1936
        %v2033 = vadd.f32 %v1453, %v1937
        %v2034 = vadd.f32 %v1454, %v1938
        %v2035 = vadd.f32 %v1455, %v1939
        %v2036 = vadd.f32 %v1456, %v1940
        %v2037 = vadd.f32 %v1457, %v1941
        %v2038 = vadd.f32 %v1458, %v1942
        %v2039 = vadd.f32 %v1459, %v1943
        %v2040 = vadd.f32 %v1460, %v1944
        %v2041 = vadd.f32 %v1461, %v1945
        %v2042 = vadd.f32 %v1462, %v1946
        %v2043 = vadd.f32 %v1463, %v1947
        %v2044 = vadd.f32 %v1464, %v1948
        %v2045 = vadd.f32 %v1465, %v1949
        %v2046 = vadd.f32 %v1466, %v1950
        %v2047 = vadd.f32 %v1467, %v1951
        %v2048 = vadd.f32 %v1468, %v1952
        %v2049 = vadd.f32 %v1469, %v1953
        %v2050 = vadd.f32 %v1470, %v1954
        %v2051 = vadd.f32 %v1471, %v1955
        %v2052 = vadd.f32 %v1472, %v1956
        %v2053 = vadd.f32 %v1473, %v1957
        %v2054 = vadd.f32 %v1474, %v1958
        %v2055 = vadd.f32 %v1475, %v1959
        %v2056 = vadd.f32 %v1476, %v1960
        %v2057 = vadd.f32 %v1477, %v1961
        %v2058 = vadd.f32 %v1478, %v1962
        %v2059 = vadd.f32 %v1479, %v1963
        %v2060 = vadd.f32 %v1480, %v1964
        %v2061 = vadd.f32 %v1481, %v1965
        %v2062 = vadd.f32 %v1482, %v1966
        %v2063 = vadd.f32 %v1483, %v1967
        %v2064 = vadd.f32 %v1484, %v1968
        %v2065 = vadd.f32 %v1485, %v1969
        %v2066 = vadd.f32 %v1486, %v1970
        %v2067 = vadd.f32 %v1487, %v1971
        %v2068 = vadd.f32 %v1488, %v1972
        %v2069 = vadd.f32 %v1489, %v1973
        %v2070 = vadd.f32 %v1490, %v1974
        %v2071 = vadd.f32 %v1491, %v1975
        %v2072 = vadd.f32 %v1492, %v1976
        %v2073 = vadd.f32 %v1493, %v1977
        %v2074 = vadd.f32 %v1494, %v1978
        %v2075 = vadd.f32 %v1495, %v1979
        %v2076 = vadd.f32 %v1496, %v1980
        %v2077 = vadd.f32 %v1497, %v1981
        %v2078 = vadd.f32 %v1498, %v1982
        %v2079 = vadd.f32 %v1499, %v1983
        %v2080 = vadd.f32 %v1500, %v1984
        %v2081 = vadd.f32 %v1501, %v1985
        %v2082 = vadd.f32 %v1502, %v1986
        %v2083 = vadd.f32 %v1503, %v1987
        %v2084 = vadd.f32 %v1504, %v1988
        %v2085 = vadd.f32 %v1505, %v1989
        %v2086 = vadd.f32 %v1506, %v1990
        %v2087 = vadd.f32 %v1507, %v1991
        %v2088 = vadd.f32 %v1508, %v1992
        %v2089 = vadd.f32 %v1509, %v1993
        %v2090 = vadd.f32 %v1510, %v1994
        %v2091 = vadd.f32 %v1511, %v1995
        %v2092 = vadd.f32 %v1512, %v1996
        %v2093 = vadd.f32 %v1513, %v1997
        %v2094 = vadd.f32 %v1514, %v1998
        %v2095 = vadd.f32 %v1515, %v1999
        %v2096 = vadd.f32 %v1516, %v2000
        %v2097 = vadd.f32 %v1517, %v2001
        %v2098 = vadd.f32 %v1518, %v2002
        %v2099 = vadd.f32 %v1519, %v2003
        %v2100 = vadd.f32 %v1520, %v2004
        %v2101 = vadd.f32 %v1521, %v2005
        %v2102 = vadd.f32 %v1522, %v2006
        %v2103 = vadd.f32 %v1523, %v2007
        %v2104 = vadd.f32 %v1524, %v2008
        %v2105 = vadd.f32 %v1525, %v2009
        %v2106 = vadd.f32 %v1526, %v2010
        %v2107 = vadd.f32 %v1527, %v2011
        %v2108 = vadd.f32 %v1528, %v2012
        %v2109 = vadd.f32 %v1529, %v2013
        %v2110 = vadd.f32 %v1530, %v2014
        %v2111 = vadd.f32 %v1531, %v2015
        %v2112 = vadd.f32 %v1532, %v2016
        %v2113 = vadd.f32 %v1533, %v2017
        %v2114 = vadd.f32 %v1534, %v2018
        %v2115 = vadd.f32 %v1535, %v2019
        %v2116 = vadd.f32 %v1536, %v2020
        %v2117 = vadd.f32 %v1537, %v2021
        %v2118 = vadd.f32 %v1538, %v2022
        %v2119 = vadd.f32 %v1539, %v2023
        %v2120 = vadd.f32 %v1540, %v2024
        %v2121 = vadd.f32 %v1541, %v2025
        %v2122 = vadd.f32 %v1542, %v2026
        %v2123 = vadd.f32 %v1543, %v2027
        %v2124 = vadd.f32 %v1544, %v2028
        %2125 = vset.pattern.permute.xlu0 2
        %2126 = vperm.xlu0 %2125, %v868
        %v2127 = vpop.permute.xlu0 %2126
        %2129 = vset.pattern.permute.xlu0 2
        %2130 = vperm.xlu0 %2129, %v869
        %v2131 = vpop.permute.xlu0 %2130
        %2133 = vset.pattern.permute.xlu0 2
        %2134 = vperm.xlu0 %2133, %v870
        %v2135 = vpop.permute.xlu0 %2134
        %2137 = vset.pattern.permute.xlu0 2
        %2138 = vperm.xlu0 %2137, %v871
        %v2139 = vpop.permute.xlu0 %2138
        %2141 = vset.pattern.permute.xlu0 2
        %2142 = vperm.xlu0 %2141, %v872
        %v2143 = vpop.permute.xlu0 %2142
        %2145 = vset.pattern.permute.xlu0 2
        %2146 = vperm.xlu0 %2145, %v873
        %v2147 = vpop.permute.xlu0 %2146
        %2149 = vset.pattern.permute.xlu0 2
        %2150 = vperm.xlu0 %2149, %v874
        %v2151 = vpop.permute.xlu0 %2150
        %2153 = vset.pattern.permute.xlu0 2
        %2154 = vperm.xlu0 %2153, %v875
        %v2155 = vpop.permute.xlu0 %2154
        %2157 = vset.pattern.permute.xlu0 2
        %2158 = vperm.xlu0 %2157, %v876
        %v2159 = vpop.permute.xlu0 %2158
        %2161 = vset.pattern.permute.xlu0 2
        %2162 = vperm.xlu0 %2161, %v877
        %v2163 = vpop.permute.xlu0 %2162
        %2165 = vset.pattern.permute.xlu0 2
        %2166 = vperm.xlu0 %2165, %v878
        %v2167 = vpop.permute.xlu0 %2166
        %2169 = vset.pattern.permute.xlu0 2
        %2170 = vperm.xlu0 %2169, %v879
        %v2171 = vpop.permute.xlu0 %2170
        %2173 = vset.pattern.permute.xlu0 2
        %2174 = vperm.xlu0 %2173, %v880
        %v2175 = vpop.permute.xlu0 %2174
        %2177 = vset.pattern.permute.xlu0 2
        %2178 = vperm.xlu0 %2177, %v881
        %v2179 = vpop.permute.xlu0 %2178
        %2181 = vset.pattern.permute.xlu0 2
        %2182 = vperm.xlu0 %2181, %v882
        %v2183 = vpop.permute.xlu0 %2182
        %2185 = vset.pattern.permute.xlu0 2
        %2186 = vperm.xlu0 %2185, %v883
        %v2187 = vpop.permute.xlu0 %2186
        %2189 = vset.pattern.permute.xlu0 2
        %2190 = vperm.xlu0 %2189, %v884
        %v2191 = vpop.permute.xlu0 %2190
        %2193 = vset.pattern.permute.xlu0 2
        %2194 = vperm.xlu0 %2193, %v885
        %v2195 = vpop.permute.xlu0 %2194
        %2197 = vset.pattern.permute.xlu0 2
        %2198 = vperm.xlu0 %2197, %v886
        %v2199 = vpop.permute.xlu0 %2198
        %2201 = vset.pattern.permute.xlu0 2
        %2202 = vperm.xlu0 %2201, %v887
        %v2203 = vpop.permute.xlu0 %2202
        %2205 = vset.pattern.permute.xlu0 2
        %2206 = vperm.xlu0 %2205, %v888
        %v2207 = vpop.permute.xlu0 %2206
        %2209 = vset.pattern.permute.xlu0 2
        %2210 = vperm.xlu0 %2209, %v889
        %v2211 = vpop.permute.xlu0 %2210
        %2213 = vset.pattern.permute.xlu0 2
        %2214 = vperm.xlu0 %2213, %v890
        %v2215 = vpop.permute.xlu0 %2214
        %2217 = vset.pattern.permute.xlu0 2
        %2218 = vperm.xlu0 %2217, %v891
        %v2219 = vpop.permute.xlu0 %2218
        %2221 = vset.pattern.permute.xlu0 2
        %2222 = vperm.xlu0 %2221, %v892
        %v2223 = vpop.permute.xlu0 %2222
        %2225 = vset.pattern.permute.xlu0 2
        %2226 = vperm.xlu0 %2225, %v893
        %v2227 = vpop.permute.xlu0 %2226
        %2229 = vset.pattern.permute.xlu0 2
        %2230 = vperm.xlu0 %2229, %v894
        %v2231 = vpop.permute.xlu0 %2230
        %2233 = vset.pattern.permute.xlu0 2
        %2234 = vperm.xlu0 %2233, %v895
        %v2235 = vpop.permute.xlu0 %2234
        %2237 = vset.pattern.permute.xlu0 2
        %2238 = vperm.xlu0 %2237, %v896
        %v2239 = vpop.permute.xlu0 %2238
        %2241 = vset.pattern.permute.xlu0 2
        %2242 = vperm.xlu0 %2241, %v897
        %v2243 = vpop.permute.xlu0 %2242
        %2245 = vset.pattern.permute.xlu0 2
        %2246 = vperm.xlu0 %2245, %v898
        %v2247 = vpop.permute.xlu0 %2246
        %2249 = vset.pattern.permute.xlu0 2
        %2250 = vperm.xlu0 %2249, %v899
        %v2251 = vpop.permute.xlu0 %2250
        %2253 = vset.pattern.permute.xlu0 2
        %2254 = vperm.xlu0 %2253, %v900
        %v2255 = vpop.permute.xlu0 %2254
        %2257 = vset.pattern.permute.xlu0 2
        %2258 = vperm.xlu0 %2257, %v901
        %v2259 = vpop.permute.xlu0 %2258
        %2261 = vset.pattern.permute.xlu0 2
        %2262 = vperm.xlu0 %2261, %v902
        %v2263 = vpop.permute.xlu0 %2262
        %2265 = vset.pattern.permute.xlu0 2
        %2266 = vperm.xlu0 %2265, %v903
        %v2267 = vpop.permute.xlu0 %2266
        %2269 = vset.pattern.permute.xlu0 2
        %2270 = vperm.xlu0 %2269, %v904
        %v2271 = vpop.permute.xlu0 %2270
        %2273 = vset.pattern.permute.xlu0 2
        %2274 = vperm.xlu0 %2273, %v905
        %v2275 = vpop.permute.xlu0 %2274
        %2277 = vset.pattern.permute.xlu0 2
        %2278 = vperm.xlu0 %2277, %v906
        %v2279 = vpop.permute.xlu0 %2278
        %2281 = vset.pattern.permute.xlu0 2
        %2282 = vperm.xlu0 %2281, %v907
        %v2283 = vpop.permute.xlu0 %2282
        %2285 = vset.pattern.permute.xlu0 2
        %2286 = vperm.xlu0 %2285, %v908
        %v2287 = vpop.permute.xlu0 %2286
        %2289 = vset.pattern.permute.xlu0 2
        %2290 = vperm.xlu0 %2289, %v909
        %v2291 = vpop.permute.xlu0 %2290
        %2293 = vset.pattern.permute.xlu0 2
        %2294 = vperm.xlu0 %2293, %v910
        %v2295 = vpop.permute.xlu0 %2294
        %2297 = vset.pattern.permute.xlu0 2
        %2298 = vperm.xlu0 %2297, %v911
        %v2299 = vpop.permute.xlu0 %2298
        %2301 = vset.pattern.permute.xlu0 2
        %2302 = vperm.xlu0 %2301, %v912
        %v2303 = vpop.permute.xlu0 %2302
        %2305 = vset.pattern.permute.xlu0 2
        %2306 = vperm.xlu0 %2305, %v913
        %v2307 = vpop.permute.xlu0 %2306
        %2309 = vset.pattern.permute.xlu0 2
        %2310 = vperm.xlu0 %2309, %v914
        %v2311 = vpop.permute.xlu0 %2310
        %2313 = vset.pattern.permute.xlu0 2
        %2314 = vperm.xlu0 %2313, %v915
        %v2315 = vpop.permute.xlu0 %2314
        %2317 = vset.pattern.permute.xlu0 2
        %2318 = vperm.xlu0 %2317, %v916
        %v2319 = vpop.permute.xlu0 %2318
        %2321 = vset.pattern.permute.xlu0 2
        %2322 = vperm.xlu0 %2321, %v917
        %v2323 = vpop.permute.xlu0 %2322
        %2325 = vset.pattern.permute.xlu0 2
        %2326 = vperm.xlu0 %2325, %v918
        %v2327 = vpop.permute.xlu0 %2326
        %2329 = vset.pattern.permute.xlu0 2
        %2330 = vperm.xlu0 %2329, %v919
        %v2331 = vpop.permute.xlu0 %2330
        %2333 = vset.pattern.permute.xlu0 2
        %2334 = vperm.xlu0 %2333, %v920
        %v2335 = vpop.permute.xlu0 %2334
        %2337 = vset.pattern.permute.xlu0 2
        %2338 = vperm.xlu0 %2337, %v921
        %v2339 = vpop.permute.xlu0 %2338
        %2341 = vset.pattern.permute.xlu0 2
        %2342 = vperm.xlu0 %2341, %v922
        %v2343 = vpop.permute.xlu0 %2342
        %2345 = vset.pattern.permute.xlu0 2
        %2346 = vperm.xlu0 %2345, %v923
        %v2347 = vpop.permute.xlu0 %2346
        %2349 = vset.pattern.permute.xlu0 2
        %2350 = vperm.xlu0 %2349, %v924
        %v2351 = vpop.permute.xlu0 %2350
        %2353 = vset.pattern.permute.xlu0 2
        %2354 = vperm.xlu0 %2353, %v925
        %v2355 = vpop.permute.xlu0 %2354
        %2357 = vset.pattern.permute.xlu0 2
        %2358 = vperm.xlu0 %2357, %v926
        %v2359 = vpop.permute.xlu0 %2358
        %2361 = vset.pattern.permute.xlu0 2
        %2362 = vperm.xlu0 %2361, %v927
        %v2363 = vpop.permute.xlu0 %2362
        %2365 = vset.pattern.permute.xlu0 2
        %2366 = vperm.xlu0 %2365, %v928
        %v2367 = vpop.permute.xlu0 %2366
        %2369 = vset.pattern.permute.xlu0 2
        %2370 = vperm.xlu0 %2369, %v929
        %v2371 = vpop.permute.xlu0 %2370
        %2373 = vset.pattern.permute.xlu0 2
        %2374 = vperm.xlu0 %2373, %v930
        %v2375 = vpop.permute.xlu0 %2374
        %2377 = vset.pattern.permute.xlu0 2
        %2378 = vperm.xlu0 %2377, %v931
        %v2379 = vpop.permute.xlu0 %2378
        %2381 = vset.pattern.permute.xlu0 2
        %2382 = vperm.xlu0 %2381, %v932
        %v2383 = vpop.permute.xlu0 %2382
        %2385 = vset.pattern.permute.xlu0 2
        %2386 = vperm.xlu0 %2385, %v933
        %v2387 = vpop.permute.xlu0 %2386
        %2389 = vset.pattern.permute.xlu0 2
        %2390 = vperm.xlu0 %2389, %v934
        %v2391 = vpop.permute.xlu0 %2390
        %2393 = vset.pattern.permute.xlu0 2
        %2394 = vperm.xlu0 %2393, %v935
        %v2395 = vpop.permute.xlu0 %2394
        %2397 = vset.pattern.permute.xlu0 2
        %2398 = vperm.xlu0 %2397, %v936
        %v2399 = vpop.permute.xlu0 %2398
        %2401 = vset.pattern.permute.xlu0 2
        %2402 = vperm.xlu0 %2401, %v937
        %v2403 = vpop.permute.xlu0 %2402
        %2405 = vset.pattern.permute.xlu0 2
        %2406 = vperm.xlu0 %2405, %v938
        %v2407 = vpop.permute.xlu0 %2406
        %2409 = vset.pattern.permute.xlu0 2
        %2410 = vperm.xlu0 %2409, %v939
        %v2411 = vpop.permute.xlu0 %2410
        %2413 = vset.pattern.permute.xlu0 2
        %2414 = vperm.xlu0 %2413, %v940
        %v2415 = vpop.permute.xlu0 %2414
        %2417 = vset.pattern.permute.xlu0 2
        %2418 = vperm.xlu0 %2417, %v941
        %v2419 = vpop.permute.xlu0 %2418
        %2421 = vset.pattern.permute.xlu0 2
        %2422 = vperm.xlu0 %2421, %v942
        %v2423 = vpop.permute.xlu0 %2422
        %2425 = vset.pattern.permute.xlu0 2
        %2426 = vperm.xlu0 %2425, %v943
        %v2427 = vpop.permute.xlu0 %2426
        %2429 = vset.pattern.permute.xlu0 2
        %2430 = vperm.xlu0 %2429, %v944
        %v2431 = vpop.permute.xlu0 %2430
        %2433 = vset.pattern.permute.xlu0 2
        %2434 = vperm.xlu0 %2433, %v945
        %v2435 = vpop.permute.xlu0 %2434
        %2437 = vset.pattern.permute.xlu0 2
        %2438 = vperm.xlu0 %2437, %v946
        %v2439 = vpop.permute.xlu0 %2438
        %2441 = vset.pattern.permute.xlu0 2
        %2442 = vperm.xlu0 %2441, %v947
        %v2443 = vpop.permute.xlu0 %2442
        %2445 = vset.pattern.permute.xlu0 2
        %2446 = vperm.xlu0 %2445, %v948
        %v2447 = vpop.permute.xlu0 %2446
        %2449 = vset.pattern.permute.xlu0 2
        %2450 = vperm.xlu0 %2449, %v949
        %v2451 = vpop.permute.xlu0 %2450
        %2453 = vset.pattern.permute.xlu0 2
        %2454 = vperm.xlu0 %2453, %v950
        %v2455 = vpop.permute.xlu0 %2454
        %2457 = vset.pattern.permute.xlu0 2
        %2458 = vperm.xlu0 %2457, %v951
        %v2459 = vpop.permute.xlu0 %2458
        %2461 = vset.pattern.permute.xlu0 2
        %2462 = vperm.xlu0 %2461, %v952
        %v2463 = vpop.permute.xlu0 %2462
        %2465 = vset.pattern.permute.xlu0 2
        %2466 = vperm.xlu0 %2465, %v953
        %v2467 = vpop.permute.xlu0 %2466
        %2469 = vset.pattern.permute.xlu0 2
        %2470 = vperm.xlu0 %2469, %v954
        %v2471 = vpop.permute.xlu0 %2470
        %2473 = vset.pattern.permute.xlu0 2
        %2474 = vperm.xlu0 %2473, %v955
        %v2475 = vpop.permute.xlu0 %2474
        %2477 = vset.pattern.permute.xlu0 2
        %2478 = vperm.xlu0 %2477, %v956
        %v2479 = vpop.permute.xlu0 %2478
        %2481 = vset.pattern.permute.xlu0 2
        %2482 = vperm.xlu0 %2481, %v957
        %v2483 = vpop.permute.xlu0 %2482
        %2485 = vset.pattern.permute.xlu0 2
        %2486 = vperm.xlu0 %2485, %v958
        %v2487 = vpop.permute.xlu0 %2486
        %2489 = vset.pattern.permute.xlu0 2
        %2490 = vperm.xlu0 %2489, %v959
        %v2491 = vpop.permute.xlu0 %2490
        %2493 = vset.pattern.permute.xlu0 2
        %2494 = vperm.xlu0 %2493, %v960
        %v2495 = vpop.permute.xlu0 %2494
        %2497 = vset.pattern.permute.xlu0 2
        %2498 = vperm.xlu0 %2497, %v961
        %v2499 = vpop.permute.xlu0 %2498
        %2501 = vset.pattern.permute.xlu0 2
        %2502 = vperm.xlu0 %2501, %v962
        %v2503 = vpop.permute.xlu0 %2502
        %2505 = vset.pattern.permute.xlu0 2
        %2506 = vperm.xlu0 %2505, %v963
        %v2507 = vpop.permute.xlu0 %2506
        %v2509 = vlaneseq
        %v2510 = vshrl.u32 %v2509, 7
        %v2511 = vsub.s32 2, %v2510
        %v2512 = vrot.slane %v964, %v2511
        %v2513 = vmul.f32 %v2127, %v2512
        %v2514 = vmul.f32 %v2131, %v2512
        %v2515 = vmul.f32 %v2135, %v2512
        %v2516 = vmul.f32 %v2139, %v2512
        %v2517 = vmul.f32 %v2143, %v2512
        %v2518 = vmul.f32 %v2147, %v2512
        %v2519 = vmul.f32 %v2151, %v2512
        %v2520 = vmul.f32 %v2155, %v2512
        %v2521 = vmul.f32 %v2159, %v2512
        %v2522 = vmul.f32 %v2163, %v2512
        %v2523 = vmul.f32 %v2167, %v2512
        %v2524 = vmul.f32 %v2171, %v2512
        %v2525 = vmul.f32 %v2175, %v2512
        %v2526 = vmul.f32 %v2179, %v2512
        %v2527 = vmul.f32 %v2183, %v2512
        %v2528 = vmul.f32 %v2187, %v2512
        %v2529 = vmul.f32 %v2191, %v2512
        %v2530 = vmul.f32 %v2195, %v2512
        %v2531 = vmul.f32 %v2199, %v2512
        %v2532 = vmul.f32 %v2203, %v2512
        %v2533 = vmul.f32 %v2207, %v2512
        %v2534 = vmul.f32 %v2211, %v2512
        %v2535 = vmul.f32 %v2215, %v2512
        %v2536 = vmul.f32 %v2219, %v2512
        %v2537 = vmul.f32 %v2223, %v2512
        %v2538 = vmul.f32 %v2227, %v2512
        %v2539 = vmul.f32 %v2231, %v2512
        %v2540 = vmul.f32 %v2235, %v2512
        %v2541 = vmul.f32 %v2239, %v2512
        %v2542 = vmul.f32 %v2243, %v2512
        %v2543 = vmul.f32 %v2247, %v2512
        %v2544 = vmul.f32 %v2251, %v2512
        %v2545 = vmul.f32 %v2255, %v2512
        %v2546 = vmul.f32 %v2259, %v2512
        %v2547 = vmul.f32 %v2263, %v2512
        %v2548 = vmul.f32 %v2267, %v2512
        %v2549 = vmul.f32 %v2271, %v2512
        %v2550 = vmul.f32 %v2275, %v2512
        %v2551 = vmul.f32 %v2279, %v2512
        %v2552 = vmul.f32 %v2283, %v2512
        %v2553 = vmul.f32 %v2287, %v2512
        %v2554 = vmul.f32 %v2291, %v2512
        %v2555 = vmul.f32 %v2295, %v2512
        %v2556 = vmul.f32 %v2299, %v2512
        %v2557 = vmul.f32 %v2303, %v2512
        %v2558 = vmul.f32 %v2307, %v2512
        %v2559 = vmul.f32 %v2311, %v2512
        %v2560 = vmul.f32 %v2315, %v2512
        %v2561 = vmul.f32 %v2319, %v2512
        %v2562 = vmul.f32 %v2323, %v2512
        %v2563 = vmul.f32 %v2327, %v2512
        %v2564 = vmul.f32 %v2331, %v2512
        %v2565 = vmul.f32 %v2335, %v2512
        %v2566 = vmul.f32 %v2339, %v2512
        %v2567 = vmul.f32 %v2343, %v2512
        %v2568 = vmul.f32 %v2347, %v2512
        %v2569 = vmul.f32 %v2351, %v2512
        %v2570 = vmul.f32 %v2355, %v2512
        %v2571 = vmul.f32 %v2359, %v2512
        %v2572 = vmul.f32 %v2363, %v2512
        %v2573 = vmul.f32 %v2367, %v2512
        %v2574 = vmul.f32 %v2371, %v2512
        %v2575 = vmul.f32 %v2375, %v2512
        %v2576 = vmul.f32 %v2379, %v2512
        %v2577 = vmul.f32 %v2383, %v2512
        %v2578 = vmul.f32 %v2387, %v2512
        %v2579 = vmul.f32 %v2391, %v2512
        %v2580 = vmul.f32 %v2395, %v2512
        %v2581 = vmul.f32 %v2399, %v2512
        %v2582 = vmul.f32 %v2403, %v2512
        %v2583 = vmul.f32 %v2407, %v2512
        %v2584 = vmul.f32 %v2411, %v2512
        %v2585 = vmul.f32 %v2415, %v2512
        %v2586 = vmul.f32 %v2419, %v2512
        %v2587 = vmul.f32 %v2423, %v2512
        %v2588 = vmul.f32 %v2427, %v2512
        %v2589 = vmul.f32 %v2431, %v2512
        %v2590 = vmul.f32 %v2435, %v2512
        %v2591 = vmul.f32 %v2439, %v2512
        %v2592 = vmul.f32 %v2443, %v2512
        %v2593 = vmul.f32 %v2447, %v2512
        %v2594 = vmul.f32 %v2451, %v2512
        %v2595 = vmul.f32 %v2455, %v2512
        %v2596 = vmul.f32 %v2459, %v2512
        %v2597 = vmul.f32 %v2463, %v2512
        %v2598 = vmul.f32 %v2467, %v2512
        %v2599 = vmul.f32 %v2471, %v2512
        %v2600 = vmul.f32 %v2475, %v2512
        %v2601 = vmul.f32 %v2479, %v2512
        %v2602 = vmul.f32 %v2483, %v2512
        %v2603 = vmul.f32 %v2487, %v2512
        %v2604 = vmul.f32 %v2491, %v2512
        %v2605 = vmul.f32 %v2495, %v2512
        %v2606 = vmul.f32 %v2499, %v2512
        %v2607 = vmul.f32 %v2503, %v2512
        %v2608 = vmul.f32 %v2507, %v2512
        %v2609 = vadd.f32 %v2029, %v2513
        %v2610 = vadd.f32 %v2030, %v2514
        %v2611 = vadd.f32 %v2031, %v2515
        %v2612 = vadd.f32 %v2032, %v2516
        %v2613 = vadd.f32 %v2033, %v2517
        %v2614 = vadd.f32 %v2034, %v2518
        %v2615 = vadd.f32 %v2035, %v2519
        %v2616 = vadd.f32 %v2036, %v2520
        %v2617 = vadd.f32 %v2037, %v2521
        %v2618 = vadd.f32 %v2038, %v2522
        %v2619 = vadd.f32 %v2039, %v2523
        %v2620 = vadd.f32 %v2040, %v2524
        %v2621 = vadd.f32 %v2041, %v2525
        %v2622 = vadd.f32 %v2042, %v2526
        %v2623 = vadd.f32 %v2043, %v2527
        %v2624 = vadd.f32 %v2044, %v2528
        %v2625 = vadd.f32 %v2045, %v2529
        %v2626 = vadd.f32 %v2046, %v2530
        %v2627 = vadd.f32 %v2047, %v2531
        %v2628 = vadd.f32 %v2048, %v2532
        %v2629 = vadd.f32 %v2049, %v2533
        %v2630 = vadd.f32 %v2050, %v2534
        %v2631 = vadd.f32 %v2051, %v2535
        %v2632 = vadd.f32 %v2052, %v2536
        %v2633 = vadd.f32 %v2053, %v2537
        %v2634 = vadd.f32 %v2054, %v2538
        %v2635 = vadd.f32 %v2055, %v2539
        %v2636 = vadd.f32 %v2056, %v2540
        %v2637 = vadd.f32 %v2057, %v2541
        %v2638 = vadd.f32 %v2058, %v2542
        %v2639 = vadd.f32 %v2059, %v2543
        %v2640 = vadd.f32 %v2060, %v2544
        %v2641 = vadd.f32 %v2061, %v2545
        %v2642 = vadd.f32 %v2062, %v2546
        %v2643 = vadd.f32 %v2063, %v2547
        %v2644 = vadd.f32 %v2064, %v2548
        %v2645 = vadd.f32 %v2065, %v2549
        %v2646 = vadd.f32 %v2066, %v2550
        %v2647 = vadd.f32 %v2067, %v2551
        %v2648 = vadd.f32 %v2068, %v2552
        %v2649 = vadd.f32 %v2069, %v2553
        %v2650 = vadd.f32 %v2070, %v2554
        %v2651 = vadd.f32 %v2071, %v2555
        %v2652 = vadd.f32 %v2072, %v2556
        %v2653 = vadd.f32 %v2073, %v2557
        %v2654 = vadd.f32 %v2074, %v2558
        %v2655 = vadd.f32 %v2075, %v2559
        %v2656 = vadd.f32 %v2076, %v2560
        %v2657 = vadd.f32 %v2077, %v2561
        %v2658 = vadd.f32 %v2078, %v2562
        %v2659 = vadd.f32 %v2079, %v2563
        %v2660 = vadd.f32 %v2080, %v2564
        %v2661 = vadd.f32 %v2081, %v2565
        %v2662 = vadd.f32 %v2082, %v2566
        %v2663 = vadd.f32 %v2083, %v2567
        %v2664 = vadd.f32 %v2084, %v2568
        %v2665 = vadd.f32 %v2085, %v2569
        %v2666 = vadd.f32 %v2086, %v2570
        %v2667 = vadd.f32 %v2087, %v2571
        %v2668 = vadd.f32 %v2088, %v2572
        %v2669 = vadd.f32 %v2089, %v2573
        %v2670 = vadd.f32 %v2090, %v2574
        %v2671 = vadd.f32 %v2091, %v2575
        %v2672 = vadd.f32 %v2092, %v2576
        %v2673 = vadd.f32 %v2093, %v2577
        %v2674 = vadd.f32 %v2094, %v2578
        %v2675 = vadd.f32 %v2095, %v2579
        %v2676 = vadd.f32 %v2096, %v2580
        %v2677 = vadd.f32 %v2097, %v2581
        %v2678 = vadd.f32 %v2098, %v2582
        %v2679 = vadd.f32 %v2099, %v2583
        %v2680 = vadd.f32 %v2100, %v2584
        %v2681 = vadd.f32 %v2101, %v2585
        %v2682 = vadd.f32 %v2102, %v2586
        %v2683 = vadd.f32 %v2103, %v2587
        %v2684 = vadd.f32 %v2104, %v2588
        %v2685 = vadd.f32 %v2105, %v2589
        %v2686 = vadd.f32 %v2106, %v2590
        %v2687 = vadd.f32 %v2107, %v2591
        %v2688 = vadd.f32 %v2108, %v2592
        %v2689 = vadd.f32 %v2109, %v2593
        %v2690 = vadd.f32 %v2110, %v2594
        %v2691 = vadd.f32 %v2111, %v2595
        %v2692 = vadd.f32 %v2112, %v2596
        %v2693 = vadd.f32 %v2113, %v2597
        %v2694 = vadd.f32 %v2114, %v2598
        %v2695 = vadd.f32 %v2115, %v2599
        %v2696 = vadd.f32 %v2116, %v2600
        %v2697 = vadd.f32 %v2117, %v2601
        %v2698 = vadd.f32 %v2118, %v2602
        %v2699 = vadd.f32 %v2119, %v2603
        %v2700 = vadd.f32 %v2120, %v2604
        %v2701 = vadd.f32 %v2121, %v2605
        %v2702 = vadd.f32 %v2122, %v2606
        %v2703 = vadd.f32 %v2123, %v2607
        %v2704 = vadd.f32 %v2124, %v2608
        %v2705 = vld [vmem:[%s5] sm:$0x1]
        %v2707 = vlaneseq
        %v2708 = vshrl.u32 %v2707, 7
        %v2709 = vsub.s32 0, %v2708
        %v2710 = vrot.slane %v2705, %v2709
        %v2712 = vadd.f32 %v2609, %v2710
        %v2713 = vadd.f32 %v2610, %v2710
        %v2714 = vadd.f32 %v2611, %v2710
        %v2715 = vadd.f32 %v2612, %v2710
        %v2716 = vadd.f32 %v2613, %v2710
        %v2717 = vadd.f32 %v2614, %v2710
        %v2718 = vadd.f32 %v2615, %v2710
        %v2719 = vadd.f32 %v2616, %v2710
        %v2720 = vadd.f32 %v2617, %v2710
        %v2721 = vadd.f32 %v2618, %v2710
        %v2722 = vadd.f32 %v2619, %v2710
        %v2723 = vadd.f32 %v2620, %v2710
        %v2724 = vadd.f32 %v2621, %v2710
        %v2725 = vadd.f32 %v2622, %v2710
        %v2726 = vadd.f32 %v2623, %v2710
        %v2727 = vadd.f32 %v2624, %v2710
        %v2728 = vadd.f32 %v2625, %v2710
        %v2729 = vadd.f32 %v2626, %v2710
        %v2730 = vadd.f32 %v2627, %v2710
        %v2731 = vadd.f32 %v2628, %v2710
        %v2732 = vadd.f32 %v2629, %v2710
        %v2733 = vadd.f32 %v2630, %v2710
        %v2734 = vadd.f32 %v2631, %v2710
        %v2735 = vadd.f32 %v2632, %v2710
        %v2736 = vadd.f32 %v2633, %v2710
        %v2737 = vadd.f32 %v2634, %v2710
        %v2738 = vadd.f32 %v2635, %v2710
        %v2739 = vadd.f32 %v2636, %v2710
        %v2740 = vadd.f32 %v2637, %v2710
        %v2741 = vadd.f32 %v2638, %v2710
        %v2742 = vadd.f32 %v2639, %v2710
        %v2743 = vadd.f32 %v2640, %v2710
        %v2744 = vadd.f32 %v2641, %v2710
        %v2745 = vadd.f32 %v2642, %v2710
        %v2746 = vadd.f32 %v2643, %v2710
        %v2747 = vadd.f32 %v2644, %v2710
        %v2748 = vadd.f32 %v2645, %v2710
        %v2749 = vadd.f32 %v2646, %v2710
        %v2750 = vadd.f32 %v2647, %v2710
        %v2751 = vadd.f32 %v2648, %v2710
        %v2752 = vadd.f32 %v2649, %v2710
        %v2753 = vadd.f32 %v2650, %v2710
        %v2754 = vadd.f32 %v2651, %v2710
        %v2755 = vadd.f32 %v2652, %v2710
        %v2756 = vadd.f32 %v2653, %v2710
        %v2757 = vadd.f32 %v2654, %v2710
        %v2758 = vadd.f32 %v2655, %v2710
        %v2759 = vadd.f32 %v2656, %v2710
        %v2760 = vadd.f32 %v2657, %v2710
        %v2761 = vadd.f32 %v2658, %v2710
        %v2762 = vadd.f32 %v2659, %v2710
        %v2763 = vadd.f32 %v2660, %v2710
        %v2764 = vadd.f32 %v2661, %v2710
        %v2765 = vadd.f32 %v2662, %v2710
        %v2766 = vadd.f32 %v2663, %v2710
        %v2767 = vadd.f32 %v2664, %v2710
        %v2768 = vadd.f32 %v2665, %v2710
        %v2769 = vadd.f32 %v2666, %v2710
        %v2770 = vadd.f32 %v2667, %v2710
        %v2771 = vadd.f32 %v2668, %v2710
        %v2772 = vadd.f32 %v2669, %v2710
        %v2773 = vadd.f32 %v2670, %v2710
        %v2774 = vadd.f32 %v2671, %v2710
        %v2775 = vadd.f32 %v2672, %v2710
        %v2776 = vadd.f32 %v2673, %v2710
        %v2777 = vadd.f32 %v2674, %v2710
        %v2778 = vadd.f32 %v2675, %v2710
        %v2779 = vadd.f32 %v2676, %v2710
        %v2780 = vadd.f32 %v2677, %v2710
        %v2781 = vadd.f32 %v2678, %v2710
        %v2782 = vadd.f32 %v2679, %v2710
        %v2783 = vadd.f32 %v2680, %v2710
        %v2784 = vadd.f32 %v2681, %v2710
        %v2785 = vadd.f32 %v2682, %v2710
        %v2786 = vadd.f32 %v2683, %v2710
        %v2787 = vadd.f32 %v2684, %v2710
        %v2788 = vadd.f32 %v2685, %v2710
        %v2789 = vadd.f32 %v2686, %v2710
        %v2790 = vadd.f32 %v2687, %v2710
        %v2791 = vadd.f32 %v2688, %v2710
        %v2792 = vadd.f32 %v2689, %v2710
        %v2793 = vadd.f32 %v2690, %v2710
        %v2794 = vadd.f32 %v2691, %v2710
        %v2795 = vadd.f32 %v2692, %v2710
        %v2796 = vadd.f32 %v2693, %v2710
        %v2797 = vadd.f32 %v2694, %v2710
        %v2798 = vadd.f32 %v2695, %v2710
        %v2799 = vadd.f32 %v2696, %v2710
        %v2800 = vadd.f32 %v2697, %v2710
        %v2801 = vadd.f32 %v2698, %v2710
        %v2802 = vadd.f32 %v2699, %v2710
        %v2803 = vadd.f32 %v2700, %v2710
        %v2804 = vadd.f32 %v2701, %v2710
        %v2805 = vadd.f32 %v2702, %v2710
        %v2806 = vadd.f32 %v2703, %v2710
        %v2807 = vadd.f32 %v2704, %v2710
        %v2808 = vmax.f32 %v2712, 0.0
        %v2809 = vmax.f32 %v2713, 0.0
        %v2810 = vmax.f32 %v2714, 0.0
        %v2811 = vmax.f32 %v2715, 0.0
        %v2812 = vmax.f32 %v2716, 0.0
        %v2813 = vmax.f32 %v2717, 0.0
        %v2814 = vmax.f32 %v2718, 0.0
        %v2815 = vmax.f32 %v2719, 0.0
        %v2816 = vmax.f32 %v2720, 0.0
        %v2817 = vmax.f32 %v2721, 0.0
        %v2818 = vmax.f32 %v2722, 0.0
        %v2819 = vmax.f32 %v2723, 0.0
        %v2820 = vmax.f32 %v2724, 0.0
        %v2821 = vmax.f32 %v2725, 0.0
        %v2822 = vmax.f32 %v2726, 0.0
        %v2823 = vmax.f32 %v2727, 0.0
        %v2824 = vmax.f32 %v2728, 0.0
        %v2825 = vmax.f32 %v2729, 0.0
        %v2826 = vmax.f32 %v2730, 0.0
        %v2827 = vmax.f32 %v2731, 0.0
        %v2828 = vmax.f32 %v2732, 0.0
        %v2829 = vmax.f32 %v2733, 0.0
        %v2830 = vmax.f32 %v2734, 0.0
        %v2831 = vmax.f32 %v2735, 0.0
        %v2832 = vmax.f32 %v2736, 0.0
        %v2833 = vmax.f32 %v2737, 0.0
        %v2834 = vmax.f32 %v2738, 0.0
        %v2835 = vmax.f32 %v2739, 0.0
        %v2836 = vmax.f32 %v2740, 0.0
        %v2837 = vmax.f32 %v2741, 0.0
        %v2838 = vmax.f32 %v2742, 0.0
        %v2839 = vmax.f32 %v2743, 0.0
        %v2840 = vmax.f32 %v2744, 0.0
        %v2841 = vmax.f32 %v2745, 0.0
        %v2842 = vmax.f32 %v2746, 0.0
        %v2843 = vmax.f32 %v2747, 0.0
        %v2844 = vmax.f32 %v2748, 0.0
        %v2845 = vmax.f32 %v2749, 0.0
        %v2846 = vmax.f32 %v2750, 0.0
        %v2847 = vmax.f32 %v2751, 0.0
        %v2848 = vmax.f32 %v2752, 0.0
        %v2849 = vmax.f32 %v2753, 0.0
        %v2850 = vmax.f32 %v2754, 0.0
        %v2851 = vmax.f32 %v2755, 0.0
        %v2852 = vmax.f32 %v2756, 0.0
        %v2853 = vmax.f32 %v2757, 0.0
        %v2854 = vmax.f32 %v2758, 0.0
        %v2855 = vmax.f32 %v2759, 0.0
        %v2856 = vmax.f32 %v2760, 0.0
        %v2857 = vmax.f32 %v2761, 0.0
        %v2858 = vmax.f32 %v2762, 0.0
        %v2859 = vmax.f32 %v2763, 0.0
        %v2860 = vmax.f32 %v2764, 0.0
        %v2861 = vmax.f32 %v2765, 0.0
        %v2862 = vmax.f32 %v2766, 0.0
        %v2863 = vmax.f32 %v2767, 0.0
        %v2864 = vmax.f32 %v2768, 0.0
        %v2865 = vmax.f32 %v2769, 0.0
        %v2866 = vmax.f32 %v2770, 0.0
        %v2867 = vmax.f32 %v2771, 0.0
        %v2868 = vmax.f32 %v2772, 0.0
        %v2869 = vmax.f32 %v2773, 0.0
        %v2870 = vmax.f32 %v2774, 0.0
        %v2871 = vmax.f32 %v2775, 0.0
        %v2872 = vmax.f32 %v2776, 0.0
        %v2873 = vmax.f32 %v2777, 0.0
        %v2874 = vmax.f32 %v2778, 0.0
        %v2875 = vmax.f32 %v2779, 0.0
        %v2876 = vmax.f32 %v2780, 0.0
        %v2877 = vmax.f32 %v2781, 0.0
        %v2878 = vmax.f32 %v2782, 0.0
        %v2879 = vmax.f32 %v2783, 0.0
        %v2880 = vmax.f32 %v2784, 0.0
        %v2881 = vmax.f32 %v2785, 0.0
        %v2882 = vmax.f32 %v2786, 0.0
        %v2883 = vmax.f32 %v2787, 0.0
        %v2884 = vmax.f32 %v2788, 0.0
        %v2885 = vmax.f32 %v2789, 0.0
        %v2886 = vmax.f32 %v2790, 0.0
        %v2887 = vmax.f32 %v2791, 0.0
        %v2888 = vmax.f32 %v2792, 0.0
        %v2889 = vmax.f32 %v2793, 0.0
        %v2890 = vmax.f32 %v2794, 0.0
        %v2891 = vmax.f32 %v2795, 0.0
        %v2892 = vmax.f32 %v2796, 0.0
        %v2893 = vmax.f32 %v2797, 0.0
        %v2894 = vmax.f32 %v2798, 0.0
        %v2895 = vmax.f32 %v2799, 0.0
        %v2896 = vmax.f32 %v2800, 0.0
        %v2897 = vmax.f32 %v2801, 0.0
        %v2898 = vmax.f32 %v2802, 0.0
        %v2899 = vmax.f32 %v2803, 0.0
        %v2900 = vmax.f32 %v2804, 0.0
        %v2901 = vmax.f32 %v2805, 0.0
        %v2902 = vmax.f32 %v2806, 0.0
        %v2903 = vmax.f32 %v2807, 0.0
        %2904 = vadd.xlane.f32.xlu0 %v2808
        %v2905 = vpop.xlane.xlu0 %2904
        %2906 = vadd.xlane.f32.xlu0 %v2809
        %v2907 = vpop.xlane.xlu0 %2906
        %2908 = vadd.xlane.f32.xlu0 %v2810
        %v2909 = vpop.xlane.xlu0 %2908
        %2910 = vadd.xlane.f32.xlu0 %v2811
        %v2911 = vpop.xlane.xlu0 %2910
        %2912 = vadd.xlane.f32.xlu0 %v2812
        %v2913 = vpop.xlane.xlu0 %2912
        %2914 = vadd.xlane.f32.xlu0 %v2813
        %v2915 = vpop.xlane.xlu0 %2914
        %2916 = vadd.xlane.f32.xlu0 %v2814
        %v2917 = vpop.xlane.xlu0 %2916
        %2918 = vadd.xlane.f32.xlu0 %v2815
        %v2919 = vpop.xlane.xlu0 %2918
        %2920 = vadd.xlane.f32.xlu0 %v2816
        %v2921 = vpop.xlane.xlu0 %2920
        %2922 = vadd.xlane.f32.xlu0 %v2817
        %v2923 = vpop.xlane.xlu0 %2922
        %2924 = vadd.xlane.f32.xlu0 %v2818
        %v2925 = vpop.xlane.xlu0 %2924
        %2926 = vadd.xlane.f32.xlu0 %v2819
        %v2927 = vpop.xlane.xlu0 %2926
        %2928 = vadd.xlane.f32.xlu0 %v2820
        %v2929 = vpop.xlane.xlu0 %2928
        %2930 = vadd.xlane.f32.xlu0 %v2821
        %v2931 = vpop.xlane.xlu0 %2930
        %2932 = vadd.xlane.f32.xlu0 %v2822
        %v2933 = vpop.xlane.xlu0 %2932
        %2934 = vadd.xlane.f32.xlu0 %v2823
        %v2935 = vpop.xlane.xlu0 %2934
        %2936 = vadd.xlane.f32.xlu0 %v2824
        %v2937 = vpop.xlane.xlu0 %2936
        %2938 = vadd.xlane.f32.xlu0 %v2825
        %v2939 = vpop.xlane.xlu0 %2938
        %2940 = vadd.xlane.f32.xlu0 %v2826
        %v2941 = vpop.xlane.xlu0 %2940
        %2942 = vadd.xlane.f32.xlu0 %v2827
        %v2943 = vpop.xlane.xlu0 %2942
        %2944 = vadd.xlane.f32.xlu0 %v2828
        %v2945 = vpop.xlane.xlu0 %2944
        %2946 = vadd.xlane.f32.xlu0 %v2829
        %v2947 = vpop.xlane.xlu0 %2946
        %2948 = vadd.xlane.f32.xlu0 %v2830
        %v2949 = vpop.xlane.xlu0 %2948
        %2950 = vadd.xlane.f32.xlu0 %v2831
        %v2951 = vpop.xlane.xlu0 %2950
        %2952 = vadd.xlane.f32.xlu0 %v2832
        %v2953 = vpop.xlane.xlu0 %2952
        %2954 = vadd.xlane.f32.xlu0 %v2833
        %v2955 = vpop.xlane.xlu0 %2954
        %2956 = vadd.xlane.f32.xlu0 %v2834
        %v2957 = vpop.xlane.xlu0 %2956
        %2958 = vadd.xlane.f32.xlu0 %v2835
        %v2959 = vpop.xlane.xlu0 %2958
        %2960 = vadd.xlane.f32.xlu0 %v2836
        %v2961 = vpop.xlane.xlu0 %2960
        %2962 = vadd.xlane.f32.xlu0 %v2837
        %v2963 = vpop.xlane.xlu0 %2962
        %2964 = vadd.xlane.f32.xlu0 %v2838
        %v2965 = vpop.xlane.xlu0 %2964
        %2966 = vadd.xlane.f32.xlu0 %v2839
        %v2967 = vpop.xlane.xlu0 %2966
        %2968 = vadd.xlane.f32.xlu0 %v2840
        %v2969 = vpop.xlane.xlu0 %2968
        %2970 = vadd.xlane.f32.xlu0 %v2841
        %v2971 = vpop.xlane.xlu0 %2970
        %2972 = vadd.xlane.f32.xlu0 %v2842
        %v2973 = vpop.xlane.xlu0 %2972
        %2974 = vadd.xlane.f32.xlu0 %v2843
        %v2975 = vpop.xlane.xlu0 %2974
        %2976 = vadd.xlane.f32.xlu0 %v2844
        %v2977 = vpop.xlane.xlu0 %2976
        %2978 = vadd.xlane.f32.xlu0 %v2845
        %v2979 = vpop.xlane.xlu0 %2978
        %2980 = vadd.xlane.f32.xlu0 %v2846
        %v2981 = vpop.xlane.xlu0 %2980
        %2982 = vadd.xlane.f32.xlu0 %v2847
        %v2983 = vpop.xlane.xlu0 %2982
        %2984 = vadd.xlane.f32.xlu0 %v2848
        %v2985 = vpop.xlane.xlu0 %2984
        %2986 = vadd.xlane.f32.xlu0 %v2849
        %v2987 = vpop.xlane.xlu0 %2986
        %2988 = vadd.xlane.f32.xlu0 %v2850
        %v2989 = vpop.xlane.xlu0 %2988
        %2990 = vadd.xlane.f32.xlu0 %v2851
        %v2991 = vpop.xlane.xlu0 %2990
        %2992 = vadd.xlane.f32.xlu0 %v2852
        %v2993 = vpop.xlane.xlu0 %2992
        %2994 = vadd.xlane.f32.xlu0 %v2853
        %v2995 = vpop.xlane.xlu0 %2994
        %2996 = vadd.xlane.f32.xlu0 %v2854
        %v2997 = vpop.xlane.xlu0 %2996
        %2998 = vadd.xlane.f32.xlu0 %v2855
        %v2999 = vpop.xlane.xlu0 %2998
        %3000 = vadd.xlane.f32.xlu0 %v2856
        %v3001 = vpop.xlane.xlu0 %3000
        %3002 = vadd.xlane.f32.xlu0 %v2857
        %v3003 = vpop.xlane.xlu0 %3002
        %3004 = vadd.xlane.f32.xlu0 %v2858
        %v3005 = vpop.xlane.xlu0 %3004
        %3006 = vadd.xlane.f32.xlu0 %v2859
        %v3007 = vpop.xlane.xlu0 %3006
        %3008 = vadd.xlane.f32.xlu0 %v2860
        %v3009 = vpop.xlane.xlu0 %3008
        %3010 = vadd.xlane.f32.xlu0 %v2861
        %v3011 = vpop.xlane.xlu0 %3010
        %3012 = vadd.xlane.f32.xlu0 %v2862
        %v3013 = vpop.xlane.xlu0 %3012
        %3014 = vadd.xlane.f32.xlu0 %v2863
        %v3015 = vpop.xlane.xlu0 %3014
        %3016 = vadd.xlane.f32.xlu0 %v2864
        %v3017 = vpop.xlane.xlu0 %3016
        %3018 = vadd.xlane.f32.xlu0 %v2865
        %v3019 = vpop.xlane.xlu0 %3018
        %3020 = vadd.xlane.f32.xlu0 %v2866
        %v3021 = vpop.xlane.xlu0 %3020
        %3022 = vadd.xlane.f32.xlu0 %v2867
        %v3023 = vpop.xlane.xlu0 %3022
        %3024 = vadd.xlane.f32.xlu0 %v2868
        %v3025 = vpop.xlane.xlu0 %3024
        %3026 = vadd.xlane.f32.xlu0 %v2869
        %v3027 = vpop.xlane.xlu0 %3026
        %3028 = vadd.xlane.f32.xlu0 %v2870
        %v3029 = vpop.xlane.xlu0 %3028
        %3030 = vadd.xlane.f32.xlu0 %v2871
        %v3031 = vpop.xlane.xlu0 %3030
        %3032 = vadd.xlane.f32.xlu0 %v2872
        %v3033 = vpop.xlane.xlu0 %3032
        %3034 = vadd.xlane.f32.xlu0 %v2873
        %v3035 = vpop.xlane.xlu0 %3034
        %3036 = vadd.xlane.f32.xlu0 %v2874
        %v3037 = vpop.xlane.xlu0 %3036
        %3038 = vadd.xlane.f32.xlu0 %v2875
        %v3039 = vpop.xlane.xlu0 %3038
        %3040 = vadd.xlane.f32.xlu0 %v2876
        %v3041 = vpop.xlane.xlu0 %3040
        %3042 = vadd.xlane.f32.xlu0 %v2877
        %v3043 = vpop.xlane.xlu0 %3042
        %3044 = vadd.xlane.f32.xlu0 %v2878
        %v3045 = vpop.xlane.xlu0 %3044
        %3046 = vadd.xlane.f32.xlu0 %v2879
        %v3047 = vpop.xlane.xlu0 %3046
        %3048 = vadd.xlane.f32.xlu0 %v2880
        %v3049 = vpop.xlane.xlu0 %3048
        %3050 = vadd.xlane.f32.xlu0 %v2881
        %v3051 = vpop.xlane.xlu0 %3050
        %3052 = vadd.xlane.f32.xlu0 %v2882
        %v3053 = vpop.xlane.xlu0 %3052
        %3054 = vadd.xlane.f32.xlu0 %v2883
        %v3055 = vpop.xlane.xlu0 %3054
        %3056 = vadd.xlane.f32.xlu0 %v2884
        %v3057 = vpop.xlane.xlu0 %3056
        %3058 = vadd.xlane.f32.xlu0 %v2885
        %v3059 = vpop.xlane.xlu0 %3058
        %3060 = vadd.xlane.f32.xlu0 %v2886
        %v3061 = vpop.xlane.xlu0 %3060
        %3062 = vadd.xlane.f32.xlu0 %v2887
        %v3063 = vpop.xlane.xlu0 %3062
        %3064 = vadd.xlane.f32.xlu0 %v2888
        %v3065 = vpop.xlane.xlu0 %3064
        %3066 = vadd.xlane.f32.xlu0 %v2889
        %v3067 = vpop.xlane.xlu0 %3066
        %3068 = vadd.xlane.f32.xlu0 %v2890
        %v3069 = vpop.xlane.xlu0 %3068
        %3070 = vadd.xlane.f32.xlu0 %v2891
        %v3071 = vpop.xlane.xlu0 %3070
        %3072 = vadd.xlane.f32.xlu0 %v2892
        %v3073 = vpop.xlane.xlu0 %3072
        %3074 = vadd.xlane.f32.xlu0 %v2893
        %v3075 = vpop.xlane.xlu0 %3074
        %3076 = vadd.xlane.f32.xlu0 %v2894
        %v3077 = vpop.xlane.xlu0 %3076
        %3078 = vadd.xlane.f32.xlu0 %v2895
        %v3079 = vpop.xlane.xlu0 %3078
        %3080 = vadd.xlane.f32.xlu0 %v2896
        %v3081 = vpop.xlane.xlu0 %3080
        %3082 = vadd.xlane.f32.xlu0 %v2897
        %v3083 = vpop.xlane.xlu0 %3082
        %3084 = vadd.xlane.f32.xlu0 %v2898
        %v3085 = vpop.xlane.xlu0 %3084
        %3086 = vadd.xlane.f32.xlu0 %v2899
        %v3087 = vpop.xlane.xlu0 %3086
        %3088 = vadd.xlane.f32.xlu0 %v2900
        %v3089 = vpop.xlane.xlu0 %3088
        %3090 = vadd.xlane.f32.xlu0 %v2901
        %v3091 = vpop.xlane.xlu0 %3090
        %3092 = vadd.xlane.f32.xlu0 %v2902
        %v3093 = vpop.xlane.xlu0 %3092
        %3094 = vadd.xlane.f32.xlu0 %v2903
        %v3095 = vpop.xlane.xlu0 %3094
        %v3096 = vrcp.pop 128.0
        %v3097 = vmul.f32 %v2905, %v3096
        %v3098 = vmul.f32 %v2907, %v3096
        %v3099 = vmul.f32 %v2909, %v3096
        %v3100 = vmul.f32 %v2911, %v3096
        %v3101 = vmul.f32 %v2913, %v3096
        %v3102 = vmul.f32 %v2915, %v3096
        %v3103 = vmul.f32 %v2917, %v3096
        %v3104 = vmul.f32 %v2919, %v3096
        %v3105 = vmul.f32 %v2921, %v3096
        %v3106 = vmul.f32 %v2923, %v3096
        %v3107 = vmul.f32 %v2925, %v3096
        %v3108 = vmul.f32 %v2927, %v3096
        %v3109 = vmul.f32 %v2929, %v3096
        %v3110 = vmul.f32 %v2931, %v3096
        %v3111 = vmul.f32 %v2933, %v3096
        %v3112 = vmul.f32 %v2935, %v3096
        %v3113 = vmul.f32 %v2937, %v3096
        %v3114 = vmul.f32 %v2939, %v3096
        %v3115 = vmul.f32 %v2941, %v3096
        %v3116 = vmul.f32 %v2943, %v3096
        %v3117 = vmul.f32 %v2945, %v3096
        %v3118 = vmul.f32 %v2947, %v3096
        %v3119 = vmul.f32 %v2949, %v3096
        %v3120 = vmul.f32 %v2951, %v3096
        %v3121 = vmul.f32 %v2953, %v3096
        %v3122 = vmul.f32 %v2955, %v3096
        %v3123 = vmul.f32 %v2957, %v3096
        %v3124 = vmul.f32 %v2959, %v3096
        %v3125 = vmul.f32 %v2961, %v3096
        %v3126 = vmul.f32 %v2963, %v3096
        %v3127 = vmul.f32 %v2965, %v3096
        %v3128 = vmul.f32 %v2967, %v3096
        %v3129 = vmul.f32 %v2969, %v3096
        %v3130 = vmul.f32 %v2971, %v3096
        %v3131 = vmul.f32 %v2973, %v3096
        %v3132 = vmul.f32 %v2975, %v3096
        %v3133 = vmul.f32 %v2977, %v3096
        %v3134 = vmul.f32 %v2979, %v3096
        %v3135 = vmul.f32 %v2981, %v3096
        %v3136 = vmul.f32 %v2983, %v3096
        %v3137 = vmul.f32 %v2985, %v3096
        %v3138 = vmul.f32 %v2987, %v3096
        %v3139 = vmul.f32 %v2989, %v3096
        %v3140 = vmul.f32 %v2991, %v3096
        %v3141 = vmul.f32 %v2993, %v3096
        %v3142 = vmul.f32 %v2995, %v3096
        %v3143 = vmul.f32 %v2997, %v3096
        %v3144 = vmul.f32 %v2999, %v3096
        %v3145 = vmul.f32 %v3001, %v3096
        %v3146 = vmul.f32 %v3003, %v3096
        %v3147 = vmul.f32 %v3005, %v3096
        %v3148 = vmul.f32 %v3007, %v3096
        %v3149 = vmul.f32 %v3009, %v3096
        %v3150 = vmul.f32 %v3011, %v3096
        %v3151 = vmul.f32 %v3013, %v3096
        %v3152 = vmul.f32 %v3015, %v3096
        %v3153 = vmul.f32 %v3017, %v3096
        %v3154 = vmul.f32 %v3019, %v3096
        %v3155 = vmul.f32 %v3021, %v3096
        %v3156 = vmul.f32 %v3023, %v3096
        %v3157 = vmul.f32 %v3025, %v3096
        %v3158 = vmul.f32 %v3027, %v3096
        %v3159 = vmul.f32 %v3029, %v3096
        %v3160 = vmul.f32 %v3031, %v3096
        %v3161 = vmul.f32 %v3033, %v3096
        %v3162 = vmul.f32 %v3035, %v3096
        %v3163 = vmul.f32 %v3037, %v3096
        %v3164 = vmul.f32 %v3039, %v3096
        %v3165 = vmul.f32 %v3041, %v3096
        %v3166 = vmul.f32 %v3043, %v3096
        %v3167 = vmul.f32 %v3045, %v3096
        %v3168 = vmul.f32 %v3047, %v3096
        %v3169 = vmul.f32 %v3049, %v3096
        %v3170 = vmul.f32 %v3051, %v3096
        %v3171 = vmul.f32 %v3053, %v3096
        %v3172 = vmul.f32 %v3055, %v3096
        %v3173 = vmul.f32 %v3057, %v3096
        %v3174 = vmul.f32 %v3059, %v3096
        %v3175 = vmul.f32 %v3061, %v3096
        %v3176 = vmul.f32 %v3063, %v3096
        %v3177 = vmul.f32 %v3065, %v3096
        %v3178 = vmul.f32 %v3067, %v3096
        %v3179 = vmul.f32 %v3069, %v3096
        %v3180 = vmul.f32 %v3071, %v3096
        %v3181 = vmul.f32 %v3073, %v3096
        %v3182 = vmul.f32 %v3075, %v3096
        %v3183 = vmul.f32 %v3077, %v3096
        %v3184 = vmul.f32 %v3079, %v3096
        %v3185 = vmul.f32 %v3081, %v3096
        %v3186 = vmul.f32 %v3083, %v3096
        %v3187 = vmul.f32 %v3085, %v3096
        %v3188 = vmul.f32 %v3087, %v3096
        %v3189 = vmul.f32 %v3089, %v3096
        %v3190 = vmul.f32 %v3091, %v3096
        %v3191 = vmul.f32 %v3093, %v3096
        %v3192 = vmul.f32 %v3095, %v3096
        %v3193 = vmul.f32 %v2808, %v2808
        %v3194 = vmul.f32 %v2809, %v2809
        %v3195 = vmul.f32 %v2810, %v2810
        %v3196 = vmul.f32 %v2811, %v2811
        %v3197 = vmul.f32 %v2812, %v2812
        %v3198 = vmul.f32 %v2813, %v2813
        %v3199 = vmul.f32 %v2814, %v2814
        %v3200 = vmul.f32 %v2815, %v2815
        %v3201 = vmul.f32 %v2816, %v2816
        %v3202 = vmul.f32 %v2817, %v2817
        %v3203 = vmul.f32 %v2818, %v2818
        %v3204 = vmul.f32 %v2819, %v2819
        %v3205 = vmul.f32 %v2820, %v2820
        %v3206 = vmul.f32 %v2821, %v2821
        %v3207 = vmul.f32 %v2822, %v2822
        %v3208 = vmul.f32 %v2823, %v2823
        %v3209 = vmul.f32 %v2824, %v2824
        %v3210 = vmul.f32 %v2825, %v2825
        %v3211 = vmul.f32 %v2826, %v2826
        %v3212 = vmul.f32 %v2827, %v2827
        %v3213 = vmul.f32 %v2828, %v2828
        %v3214 = vmul.f32 %v2829, %v2829
        %v3215 = vmul.f32 %v2830, %v2830
        %v3216 = vmul.f32 %v2831, %v2831
        %v3217 = vmul.f32 %v2832, %v2832
        %v3218 = vmul.f32 %v2833, %v2833
        %v3219 = vmul.f32 %v2834, %v2834
        %v3220 = vmul.f32 %v2835, %v2835
        %v3221 = vmul.f32 %v2836, %v2836
        %v3222 = vmul.f32 %v2837, %v2837
        %v3223 = vmul.f32 %v2838, %v2838
        %v3224 = vmul.f32 %v2839, %v2839
        %v3225 = vmul.f32 %v2840, %v2840
        %v3226 = vmul.f32 %v2841, %v2841
        %v3227 = vmul.f32 %v2842, %v2842
        %v3228 = vmul.f32 %v2843, %v2843
        %v3229 = vmul.f32 %v2844, %v2844
        %v3230 = vmul.f32 %v2845, %v2845
        %v3231 = vmul.f32 %v2846, %v2846
        %v3232 = vmul.f32 %v2847, %v2847
        %v3233 = vmul.f32 %v2848, %v2848
        %v3234 = vmul.f32 %v2849, %v2849
        %v3235 = vmul.f32 %v2850, %v2850
        %v3236 = vmul.f32 %v2851, %v2851
        %v3237 = vmul.f32 %v2852, %v2852
        %v3238 = vmul.f32 %v2853, %v2853
        %v3239 = vmul.f32 %v2854, %v2854
        %v3240 = vmul.f32 %v2855, %v2855
        %v3241 = vmul.f32 %v2856, %v2856
        %v3242 = vmul.f32 %v2857, %v2857
        %v3243 = vmul.f32 %v2858, %v2858
        %v3244 = vmul.f32 %v2859, %v2859
        %v3245 = vmul.f32 %v2860, %v2860
        %v3246 = vmul.f32 %v2861, %v2861
        %v3247 = vmul.f32 %v2862, %v2862
        %v3248 = vmul.f32 %v2863, %v2863
        %v3249 = vmul.f32 %v2864, %v2864
        %v3250 = vmul.f32 %v2865, %v2865
        %v3251 = vmul.f32 %v2866, %v2866
        %v3252 = vmul.f32 %v2867, %v2867
        %v3253 = vmul.f32 %v2868, %v2868
        %v3254 = vmul.f32 %v2869, %v2869
        %v3255 = vmul.f32 %v2870, %v2870
        %v3256 = vmul.f32 %v2871, %v2871
        %v3257 = vmul.f32 %v2872, %v2872
        %v3258 = vmul.f32 %v2873, %v2873
        %v3259 = vmul.f32 %v2874, %v2874
        %v3260 = vmul.f32 %v2875, %v2875
        %v3261 = vmul.f32 %v2876, %v2876
        %v3262 = vmul.f32 %v2877, %v2877
        %v3263 = vmul.f32 %v2878, %v2878
        %v3264 = vmul.f32 %v2879, %v2879
        %v3265 = vmul.f32 %v2880, %v2880
        %v3266 = vmul.f32 %v2881, %v2881
        %v3267 = vmul.f32 %v2882, %v2882
        %v3268 = vmul.f32 %v2883, %v2883
        %v3269 = vmul.f32 %v2884, %v2884
        %v3270 = vmul.f32 %v2885, %v2885
        %v3271 = vmul.f32 %v2886, %v2886
        %v3272 = vmul.f32 %v2887, %v2887
        %v3273 = vmul.f32 %v2888, %v2888
        %v3274 = vmul.f32 %v2889, %v2889
        %v3275 = vmul.f32 %v2890, %v2890
        %v3276 = vmul.f32 %v2891, %v2891
        %v3277 = vmul.f32 %v2892, %v2892
        %v3278 = vmul.f32 %v2893, %v2893
        %v3279 = vmul.f32 %v2894, %v2894
        %v3280 = vmul.f32 %v2895, %v2895
        %v3281 = vmul.f32 %v2896, %v2896
        %v3282 = vmul.f32 %v2897, %v2897
        %v3283 = vmul.f32 %v2898, %v2898
        %v3284 = vmul.f32 %v2899, %v2899
        %v3285 = vmul.f32 %v2900, %v2900
        %v3286 = vmul.f32 %v2901, %v2901
        %v3287 = vmul.f32 %v2902, %v2902
        %v3288 = vmul.f32 %v2903, %v2903
        %3289 = vadd.xlane.f32.xlu0 %v3193
        %v3290 = vpop.xlane.xlu0 %3289
        %3291 = vadd.xlane.f32.xlu0 %v3194
        %v3292 = vpop.xlane.xlu0 %3291
        %3293 = vadd.xlane.f32.xlu0 %v3195
        %v3294 = vpop.xlane.xlu0 %3293
        %3295 = vadd.xlane.f32.xlu0 %v3196
        %v3296 = vpop.xlane.xlu0 %3295
        %3297 = vadd.xlane.f32.xlu0 %v3197
        %v3298 = vpop.xlane.xlu0 %3297
        %3299 = vadd.xlane.f32.xlu0 %v3198
        %v3300 = vpop.xlane.xlu0 %3299
        %3301 = vadd.xlane.f32.xlu0 %v3199
        %v3302 = vpop.xlane.xlu0 %3301
        %3303 = vadd.xlane.f32.xlu0 %v3200
        %v3304 = vpop.xlane.xlu0 %3303
        %3305 = vadd.xlane.f32.xlu0 %v3201
        %v3306 = vpop.xlane.xlu0 %3305
        %3307 = vadd.xlane.f32.xlu0 %v3202
        %v3308 = vpop.xlane.xlu0 %3307
        %3309 = vadd.xlane.f32.xlu0 %v3203
        %v3310 = vpop.xlane.xlu0 %3309
        %3311 = vadd.xlane.f32.xlu0 %v3204
        %v3312 = vpop.xlane.xlu0 %3311
        %3313 = vadd.xlane.f32.xlu0 %v3205
        %v3314 = vpop.xlane.xlu0 %3313
        %3315 = vadd.xlane.f32.xlu0 %v3206
        %v3316 = vpop.xlane.xlu0 %3315
        %3317 = vadd.xlane.f32.xlu0 %v3207
        %v3318 = vpop.xlane.xlu0 %3317
        %3319 = vadd.xlane.f32.xlu0 %v3208
        %v3320 = vpop.xlane.xlu0 %3319
        %3321 = vadd.xlane.f32.xlu0 %v3209
        %v3322 = vpop.xlane.xlu0 %3321
        %3323 = vadd.xlane.f32.xlu0 %v3210
        %v3324 = vpop.xlane.xlu0 %3323
        %3325 = vadd.xlane.f32.xlu0 %v3211
        %v3326 = vpop.xlane.xlu0 %3325
        %3327 = vadd.xlane.f32.xlu0 %v3212
        %v3328 = vpop.xlane.xlu0 %3327
        %3329 = vadd.xlane.f32.xlu0 %v3213
        %v3330 = vpop.xlane.xlu0 %3329
        %3331 = vadd.xlane.f32.xlu0 %v3214
        %v3332 = vpop.xlane.xlu0 %3331
        %3333 = vadd.xlane.f32.xlu0 %v3215
        %v3334 = vpop.xlane.xlu0 %3333
        %3335 = vadd.xlane.f32.xlu0 %v3216
        %v3336 = vpop.xlane.xlu0 %3335
        %3337 = vadd.xlane.f32.xlu0 %v3217
        %v3338 = vpop.xlane.xlu0 %3337
        %3339 = vadd.xlane.f32.xlu0 %v3218
        %v3340 = vpop.xlane.xlu0 %3339
        %3341 = vadd.xlane.f32.xlu0 %v3219
        %v3342 = vpop.xlane.xlu0 %3341
        %3343 = vadd.xlane.f32.xlu0 %v3220
        %v3344 = vpop.xlane.xlu0 %3343
        %3345 = vadd.xlane.f32.xlu0 %v3221
        %v3346 = vpop.xlane.xlu0 %3345
        %3347 = vadd.xlane.f32.xlu0 %v3222
        %v3348 = vpop.xlane.xlu0 %3347
        %3349 = vadd.xlane.f32.xlu0 %v3223
        %v3350 = vpop.xlane.xlu0 %3349
        %3351 = vadd.xlane.f32.xlu0 %v3224
        %v3352 = vpop.xlane.xlu0 %3351
        %3353 = vadd.xlane.f32.xlu0 %v3225
        %v3354 = vpop.xlane.xlu0 %3353
        %3355 = vadd.xlane.f32.xlu0 %v3226
        %v3356 = vpop.xlane.xlu0 %3355
        %3357 = vadd.xlane.f32.xlu0 %v3227
        %v3358 = vpop.xlane.xlu0 %3357
        %3359 = vadd.xlane.f32.xlu0 %v3228
        %v3360 = vpop.xlane.xlu0 %3359
        %3361 = vadd.xlane.f32.xlu0 %v3229
        %v3362 = vpop.xlane.xlu0 %3361
        %3363 = vadd.xlane.f32.xlu0 %v3230
        %v3364 = vpop.xlane.xlu0 %3363
        %3365 = vadd.xlane.f32.xlu0 %v3231
        %v3366 = vpop.xlane.xlu0 %3365
        %3367 = vadd.xlane.f32.xlu0 %v3232
        %v3368 = vpop.xlane.xlu0 %3367
        %3369 = vadd.xlane.f32.xlu0 %v3233
        %v3370 = vpop.xlane.xlu0 %3369
        %3371 = vadd.xlane.f32.xlu0 %v3234
        %v3372 = vpop.xlane.xlu0 %3371
        %3373 = vadd.xlane.f32.xlu0 %v3235
        %v3374 = vpop.xlane.xlu0 %3373
        %3375 = vadd.xlane.f32.xlu0 %v3236
        %v3376 = vpop.xlane.xlu0 %3375
        %3377 = vadd.xlane.f32.xlu0 %v3237
        %v3378 = vpop.xlane.xlu0 %3377
        %3379 = vadd.xlane.f32.xlu0 %v3238
        %v3380 = vpop.xlane.xlu0 %3379
        %3381 = vadd.xlane.f32.xlu0 %v3239
        %v3382 = vpop.xlane.xlu0 %3381
        %3383 = vadd.xlane.f32.xlu0 %v3240
        %v3384 = vpop.xlane.xlu0 %3383
        %3385 = vadd.xlane.f32.xlu0 %v3241
        %v3386 = vpop.xlane.xlu0 %3385
        %3387 = vadd.xlane.f32.xlu0 %v3242
        %v3388 = vpop.xlane.xlu0 %3387
        %3389 = vadd.xlane.f32.xlu0 %v3243
        %v3390 = vpop.xlane.xlu0 %3389
        %3391 = vadd.xlane.f32.xlu0 %v3244
        %v3392 = vpop.xlane.xlu0 %3391
        %3393 = vadd.xlane.f32.xlu0 %v3245
        %v3394 = vpop.xlane.xlu0 %3393
        %3395 = vadd.xlane.f32.xlu0 %v3246
        %v3396 = vpop.xlane.xlu0 %3395
        %3397 = vadd.xlane.f32.xlu0 %v3247
        %v3398 = vpop.xlane.xlu0 %3397
        %3399 = vadd.xlane.f32.xlu0 %v3248
        %v3400 = vpop.xlane.xlu0 %3399
        %3401 = vadd.xlane.f32.xlu0 %v3249
        %v3402 = vpop.xlane.xlu0 %3401
        %3403 = vadd.xlane.f32.xlu0 %v3250
        %v3404 = vpop.xlane.xlu0 %3403
        %3405 = vadd.xlane.f32.xlu0 %v3251
        %v3406 = vpop.xlane.xlu0 %3405
        %3407 = vadd.xlane.f32.xlu0 %v3252
        %v3408 = vpop.xlane.xlu0 %3407
        %3409 = vadd.xlane.f32.xlu0 %v3253
        %v3410 = vpop.xlane.xlu0 %3409
        %3411 = vadd.xlane.f32.xlu0 %v3254
        %v3412 = vpop.xlane.xlu0 %3411
        %3413 = vadd.xlane.f32.xlu0 %v3255
        %v3414 = vpop.xlane.xlu0 %3413
        %3415 = vadd.xlane.f32.xlu0 %v3256
        %v3416 = vpop.xlane.xlu0 %3415
        %3417 = vadd.xlane.f32.xlu0 %v3257
        %v3418 = vpop.xlane.xlu0 %3417
        %3419 = vadd.xlane.f32.xlu0 %v3258
        %v3420 = vpop.xlane.xlu0 %3419
        %3421 = vadd.xlane.f32.xlu0 %v3259
        %v3422 = vpop.xlane.xlu0 %3421
        %3423 = vadd.xlane.f32.xlu0 %v3260
        %v3424 = vpop.xlane.xlu0 %3423
        %3425 = vadd.xlane.f32.xlu0 %v3261
        %v3426 = vpop.xlane.xlu0 %3425
        %3427 = vadd.xlane.f32.xlu0 %v3262
        %v3428 = vpop.xlane.xlu0 %3427
        %3429 = vadd.xlane.f32.xlu0 %v3263
        %v3430 = vpop.xlane.xlu0 %3429
        %3431 = vadd.xlane.f32.xlu0 %v3264
        %v3432 = vpop.xlane.xlu0 %3431
        %3433 = vadd.xlane.f32.xlu0 %v3265
        %v3434 = vpop.xlane.xlu0 %3433
        %3435 = vadd.xlane.f32.xlu0 %v3266
        %v3436 = vpop.xlane.xlu0 %3435
        %3437 = vadd.xlane.f32.xlu0 %v3267
        %v3438 = vpop.xlane.xlu0 %3437
        %3439 = vadd.xlane.f32.xlu0 %v3268
        %v3440 = vpop.xlane.xlu0 %3439
        %3441 = vadd.xlane.f32.xlu0 %v3269
        %v3442 = vpop.xlane.xlu0 %3441
        %3443 = vadd.xlane.f32.xlu0 %v3270
        %v3444 = vpop.xlane.xlu0 %3443
        %3445 = vadd.xlane.f32.xlu0 %v3271
        %v3446 = vpop.xlane.xlu0 %3445
        %3447 = vadd.xlane.f32.xlu0 %v3272
        %v3448 = vpop.xlane.xlu0 %3447
        %3449 = vadd.xlane.f32.xlu0 %v3273
        %v3450 = vpop.xlane.xlu0 %3449
        %3451 = vadd.xlane.f32.xlu0 %v3274
        %v3452 = vpop.xlane.xlu0 %3451
        %3453 = vadd.xlane.f32.xlu0 %v3275
        %v3454 = vpop.xlane.xlu0 %3453
        %3455 = vadd.xlane.f32.xlu0 %v3276
        %v3456 = vpop.xlane.xlu0 %3455
        %3457 = vadd.xlane.f32.xlu0 %v3277
        %v3458 = vpop.xlane.xlu0 %3457
        %3459 = vadd.xlane.f32.xlu0 %v3278
        %v3460 = vpop.xlane.xlu0 %3459
        %3461 = vadd.xlane.f32.xlu0 %v3279
        %v3462 = vpop.xlane.xlu0 %3461
        %3463 = vadd.xlane.f32.xlu0 %v3280
        %v3464 = vpop.xlane.xlu0 %3463
        %3465 = vadd.xlane.f32.xlu0 %v3281
        %v3466 = vpop.xlane.xlu0 %3465
        %3467 = vadd.xlane.f32.xlu0 %v3282
        %v3468 = vpop.xlane.xlu0 %3467
        %3469 = vadd.xlane.f32.xlu0 %v3283
        %v3470 = vpop.xlane.xlu0 %3469
        %3471 = vadd.xlane.f32.xlu0 %v3284
        %v3472 = vpop.xlane.xlu0 %3471
        %3473 = vadd.xlane.f32.xlu0 %v3285
        %v3474 = vpop.xlane.xlu0 %3473
        %3475 = vadd.xlane.f32.xlu0 %v3286
        %v3476 = vpop.xlane.xlu0 %3475
        %3477 = vadd.xlane.f32.xlu0 %v3287
        %v3478 = vpop.xlane.xlu0 %3477
        %3479 = vadd.xlane.f32.xlu0 %v3288
        %v3480 = vpop.xlane.xlu0 %3479
        %v3481 = vmul.f32 %v3290, %v3096
        %v3482 = vmul.f32 %v3292, %v3096
        %v3483 = vmul.f32 %v3294, %v3096
        %v3484 = vmul.f32 %v3296, %v3096
        %v3485 = vmul.f32 %v3298, %v3096
        %v3486 = vmul.f32 %v3300, %v3096
        %v3487 = vmul.f32 %v3302, %v3096
        %v3488 = vmul.f32 %v3304, %v3096
        %v3489 = vmul.f32 %v3306, %v3096
        %v3490 = vmul.f32 %v3308, %v3096
        %v3491 = vmul.f32 %v3310, %v3096
        %v3492 = vmul.f32 %v3312, %v3096
        %v3493 = vmul.f32 %v3314, %v3096
        %v3494 = vmul.f32 %v3316, %v3096
        %v3495 = vmul.f32 %v3318, %v3096
        %v3496 = vmul.f32 %v3320, %v3096
        %v3497 = vmul.f32 %v3322, %v3096
        %v3498 = vmul.f32 %v3324, %v3096
        %v3499 = vmul.f32 %v3326, %v3096
        %v3500 = vmul.f32 %v3328, %v3096
        %v3501 = vmul.f32 %v3330, %v3096
        %v3502 = vmul.f32 %v3332, %v3096
        %v3503 = vmul.f32 %v3334, %v3096
        %v3504 = vmul.f32 %v3336, %v3096
        %v3505 = vmul.f32 %v3338, %v3096
        %v3506 = vmul.f32 %v3340, %v3096
        %v3507 = vmul.f32 %v3342, %v3096
        %v3508 = vmul.f32 %v3344, %v3096
        %v3509 = vmul.f32 %v3346, %v3096
        %v3510 = vmul.f32 %v3348, %v3096
        %v3511 = vmul.f32 %v3350, %v3096
        %v3512 = vmul.f32 %v3352, %v3096
        %v3513 = vmul.f32 %v3354, %v3096
        %v3514 = vmul.f32 %v3356, %v3096
        %v3515 = vmul.f32 %v3358, %v3096
        %v3516 = vmul.f32 %v3360, %v3096
        %v3517 = vmul.f32 %v3362, %v3096
        %v3518 = vmul.f32 %v3364, %v3096
        %v3519 = vmul.f32 %v3366, %v3096
        %v3520 = vmul.f32 %v3368, %v3096
        %v3521 = vmul.f32 %v3370, %v3096
        %v3522 = vmul.f32 %v3372, %v3096
        %v3523 = vmul.f32 %v3374, %v3096
        %v3524 = vmul.f32 %v3376, %v3096
        %v3525 = vmul.f32 %v3378, %v3096
        %v3526 = vmul.f32 %v3380, %v3096
        %v3527 = vmul.f32 %v3382, %v3096
        %v3528 = vmul.f32 %v3384, %v3096
        %v3529 = vmul.f32 %v3386, %v3096
        %v3530 = vmul.f32 %v3388, %v3096
        %v3531 = vmul.f32 %v3390, %v3096
        %v3532 = vmul.f32 %v3392, %v3096
        %v3533 = vmul.f32 %v3394, %v3096
        %v3534 = vmul.f32 %v3396, %v3096
        %v3535 = vmul.f32 %v3398, %v3096
        %v3536 = vmul.f32 %v3400, %v3096
        %v3537 = vmul.f32 %v3402, %v3096
        %v3538 = vmul.f32 %v3404, %v3096
        %v3539 = vmul.f32 %v3406, %v3096
        %v3540 = vmul.f32 %v3408, %v3096
        %v3541 = vmul.f32 %v3410, %v3096
        %v3542 = vmul.f32 %v3412, %v3096
        %v3543 = vmul.f32 %v3414, %v3096
        %v3544 = vmul.f32 %v3416, %v3096
        %v3545 = vmul.f32 %v3418, %v3096
        %v3546 = vmul.f32 %v3420, %v3096
        %v3547 = vmul.f32 %v3422, %v3096
        %v3548 = vmul.f32 %v3424, %v3096
        %v3549 = vmul.f32 %v3426, %v3096
        %v3550 = vmul.f32 %v3428, %v3096
        %v3551 = vmul.f32 %v3430, %v3096
        %v3552 = vmul.f32 %v3432, %v3096
        %v3553 = vmul.f32 %v3434, %v3096
        %v3554 = vmul.f32 %v3436, %v3096
        %v3555 = vmul.f32 %v3438, %v3096
        %v3556 = vmul.f32 %v3440, %v3096
        %v3557 = vmul.f32 %v3442, %v3096
        %v3558 = vmul.f32 %v3444, %v3096
        %v3559 = vmul.f32 %v3446, %v3096
        %v3560 = vmul.f32 %v3448, %v3096
        %v3561 = vmul.f32 %v3450, %v3096
        %v3562 = vmul.f32 %v3452, %v3096
        %v3563 = vmul.f32 %v3454, %v3096
        %v3564 = vmul.f32 %v3456, %v3096
        %v3565 = vmul.f32 %v3458, %v3096
        %v3566 = vmul.f32 %v3460, %v3096
        %v3567 = vmul.f32 %v3462, %v3096
        %v3568 = vmul.f32 %v3464, %v3096
        %v3569 = vmul.f32 %v3466, %v3096
        %v3570 = vmul.f32 %v3468, %v3096
        %v3571 = vmul.f32 %v3470, %v3096
        %v3572 = vmul.f32 %v3472, %v3096
        %v3573 = vmul.f32 %v3474, %v3096
        %v3574 = vmul.f32 %v3476, %v3096
        %v3575 = vmul.f32 %v3478, %v3096
        %v3576 = vmul.f32 %v3480, %v3096
        %v3577 = vmul.f32 %v3097, %v3097
        %v3578 = vmul.f32 %v3098, %v3098
        %v3579 = vmul.f32 %v3099, %v3099
        %v3580 = vmul.f32 %v3100, %v3100
        %v3581 = vmul.f32 %v3101, %v3101
        %v3582 = vmul.f32 %v3102, %v3102
        %v3583 = vmul.f32 %v3103, %v3103
        %v3584 = vmul.f32 %v3104, %v3104
        %v3585 = vmul.f32 %v3105, %v3105
        %v3586 = vmul.f32 %v3106, %v3106
        %v3587 = vmul.f32 %v3107, %v3107
        %v3588 = vmul.f32 %v3108, %v3108
        %v3589 = vmul.f32 %v3109, %v3109
        %v3590 = vmul.f32 %v3110, %v3110
        %v3591 = vmul.f32 %v3111, %v3111
        %v3592 = vmul.f32 %v3112, %v3112
        %v3593 = vmul.f32 %v3113, %v3113
        %v3594 = vmul.f32 %v3114, %v3114
        %v3595 = vmul.f32 %v3115, %v3115
        %v3596 = vmul.f32 %v3116, %v3116
        %v3597 = vmul.f32 %v3117, %v3117
        %v3598 = vmul.f32 %v3118, %v3118
        %v3599 = vmul.f32 %v3119, %v3119
        %v3600 = vmul.f32 %v3120, %v3120
        %v3601 = vmul.f32 %v3121, %v3121
        %v3602 = vmul.f32 %v3122, %v3122
        %v3603 = vmul.f32 %v3123, %v3123
        %v3604 = vmul.f32 %v3124, %v3124
        %v3605 = vmul.f32 %v3125, %v3125
        %v3606 = vmul.f32 %v3126, %v3126
        %v3607 = vmul.f32 %v3127, %v3127
        %v3608 = vmul.f32 %v3128, %v3128
        %v3609 = vmul.f32 %v3129, %v3129
        %v3610 = vmul.f32 %v3130, %v3130
        %v3611 = vmul.f32 %v3131, %v3131
        %v3612 = vmul.f32 %v3132, %v3132
        %v3613 = vmul.f32 %v3133, %v3133
        %v3614 = vmul.f32 %v3134, %v3134
        %v3615 = vmul.f32 %v3135, %v3135
        %v3616 = vmul.f32 %v3136, %v3136
        %v3617 = vmul.f32 %v3137, %v3137
        %v3618 = vmul.f32 %v3138, %v3138
        %v3619 = vmul.f32 %v3139, %v3139
        %v3620 = vmul.f32 %v3140, %v3140
        %v3621 = vmul.f32 %v3141, %v3141
        %v3622 = vmul.f32 %v3142, %v3142
        %v3623 = vmul.f32 %v3143, %v3143
        %v3624 = vmul.f32 %v3144, %v3144
        %v3625 = vmul.f32 %v3145, %v3145
        %v3626 = vmul.f32 %v3146, %v3146
        %v3627 = vmul.f32 %v3147, %v3147
        %v3628 = vmul.f32 %v3148, %v3148
        %v3629 = vmul.f32 %v3149, %v3149
        %v3630 = vmul.f32 %v3150, %v3150
        %v3631 = vmul.f32 %v3151, %v3151
        %v3632 = vmul.f32 %v3152, %v3152
        %v3633 = vmul.f32 %v3153, %v3153
        %v3634 = vmul.f32 %v3154, %v3154
        %v3635 = vmul.f32 %v3155, %v3155
        %v3636 = vmul.f32 %v3156, %v3156
        %v3637 = vmul.f32 %v3157, %v3157
        %v3638 = vmul.f32 %v3158, %v3158
        %v3639 = vmul.f32 %v3159, %v3159
        %v3640 = vmul.f32 %v3160, %v3160
        %v3641 = vmul.f32 %v3161, %v3161
        %v3642 = vmul.f32 %v3162, %v3162
        %v3643 = vmul.f32 %v3163, %v3163
        %v3644 = vmul.f32 %v3164, %v3164
        %v3645 = vmul.f32 %v3165, %v3165
        %v3646 = vmul.f32 %v3166, %v3166
        %v3647 = vmul.f32 %v3167, %v3167
        %v3648 = vmul.f32 %v3168, %v3168
        %v3649 = vmul.f32 %v3169, %v3169
        %v3650 = vmul.f32 %v3170, %v3170
        %v3651 = vmul.f32 %v3171, %v3171
        %v3652 = vmul.f32 %v3172, %v3172
        %v3653 = vmul.f32 %v3173, %v3173
        %v3654 = vmul.f32 %v3174, %v3174
        %v3655 = vmul.f32 %v3175, %v3175
        %v3656 = vmul.f32 %v3176, %v3176
        %v3657 = vmul.f32 %v3177, %v3177
        %v3658 = vmul.f32 %v3178, %v3178
        %v3659 = vmul.f32 %v3179, %v3179
        %v3660 = vmul.f32 %v3180, %v3180
        %v3661 = vmul.f32 %v3181, %v3181
        %v3662 = vmul.f32 %v3182, %v3182
        %v3663 = vmul.f32 %v3183, %v3183
        %v3664 = vmul.f32 %v3184, %v3184
        %v3665 = vmul.f32 %v3185, %v3185
        %v3666 = vmul.f32 %v3186, %v3186
        %v3667 = vmul.f32 %v3187, %v3187
        %v3668 = vmul.f32 %v3188, %v3188
        %v3669 = vmul.f32 %v3189, %v3189
        %v3670 = vmul.f32 %v3190, %v3190
        %v3671 = vmul.f32 %v3191, %v3191
        %v3672 = vmul.f32 %v3192, %v3192
        %v3673 = vsub.f32 %v3481, %v3577
        %v3674 = vsub.f32 %v3482, %v3578
        %v3675 = vsub.f32 %v3483, %v3579
        %v3676 = vsub.f32 %v3484, %v3580
        %v3677 = vsub.f32 %v3485, %v3581
        %v3678 = vsub.f32 %v3486, %v3582
        %v3679 = vsub.f32 %v3487, %v3583
        %v3680 = vsub.f32 %v3488, %v3584
        %v3681 = vsub.f32 %v3489, %v3585
        %v3682 = vsub.f32 %v3490, %v3586
        %v3683 = vsub.f32 %v3491, %v3587
        %v3684 = vsub.f32 %v3492, %v3588
        %v3685 = vsub.f32 %v3493, %v3589
        %v3686 = vsub.f32 %v3494, %v3590
        %v3687 = vsub.f32 %v3495, %v3591
        %v3688 = vsub.f32 %v3496, %v3592
        %v3689 = vsub.f32 %v3497, %v3593
        %v3690 = vsub.f32 %v3498, %v3594
        %v3691 = vsub.f32 %v3499, %v3595
        %v3692 = vsub.f32 %v3500, %v3596
        %v3693 = vsub.f32 %v3501, %v3597
        %v3694 = vsub.f32 %v3502, %v3598
        %v3695 = vsub.f32 %v3503, %v3599
        %v3696 = vsub.f32 %v3504, %v3600
        %v3697 = vsub.f32 %v3505, %v3601
        %v3698 = vsub.f32 %v3506, %v3602
        %v3699 = vsub.f32 %v3507, %v3603
        %v3700 = vsub.f32 %v3508, %v3604
        %v3701 = vsub.f32 %v3509, %v3605
        %v3702 = vsub.f32 %v3510, %v3606
        %v3703 = vsub.f32 %v3511, %v3607
        %v3704 = vsub.f32 %v3512, %v3608
        %v3705 = vsub.f32 %v3513, %v3609
        %v3706 = vsub.f32 %v3514, %v3610
        %v3707 = vsub.f32 %v3515, %v3611
        %v3708 = vsub.f32 %v3516, %v3612
        %v3709 = vsub.f32 %v3517, %v3613
        %v3710 = vsub.f32 %v3518, %v3614
        %v3711 = vsub.f32 %v3519, %v3615
        %v3712 = vsub.f32 %v3520, %v3616
        %v3713 = vsub.f32 %v3521, %v3617
        %v3714 = vsub.f32 %v3522, %v3618
        %v3715 = vsub.f32 %v3523, %v3619
        %v3716 = vsub.f32 %v3524, %v3620
        %v3717 = vsub.f32 %v3525, %v3621
        %v3718 = vsub.f32 %v3526, %v3622
        %v3719 = vsub.f32 %v3527, %v3623
        %v3720 = vsub.f32 %v3528, %v3624
        %v3721 = vsub.f32 %v3529, %v3625
        %v3722 = vsub.f32 %v3530, %v3626
        %v3723 = vsub.f32 %v3531, %v3627
        %v3724 = vsub.f32 %v3532, %v3628
        %v3725 = vsub.f32 %v3533, %v3629
        %v3726 = vsub.f32 %v3534, %v3630
        %v3727 = vsub.f32 %v3535, %v3631
        %v3728 = vsub.f32 %v3536, %v3632
        %v3729 = vsub.f32 %v3537, %v3633
        %v3730 = vsub.f32 %v3538, %v3634
        %v3731 = vsub.f32 %v3539, %v3635
        %v3732 = vsub.f32 %v3540, %v3636
        %v3733 = vsub.f32 %v3541, %v3637
        %v3734 = vsub.f32 %v3542, %v3638
        %v3735 = vsub.f32 %v3543, %v3639
        %v3736 = vsub.f32 %v3544, %v3640
        %v3737 = vsub.f32 %v3545, %v3641
        %v3738 = vsub.f32 %v3546, %v3642
        %v3739 = vsub.f32 %v3547, %v3643
        %v3740 = vsub.f32 %v3548, %v3644
        %v3741 = vsub.f32 %v3549, %v3645
        %v3742 = vsub.f32 %v3550, %v3646
        %v3743 = vsub.f32 %v3551, %v3647
        %v3744 = vsub.f32 %v3552, %v3648
        %v3745 = vsub.f32 %v3553, %v3649
        %v3746 = vsub.f32 %v3554, %v3650
        %v3747 = vsub.f32 %v3555, %v3651
        %v3748 = vsub.f32 %v3556, %v3652
        %v3749 = vsub.f32 %v3557, %v3653
        %v3750 = vsub.f32 %v3558, %v3654
        %v3751 = vsub.f32 %v3559, %v3655
        %v3752 = vsub.f32 %v3560, %v3656
        %v3753 = vsub.f32 %v3561, %v3657
        %v3754 = vsub.f32 %v3562, %v3658
        %v3755 = vsub.f32 %v3563, %v3659
        %v3756 = vsub.f32 %v3564, %v3660
        %v3757 = vsub.f32 %v3565, %v3661
        %v3758 = vsub.f32 %v3566, %v3662
        %v3759 = vsub.f32 %v3567, %v3663
        %v3760 = vsub.f32 %v3568, %v3664
        %v3761 = vsub.f32 %v3569, %v3665
        %v3762 = vsub.f32 %v3570, %v3666
        %v3763 = vsub.f32 %v3571, %v3667
        %v3764 = vsub.f32 %v3572, %v3668
        %v3765 = vsub.f32 %v3573, %v3669
        %v3766 = vsub.f32 %v3574, %v3670
        %v3767 = vsub.f32 %v3575, %v3671
        %v3768 = vsub.f32 %v3576, %v3672
        %v3769 = vmax.f32 %v3673, 0.0
        %v3770 = vmax.f32 %v3674, 0.0
        %v3771 = vmax.f32 %v3675, 0.0
        %v3772 = vmax.f32 %v3676, 0.0
        %v3773 = vmax.f32 %v3677, 0.0
        %v3774 = vmax.f32 %v3678, 0.0
        %v3775 = vmax.f32 %v3679, 0.0
        %v3776 = vmax.f32 %v3680, 0.0
        %v3777 = vmax.f32 %v3681, 0.0
        %v3778 = vmax.f32 %v3682, 0.0
        %v3779 = vmax.f32 %v3683, 0.0
        %v3780 = vmax.f32 %v3684, 0.0
        %v3781 = vmax.f32 %v3685, 0.0
        %v3782 = vmax.f32 %v3686, 0.0
        %v3783 = vmax.f32 %v3687, 0.0
        %v3784 = vmax.f32 %v3688, 0.0
        %v3785 = vmax.f32 %v3689, 0.0
        %v3786 = vmax.f32 %v3690, 0.0
        %v3787 = vmax.f32 %v3691, 0.0
        %v3788 = vmax.f32 %v3692, 0.0
        %v3789 = vmax.f32 %v3693, 0.0
        %v3790 = vmax.f32 %v3694, 0.0
        %v3791 = vmax.f32 %v3695, 0.0
        %v3792 = vmax.f32 %v3696, 0.0
        %v3793 = vmax.f32 %v3697, 0.0
        %v3794 = vmax.f32 %v3698, 0.0
        %v3795 = vmax.f32 %v3699, 0.0
        %v3796 = vmax.f32 %v3700, 0.0
        %v3797 = vmax.f32 %v3701, 0.0
        %v3798 = vmax.f32 %v3702, 0.0
        %v3799 = vmax.f32 %v3703, 0.0
        %v3800 = vmax.f32 %v3704, 0.0
        %v3801 = vmax.f32 %v3705, 0.0
        %v3802 = vmax.f32 %v3706, 0.0
        %v3803 = vmax.f32 %v3707, 0.0
        %v3804 = vmax.f32 %v3708, 0.0
        %v3805 = vmax.f32 %v3709, 0.0
        %v3806 = vmax.f32 %v3710, 0.0
        %v3807 = vmax.f32 %v3711, 0.0
        %v3808 = vmax.f32 %v3712, 0.0
        %v3809 = vmax.f32 %v3713, 0.0
        %v3810 = vmax.f32 %v3714, 0.0
        %v3811 = vmax.f32 %v3715, 0.0
        %v3812 = vmax.f32 %v3716, 0.0
        %v3813 = vmax.f32 %v3717, 0.0
        %v3814 = vmax.f32 %v3718, 0.0
        %v3815 = vmax.f32 %v3719, 0.0
        %v3816 = vmax.f32 %v3720, 0.0
        %v3817 = vmax.f32 %v3721, 0.0
        %v3818 = vmax.f32 %v3722, 0.0
        %v3819 = vmax.f32 %v3723, 0.0
        %v3820 = vmax.f32 %v3724, 0.0
        %v3821 = vmax.f32 %v3725, 0.0
        %v3822 = vmax.f32 %v3726, 0.0
        %v3823 = vmax.f32 %v3727, 0.0
        %v3824 = vmax.f32 %v3728, 0.0
        %v3825 = vmax.f32 %v3729, 0.0
        %v3826 = vmax.f32 %v3730, 0.0
        %v3827 = vmax.f32 %v3731, 0.0
        %v3828 = vmax.f32 %v3732, 0.0
        %v3829 = vmax.f32 %v3733, 0.0
        %v3830 = vmax.f32 %v3734, 0.0
        %v3831 = vmax.f32 %v3735, 0.0
        %v3832 = vmax.f32 %v3736, 0.0
        %v3833 = vmax.f32 %v3737, 0.0
        %v3834 = vmax.f32 %v3738, 0.0
        %v3835 = vmax.f32 %v3739, 0.0
        %v3836 = vmax.f32 %v3740, 0.0
        %v3837 = vmax.f32 %v3741, 0.0
        %v3838 = vmax.f32 %v3742, 0.0
        %v3839 = vmax.f32 %v3743, 0.0
        %v3840 = vmax.f32 %v3744, 0.0
        %v3841 = vmax.f32 %v3745, 0.0
        %v3842 = vmax.f32 %v3746, 0.0
        %v3843 = vmax.f32 %v3747, 0.0
        %v3844 = vmax.f32 %v3748, 0.0
        %v3845 = vmax.f32 %v3749, 0.0
        %v3846 = vmax.f32 %v3750, 0.0
        %v3847 = vmax.f32 %v3751, 0.0
        %v3848 = vmax.f32 %v3752, 0.0
        %v3849 = vmax.f32 %v3753, 0.0
        %v3850 = vmax.f32 %v3754, 0.0
        %v3851 = vmax.f32 %v3755, 0.0
        %v3852 = vmax.f32 %v3756, 0.0
        %v3853 = vmax.f32 %v3757, 0.0
        %v3854 = vmax.f32 %v3758, 0.0
        %v3855 = vmax.f32 %v3759, 0.0
        %v3856 = vmax.f32 %v3760, 0.0
        %v3857 = vmax.f32 %v3761, 0.0
        %v3858 = vmax.f32 %v3762, 0.0
        %v3859 = vmax.f32 %v3763, 0.0
        %v3860 = vmax.f32 %v3764, 0.0
        %v3861 = vmax.f32 %v3765, 0.0
        %v3862 = vmax.f32 %v3766, 0.0
        %v3863 = vmax.f32 %v3767, 0.0
        %v3864 = vmax.f32 %v3768, 0.0
        %v3865 = vadd.f32 %v3769, 1e-12
        %v3866 = vadd.f32 %v3770, 1e-12
        %v3867 = vadd.f32 %v3771, 1e-12
        %v3868 = vadd.f32 %v3772, 1e-12
        %v3869 = vadd.f32 %v3773, 1e-12
        %v3870 = vadd.f32 %v3774, 1e-12
        %v3871 = vadd.f32 %v3775, 1e-12
        %v3872 = vadd.f32 %v3776, 1e-12
        %v3873 = vadd.f32 %v3777, 1e-12
        %v3874 = vadd.f32 %v3778, 1e-12
        %v3875 = vadd.f32 %v3779, 1e-12
        %v3876 = vadd.f32 %v3780, 1e-12
        %v3877 = vadd.f32 %v3781, 1e-12
        %v3878 = vadd.f32 %v3782, 1e-12
        %v3879 = vadd.f32 %v3783, 1e-12
        %v3880 = vadd.f32 %v3784, 1e-12
        %v3881 = vadd.f32 %v3785, 1e-12
        %v3882 = vadd.f32 %v3786, 1e-12
        %v3883 = vadd.f32 %v3787, 1e-12
        %v3884 = vadd.f32 %v3788, 1e-12
        %v3885 = vadd.f32 %v3789, 1e-12
        %v3886 = vadd.f32 %v3790, 1e-12
        %v3887 = vadd.f32 %v3791, 1e-12
        %v3888 = vadd.f32 %v3792, 1e-12
        %v3889 = vadd.f32 %v3793, 1e-12
        %v3890 = vadd.f32 %v3794, 1e-12
        %v3891 = vadd.f32 %v3795, 1e-12
        %v3892 = vadd.f32 %v3796, 1e-12
        %v3893 = vadd.f32 %v3797, 1e-12
        %v3894 = vadd.f32 %v3798, 1e-12
        %v3895 = vadd.f32 %v3799, 1e-12
        %v3896 = vadd.f32 %v3800, 1e-12
        %v3897 = vadd.f32 %v3801, 1e-12
        %v3898 = vadd.f32 %v3802, 1e-12
        %v3899 = vadd.f32 %v3803, 1e-12
        %v3900 = vadd.f32 %v3804, 1e-12
        %v3901 = vadd.f32 %v3805, 1e-12
        %v3902 = vadd.f32 %v3806, 1e-12
        %v3903 = vadd.f32 %v3807, 1e-12
        %v3904 = vadd.f32 %v3808, 1e-12
        %v3905 = vadd.f32 %v3809, 1e-12
        %v3906 = vadd.f32 %v3810, 1e-12
        %v3907 = vadd.f32 %v3811, 1e-12
        %v3908 = vadd.f32 %v3812, 1e-12
        %v3909 = vadd.f32 %v3813, 1e-12
        %v3910 = vadd.f32 %v3814, 1e-12
        %v3911 = vadd.f32 %v3815, 1e-12
        %v3912 = vadd.f32 %v3816, 1e-12
        %v3913 = vadd.f32 %v3817, 1e-12
        %v3914 = vadd.f32 %v3818, 1e-12
        %v3915 = vadd.f32 %v3819, 1e-12
        %v3916 = vadd.f32 %v3820, 1e-12
        %v3917 = vadd.f32 %v3821, 1e-12
        %v3918 = vadd.f32 %v3822, 1e-12
        %v3919 = vadd.f32 %v3823, 1e-12
        %v3920 = vadd.f32 %v3824, 1e-12
        %v3921 = vadd.f32 %v3825, 1e-12
        %v3922 = vadd.f32 %v3826, 1e-12
        %v3923 = vadd.f32 %v3827, 1e-12
        %v3924 = vadd.f32 %v3828, 1e-12
        %v3925 = vadd.f32 %v3829, 1e-12
        %v3926 = vadd.f32 %v3830, 1e-12
        %v3927 = vadd.f32 %v3831, 1e-12
        %v3928 = vadd.f32 %v3832, 1e-12
        %v3929 = vadd.f32 %v3833, 1e-12
        %v3930 = vadd.f32 %v3834, 1e-12
        %v3931 = vadd.f32 %v3835, 1e-12
        %v3932 = vadd.f32 %v3836, 1e-12
        %v3933 = vadd.f32 %v3837, 1e-12
        %v3934 = vadd.f32 %v3838, 1e-12
        %v3935 = vadd.f32 %v3839, 1e-12
        %v3936 = vadd.f32 %v3840, 1e-12
        %v3937 = vadd.f32 %v3841, 1e-12
        %v3938 = vadd.f32 %v3842, 1e-12
        %v3939 = vadd.f32 %v3843, 1e-12
        %v3940 = vadd.f32 %v3844, 1e-12
        %v3941 = vadd.f32 %v3845, 1e-12
        %v3942 = vadd.f32 %v3846, 1e-12
        %v3943 = vadd.f32 %v3847, 1e-12
        %v3944 = vadd.f32 %v3848, 1e-12
        %v3945 = vadd.f32 %v3849, 1e-12
        %v3946 = vadd.f32 %v3850, 1e-12
        %v3947 = vadd.f32 %v3851, 1e-12
        %v3948 = vadd.f32 %v3852, 1e-12
        %v3949 = vadd.f32 %v3853, 1e-12
        %v3950 = vadd.f32 %v3854, 1e-12
        %v3951 = vadd.f32 %v3855, 1e-12
        %v3952 = vadd.f32 %v3856, 1e-12
        %v3953 = vadd.f32 %v3857, 1e-12
        %v3954 = vadd.f32 %v3858, 1e-12
        %v3955 = vadd.f32 %v3859, 1e-12
        %v3956 = vadd.f32 %v3860, 1e-12
        %v3957 = vadd.f32 %v3861, 1e-12
        %v3958 = vadd.f32 %v3862, 1e-12
        %v3959 = vadd.f32 %v3863, 1e-12
        %v3960 = vadd.f32 %v3864, 1e-12
        %v3961 = vrsqrt.pop %v3865
        %v3962 = vrsqrt.pop %v3866
        %v3963 = vrsqrt.pop %v3867
        %v3964 = vrsqrt.pop %v3868
        %v3965 = vrsqrt.pop %v3869
        %v3966 = vrsqrt.pop %v3870
        %v3967 = vrsqrt.pop %v3871
        %v3968 = vrsqrt.pop %v3872
        %v3969 = vrsqrt.pop %v3873
        %v3970 = vrsqrt.pop %v3874
        %v3971 = vrsqrt.pop %v3875
        %v3972 = vrsqrt.pop %v3876
        %v3973 = vrsqrt.pop %v3877
        %v3974 = vrsqrt.pop %v3878
        %v3975 = vrsqrt.pop %v3879
        %v3976 = vrsqrt.pop %v3880
        %v3977 = vrsqrt.pop %v3881
        %v3978 = vrsqrt.pop %v3882
        %v3979 = vrsqrt.pop %v3883
        %v3980 = vrsqrt.pop %v3884
        %v3981 = vrsqrt.pop %v3885
        %v3982 = vrsqrt.pop %v3886
        %v3983 = vrsqrt.pop %v3887
        %v3984 = vrsqrt.pop %v3888
        %v3985 = vrsqrt.pop %v3889
        %v3986 = vrsqrt.pop %v3890
        %v3987 = vrsqrt.pop %v3891
        %v3988 = vrsqrt.pop %v3892
        %v3989 = vrsqrt.pop %v3893
        %v3990 = vrsqrt.pop %v3894
        %v3991 = vrsqrt.pop %v3895
        %v3992 = vrsqrt.pop %v3896
        %v3993 = vrsqrt.pop %v3897
        %v3994 = vrsqrt.pop %v3898
        %v3995 = vrsqrt.pop %v3899
        %v3996 = vrsqrt.pop %v3900
        %v3997 = vrsqrt.pop %v3901
        %v3998 = vrsqrt.pop %v3902
        %v3999 = vrsqrt.pop %v3903
        %v4000 = vrsqrt.pop %v3904
        %v4001 = vrsqrt.pop %v3905
        %v4002 = vrsqrt.pop %v3906
        %v4003 = vrsqrt.pop %v3907
        %v4004 = vrsqrt.pop %v3908
        %v4005 = vrsqrt.pop %v3909
        %v4006 = vrsqrt.pop %v3910
        %v4007 = vrsqrt.pop %v3911
        %v4008 = vrsqrt.pop %v3912
        %v4009 = vrsqrt.pop %v3913
        %v4010 = vrsqrt.pop %v3914
        %v4011 = vrsqrt.pop %v3915
        %v4012 = vrsqrt.pop %v3916
        %v4013 = vrsqrt.pop %v3917
        %v4014 = vrsqrt.pop %v3918
        %v4015 = vrsqrt.pop %v3919
        %v4016 = vrsqrt.pop %v3920
        %v4017 = vrsqrt.pop %v3921
        %v4018 = vrsqrt.pop %v3922
        %v4019 = vrsqrt.pop %v3923
        %v4020 = vrsqrt.pop %v3924
        %v4021 = vrsqrt.pop %v3925
        %v4022 = vrsqrt.pop %v3926
        %v4023 = vrsqrt.pop %v3927
        %v4024 = vrsqrt.pop %v3928
        %v4025 = vrsqrt.pop %v3929
        %v4026 = vrsqrt.pop %v3930
        %v4027 = vrsqrt.pop %v3931
        %v4028 = vrsqrt.pop %v3932
        %v4029 = vrsqrt.pop %v3933
        %v4030 = vrsqrt.pop %v3934
        %v4031 = vrsqrt.pop %v3935
        %v4032 = vrsqrt.pop %v3936
        %v4033 = vrsqrt.pop %v3937
        %v4034 = vrsqrt.pop %v3938
        %v4035 = vrsqrt.pop %v3939
        %v4036 = vrsqrt.pop %v3940
        %v4037 = vrsqrt.pop %v3941
        %v4038 = vrsqrt.pop %v3942
        %v4039 = vrsqrt.pop %v3943
        %v4040 = vrsqrt.pop %v3944
        %v4041 = vrsqrt.pop %v3945
        %v4042 = vrsqrt.pop %v3946
        %v4043 = vrsqrt.pop %v3947
        %v4044 = vrsqrt.pop %v3948
        %v4045 = vrsqrt.pop %v3949
        %v4046 = vrsqrt.pop %v3950
        %v4047 = vrsqrt.pop %v3951
        %v4048 = vrsqrt.pop %v3952
        %v4049 = vrsqrt.pop %v3953
        %v4050 = vrsqrt.pop %v3954
        %v4051 = vrsqrt.pop %v3955
        %v4052 = vrsqrt.pop %v3956
        %v4053 = vrsqrt.pop %v3957
        %v4054 = vrsqrt.pop %v3958
        %v4055 = vrsqrt.pop %v3959
        %v4056 = vrsqrt.pop %v3960
        %v4057 = vld [vmem:[%s6] sm:$0x1]
        %v4059 = vlaneseq
        %v4060 = vshrl.u32 %v4059, 7
        %v4061 = vsub.s32 0, %v4060
        %v4062 = vrot.slane %v4057, %v4061
        %v4064 = vmul.f32 %v3961, %v4062
        %v4065 = vmul.f32 %v3962, %v4062
        %v4066 = vmul.f32 %v3963, %v4062
        %v4067 = vmul.f32 %v3964, %v4062
        %v4068 = vmul.f32 %v3965, %v4062
        %v4069 = vmul.f32 %v3966, %v4062
        %v4070 = vmul.f32 %v3967, %v4062
        %v4071 = vmul.f32 %v3968, %v4062
        %v4072 = vmul.f32 %v3969, %v4062
        %v4073 = vmul.f32 %v3970, %v4062
        %v4074 = vmul.f32 %v3971, %v4062
        %v4075 = vmul.f32 %v3972, %v4062
        %v4076 = vmul.f32 %v3973, %v4062
        %v4077 = vmul.f32 %v3974, %v4062
        %v4078 = vmul.f32 %v3975, %v4062
        %v4079 = vmul.f32 %v3976, %v4062
        %v4080 = vmul.f32 %v3977, %v4062
        %v4081 = vmul.f32 %v3978, %v4062
        %v4082 = vmul.f32 %v3979, %v4062
        %v4083 = vmul.f32 %v3980, %v4062
        %v4084 = vmul.f32 %v3981, %v4062
        %v4085 = vmul.f32 %v3982, %v4062
        %v4086 = vmul.f32 %v3983, %v4062
        %v4087 = vmul.f32 %v3984, %v4062
        %v4088 = vmul.f32 %v3985, %v4062
        %v4089 = vmul.f32 %v3986, %v4062
        %v4090 = vmul.f32 %v3987, %v4062
        %v4091 = vmul.f32 %v3988, %v4062
        %v4092 = vmul.f32 %v3989, %v4062
        %v4093 = vmul.f32 %v3990, %v4062
        %v4094 = vmul.f32 %v3991, %v4062
        %v4095 = vmul.f32 %v3992, %v4062
        %v4096 = vmul.f32 %v3993, %v4062
        %v4097 = vmul.f32 %v3994, %v4062
        %v4098 = vmul.f32 %v3995, %v4062
        %v4099 = vmul.f32 %v3996, %v4062
        %v4100 = vmul.f32 %v3997, %v4062
        %v4101 = vmul.f32 %v3998, %v4062
        %v4102 = vmul.f32 %v3999, %v4062
        %v4103 = vmul.f32 %v4000, %v4062
        %v4104 = vmul.f32 %v4001, %v4062
        %v4105 = vmul.f32 %v4002, %v4062
        %v4106 = vmul.f32 %v4003, %v4062
        %v4107 = vmul.f32 %v4004, %v4062
        %v4108 = vmul.f32 %v4005, %v4062
        %v4109 = vmul.f32 %v4006, %v4062
        %v4110 = vmul.f32 %v4007, %v4062
        %v4111 = vmul.f32 %v4008, %v4062
        %v4112 = vmul.f32 %v4009, %v4062
        %v4113 = vmul.f32 %v4010, %v4062
        %v4114 = vmul.f32 %v4011, %v4062
        %v4115 = vmul.f32 %v4012, %v4062
        %v4116 = vmul.f32 %v4013, %v4062
        %v4117 = vmul.f32 %v4014, %v4062
        %v4118 = vmul.f32 %v4015, %v4062
        %v4119 = vmul.f32 %v4016, %v4062
        %v4120 = vmul.f32 %v4017, %v4062
        %v4121 = vmul.f32 %v4018, %v4062
        %v4122 = vmul.f32 %v4019, %v4062
        %v4123 = vmul.f32 %v4020, %v4062
        %v4124 = vmul.f32 %v4021, %v4062
        %v4125 = vmul.f32 %v4022, %v4062
        %v4126 = vmul.f32 %v4023, %v4062
        %v4127 = vmul.f32 %v4024, %v4062
        %v4128 = vmul.f32 %v4025, %v4062
        %v4129 = vmul.f32 %v4026, %v4062
        %v4130 = vmul.f32 %v4027, %v4062
        %v4131 = vmul.f32 %v4028, %v4062
        %v4132 = vmul.f32 %v4029, %v4062
        %v4133 = vmul.f32 %v4030, %v4062
        %v4134 = vmul.f32 %v4031, %v4062
        %v4135 = vmul.f32 %v4032, %v4062
        %v4136 = vmul.f32 %v4033, %v4062
        %v4137 = vmul.f32 %v4034, %v4062
        %v4138 = vmul.f32 %v4035, %v4062
        %v4139 = vmul.f32 %v4036, %v4062
        %v4140 = vmul.f32 %v4037, %v4062
        %v4141 = vmul.f32 %v4038, %v4062
        %v4142 = vmul.f32 %v4039, %v4062
        %v4143 = vmul.f32 %v4040, %v4062
        %v4144 = vmul.f32 %v4041, %v4062
        %v4145 = vmul.f32 %v4042, %v4062
        %v4146 = vmul.f32 %v4043, %v4062
        %v4147 = vmul.f32 %v4044, %v4062
        %v4148 = vmul.f32 %v4045, %v4062
        %v4149 = vmul.f32 %v4046, %v4062
        %v4150 = vmul.f32 %v4047, %v4062
        %v4151 = vmul.f32 %v4048, %v4062
        %v4152 = vmul.f32 %v4049, %v4062
        %v4153 = vmul.f32 %v4050, %v4062
        %v4154 = vmul.f32 %v4051, %v4062
        %v4155 = vmul.f32 %v4052, %v4062
        %v4156 = vmul.f32 %v4053, %v4062
        %v4157 = vmul.f32 %v4054, %v4062
        %v4158 = vmul.f32 %v4055, %v4062
        %v4159 = vmul.f32 %v4056, %v4062
        %v4160 = vsub.f32 %v2808, %v3097
        %v4161 = vsub.f32 %v2809, %v3098
        %v4162 = vsub.f32 %v2810, %v3099
        %v4163 = vsub.f32 %v2811, %v3100
        %v4164 = vsub.f32 %v2812, %v3101
        %v4165 = vsub.f32 %v2813, %v3102
        %v4166 = vsub.f32 %v2814, %v3103
        %v4167 = vsub.f32 %v2815, %v3104
        %v4168 = vsub.f32 %v2816, %v3105
        %v4169 = vsub.f32 %v2817, %v3106
        %v4170 = vsub.f32 %v2818, %v3107
        %v4171 = vsub.f32 %v2819, %v3108
        %v4172 = vsub.f32 %v2820, %v3109
        %v4173 = vsub.f32 %v2821, %v3110
        %v4174 = vsub.f32 %v2822, %v3111
        %v4175 = vsub.f32 %v2823, %v3112
        %v4176 = vsub.f32 %v2824, %v3113
        %v4177 = vsub.f32 %v2825, %v3114
        %v4178 = vsub.f32 %v2826, %v3115
        %v4179 = vsub.f32 %v2827, %v3116
        %v4180 = vsub.f32 %v2828, %v3117
        %v4181 = vsub.f32 %v2829, %v3118
        %v4182 = vsub.f32 %v2830, %v3119
        %v4183 = vsub.f32 %v2831, %v3120
        %v4184 = vsub.f32 %v2832, %v3121
        %v4185 = vsub.f32 %v2833, %v3122
        %v4186 = vsub.f32 %v2834, %v3123
        %v4187 = vsub.f32 %v2835, %v3124
        %v4188 = vsub.f32 %v2836, %v3125
        %v4189 = vsub.f32 %v2837, %v3126
        %v4190 = vsub.f32 %v2838, %v3127
        %v4191 = vsub.f32 %v2839, %v3128
        %v4192 = vsub.f32 %v2840, %v3129
        %v4193 = vsub.f32 %v2841, %v3130
        %v4194 = vsub.f32 %v2842, %v3131
        %v4195 = vsub.f32 %v2843, %v3132
        %v4196 = vsub.f32 %v2844, %v3133
        %v4197 = vsub.f32 %v2845, %v3134
        %v4198 = vsub.f32 %v2846, %v3135
        %v4199 = vsub.f32 %v2847, %v3136
        %v4200 = vsub.f32 %v2848, %v3137
        %v4201 = vsub.f32 %v2849, %v3138
        %v4202 = vsub.f32 %v2850, %v3139
        %v4203 = vsub.f32 %v2851, %v3140
        %v4204 = vsub.f32 %v2852, %v3141
        %v4205 = vsub.f32 %v2853, %v3142
        %v4206 = vsub.f32 %v2854, %v3143
        %v4207 = vsub.f32 %v2855, %v3144
        %v4208 = vsub.f32 %v2856, %v3145
        %v4209 = vsub.f32 %v2857, %v3146
        %v4210 = vsub.f32 %v2858, %v3147
        %v4211 = vsub.f32 %v2859, %v3148
        %v4212 = vsub.f32 %v2860, %v3149
        %v4213 = vsub.f32 %v2861, %v3150
        %v4214 = vsub.f32 %v2862, %v3151
        %v4215 = vsub.f32 %v2863, %v3152
        %v4216 = vsub.f32 %v2864, %v3153
        %v4217 = vsub.f32 %v2865, %v3154
        %v4218 = vsub.f32 %v2866, %v3155
        %v4219 = vsub.f32 %v2867, %v3156
        %v4220 = vsub.f32 %v2868, %v3157
        %v4221 = vsub.f32 %v2869, %v3158
        %v4222 = vsub.f32 %v2870, %v3159
        %v4223 = vsub.f32 %v2871, %v3160
        %v4224 = vsub.f32 %v2872, %v3161
        %v4225 = vsub.f32 %v2873, %v3162
        %v4226 = vsub.f32 %v2874, %v3163
        %v4227 = vsub.f32 %v2875, %v3164
        %v4228 = vsub.f32 %v2876, %v3165
        %v4229 = vsub.f32 %v2877, %v3166
        %v4230 = vsub.f32 %v2878, %v3167
        %v4231 = vsub.f32 %v2879, %v3168
        %v4232 = vsub.f32 %v2880, %v3169
        %v4233 = vsub.f32 %v2881, %v3170
        %v4234 = vsub.f32 %v2882, %v3171
        %v4235 = vsub.f32 %v2883, %v3172
        %v4236 = vsub.f32 %v2884, %v3173
        %v4237 = vsub.f32 %v2885, %v3174
        %v4238 = vsub.f32 %v2886, %v3175
        %v4239 = vsub.f32 %v2887, %v3176
        %v4240 = vsub.f32 %v2888, %v3177
        %v4241 = vsub.f32 %v2889, %v3178
        %v4242 = vsub.f32 %v2890, %v3179
        %v4243 = vsub.f32 %v2891, %v3180
        %v4244 = vsub.f32 %v2892, %v3181
        %v4245 = vsub.f32 %v2893, %v3182
        %v4246 = vsub.f32 %v2894, %v3183
        %v4247 = vsub.f32 %v2895, %v3184
        %v4248 = vsub.f32 %v2896, %v3185
        %v4249 = vsub.f32 %v2897, %v3186
        %v4250 = vsub.f32 %v2898, %v3187
        %v4251 = vsub.f32 %v2899, %v3188
        %v4252 = vsub.f32 %v2900, %v3189
        %v4253 = vsub.f32 %v2901, %v3190
        %v4254 = vsub.f32 %v2902, %v3191
        %v4255 = vsub.f32 %v2903, %v3192
        %v4256 = vmul.f32 %v4160, %v4064
        %v4257 = vmul.f32 %v4161, %v4065
        %v4258 = vmul.f32 %v4162, %v4066
        %v4259 = vmul.f32 %v4163, %v4067
        %v4260 = vmul.f32 %v4164, %v4068
        %v4261 = vmul.f32 %v4165, %v4069
        %v4262 = vmul.f32 %v4166, %v4070
        %v4263 = vmul.f32 %v4167, %v4071
        %v4264 = vmul.f32 %v4168, %v4072
        %v4265 = vmul.f32 %v4169, %v4073
        %v4266 = vmul.f32 %v4170, %v4074
        %v4267 = vmul.f32 %v4171, %v4075
        %v4268 = vmul.f32 %v4172, %v4076
        %v4269 = vmul.f32 %v4173, %v4077
        %v4270 = vmul.f32 %v4174, %v4078
        %v4271 = vmul.f32 %v4175, %v4079
        %v4272 = vmul.f32 %v4176, %v4080
        %v4273 = vmul.f32 %v4177, %v4081
        %v4274 = vmul.f32 %v4178, %v4082
        %v4275 = vmul.f32 %v4179, %v4083
        %v4276 = vmul.f32 %v4180, %v4084
        %v4277 = vmul.f32 %v4181, %v4085
        %v4278 = vmul.f32 %v4182, %v4086
        %v4279 = vmul.f32 %v4183, %v4087
        %v4280 = vmul.f32 %v4184, %v4088
        %v4281 = vmul.f32 %v4185, %v4089
        %v4282 = vmul.f32 %v4186, %v4090
        %v4283 = vmul.f32 %v4187, %v4091
        %v4284 = vmul.f32 %v4188, %v4092
        %v4285 = vmul.f32 %v4189, %v4093
        %v4286 = vmul.f32 %v4190, %v4094
        %v4287 = vmul.f32 %v4191, %v4095
        %v4288 = vmul.f32 %v4192, %v4096
        %v4289 = vmul.f32 %v4193, %v4097
        %v4290 = vmul.f32 %v4194, %v4098
        %v4291 = vmul.f32 %v4195, %v4099
        %v4292 = vmul.f32 %v4196, %v4100
        %v4293 = vmul.f32 %v4197, %v4101
        %v4294 = vmul.f32 %v4198, %v4102
        %v4295 = vmul.f32 %v4199, %v4103
        %v4296 = vmul.f32 %v4200, %v4104
        %v4297 = vmul.f32 %v4201, %v4105
        %v4298 = vmul.f32 %v4202, %v4106
        %v4299 = vmul.f32 %v4203, %v4107
        %v4300 = vmul.f32 %v4204, %v4108
        %v4301 = vmul.f32 %v4205, %v4109
        %v4302 = vmul.f32 %v4206, %v4110
        %v4303 = vmul.f32 %v4207, %v4111
        %v4304 = vmul.f32 %v4208, %v4112
        %v4305 = vmul.f32 %v4209, %v4113
        %v4306 = vmul.f32 %v4210, %v4114
        %v4307 = vmul.f32 %v4211, %v4115
        %v4308 = vmul.f32 %v4212, %v4116
        %v4309 = vmul.f32 %v4213, %v4117
        %v4310 = vmul.f32 %v4214, %v4118
        %v4311 = vmul.f32 %v4215, %v4119
        %v4312 = vmul.f32 %v4216, %v4120
        %v4313 = vmul.f32 %v4217, %v4121
        %v4314 = vmul.f32 %v4218, %v4122
        %v4315 = vmul.f32 %v4219, %v4123
        %v4316 = vmul.f32 %v4220, %v4124
        %v4317 = vmul.f32 %v4221, %v4125
        %v4318 = vmul.f32 %v4222, %v4126
        %v4319 = vmul.f32 %v4223, %v4127
        %v4320 = vmul.f32 %v4224, %v4128
        %v4321 = vmul.f32 %v4225, %v4129
        %v4322 = vmul.f32 %v4226, %v4130
        %v4323 = vmul.f32 %v4227, %v4131
        %v4324 = vmul.f32 %v4228, %v4132
        %v4325 = vmul.f32 %v4229, %v4133
        %v4326 = vmul.f32 %v4230, %v4134
        %v4327 = vmul.f32 %v4231, %v4135
        %v4328 = vmul.f32 %v4232, %v4136
        %v4329 = vmul.f32 %v4233, %v4137
        %v4330 = vmul.f32 %v4234, %v4138
        %v4331 = vmul.f32 %v4235, %v4139
        %v4332 = vmul.f32 %v4236, %v4140
        %v4333 = vmul.f32 %v4237, %v4141
        %v4334 = vmul.f32 %v4238, %v4142
        %v4335 = vmul.f32 %v4239, %v4143
        %v4336 = vmul.f32 %v4240, %v4144
        %v4337 = vmul.f32 %v4241, %v4145
        %v4338 = vmul.f32 %v4242, %v4146
        %v4339 = vmul.f32 %v4243, %v4147
        %v4340 = vmul.f32 %v4244, %v4148
        %v4341 = vmul.f32 %v4245, %v4149
        %v4342 = vmul.f32 %v4246, %v4150
        %v4343 = vmul.f32 %v4247, %v4151
        %v4344 = vmul.f32 %v4248, %v4152
        %v4345 = vmul.f32 %v4249, %v4153
        %v4346 = vmul.f32 %v4250, %v4154
        %v4347 = vmul.f32 %v4251, %v4155
        %v4348 = vmul.f32 %v4252, %v4156
        %v4349 = vmul.f32 %v4253, %v4157
        %v4350 = vmul.f32 %v4254, %v4158
        %v4351 = vmul.f32 %v4255, %v4159
        %v4352 = vld [vmem:[%s7] sm:$0x1]
        %v4354 = vlaneseq
        %v4355 = vshrl.u32 %v4354, 7
        %v4356 = vsub.s32 0, %v4355
        %v4357 = vrot.slane %v4352, %v4356
        %v4359 = vadd.f32 %v4256, %v4357
        %v4360 = vadd.f32 %v4257, %v4357
        %v4361 = vadd.f32 %v4258, %v4357
        %v4362 = vadd.f32 %v4259, %v4357
        %v4363 = vadd.f32 %v4260, %v4357
        %v4364 = vadd.f32 %v4261, %v4357
        %v4365 = vadd.f32 %v4262, %v4357
        %v4366 = vadd.f32 %v4263, %v4357
        %v4367 = vadd.f32 %v4264, %v4357
        %v4368 = vadd.f32 %v4265, %v4357
        %v4369 = vadd.f32 %v4266, %v4357
        %v4370 = vadd.f32 %v4267, %v4357
        %v4371 = vadd.f32 %v4268, %v4357
        %v4372 = vadd.f32 %v4269, %v4357
        %v4373 = vadd.f32 %v4270, %v4357
        %v4374 = vadd.f32 %v4271, %v4357
        %v4375 = vadd.f32 %v4272, %v4357
        %v4376 = vadd.f32 %v4273, %v4357
        %v4377 = vadd.f32 %v4274, %v4357
        %v4378 = vadd.f32 %v4275, %v4357
        %v4379 = vadd.f32 %v4276, %v4357
        %v4380 = vadd.f32 %v4277, %v4357
        %v4381 = vadd.f32 %v4278, %v4357
        %v4382 = vadd.f32 %v4279, %v4357
        %v4383 = vadd.f32 %v4280, %v4357
        %v4384 = vadd.f32 %v4281, %v4357
        %v4385 = vadd.f32 %v4282, %v4357
        %v4386 = vadd.f32 %v4283, %v4357
        %v4387 = vadd.f32 %v4284, %v4357
        %v4388 = vadd.f32 %v4285, %v4357
        %v4389 = vadd.f32 %v4286, %v4357
        %v4390 = vadd.f32 %v4287, %v4357
        %v4391 = vadd.f32 %v4288, %v4357
        %v4392 = vadd.f32 %v4289, %v4357
        %v4393 = vadd.f32 %v4290, %v4357
        %v4394 = vadd.f32 %v4291, %v4357
        %v4395 = vadd.f32 %v4292, %v4357
        %v4396 = vadd.f32 %v4293, %v4357
        %v4397 = vadd.f32 %v4294, %v4357
        %v4398 = vadd.f32 %v4295, %v4357
        %v4399 = vadd.f32 %v4296, %v4357
        %v4400 = vadd.f32 %v4297, %v4357
        %v4401 = vadd.f32 %v4298, %v4357
        %v4402 = vadd.f32 %v4299, %v4357
        %v4403 = vadd.f32 %v4300, %v4357
        %v4404 = vadd.f32 %v4301, %v4357
        %v4405 = vadd.f32 %v4302, %v4357
        %v4406 = vadd.f32 %v4303, %v4357
        %v4407 = vadd.f32 %v4304, %v4357
        %v4408 = vadd.f32 %v4305, %v4357
        %v4409 = vadd.f32 %v4306, %v4357
        %v4410 = vadd.f32 %v4307, %v4357
        %v4411 = vadd.f32 %v4308, %v4357
        %v4412 = vadd.f32 %v4309, %v4357
        %v4413 = vadd.f32 %v4310, %v4357
        %v4414 = vadd.f32 %v4311, %v4357
        %v4415 = vadd.f32 %v4312, %v4357
        %v4416 = vadd.f32 %v4313, %v4357
        %v4417 = vadd.f32 %v4314, %v4357
        %v4418 = vadd.f32 %v4315, %v4357
        %v4419 = vadd.f32 %v4316, %v4357
        %v4420 = vadd.f32 %v4317, %v4357
        %v4421 = vadd.f32 %v4318, %v4357
        %v4422 = vadd.f32 %v4319, %v4357
        %v4423 = vadd.f32 %v4320, %v4357
        %v4424 = vadd.f32 %v4321, %v4357
        %v4425 = vadd.f32 %v4322, %v4357
        %v4426 = vadd.f32 %v4323, %v4357
        %v4427 = vadd.f32 %v4324, %v4357
        %v4428 = vadd.f32 %v4325, %v4357
        %v4429 = vadd.f32 %v4326, %v4357
        %v4430 = vadd.f32 %v4327, %v4357
        %v4431 = vadd.f32 %v4328, %v4357
        %v4432 = vadd.f32 %v4329, %v4357
        %v4433 = vadd.f32 %v4330, %v4357
        %v4434 = vadd.f32 %v4331, %v4357
        %v4435 = vadd.f32 %v4332, %v4357
        %v4436 = vadd.f32 %v4333, %v4357
        %v4437 = vadd.f32 %v4334, %v4357
        %v4438 = vadd.f32 %v4335, %v4357
        %v4439 = vadd.f32 %v4336, %v4357
        %v4440 = vadd.f32 %v4337, %v4357
        %v4441 = vadd.f32 %v4338, %v4357
        %v4442 = vadd.f32 %v4339, %v4357
        %v4443 = vadd.f32 %v4340, %v4357
        %v4444 = vadd.f32 %v4341, %v4357
        %v4445 = vadd.f32 %v4342, %v4357
        %v4446 = vadd.f32 %v4343, %v4357
        %v4447 = vadd.f32 %v4344, %v4357
        %v4448 = vadd.f32 %v4345, %v4357
        %v4449 = vadd.f32 %v4346, %v4357
        %v4450 = vadd.f32 %v4347, %v4357
        %v4451 = vadd.f32 %v4348, %v4357
        %v4452 = vadd.f32 %v4349, %v4357
        %v4453 = vadd.f32 %v4350, %v4357
        %v4454 = vadd.f32 %v4351, %v4357
        %v4455 = vld [vmem:[%s853] sm:$0xff]
        %v4456 = vld [vmem:[%s853 + $0x8] sm:$0xff]
        %v4457 = vld [vmem:[%s853 + $0x10] sm:$0xff]
        %v4458 = vld [vmem:[%s853 + $0x18] sm:$0xff]
        %v4459 = vld [vmem:[%s853 + $0x20] sm:$0xff]
        %v4460 = vld [vmem:[%s853 + $0x28] sm:$0xff]
        %v4461 = vld [vmem:[%s853 + $0x30] sm:$0xff]
        %v4462 = vld [vmem:[%s853 + $0x38] sm:$0xff]
        %v4463 = vld [vmem:[%s853 + $0x40] sm:$0xff]
        %v4464 = vld [vmem:[%s853 + $0x48] sm:$0xff]
        %v4465 = vld [vmem:[%s853 + $0x50] sm:$0xff]
        %v4466 = vld [vmem:[%s853 + $0x58] sm:$0xff]
        %v4467 = vld [vmem:[%s853 + $0x60] sm:$0xff]
        %v4468 = vld [vmem:[%s853 + $0x68] sm:$0xff]
        %v4469 = vld [vmem:[%s853 + $0x70] sm:$0xff]
        %v4470 = vld [vmem:[%s853 + $0x78] sm:$0xff]
        %v4471 = vld [vmem:[%s853 + $0x80] sm:$0xff]
        %v4472 = vld [vmem:[%s853 + $0x88] sm:$0xff]
        %v4473 = vld [vmem:[%s853 + $0x90] sm:$0xff]
        %v4474 = vld [vmem:[%s853 + $0x98] sm:$0xff]
        %v4475 = vld [vmem:[%s853 + $0xa0] sm:$0xff]
        %v4476 = vld [vmem:[%s853 + $0xa8] sm:$0xff]
        %v4477 = vld [vmem:[%s853 + $0xb0] sm:$0xff]
        %v4478 = vld [vmem:[%s853 + $0xb8] sm:$0xff]
        %v4479 = vld [vmem:[%s853 + $0xc0] sm:$0xff]
        %v4480 = vld [vmem:[%s853 + $0xc8] sm:$0xff]
        %v4481 = vld [vmem:[%s853 + $0xd0] sm:$0xff]
        %v4482 = vld [vmem:[%s853 + $0xd8] sm:$0xff]
        %v4483 = vld [vmem:[%s853 + $0xe0] sm:$0xff]
        %v4484 = vld [vmem:[%s853 + $0xe8] sm:$0xff]
        %v4485 = vld [vmem:[%s853 + $0xf0] sm:$0xff]
        %v4486 = vld [vmem:[%s853 + $0xf8] sm:$0xff]
        %4488 = vset.pattern.permute.xlu0 0
        %4489 = vperm.xlu0 %4488, %v4455
        %v4490 = vpop.permute.xlu0 %4489
        %4493 = vset.pattern.permute.xlu0 0
        %4494 = vperm.xlu0 %4493, %v4456
        %v4495 = vpop.permute.xlu0 %4494
        %4498 = vset.pattern.permute.xlu0 0
        %4499 = vperm.xlu0 %4498, %v4457
        %v4500 = vpop.permute.xlu0 %4499
        %4503 = vset.pattern.permute.xlu0 0
        %4504 = vperm.xlu0 %4503, %v4458
        %v4505 = vpop.permute.xlu0 %4504
        %4508 = vset.pattern.permute.xlu0 0
        %4509 = vperm.xlu0 %4508, %v4459
        %v4510 = vpop.permute.xlu0 %4509
        %4513 = vset.pattern.permute.xlu0 0
        %4514 = vperm.xlu0 %4513, %v4460
        %v4515 = vpop.permute.xlu0 %4514
        %4518 = vset.pattern.permute.xlu0 0
        %4519 = vperm.xlu0 %4518, %v4461
        %v4520 = vpop.permute.xlu0 %4519
        %4523 = vset.pattern.permute.xlu0 0
        %4524 = vperm.xlu0 %4523, %v4462
        %v4525 = vpop.permute.xlu0 %4524
        %4528 = vset.pattern.permute.xlu0 0
        %4529 = vperm.xlu0 %4528, %v4463
        %v4530 = vpop.permute.xlu0 %4529
        %4533 = vset.pattern.permute.xlu0 0
        %4534 = vperm.xlu0 %4533, %v4464
        %v4535 = vpop.permute.xlu0 %4534
        %4538 = vset.pattern.permute.xlu0 0
        %4539 = vperm.xlu0 %4538, %v4465
        %v4540 = vpop.permute.xlu0 %4539
        %4543 = vset.pattern.permute.xlu0 0
        %4544 = vperm.xlu0 %4543, %v4466
        %v4545 = vpop.permute.xlu0 %4544
        %4548 = vset.pattern.permute.xlu0 0
        %4549 = vperm.xlu0 %4548, %v4467
        %v4550 = vpop.permute.xlu0 %4549
        %4553 = vset.pattern.permute.xlu0 0
        %4554 = vperm.xlu0 %4553, %v4468
        %v4555 = vpop.permute.xlu0 %4554
        %4558 = vset.pattern.permute.xlu0 0
        %4559 = vperm.xlu0 %4558, %v4469
        %v4560 = vpop.permute.xlu0 %4559
        %4563 = vset.pattern.permute.xlu0 0
        %4564 = vperm.xlu0 %4563, %v4470
        %v4565 = vpop.permute.xlu0 %4564
        %4568 = vset.pattern.permute.xlu0 0
        %4569 = vperm.xlu0 %4568, %v4471
        %v4570 = vpop.permute.xlu0 %4569
        %4573 = vset.pattern.permute.xlu0 0
        %4574 = vperm.xlu0 %4573, %v4472
        %v4575 = vpop.permute.xlu0 %4574
        %4578 = vset.pattern.permute.xlu0 0
        %4579 = vperm.xlu0 %4578, %v4473
        %v4580 = vpop.permute.xlu0 %4579
        %4583 = vset.pattern.permute.xlu0 0
        %4584 = vperm.xlu0 %4583, %v4474
        %v4585 = vpop.permute.xlu0 %4584
        %4588 = vset.pattern.permute.xlu0 0
        %4589 = vperm.xlu0 %4588, %v4475
        %v4590 = vpop.permute.xlu0 %4589
        %4593 = vset.pattern.permute.xlu0 0
        %4594 = vperm.xlu0 %4593, %v4476
        %v4595 = vpop.permute.xlu0 %4594
        %4598 = vset.pattern.permute.xlu0 0
        %4599 = vperm.xlu0 %4598, %v4477
        %v4600 = vpop.permute.xlu0 %4599
        %4603 = vset.pattern.permute.xlu0 0
        %4604 = vperm.xlu0 %4603, %v4478
        %v4605 = vpop.permute.xlu0 %4604
        %4608 = vset.pattern.permute.xlu0 0
        %4609 = vperm.xlu0 %4608, %v4479
        %v4610 = vpop.permute.xlu0 %4609
        %4613 = vset.pattern.permute.xlu0 0
        %4614 = vperm.xlu0 %4613, %v4480
        %v4615 = vpop.permute.xlu0 %4614
        %4618 = vset.pattern.permute.xlu0 0
        %4619 = vperm.xlu0 %4618, %v4481
        %v4620 = vpop.permute.xlu0 %4619
        %4623 = vset.pattern.permute.xlu0 0
        %4624 = vperm.xlu0 %4623, %v4482
        %v4625 = vpop.permute.xlu0 %4624
        %4628 = vset.pattern.permute.xlu0 0
        %4629 = vperm.xlu0 %4628, %v4483
        %v4630 = vpop.permute.xlu0 %4629
        %4633 = vset.pattern.permute.xlu0 0
        %4634 = vperm.xlu0 %4633, %v4484
        %v4635 = vpop.permute.xlu0 %4634
        %4638 = vset.pattern.permute.xlu0 0
        %4639 = vperm.xlu0 %4638, %v4485
        %v4640 = vpop.permute.xlu0 %4639
        %4643 = vset.pattern.permute.xlu0 0
        %4644 = vperm.xlu0 %4643, %v4486
        %v4645 = vpop.permute.xlu0 %4644
        %v4647 = vmul.f32 %v4490, %v4359
        %v4648 = vmul.f32 %v4495, %v4360
        %v4649 = vmul.f32 %v4500, %v4361
        %v4650 = vmul.f32 %v4505, %v4362
        %v4651 = vmul.f32 %v4510, %v4363
        %v4652 = vmul.f32 %v4515, %v4364
        %v4653 = vmul.f32 %v4520, %v4365
        %v4654 = vmul.f32 %v4525, %v4366
        %v4655 = vmul.f32 %v4530, %v4367
        %v4656 = vmul.f32 %v4535, %v4368
        %v4657 = vmul.f32 %v4540, %v4369
        %v4658 = vmul.f32 %v4545, %v4370
        %v4659 = vmul.f32 %v4550, %v4371
        %v4660 = vmul.f32 %v4555, %v4372
        %v4661 = vmul.f32 %v4560, %v4373
        %v4662 = vmul.f32 %v4565, %v4374
        %v4663 = vmul.f32 %v4570, %v4375
        %v4664 = vmul.f32 %v4575, %v4376
        %v4665 = vmul.f32 %v4580, %v4377
        %v4666 = vmul.f32 %v4585, %v4378
        %v4667 = vmul.f32 %v4590, %v4379
        %v4668 = vmul.f32 %v4595, %v4380
        %v4669 = vmul.f32 %v4600, %v4381
        %v4670 = vmul.f32 %v4605, %v4382
        %v4671 = vmul.f32 %v4610, %v4383
        %v4672 = vmul.f32 %v4615, %v4384
        %v4673 = vmul.f32 %v4620, %v4385
        %v4674 = vmul.f32 %v4625, %v4386
        %v4675 = vmul.f32 %v4630, %v4387
        %v4676 = vmul.f32 %v4635, %v4388
        %v4677 = vmul.f32 %v4640, %v4389
        %v4678 = vmul.f32 %v4645, %v4390
        %4679 = vset.pattern.permute.xlu0 1
        %4680 = vperm.xlu0 %4679, %v4455
        %v4681 = vpop.permute.xlu0 %4680
        %4683 = vset.pattern.permute.xlu0 1
        %4684 = vperm.xlu0 %4683, %v4456
        %v4685 = vpop.permute.xlu0 %4684
        %4687 = vset.pattern.permute.xlu0 1
        %4688 = vperm.xlu0 %4687, %v4457
        %v4689 = vpop.permute.xlu0 %4688
        %4691 = vset.pattern.permute.xlu0 1
        %4692 = vperm.xlu0 %4691, %v4458
        %v4693 = vpop.permute.xlu0 %4692
        %4695 = vset.pattern.permute.xlu0 1
        %4696 = vperm.xlu0 %4695, %v4459
        %v4697 = vpop.permute.xlu0 %4696
        %4699 = vset.pattern.permute.xlu0 1
        %4700 = vperm.xlu0 %4699, %v4460
        %v4701 = vpop.permute.xlu0 %4700
        %4703 = vset.pattern.permute.xlu0 1
        %4704 = vperm.xlu0 %4703, %v4461
        %v4705 = vpop.permute.xlu0 %4704
        %4707 = vset.pattern.permute.xlu0 1
        %4708 = vperm.xlu0 %4707, %v4462
        %v4709 = vpop.permute.xlu0 %4708
        %4711 = vset.pattern.permute.xlu0 1
        %4712 = vperm.xlu0 %4711, %v4463
        %v4713 = vpop.permute.xlu0 %4712
        %4715 = vset.pattern.permute.xlu0 1
        %4716 = vperm.xlu0 %4715, %v4464
        %v4717 = vpop.permute.xlu0 %4716
        %4719 = vset.pattern.permute.xlu0 1
        %4720 = vperm.xlu0 %4719, %v4465
        %v4721 = vpop.permute.xlu0 %4720
        %4723 = vset.pattern.permute.xlu0 1
        %4724 = vperm.xlu0 %4723, %v4466
        %v4725 = vpop.permute.xlu0 %4724
        %4727 = vset.pattern.permute.xlu0 1
        %4728 = vperm.xlu0 %4727, %v4467
        %v4729 = vpop.permute.xlu0 %4728
        %4731 = vset.pattern.permute.xlu0 1
        %4732 = vperm.xlu0 %4731, %v4468
        %v4733 = vpop.permute.xlu0 %4732
        %4735 = vset.pattern.permute.xlu0 1
        %4736 = vperm.xlu0 %4735, %v4469
        %v4737 = vpop.permute.xlu0 %4736
        %4739 = vset.pattern.permute.xlu0 1
        %4740 = vperm.xlu0 %4739, %v4470
        %v4741 = vpop.permute.xlu0 %4740
        %4743 = vset.pattern.permute.xlu0 1
        %4744 = vperm.xlu0 %4743, %v4471
        %v4745 = vpop.permute.xlu0 %4744
        %4747 = vset.pattern.permute.xlu0 1
        %4748 = vperm.xlu0 %4747, %v4472
        %v4749 = vpop.permute.xlu0 %4748
        %4751 = vset.pattern.permute.xlu0 1
        %4752 = vperm.xlu0 %4751, %v4473
        %v4753 = vpop.permute.xlu0 %4752
        %4755 = vset.pattern.permute.xlu0 1
        %4756 = vperm.xlu0 %4755, %v4474
        %v4757 = vpop.permute.xlu0 %4756
        %4759 = vset.pattern.permute.xlu0 1
        %4760 = vperm.xlu0 %4759, %v4475
        %v4761 = vpop.permute.xlu0 %4760
        %4763 = vset.pattern.permute.xlu0 1
        %4764 = vperm.xlu0 %4763, %v4476
        %v4765 = vpop.permute.xlu0 %4764
        %4767 = vset.pattern.permute.xlu0 1
        %4768 = vperm.xlu0 %4767, %v4477
        %v4769 = vpop.permute.xlu0 %4768
        %4771 = vset.pattern.permute.xlu0 1
        %4772 = vperm.xlu0 %4771, %v4478
        %v4773 = vpop.permute.xlu0 %4772
        %4775 = vset.pattern.permute.xlu0 1
        %4776 = vperm.xlu0 %4775, %v4479
        %v4777 = vpop.permute.xlu0 %4776
        %4779 = vset.pattern.permute.xlu0 1
        %4780 = vperm.xlu0 %4779, %v4480
        %v4781 = vpop.permute.xlu0 %4780
        %4783 = vset.pattern.permute.xlu0 1
        %4784 = vperm.xlu0 %4783, %v4481
        %v4785 = vpop.permute.xlu0 %4784
        %4787 = vset.pattern.permute.xlu0 1
        %4788 = vperm.xlu0 %4787, %v4482
        %v4789 = vpop.permute.xlu0 %4788
        %4791 = vset.pattern.permute.xlu0 1
        %4792 = vperm.xlu0 %4791, %v4483
        %v4793 = vpop.permute.xlu0 %4792
        %4795 = vset.pattern.permute.xlu0 1
        %4796 = vperm.xlu0 %4795, %v4484
        %v4797 = vpop.permute.xlu0 %4796
        %4799 = vset.pattern.permute.xlu0 1
        %4800 = vperm.xlu0 %4799, %v4485
        %v4801 = vpop.permute.xlu0 %4800
        %4803 = vset.pattern.permute.xlu0 1
        %4804 = vperm.xlu0 %4803, %v4486
        %v4805 = vpop.permute.xlu0 %4804
        %v4807 = vmul.f32 %v4681, %v4391
        %v4808 = vmul.f32 %v4685, %v4392
        %v4809 = vmul.f32 %v4689, %v4393
        %v4810 = vmul.f32 %v4693, %v4394
        %v4811 = vmul.f32 %v4697, %v4395
        %v4812 = vmul.f32 %v4701, %v4396
        %v4813 = vmul.f32 %v4705, %v4397
        %v4814 = vmul.f32 %v4709, %v4398
        %v4815 = vmul.f32 %v4713, %v4399
        %v4816 = vmul.f32 %v4717, %v4400
        %v4817 = vmul.f32 %v4721, %v4401
        %v4818 = vmul.f32 %v4725, %v4402
        %v4819 = vmul.f32 %v4729, %v4403
        %v4820 = vmul.f32 %v4733, %v4404
        %v4821 = vmul.f32 %v4737, %v4405
        %v4822 = vmul.f32 %v4741, %v4406
        %v4823 = vmul.f32 %v4745, %v4407
        %v4824 = vmul.f32 %v4749, %v4408
        %v4825 = vmul.f32 %v4753, %v4409
        %v4826 = vmul.f32 %v4757, %v4410
        %v4827 = vmul.f32 %v4761, %v4411
        %v4828 = vmul.f32 %v4765, %v4412
        %v4829 = vmul.f32 %v4769, %v4413
        %v4830 = vmul.f32 %v4773, %v4414
        %v4831 = vmul.f32 %v4777, %v4415
        %v4832 = vmul.f32 %v4781, %v4416
        %v4833 = vmul.f32 %v4785, %v4417
        %v4834 = vmul.f32 %v4789, %v4418
        %v4835 = vmul.f32 %v4793, %v4419
        %v4836 = vmul.f32 %v4797, %v4420
        %v4837 = vmul.f32 %v4801, %v4421
        %v4838 = vmul.f32 %v4805, %v4422
        %v4839 = vadd.f32 %v4647, %v4807
        %v4840 = vadd.f32 %v4648, %v4808
        %v4841 = vadd.f32 %v4649, %v4809
        %v4842 = vadd.f32 %v4650, %v4810
        %v4843 = vadd.f32 %v4651, %v4811
        %v4844 = vadd.f32 %v4652, %v4812
        %v4845 = vadd.f32 %v4653, %v4813
        %v4846 = vadd.f32 %v4654, %v4814
        %v4847 = vadd.f32 %v4655, %v4815
        %v4848 = vadd.f32 %v4656, %v4816
        %v4849 = vadd.f32 %v4657, %v4817
        %v4850 = vadd.f32 %v4658, %v4818
        %v4851 = vadd.f32 %v4659, %v4819
        %v4852 = vadd.f32 %v4660, %v4820
        %v4853 = vadd.f32 %v4661, %v4821
        %v4854 = vadd.f32 %v4662, %v4822
        %v4855 = vadd.f32 %v4663, %v4823
        %v4856 = vadd.f32 %v4664, %v4824
        %v4857 = vadd.f32 %v4665, %v4825
        %v4858 = vadd.f32 %v4666, %v4826
        %v4859 = vadd.f32 %v4667, %v4827
        %v4860 = vadd.f32 %v4668, %v4828
        %v4861 = vadd.f32 %v4669, %v4829
        %v4862 = vadd.f32 %v4670, %v4830
        %v4863 = vadd.f32 %v4671, %v4831
        %v4864 = vadd.f32 %v4672, %v4832
        %v4865 = vadd.f32 %v4673, %v4833
        %v4866 = vadd.f32 %v4674, %v4834
        %v4867 = vadd.f32 %v4675, %v4835
        %v4868 = vadd.f32 %v4676, %v4836
        %v4869 = vadd.f32 %v4677, %v4837
        %v4870 = vadd.f32 %v4678, %v4838
        %4871 = vset.pattern.permute.xlu0 2
        %4872 = vperm.xlu0 %4871, %v4455
        %v4873 = vpop.permute.xlu0 %4872
        %4875 = vset.pattern.permute.xlu0 2
        %4876 = vperm.xlu0 %4875, %v4456
        %v4877 = vpop.permute.xlu0 %4876
        %4879 = vset.pattern.permute.xlu0 2
        %4880 = vperm.xlu0 %4879, %v4457
        %v4881 = vpop.permute.xlu0 %4880
        %4883 = vset.pattern.permute.xlu0 2
        %4884 = vperm.xlu0 %4883, %v4458
        %v4885 = vpop.permute.xlu0 %4884
        %4887 = vset.pattern.permute.xlu0 2
        %4888 = vperm.xlu0 %4887, %v4459
        %v4889 = vpop.permute.xlu0 %4888
        %4891 = vset.pattern.permute.xlu0 2
        %4892 = vperm.xlu0 %4891, %v4460
        %v4893 = vpop.permute.xlu0 %4892
        %4895 = vset.pattern.permute.xlu0 2
        %4896 = vperm.xlu0 %4895, %v4461
        %v4897 = vpop.permute.xlu0 %4896
        %4899 = vset.pattern.permute.xlu0 2
        %4900 = vperm.xlu0 %4899, %v4462
        %v4901 = vpop.permute.xlu0 %4900
        %4903 = vset.pattern.permute.xlu0 2
        %4904 = vperm.xlu0 %4903, %v4463
        %v4905 = vpop.permute.xlu0 %4904
        %4907 = vset.pattern.permute.xlu0 2
        %4908 = vperm.xlu0 %4907, %v4464
        %v4909 = vpop.permute.xlu0 %4908
        %4911 = vset.pattern.permute.xlu0 2
        %4912 = vperm.xlu0 %4911, %v4465
        %v4913 = vpop.permute.xlu0 %4912
        %4915 = vset.pattern.permute.xlu0 2
        %4916 = vperm.xlu0 %4915, %v4466
        %v4917 = vpop.permute.xlu0 %4916
        %4919 = vset.pattern.permute.xlu0 2
        %4920 = vperm.xlu0 %4919, %v4467
        %v4921 = vpop.permute.xlu0 %4920
        %4923 = vset.pattern.permute.xlu0 2
        %4924 = vperm.xlu0 %4923, %v4468
        %v4925 = vpop.permute.xlu0 %4924
        %4927 = vset.pattern.permute.xlu0 2
        %4928 = vperm.xlu0 %4927, %v4469
        %v4929 = vpop.permute.xlu0 %4928
        %4931 = vset.pattern.permute.xlu0 2
        %4932 = vperm.xlu0 %4931, %v4470
        %v4933 = vpop.permute.xlu0 %4932
        %4935 = vset.pattern.permute.xlu0 2
        %4936 = vperm.xlu0 %4935, %v4471
        %v4937 = vpop.permute.xlu0 %4936
        %4939 = vset.pattern.permute.xlu0 2
        %4940 = vperm.xlu0 %4939, %v4472
        %v4941 = vpop.permute.xlu0 %4940
        %4943 = vset.pattern.permute.xlu0 2
        %4944 = vperm.xlu0 %4943, %v4473
        %v4945 = vpop.permute.xlu0 %4944
        %4947 = vset.pattern.permute.xlu0 2
        %4948 = vperm.xlu0 %4947, %v4474
        %v4949 = vpop.permute.xlu0 %4948
        %4951 = vset.pattern.permute.xlu0 2
        %4952 = vperm.xlu0 %4951, %v4475
        %v4953 = vpop.permute.xlu0 %4952
        %4955 = vset.pattern.permute.xlu0 2
        %4956 = vperm.xlu0 %4955, %v4476
        %v4957 = vpop.permute.xlu0 %4956
        %4959 = vset.pattern.permute.xlu0 2
        %4960 = vperm.xlu0 %4959, %v4477
        %v4961 = vpop.permute.xlu0 %4960
        %4963 = vset.pattern.permute.xlu0 2
        %4964 = vperm.xlu0 %4963, %v4478
        %v4965 = vpop.permute.xlu0 %4964
        %4967 = vset.pattern.permute.xlu0 2
        %4968 = vperm.xlu0 %4967, %v4479
        %v4969 = vpop.permute.xlu0 %4968
        %4971 = vset.pattern.permute.xlu0 2
        %4972 = vperm.xlu0 %4971, %v4480
        %v4973 = vpop.permute.xlu0 %4972
        %4975 = vset.pattern.permute.xlu0 2
        %4976 = vperm.xlu0 %4975, %v4481
        %v4977 = vpop.permute.xlu0 %4976
        %4979 = vset.pattern.permute.xlu0 2
        %4980 = vperm.xlu0 %4979, %v4482
        %v4981 = vpop.permute.xlu0 %4980
        %4983 = vset.pattern.permute.xlu0 2
        %4984 = vperm.xlu0 %4983, %v4483
        %v4985 = vpop.permute.xlu0 %4984
        %4987 = vset.pattern.permute.xlu0 2
        %4988 = vperm.xlu0 %4987, %v4484
        %v4989 = vpop.permute.xlu0 %4988
        %4991 = vset.pattern.permute.xlu0 2
        %4992 = vperm.xlu0 %4991, %v4485
        %v4993 = vpop.permute.xlu0 %4992
        %4995 = vset.pattern.permute.xlu0 2
        %4996 = vperm.xlu0 %4995, %v4486
        %v4997 = vpop.permute.xlu0 %4996
        %v4999 = vmul.f32 %v4873, %v4423
        %v5000 = vmul.f32 %v4877, %v4424
        %v5001 = vmul.f32 %v4881, %v4425
        %v5002 = vmul.f32 %v4885, %v4426
        %v5003 = vmul.f32 %v4889, %v4427
        %v5004 = vmul.f32 %v4893, %v4428
        %v5005 = vmul.f32 %v4897, %v4429
        %v5006 = vmul.f32 %v4901, %v4430
        %v5007 = vmul.f32 %v4905, %v4431
        %v5008 = vmul.f32 %v4909, %v4432
        %v5009 = vmul.f32 %v4913, %v4433
        %v5010 = vmul.f32 %v4917, %v4434
        %v5011 = vmul.f32 %v4921, %v4435
        %v5012 = vmul.f32 %v4925, %v4436
        %v5013 = vmul.f32 %v4929, %v4437
        %v5014 = vmul.f32 %v4933, %v4438
        %v5015 = vmul.f32 %v4937, %v4439
        %v5016 = vmul.f32 %v4941, %v4440
        %v5017 = vmul.f32 %v4945, %v4441
        %v5018 = vmul.f32 %v4949, %v4442
        %v5019 = vmul.f32 %v4953, %v4443
        %v5020 = vmul.f32 %v4957, %v4444
        %v5021 = vmul.f32 %v4961, %v4445
        %v5022 = vmul.f32 %v4965, %v4446
        %v5023 = vmul.f32 %v4969, %v4447
        %v5024 = vmul.f32 %v4973, %v4448
        %v5025 = vmul.f32 %v4977, %v4449
        %v5026 = vmul.f32 %v4981, %v4450
        %v5027 = vmul.f32 %v4985, %v4451
        %v5028 = vmul.f32 %v4989, %v4452
        %v5029 = vmul.f32 %v4993, %v4453
        %v5030 = vmul.f32 %v4997, %v4454
        %v5031 = vadd.f32 %v4839, %v4999
        %v5032 = vadd.f32 %v4840, %v5000
        %v5033 = vadd.f32 %v4841, %v5001
        %v5034 = vadd.f32 %v4842, %v5002
        %v5035 = vadd.f32 %v4843, %v5003
        %v5036 = vadd.f32 %v4844, %v5004
        %v5037 = vadd.f32 %v4845, %v5005
        %v5038 = vadd.f32 %v4846, %v5006
        %v5039 = vadd.f32 %v4847, %v5007
        %v5040 = vadd.f32 %v4848, %v5008
        %v5041 = vadd.f32 %v4849, %v5009
        %v5042 = vadd.f32 %v4850, %v5010
        %v5043 = vadd.f32 %v4851, %v5011
        %v5044 = vadd.f32 %v4852, %v5012
        %v5045 = vadd.f32 %v4853, %v5013
        %v5046 = vadd.f32 %v4854, %v5014
        %v5047 = vadd.f32 %v4855, %v5015
        %v5048 = vadd.f32 %v4856, %v5016
        %v5049 = vadd.f32 %v4857, %v5017
        %v5050 = vadd.f32 %v4858, %v5018
        %v5051 = vadd.f32 %v4859, %v5019
        %v5052 = vadd.f32 %v4860, %v5020
        %v5053 = vadd.f32 %v4861, %v5021
        %v5054 = vadd.f32 %v4862, %v5022
        %v5055 = vadd.f32 %v4863, %v5023
        %v5056 = vadd.f32 %v4864, %v5024
        %v5057 = vadd.f32 %v4865, %v5025
        %v5058 = vadd.f32 %v4866, %v5026
        %v5059 = vadd.f32 %v4867, %v5027
        %v5060 = vadd.f32 %v4868, %v5028
        %v5061 = vadd.f32 %v4869, %v5029
        %v5062 = vadd.f32 %v4870, %v5030
        %v5063 = vld [vmem:[%s859] sm:$0xff]
        %v5064 = vld [vmem:[%s859 + $0x8] sm:$0xff]
        %v5065 = vld [vmem:[%s859 + $0x10] sm:$0xff]
        %v5066 = vld [vmem:[%s859 + $0x18] sm:$0xff]
        %v5067 = vld [vmem:[%s859 + $0x20] sm:$0xff]
        %v5068 = vld [vmem:[%s859 + $0x28] sm:$0xff]
        %v5069 = vld [vmem:[%s859 + $0x30] sm:$0xff]
        %v5070 = vld [vmem:[%s859 + $0x38] sm:$0xff]
        %v5071 = vld [vmem:[%s859 + $0x40] sm:$0xff]
        %v5072 = vld [vmem:[%s859 + $0x48] sm:$0xff]
        %v5073 = vld [vmem:[%s859 + $0x50] sm:$0xff]
        %v5074 = vld [vmem:[%s859 + $0x58] sm:$0xff]
        %v5075 = vld [vmem:[%s859 + $0x60] sm:$0xff]
        %v5076 = vld [vmem:[%s859 + $0x68] sm:$0xff]
        %v5077 = vld [vmem:[%s859 + $0x70] sm:$0xff]
        %v5078 = vld [vmem:[%s859 + $0x78] sm:$0xff]
        %v5079 = vld [vmem:[%s859 + $0x80] sm:$0xff]
        %v5080 = vld [vmem:[%s859 + $0x88] sm:$0xff]
        %v5081 = vld [vmem:[%s859 + $0x90] sm:$0xff]
        %v5082 = vld [vmem:[%s859 + $0x98] sm:$0xff]
        %v5083 = vld [vmem:[%s859 + $0xa0] sm:$0xff]
        %v5084 = vld [vmem:[%s859 + $0xa8] sm:$0xff]
        %v5085 = vld [vmem:[%s859 + $0xb0] sm:$0xff]
        %v5086 = vld [vmem:[%s859 + $0xb8] sm:$0xff]
        %v5087 = vld [vmem:[%s859 + $0xc0] sm:$0xff]
        %v5088 = vld [vmem:[%s859 + $0xc8] sm:$0xff]
        %v5089 = vld [vmem:[%s859 + $0xd0] sm:$0xff]
        %v5090 = vld [vmem:[%s859 + $0xd8] sm:$0xff]
        %v5091 = vld [vmem:[%s859 + $0xe0] sm:$0xff]
        %v5092 = vld [vmem:[%s859 + $0xe8] sm:$0xff]
        %v5093 = vld [vmem:[%s859 + $0xf0] sm:$0xff]
        %v5094 = vld [vmem:[%s859 + $0xf8] sm:$0xff]
        %v5095 = vld [vmem:[%s865] sm:$0x7]
        %v5096 = vld [vmem:[%s865 + $0x4] sm:$0x7]
        %v5097 = vld [vmem:[%s865 + $0x8] sm:$0x7]
        %v5098 = vld [vmem:[%s865 + $0xc] sm:$0x7]
        %v5099 = vld [vmem:[%s865 + $0x10] sm:$0x7]
        %v5100 = vld [vmem:[%s865 + $0x14] sm:$0x7]
        %v5101 = vld [vmem:[%s865 + $0x18] sm:$0x7]
        %v5102 = vld [vmem:[%s865 + $0x1c] sm:$0x7]
        %v5103 = vld [vmem:[%s865 + $0x20] sm:$0x7]
        %v5104 = vld [vmem:[%s865 + $0x24] sm:$0x7]
        %v5105 = vld [vmem:[%s865 + $0x28] sm:$0x7]
        %v5106 = vld [vmem:[%s865 + $0x2c] sm:$0x7]
        %v5107 = vld [vmem:[%s865 + $0x30] sm:$0x7]
        %v5108 = vld [vmem:[%s865 + $0x34] sm:$0x7]
        %v5109 = vld [vmem:[%s865 + $0x38] sm:$0x7]
        %v5110 = vld [vmem:[%s865 + $0x3c] sm:$0x7]
        %v5111 = vld [vmem:[%s865 + $0x40] sm:$0x7]
        %v5112 = vld [vmem:[%s865 + $0x44] sm:$0x7]
        %v5113 = vld [vmem:[%s865 + $0x48] sm:$0x7]
        %v5114 = vld [vmem:[%s865 + $0x4c] sm:$0x7]
        %v5115 = vld [vmem:[%s865 + $0x50] sm:$0x7]
        %v5116 = vld [vmem:[%s865 + $0x54] sm:$0x7]
        %v5117 = vld [vmem:[%s865 + $0x58] sm:$0x7]
        %v5118 = vld [vmem:[%s865 + $0x5c] sm:$0x7]
        %v5119 = vld [vmem:[%s865 + $0x60] sm:$0x7]
        %v5120 = vld [vmem:[%s865 + $0x64] sm:$0x7]
        %v5121 = vld [vmem:[%s865 + $0x68] sm:$0x7]
        %v5122 = vld [vmem:[%s865 + $0x6c] sm:$0x7]
        %v5123 = vld [vmem:[%s865 + $0x70] sm:$0x7]
        %v5124 = vld [vmem:[%s865 + $0x74] sm:$0x7]
        %v5125 = vld [vmem:[%s865 + $0x78] sm:$0x7]
        %v5126 = vld [vmem:[%s865 + $0x7c] sm:$0x7]
        %5128 = vset.pattern.permute.xlu0 0
        %5129 = vperm.xlu0 %5128, %v5063
        %v5130 = vpop.permute.xlu0 %5129
        %5133 = vset.pattern.permute.xlu0 0
        %5134 = vperm.xlu0 %5133, %v5064
        %v5135 = vpop.permute.xlu0 %5134
        %5138 = vset.pattern.permute.xlu0 0
        %5139 = vperm.xlu0 %5138, %v5065
        %v5140 = vpop.permute.xlu0 %5139
        %5143 = vset.pattern.permute.xlu0 0
        %5144 = vperm.xlu0 %5143, %v5066
        %v5145 = vpop.permute.xlu0 %5144
        %5148 = vset.pattern.permute.xlu0 0
        %5149 = vperm.xlu0 %5148, %v5067
        %v5150 = vpop.permute.xlu0 %5149
        %5153 = vset.pattern.permute.xlu0 0
        %5154 = vperm.xlu0 %5153, %v5068
        %v5155 = vpop.permute.xlu0 %5154
        %5158 = vset.pattern.permute.xlu0 0
        %5159 = vperm.xlu0 %5158, %v5069
        %v5160 = vpop.permute.xlu0 %5159
        %5163 = vset.pattern.permute.xlu0 0
        %5164 = vperm.xlu0 %5163, %v5070
        %v5165 = vpop.permute.xlu0 %5164
        %5168 = vset.pattern.permute.xlu0 0
        %5169 = vperm.xlu0 %5168, %v5071
        %v5170 = vpop.permute.xlu0 %5169
        %5173 = vset.pattern.permute.xlu0 0
        %5174 = vperm.xlu0 %5173, %v5072
        %v5175 = vpop.permute.xlu0 %5174
        %5178 = vset.pattern.permute.xlu0 0
        %5179 = vperm.xlu0 %5178, %v5073
        %v5180 = vpop.permute.xlu0 %5179
        %5183 = vset.pattern.permute.xlu0 0
        %5184 = vperm.xlu0 %5183, %v5074
        %v5185 = vpop.permute.xlu0 %5184
        %5188 = vset.pattern.permute.xlu0 0
        %5189 = vperm.xlu0 %5188, %v5075
        %v5190 = vpop.permute.xlu0 %5189
        %5193 = vset.pattern.permute.xlu0 0
        %5194 = vperm.xlu0 %5193, %v5076
        %v5195 = vpop.permute.xlu0 %5194
        %5198 = vset.pattern.permute.xlu0 0
        %5199 = vperm.xlu0 %5198, %v5077
        %v5200 = vpop.permute.xlu0 %5199
        %5203 = vset.pattern.permute.xlu0 0
        %5204 = vperm.xlu0 %5203, %v5078
        %v5205 = vpop.permute.xlu0 %5204
        %5208 = vset.pattern.permute.xlu0 0
        %5209 = vperm.xlu0 %5208, %v5079
        %v5210 = vpop.permute.xlu0 %5209
        %5213 = vset.pattern.permute.xlu0 0
        %5214 = vperm.xlu0 %5213, %v5080
        %v5215 = vpop.permute.xlu0 %5214
        %5218 = vset.pattern.permute.xlu0 0
        %5219 = vperm.xlu0 %5218, %v5081
        %v5220 = vpop.permute.xlu0 %5219
        %5223 = vset.pattern.permute.xlu0 0
        %5224 = vperm.xlu0 %5223, %v5082
        %v5225 = vpop.permute.xlu0 %5224
        %5228 = vset.pattern.permute.xlu0 0
        %5229 = vperm.xlu0 %5228, %v5083
        %v5230 = vpop.permute.xlu0 %5229
        %5233 = vset.pattern.permute.xlu0 0
        %5234 = vperm.xlu0 %5233, %v5084
        %v5235 = vpop.permute.xlu0 %5234
        %5238 = vset.pattern.permute.xlu0 0
        %5239 = vperm.xlu0 %5238, %v5085
        %v5240 = vpop.permute.xlu0 %5239
        %5243 = vset.pattern.permute.xlu0 0
        %5244 = vperm.xlu0 %5243, %v5086
        %v5245 = vpop.permute.xlu0 %5244
        %5248 = vset.pattern.permute.xlu0 0
        %5249 = vperm.xlu0 %5248, %v5087
        %v5250 = vpop.permute.xlu0 %5249
        %5253 = vset.pattern.permute.xlu0 0
        %5254 = vperm.xlu0 %5253, %v5088
        %v5255 = vpop.permute.xlu0 %5254
        %5258 = vset.pattern.permute.xlu0 0
        %5259 = vperm.xlu0 %5258, %v5089
        %v5260 = vpop.permute.xlu0 %5259
        %5263 = vset.pattern.permute.xlu0 0
        %5264 = vperm.xlu0 %5263, %v5090
        %v5265 = vpop.permute.xlu0 %5264
        %5268 = vset.pattern.permute.xlu0 0
        %5269 = vperm.xlu0 %5268, %v5091
        %v5270 = vpop.permute.xlu0 %5269
        %5273 = vset.pattern.permute.xlu0 0
        %5274 = vperm.xlu0 %5273, %v5092
        %v5275 = vpop.permute.xlu0 %5274
        %5278 = vset.pattern.permute.xlu0 0
        %5279 = vperm.xlu0 %5278, %v5093
        %v5280 = vpop.permute.xlu0 %5279
        %5283 = vset.pattern.permute.xlu0 0
        %5284 = vperm.xlu0 %5283, %v5094
        %v5285 = vpop.permute.xlu0 %5284
        %v5287 = vlaneseq
        %v5288 = vshrl.u32 %v5287, 7
        %v5289 = vsub.s32 0, %v5288
        %v5290 = vrot.slane %v5095, %v5289
        %v5291 = vlaneseq
        %v5292 = vshrl.u32 %v5291, 7
        %v5293 = vsub.s32 0, %v5292
        %v5294 = vrot.slane %v5096, %v5293
        %v5295 = vlaneseq
        %v5296 = vshrl.u32 %v5295, 7
        %v5297 = vsub.s32 0, %v5296
        %v5298 = vrot.slane %v5097, %v5297
        %v5299 = vlaneseq
        %v5300 = vshrl.u32 %v5299, 7
        %v5301 = vsub.s32 0, %v5300
        %v5302 = vrot.slane %v5098, %v5301
        %v5303 = vlaneseq
        %v5304 = vshrl.u32 %v5303, 7
        %v5305 = vsub.s32 0, %v5304
        %v5306 = vrot.slane %v5099, %v5305
        %v5307 = vlaneseq
        %v5308 = vshrl.u32 %v5307, 7
        %v5309 = vsub.s32 0, %v5308
        %v5310 = vrot.slane %v5100, %v5309
        %v5311 = vlaneseq
        %v5312 = vshrl.u32 %v5311, 7
        %v5313 = vsub.s32 0, %v5312
        %v5314 = vrot.slane %v5101, %v5313
        %v5315 = vlaneseq
        %v5316 = vshrl.u32 %v5315, 7
        %v5317 = vsub.s32 0, %v5316
        %v5318 = vrot.slane %v5102, %v5317
        %v5319 = vlaneseq
        %v5320 = vshrl.u32 %v5319, 7
        %v5321 = vsub.s32 0, %v5320
        %v5322 = vrot.slane %v5103, %v5321
        %v5323 = vlaneseq
        %v5324 = vshrl.u32 %v5323, 7
        %v5325 = vsub.s32 0, %v5324
        %v5326 = vrot.slane %v5104, %v5325
        %v5327 = vlaneseq
        %v5328 = vshrl.u32 %v5327, 7
        %v5329 = vsub.s32 0, %v5328
        %v5330 = vrot.slane %v5105, %v5329
        %v5331 = vlaneseq
        %v5332 = vshrl.u32 %v5331, 7
        %v5333 = vsub.s32 0, %v5332
        %v5334 = vrot.slane %v5106, %v5333
        %v5335 = vlaneseq
        %v5336 = vshrl.u32 %v5335, 7
        %v5337 = vsub.s32 0, %v5336
        %v5338 = vrot.slane %v5107, %v5337
        %v5339 = vlaneseq
        %v5340 = vshrl.u32 %v5339, 7
        %v5341 = vsub.s32 0, %v5340
        %v5342 = vrot.slane %v5108, %v5341
        %v5343 = vlaneseq
        %v5344 = vshrl.u32 %v5343, 7
        %v5345 = vsub.s32 0, %v5344
        %v5346 = vrot.slane %v5109, %v5345
        %v5347 = vlaneseq
        %v5348 = vshrl.u32 %v5347, 7
        %v5349 = vsub.s32 0, %v5348
        %v5350 = vrot.slane %v5110, %v5349
        %v5351 = vlaneseq
        %v5352 = vshrl.u32 %v5351, 7
        %v5353 = vsub.s32 0, %v5352
        %v5354 = vrot.slane %v5111, %v5353
        %v5355 = vlaneseq
        %v5356 = vshrl.u32 %v5355, 7
        %v5357 = vsub.s32 0, %v5356
        %v5358 = vrot.slane %v5112, %v5357
        %v5359 = vlaneseq
        %v5360 = vshrl.u32 %v5359, 7
        %v5361 = vsub.s32 0, %v5360
        %v5362 = vrot.slane %v5113, %v5361
        %v5363 = vlaneseq
        %v5364 = vshrl.u32 %v5363, 7
        %v5365 = vsub.s32 0, %v5364
        %v5366 = vrot.slane %v5114, %v5365
        %v5367 = vlaneseq
        %v5368 = vshrl.u32 %v5367, 7
        %v5369 = vsub.s32 0, %v5368
        %v5370 = vrot.slane %v5115, %v5369
        %v5371 = vlaneseq
        %v5372 = vshrl.u32 %v5371, 7
        %v5373 = vsub.s32 0, %v5372
        %v5374 = vrot.slane %v5116, %v5373
        %v5375 = vlaneseq
        %v5376 = vshrl.u32 %v5375, 7
        %v5377 = vsub.s32 0, %v5376
        %v5378 = vrot.slane %v5117, %v5377
        %v5379 = vlaneseq
        %v5380 = vshrl.u32 %v5379, 7
        %v5381 = vsub.s32 0, %v5380
        %v5382 = vrot.slane %v5118, %v5381
        %v5383 = vlaneseq
        %v5384 = vshrl.u32 %v5383, 7
        %v5385 = vsub.s32 0, %v5384
        %v5386 = vrot.slane %v5119, %v5385
        %v5387 = vlaneseq
        %v5388 = vshrl.u32 %v5387, 7
        %v5389 = vsub.s32 0, %v5388
        %v5390 = vrot.slane %v5120, %v5389
        %v5391 = vlaneseq
        %v5392 = vshrl.u32 %v5391, 7
        %v5393 = vsub.s32 0, %v5392
        %v5394 = vrot.slane %v5121, %v5393
        %v5395 = vlaneseq
        %v5396 = vshrl.u32 %v5395, 7
        %v5397 = vsub.s32 0, %v5396
        %v5398 = vrot.slane %v5122, %v5397
        %v5399 = vlaneseq
        %v5400 = vshrl.u32 %v5399, 7
        %v5401 = vsub.s32 0, %v5400
        %v5402 = vrot.slane %v5123, %v5401
        %v5403 = vlaneseq
        %v5404 = vshrl.u32 %v5403, 7
        %v5405 = vsub.s32 0, %v5404
        %v5406 = vrot.slane %v5124, %v5405
        %v5407 = vlaneseq
        %v5408 = vshrl.u32 %v5407, 7
        %v5409 = vsub.s32 0, %v5408
        %v5410 = vrot.slane %v5125, %v5409
        %v5411 = vlaneseq
        %v5412 = vshrl.u32 %v5411, 7
        %v5413 = vsub.s32 0, %v5412
        %v5414 = vrot.slane %v5126, %v5413
        %v5415 = vsub.f32 %v5130, %v5290
        %v5416 = vsub.f32 %v5135, %v5294
        %v5417 = vsub.f32 %v5140, %v5298
        %v5418 = vsub.f32 %v5145, %v5302
        %v5419 = vsub.f32 %v5150, %v5306
        %v5420 = vsub.f32 %v5155, %v5310
        %v5421 = vsub.f32 %v5160, %v5314
        %v5422 = vsub.f32 %v5165, %v5318
        %v5423 = vsub.f32 %v5170, %v5322
        %v5424 = vsub.f32 %v5175, %v5326
        %v5425 = vsub.f32 %v5180, %v5330
        %v5426 = vsub.f32 %v5185, %v5334
        %v5427 = vsub.f32 %v5190, %v5338
        %v5428 = vsub.f32 %v5195, %v5342
        %v5429 = vsub.f32 %v5200, %v5346
        %v5430 = vsub.f32 %v5205, %v5350
        %v5431 = vsub.f32 %v5210, %v5354
        %v5432 = vsub.f32 %v5215, %v5358
        %v5433 = vsub.f32 %v5220, %v5362
        %v5434 = vsub.f32 %v5225, %v5366
        %v5435 = vsub.f32 %v5230, %v5370
        %v5436 = vsub.f32 %v5235, %v5374
        %v5437 = vsub.f32 %v5240, %v5378
        %v5438 = vsub.f32 %v5245, %v5382
        %v5439 = vsub.f32 %v5250, %v5386
        %v5440 = vsub.f32 %v5255, %v5390
        %v5441 = vsub.f32 %v5260, %v5394
        %v5442 = vsub.f32 %v5265, %v5398
        %v5443 = vsub.f32 %v5270, %v5402
        %v5444 = vsub.f32 %v5275, %v5406
        %v5445 = vsub.f32 %v5280, %v5410
        %v5446 = vsub.f32 %v5285, %v5414
        %5447 = vset.pattern.permute.xlu0 1
        %5448 = vperm.xlu0 %5447, %v5063
        %v5449 = vpop.permute.xlu0 %5448
        %5451 = vset.pattern.permute.xlu0 1
        %5452 = vperm.xlu0 %5451, %v5064
        %v5453 = vpop.permute.xlu0 %5452
        %5455 = vset.pattern.permute.xlu0 1
        %5456 = vperm.xlu0 %5455, %v5065
        %v5457 = vpop.permute.xlu0 %5456
        %5459 = vset.pattern.permute.xlu0 1
        %5460 = vperm.xlu0 %5459, %v5066
        %v5461 = vpop.permute.xlu0 %5460
        %5463 = vset.pattern.permute.xlu0 1
        %5464 = vperm.xlu0 %5463, %v5067
        %v5465 = vpop.permute.xlu0 %5464
        %5467 = vset.pattern.permute.xlu0 1
        %5468 = vperm.xlu0 %5467, %v5068
        %v5469 = vpop.permute.xlu0 %5468
        %5471 = vset.pattern.permute.xlu0 1
        %5472 = vperm.xlu0 %5471, %v5069
        %v5473 = vpop.permute.xlu0 %5472
        %5475 = vset.pattern.permute.xlu0 1
        %5476 = vperm.xlu0 %5475, %v5070
        %v5477 = vpop.permute.xlu0 %5476
        %5479 = vset.pattern.permute.xlu0 1
        %5480 = vperm.xlu0 %5479, %v5071
        %v5481 = vpop.permute.xlu0 %5480
        %5483 = vset.pattern.permute.xlu0 1
        %5484 = vperm.xlu0 %5483, %v5072
        %v5485 = vpop.permute.xlu0 %5484
        %5487 = vset.pattern.permute.xlu0 1
        %5488 = vperm.xlu0 %5487, %v5073
        %v5489 = vpop.permute.xlu0 %5488
        %5491 = vset.pattern.permute.xlu0 1
        %5492 = vperm.xlu0 %5491, %v5074
        %v5493 = vpop.permute.xlu0 %5492
        %5495 = vset.pattern.permute.xlu0 1
        %5496 = vperm.xlu0 %5495, %v5075
        %v5497 = vpop.permute.xlu0 %5496
        %5499 = vset.pattern.permute.xlu0 1
        %5500 = vperm.xlu0 %5499, %v5076
        %v5501 = vpop.permute.xlu0 %5500
        %5503 = vset.pattern.permute.xlu0 1
        %5504 = vperm.xlu0 %5503, %v5077
        %v5505 = vpop.permute.xlu0 %5504
        %5507 = vset.pattern.permute.xlu0 1
        %5508 = vperm.xlu0 %5507, %v5078
        %v5509 = vpop.permute.xlu0 %5508
        %5511 = vset.pattern.permute.xlu0 1
        %5512 = vperm.xlu0 %5511, %v5079
        %v5513 = vpop.permute.xlu0 %5512
        %5515 = vset.pattern.permute.xlu0 1
        %5516 = vperm.xlu0 %5515, %v5080
        %v5517 = vpop.permute.xlu0 %5516
        %5519 = vset.pattern.permute.xlu0 1
        %5520 = vperm.xlu0 %5519, %v5081
        %v5521 = vpop.permute.xlu0 %5520
        %5523 = vset.pattern.permute.xlu0 1
        %5524 = vperm.xlu0 %5523, %v5082
        %v5525 = vpop.permute.xlu0 %5524
        %5527 = vset.pattern.permute.xlu0 1
        %5528 = vperm.xlu0 %5527, %v5083
        %v5529 = vpop.permute.xlu0 %5528
        %5531 = vset.pattern.permute.xlu0 1
        %5532 = vperm.xlu0 %5531, %v5084
        %v5533 = vpop.permute.xlu0 %5532
        %5535 = vset.pattern.permute.xlu0 1
        %5536 = vperm.xlu0 %5535, %v5085
        %v5537 = vpop.permute.xlu0 %5536
        %5539 = vset.pattern.permute.xlu0 1
        %5540 = vperm.xlu0 %5539, %v5086
        %v5541 = vpop.permute.xlu0 %5540
        %5543 = vset.pattern.permute.xlu0 1
        %5544 = vperm.xlu0 %5543, %v5087
        %v5545 = vpop.permute.xlu0 %5544
        %5547 = vset.pattern.permute.xlu0 1
        %5548 = vperm.xlu0 %5547, %v5088
        %v5549 = vpop.permute.xlu0 %5548
        %5551 = vset.pattern.permute.xlu0 1
        %5552 = vperm.xlu0 %5551, %v5089
        %v5553 = vpop.permute.xlu0 %5552
        %5555 = vset.pattern.permute.xlu0 1
        %5556 = vperm.xlu0 %5555, %v5090
        %v5557 = vpop.permute.xlu0 %5556
        %5559 = vset.pattern.permute.xlu0 1
        %5560 = vperm.xlu0 %5559, %v5091
        %v5561 = vpop.permute.xlu0 %5560
        %5563 = vset.pattern.permute.xlu0 1
        %5564 = vperm.xlu0 %5563, %v5092
        %v5565 = vpop.permute.xlu0 %5564
        %5567 = vset.pattern.permute.xlu0 1
        %5568 = vperm.xlu0 %5567, %v5093
        %v5569 = vpop.permute.xlu0 %5568
        %5571 = vset.pattern.permute.xlu0 1
        %5572 = vperm.xlu0 %5571, %v5094
        %v5573 = vpop.permute.xlu0 %5572
        %v5575 = vlaneseq
        %v5576 = vshrl.u32 %v5575, 7
        %v5577 = vsub.s32 1, %v5576
        %v5578 = vrot.slane %v5095, %v5577
        %v5579 = vlaneseq
        %v5580 = vshrl.u32 %v5579, 7
        %v5581 = vsub.s32 1, %v5580
        %v5582 = vrot.slane %v5096, %v5581
        %v5583 = vlaneseq
        %v5584 = vshrl.u32 %v5583, 7
        %v5585 = vsub.s32 1, %v5584
        %v5586 = vrot.slane %v5097, %v5585
        %v5587 = vlaneseq
        %v5588 = vshrl.u32 %v5587, 7
        %v5589 = vsub.s32 1, %v5588
        %v5590 = vrot.slane %v5098, %v5589
        %v5591 = vlaneseq
        %v5592 = vshrl.u32 %v5591, 7
        %v5593 = vsub.s32 1, %v5592
        %v5594 = vrot.slane %v5099, %v5593
        %v5595 = vlaneseq
        %v5596 = vshrl.u32 %v5595, 7
        %v5597 = vsub.s32 1, %v5596
        %v5598 = vrot.slane %v5100, %v5597
        %v5599 = vlaneseq
        %v5600 = vshrl.u32 %v5599, 7
        %v5601 = vsub.s32 1, %v5600
        %v5602 = vrot.slane %v5101, %v5601
        %v5603 = vlaneseq
        %v5604 = vshrl.u32 %v5603, 7
        %v5605 = vsub.s32 1, %v5604
        %v5606 = vrot.slane %v5102, %v5605
        %v5607 = vlaneseq
        %v5608 = vshrl.u32 %v5607, 7
        %v5609 = vsub.s32 1, %v5608
        %v5610 = vrot.slane %v5103, %v5609
        %v5611 = vlaneseq
        %v5612 = vshrl.u32 %v5611, 7
        %v5613 = vsub.s32 1, %v5612
        %v5614 = vrot.slane %v5104, %v5613
        %v5615 = vlaneseq
        %v5616 = vshrl.u32 %v5615, 7
        %v5617 = vsub.s32 1, %v5616
        %v5618 = vrot.slane %v5105, %v5617
        %v5619 = vlaneseq
        %v5620 = vshrl.u32 %v5619, 7
        %v5621 = vsub.s32 1, %v5620
        %v5622 = vrot.slane %v5106, %v5621
        %v5623 = vlaneseq
        %v5624 = vshrl.u32 %v5623, 7
        %v5625 = vsub.s32 1, %v5624
        %v5626 = vrot.slane %v5107, %v5625
        %v5627 = vlaneseq
        %v5628 = vshrl.u32 %v5627, 7
        %v5629 = vsub.s32 1, %v5628
        %v5630 = vrot.slane %v5108, %v5629
        %v5631 = vlaneseq
        %v5632 = vshrl.u32 %v5631, 7
        %v5633 = vsub.s32 1, %v5632
        %v5634 = vrot.slane %v5109, %v5633
        %v5635 = vlaneseq
        %v5636 = vshrl.u32 %v5635, 7
        %v5637 = vsub.s32 1, %v5636
        %v5638 = vrot.slane %v5110, %v5637
        %v5639 = vlaneseq
        %v5640 = vshrl.u32 %v5639, 7
        %v5641 = vsub.s32 1, %v5640
        %v5642 = vrot.slane %v5111, %v5641
        %v5643 = vlaneseq
        %v5644 = vshrl.u32 %v5643, 7
        %v5645 = vsub.s32 1, %v5644
        %v5646 = vrot.slane %v5112, %v5645
        %v5647 = vlaneseq
        %v5648 = vshrl.u32 %v5647, 7
        %v5649 = vsub.s32 1, %v5648
        %v5650 = vrot.slane %v5113, %v5649
        %v5651 = vlaneseq
        %v5652 = vshrl.u32 %v5651, 7
        %v5653 = vsub.s32 1, %v5652
        %v5654 = vrot.slane %v5114, %v5653
        %v5655 = vlaneseq
        %v5656 = vshrl.u32 %v5655, 7
        %v5657 = vsub.s32 1, %v5656
        %v5658 = vrot.slane %v5115, %v5657
        %v5659 = vlaneseq
        %v5660 = vshrl.u32 %v5659, 7
        %v5661 = vsub.s32 1, %v5660
        %v5662 = vrot.slane %v5116, %v5661
        %v5663 = vlaneseq
        %v5664 = vshrl.u32 %v5663, 7
        %v5665 = vsub.s32 1, %v5664
        %v5666 = vrot.slane %v5117, %v5665
        %v5667 = vlaneseq
        %v5668 = vshrl.u32 %v5667, 7
        %v5669 = vsub.s32 1, %v5668
        %v5670 = vrot.slane %v5118, %v5669
        %v5671 = vlaneseq
        %v5672 = vshrl.u32 %v5671, 7
        %v5673 = vsub.s32 1, %v5672
        %v5674 = vrot.slane %v5119, %v5673
        %v5675 = vlaneseq
        %v5676 = vshrl.u32 %v5675, 7
        %v5677 = vsub.s32 1, %v5676
        %v5678 = vrot.slane %v5120, %v5677
        %v5679 = vlaneseq
        %v5680 = vshrl.u32 %v5679, 7
        %v5681 = vsub.s32 1, %v5680
        %v5682 = vrot.slane %v5121, %v5681
        %v5683 = vlaneseq
        %v5684 = vshrl.u32 %v5683, 7
        %v5685 = vsub.s32 1, %v5684
        %v5686 = vrot.slane %v5122, %v5685
        %v5687 = vlaneseq
        %v5688 = vshrl.u32 %v5687, 7
        %v5689 = vsub.s32 1, %v5688
        %v5690 = vrot.slane %v5123, %v5689
        %v5691 = vlaneseq
        %v5692 = vshrl.u32 %v5691, 7
        %v5693 = vsub.s32 1, %v5692
        %v5694 = vrot.slane %v5124, %v5693
        %v5695 = vlaneseq
        %v5696 = vshrl.u32 %v5695, 7
        %v5697 = vsub.s32 1, %v5696
        %v5698 = vrot.slane %v5125, %v5697
        %v5699 = vlaneseq
        %v5700 = vshrl.u32 %v5699, 7
        %v5701 = vsub.s32 1, %v5700
        %v5702 = vrot.slane %v5126, %v5701
        %v5703 = vsub.f32 %v5449, %v5578
        %v5704 = vsub.f32 %v5453, %v5582
        %v5705 = vsub.f32 %v5457, %v5586
        %v5706 = vsub.f32 %v5461, %v5590
        %v5707 = vsub.f32 %v5465, %v5594
        %v5708 = vsub.f32 %v5469, %v5598
        %v5709 = vsub.f32 %v5473, %v5602
        %v5710 = vsub.f32 %v5477, %v5606
        %v5711 = vsub.f32 %v5481, %v5610
        %v5712 = vsub.f32 %v5485, %v5614
        %v5713 = vsub.f32 %v5489, %v5618
        %v5714 = vsub.f32 %v5493, %v5622
        %v5715 = vsub.f32 %v5497, %v5626
        %v5716 = vsub.f32 %v5501, %v5630
        %v5717 = vsub.f32 %v5505, %v5634
        %v5718 = vsub.f32 %v5509, %v5638
        %v5719 = vsub.f32 %v5513, %v5642
        %v5720 = vsub.f32 %v5517, %v5646
        %v5721 = vsub.f32 %v5521, %v5650
        %v5722 = vsub.f32 %v5525, %v5654
        %v5723 = vsub.f32 %v5529, %v5658
        %v5724 = vsub.f32 %v5533, %v5662
        %v5725 = vsub.f32 %v5537, %v5666
        %v5726 = vsub.f32 %v5541, %v5670
        %v5727 = vsub.f32 %v5545, %v5674
        %v5728 = vsub.f32 %v5549, %v5678
        %v5729 = vsub.f32 %v5553, %v5682
        %v5730 = vsub.f32 %v5557, %v5686
        %v5731 = vsub.f32 %v5561, %v5690
        %v5732 = vsub.f32 %v5565, %v5694
        %v5733 = vsub.f32 %v5569, %v5698
        %v5734 = vsub.f32 %v5573, %v5702
        %5735 = vset.pattern.permute.xlu0 2
        %5736 = vperm.xlu0 %5735, %v5063
        %v5737 = vpop.permute.xlu0 %5736
        %5739 = vset.pattern.permute.xlu0 2
        %5740 = vperm.xlu0 %5739, %v5064
        %v5741 = vpop.permute.xlu0 %5740
        %5743 = vset.pattern.permute.xlu0 2
        %5744 = vperm.xlu0 %5743, %v5065
        %v5745 = vpop.permute.xlu0 %5744
        %5747 = vset.pattern.permute.xlu0 2
        %5748 = vperm.xlu0 %5747, %v5066
        %v5749 = vpop.permute.xlu0 %5748
        %5751 = vset.pattern.permute.xlu0 2
        %5752 = vperm.xlu0 %5751, %v5067
        %v5753 = vpop.permute.xlu0 %5752
        %5755 = vset.pattern.permute.xlu0 2
        %5756 = vperm.xlu0 %5755, %v5068
        %v5757 = vpop.permute.xlu0 %5756
        %5759 = vset.pattern.permute.xlu0 2
        %5760 = vperm.xlu0 %5759, %v5069
        %v5761 = vpop.permute.xlu0 %5760
        %5763 = vset.pattern.permute.xlu0 2
        %5764 = vperm.xlu0 %5763, %v5070
        %v5765 = vpop.permute.xlu0 %5764
        %5767 = vset.pattern.permute.xlu0 2
        %5768 = vperm.xlu0 %5767, %v5071
        %v5769 = vpop.permute.xlu0 %5768
        %5771 = vset.pattern.permute.xlu0 2
        %5772 = vperm.xlu0 %5771, %v5072
        %v5773 = vpop.permute.xlu0 %5772
        %5775 = vset.pattern.permute.xlu0 2
        %5776 = vperm.xlu0 %5775, %v5073
        %v5777 = vpop.permute.xlu0 %5776
        %5779 = vset.pattern.permute.xlu0 2
        %5780 = vperm.xlu0 %5779, %v5074
        %v5781 = vpop.permute.xlu0 %5780
        %5783 = vset.pattern.permute.xlu0 2
        %5784 = vperm.xlu0 %5783, %v5075
        %v5785 = vpop.permute.xlu0 %5784
        %5787 = vset.pattern.permute.xlu0 2
        %5788 = vperm.xlu0 %5787, %v5076
        %v5789 = vpop.permute.xlu0 %5788
        %5791 = vset.pattern.permute.xlu0 2
        %5792 = vperm.xlu0 %5791, %v5077
        %v5793 = vpop.permute.xlu0 %5792
        %5795 = vset.pattern.permute.xlu0 2
        %5796 = vperm.xlu0 %5795, %v5078
        %v5797 = vpop.permute.xlu0 %5796
        %5799 = vset.pattern.permute.xlu0 2
        %5800 = vperm.xlu0 %5799, %v5079
        %v5801 = vpop.permute.xlu0 %5800
        %5803 = vset.pattern.permute.xlu0 2
        %5804 = vperm.xlu0 %5803, %v5080
        %v5805 = vpop.permute.xlu0 %5804
        %5807 = vset.pattern.permute.xlu0 2
        %5808 = vperm.xlu0 %5807, %v5081
        %v5809 = vpop.permute.xlu0 %5808
        %5811 = vset.pattern.permute.xlu0 2
        %5812 = vperm.xlu0 %5811, %v5082
        %v5813 = vpop.permute.xlu0 %5812
        %5815 = vset.pattern.permute.xlu0 2
        %5816 = vperm.xlu0 %5815, %v5083
        %v5817 = vpop.permute.xlu0 %5816
        %5819 = vset.pattern.permute.xlu0 2
        %5820 = vperm.xlu0 %5819, %v5084
        %v5821 = vpop.permute.xlu0 %5820
        %5823 = vset.pattern.permute.xlu0 2
        %5824 = vperm.xlu0 %5823, %v5085
        %v5825 = vpop.permute.xlu0 %5824
        %5827 = vset.pattern.permute.xlu0 2
        %5828 = vperm.xlu0 %5827, %v5086
        %v5829 = vpop.permute.xlu0 %5828
        %5831 = vset.pattern.permute.xlu0 2
        %5832 = vperm.xlu0 %5831, %v5087
        %v5833 = vpop.permute.xlu0 %5832
        %5835 = vset.pattern.permute.xlu0 2
        %5836 = vperm.xlu0 %5835, %v5088
        %v5837 = vpop.permute.xlu0 %5836
        %5839 = vset.pattern.permute.xlu0 2
        %5840 = vperm.xlu0 %5839, %v5089
        %v5841 = vpop.permute.xlu0 %5840
        %5843 = vset.pattern.permute.xlu0 2
        %5844 = vperm.xlu0 %5843, %v5090
        %v5845 = vpop.permute.xlu0 %5844
        %5847 = vset.pattern.permute.xlu0 2
        %5848 = vperm.xlu0 %5847, %v5091
        %v5849 = vpop.permute.xlu0 %5848
        %5851 = vset.pattern.permute.xlu0 2
        %5852 = vperm.xlu0 %5851, %v5092
        %v5853 = vpop.permute.xlu0 %5852
        %5855 = vset.pattern.permute.xlu0 2
        %5856 = vperm.xlu0 %5855, %v5093
        %v5857 = vpop.permute.xlu0 %5856
        %5859 = vset.pattern.permute.xlu0 2
        %5860 = vperm.xlu0 %5859, %v5094
        %v5861 = vpop.permute.xlu0 %5860
        %v5863 = vlaneseq
        %v5864 = vshrl.u32 %v5863, 7
        %v5865 = vsub.s32 2, %v5864
        %v5866 = vrot.slane %v5095, %v5865
        %v5867 = vlaneseq
        %v5868 = vshrl.u32 %v5867, 7
        %v5869 = vsub.s32 2, %v5868
        %v5870 = vrot.slane %v5096, %v5869
        %v5871 = vlaneseq
        %v5872 = vshrl.u32 %v5871, 7
        %v5873 = vsub.s32 2, %v5872
        %v5874 = vrot.slane %v5097, %v5873
        %v5875 = vlaneseq
        %v5876 = vshrl.u32 %v5875, 7
        %v5877 = vsub.s32 2, %v5876
        %v5878 = vrot.slane %v5098, %v5877
        %v5879 = vlaneseq
        %v5880 = vshrl.u32 %v5879, 7
        %v5881 = vsub.s32 2, %v5880
        %v5882 = vrot.slane %v5099, %v5881
        %v5883 = vlaneseq
        %v5884 = vshrl.u32 %v5883, 7
        %v5885 = vsub.s32 2, %v5884
        %v5886 = vrot.slane %v5100, %v5885
        %v5887 = vlaneseq
        %v5888 = vshrl.u32 %v5887, 7
        %v5889 = vsub.s32 2, %v5888
        %v5890 = vrot.slane %v5101, %v5889
        %v5891 = vlaneseq
        %v5892 = vshrl.u32 %v5891, 7
        %v5893 = vsub.s32 2, %v5892
        %v5894 = vrot.slane %v5102, %v5893
        %v5895 = vlaneseq
        %v5896 = vshrl.u32 %v5895, 7
        %v5897 = vsub.s32 2, %v5896
        %v5898 = vrot.slane %v5103, %v5897
        %v5899 = vlaneseq
        %v5900 = vshrl.u32 %v5899, 7
        %v5901 = vsub.s32 2, %v5900
        %v5902 = vrot.slane %v5104, %v5901
        %v5903 = vlaneseq
        %v5904 = vshrl.u32 %v5903, 7
        %v5905 = vsub.s32 2, %v5904
        %v5906 = vrot.slane %v5105, %v5905
        %v5907 = vlaneseq
        %v5908 = vshrl.u32 %v5907, 7
        %v5909 = vsub.s32 2, %v5908
        %v5910 = vrot.slane %v5106, %v5909
        %v5911 = vlaneseq
        %v5912 = vshrl.u32 %v5911, 7
        %v5913 = vsub.s32 2, %v5912
        %v5914 = vrot.slane %v5107, %v5913
        %v5915 = vlaneseq
        %v5916 = vshrl.u32 %v5915, 7
        %v5917 = vsub.s32 2, %v5916
        %v5918 = vrot.slane %v5108, %v5917
        %v5919 = vlaneseq
        %v5920 = vshrl.u32 %v5919, 7
        %v5921 = vsub.s32 2, %v5920
        %v5922 = vrot.slane %v5109, %v5921
        %v5923 = vlaneseq
        %v5924 = vshrl.u32 %v5923, 7
        %v5925 = vsub.s32 2, %v5924
        %v5926 = vrot.slane %v5110, %v5925
        %v5927 = vlaneseq
        %v5928 = vshrl.u32 %v5927, 7
        %v5929 = vsub.s32 2, %v5928
        %v5930 = vrot.slane %v5111, %v5929
        %v5931 = vlaneseq
        %v5932 = vshrl.u32 %v5931, 7
        %v5933 = vsub.s32 2, %v5932
        %v5934 = vrot.slane %v5112, %v5933
        %v5935 = vlaneseq
        %v5936 = vshrl.u32 %v5935, 7
        %v5937 = vsub.s32 2, %v5936
        %v5938 = vrot.slane %v5113, %v5937
        %v5939 = vlaneseq
        %v5940 = vshrl.u32 %v5939, 7
        %v5941 = vsub.s32 2, %v5940
        %v5942 = vrot.slane %v5114, %v5941
        %v5943 = vlaneseq
        %v5944 = vshrl.u32 %v5943, 7
        %v5945 = vsub.s32 2, %v5944
        %v5946 = vrot.slane %v5115, %v5945
        %v5947 = vlaneseq
        %v5948 = vshrl.u32 %v5947, 7
        %v5949 = vsub.s32 2, %v5948
        %v5950 = vrot.slane %v5116, %v5949
        %v5951 = vlaneseq
        %v5952 = vshrl.u32 %v5951, 7
        %v5953 = vsub.s32 2, %v5952
        %v5954 = vrot.slane %v5117, %v5953
        %v5955 = vlaneseq
        %v5956 = vshrl.u32 %v5955, 7
        %v5957 = vsub.s32 2, %v5956
        %v5958 = vrot.slane %v5118, %v5957
        %v5959 = vlaneseq
        %v5960 = vshrl.u32 %v5959, 7
        %v5961 = vsub.s32 2, %v5960
        %v5962 = vrot.slane %v5119, %v5961
        %v5963 = vlaneseq
        %v5964 = vshrl.u32 %v5963, 7
        %v5965 = vsub.s32 2, %v5964
        %v5966 = vrot.slane %v5120, %v5965
        %v5967 = vlaneseq
        %v5968 = vshrl.u32 %v5967, 7
        %v5969 = vsub.s32 2, %v5968
        %v5970 = vrot.slane %v5121, %v5969
        %v5971 = vlaneseq
        %v5972 = vshrl.u32 %v5971, 7
        %v5973 = vsub.s32 2, %v5972
        %v5974 = vrot.slane %v5122, %v5973
        %v5975 = vlaneseq
        %v5976 = vshrl.u32 %v5975, 7
        %v5977 = vsub.s32 2, %v5976
        %v5978 = vrot.slane %v5123, %v5977
        %v5979 = vlaneseq
        %v5980 = vshrl.u32 %v5979, 7
        %v5981 = vsub.s32 2, %v5980
        %v5982 = vrot.slane %v5124, %v5981
        %v5983 = vlaneseq
        %v5984 = vshrl.u32 %v5983, 7
        %v5985 = vsub.s32 2, %v5984
        %v5986 = vrot.slane %v5125, %v5985
        %v5987 = vlaneseq
        %v5988 = vshrl.u32 %v5987, 7
        %v5989 = vsub.s32 2, %v5988
        %v5990 = vrot.slane %v5126, %v5989
        %v5991 = vsub.f32 %v5737, %v5866
        %v5992 = vsub.f32 %v5741, %v5870
        %v5993 = vsub.f32 %v5745, %v5874
        %v5994 = vsub.f32 %v5749, %v5878
        %v5995 = vsub.f32 %v5753, %v5882
        %v5996 = vsub.f32 %v5757, %v5886
        %v5997 = vsub.f32 %v5761, %v5890
        %v5998 = vsub.f32 %v5765, %v5894
        %v5999 = vsub.f32 %v5769, %v5898
        %v6000 = vsub.f32 %v5773, %v5902
        %v6001 = vsub.f32 %v5777, %v5906
        %v6002 = vsub.f32 %v5781, %v5910
        %v6003 = vsub.f32 %v5785, %v5914
        %v6004 = vsub.f32 %v5789, %v5918
        %v6005 = vsub.f32 %v5793, %v5922
        %v6006 = vsub.f32 %v5797, %v5926
        %v6007 = vsub.f32 %v5801, %v5930
        %v6008 = vsub.f32 %v5805, %v5934
        %v6009 = vsub.f32 %v5809, %v5938
        %v6010 = vsub.f32 %v5813, %v5942
        %v6011 = vsub.f32 %v5817, %v5946
        %v6012 = vsub.f32 %v5821, %v5950
        %v6013 = vsub.f32 %v5825, %v5954
        %v6014 = vsub.f32 %v5829, %v5958
        %v6015 = vsub.f32 %v5833, %v5962
        %v6016 = vsub.f32 %v5837, %v5966
        %v6017 = vsub.f32 %v5841, %v5970
        %v6018 = vsub.f32 %v5845, %v5974
        %v6019 = vsub.f32 %v5849, %v5978
        %v6020 = vsub.f32 %v5853, %v5982
        %v6021 = vsub.f32 %v5857, %v5986
        %v6022 = vsub.f32 %v5861, %v5990
        %v6023 = vmul.f32 %v5415, %v5415
        %v6024 = vmul.f32 %v5416, %v5416
        %v6025 = vmul.f32 %v5417, %v5417
        %v6026 = vmul.f32 %v5418, %v5418
        %v6027 = vmul.f32 %v5419, %v5419
        %v6028 = vmul.f32 %v5420, %v5420
        %v6029 = vmul.f32 %v5421, %v5421
        %v6030 = vmul.f32 %v5422, %v5422
        %v6031 = vmul.f32 %v5423, %v5423
        %v6032 = vmul.f32 %v5424, %v5424
        %v6033 = vmul.f32 %v5425, %v5425
        %v6034 = vmul.f32 %v5426, %v5426
        %v6035 = vmul.f32 %v5427, %v5427
        %v6036 = vmul.f32 %v5428, %v5428
        %v6037 = vmul.f32 %v5429, %v5429
        %v6038 = vmul.f32 %v5430, %v5430
        %v6039 = vmul.f32 %v5431, %v5431
        %v6040 = vmul.f32 %v5432, %v5432
        %v6041 = vmul.f32 %v5433, %v5433
        %v6042 = vmul.f32 %v5434, %v5434
        %v6043 = vmul.f32 %v5435, %v5435
        %v6044 = vmul.f32 %v5436, %v5436
        %v6045 = vmul.f32 %v5437, %v5437
        %v6046 = vmul.f32 %v5438, %v5438
        %v6047 = vmul.f32 %v5439, %v5439
        %v6048 = vmul.f32 %v5440, %v5440
        %v6049 = vmul.f32 %v5441, %v5441
        %v6050 = vmul.f32 %v5442, %v5442
        %v6051 = vmul.f32 %v5443, %v5443
        %v6052 = vmul.f32 %v5444, %v5444
        %v6053 = vmul.f32 %v5445, %v5445
        %v6054 = vmul.f32 %v5446, %v5446
        %v6055 = vmul.f32 %v5703, %v5703
        %v6056 = vmul.f32 %v5704, %v5704
        %v6057 = vmul.f32 %v5705, %v5705
        %v6058 = vmul.f32 %v5706, %v5706
        %v6059 = vmul.f32 %v5707, %v5707
        %v6060 = vmul.f32 %v5708, %v5708
        %v6061 = vmul.f32 %v5709, %v5709
        %v6062 = vmul.f32 %v5710, %v5710
        %v6063 = vmul.f32 %v5711, %v5711
        %v6064 = vmul.f32 %v5712, %v5712
        %v6065 = vmul.f32 %v5713, %v5713
        %v6066 = vmul.f32 %v5714, %v5714
        %v6067 = vmul.f32 %v5715, %v5715
        %v6068 = vmul.f32 %v5716, %v5716
        %v6069 = vmul.f32 %v5717, %v5717
        %v6070 = vmul.f32 %v5718, %v5718
        %v6071 = vmul.f32 %v5719, %v5719
        %v6072 = vmul.f32 %v5720, %v5720
        %v6073 = vmul.f32 %v5721, %v5721
        %v6074 = vmul.f32 %v5722, %v5722
        %v6075 = vmul.f32 %v5723, %v5723
        %v6076 = vmul.f32 %v5724, %v5724
        %v6077 = vmul.f32 %v5725, %v5725
        %v6078 = vmul.f32 %v5726, %v5726
        %v6079 = vmul.f32 %v5727, %v5727
        %v6080 = vmul.f32 %v5728, %v5728
        %v6081 = vmul.f32 %v5729, %v5729
        %v6082 = vmul.f32 %v5730, %v5730
        %v6083 = vmul.f32 %v5731, %v5731
        %v6084 = vmul.f32 %v5732, %v5732
        %v6085 = vmul.f32 %v5733, %v5733
        %v6086 = vmul.f32 %v5734, %v5734
        %v6087 = vadd.f32 %v6023, %v6055
        %v6088 = vadd.f32 %v6024, %v6056
        %v6089 = vadd.f32 %v6025, %v6057
        %v6090 = vadd.f32 %v6026, %v6058
        %v6091 = vadd.f32 %v6027, %v6059
        %v6092 = vadd.f32 %v6028, %v6060
        %v6093 = vadd.f32 %v6029, %v6061
        %v6094 = vadd.f32 %v6030, %v6062
        %v6095 = vadd.f32 %v6031, %v6063
        %v6096 = vadd.f32 %v6032, %v6064
        %v6097 = vadd.f32 %v6033, %v6065
        %v6098 = vadd.f32 %v6034, %v6066
        %v6099 = vadd.f32 %v6035, %v6067
        %v6100 = vadd.f32 %v6036, %v6068
        %v6101 = vadd.f32 %v6037, %v6069
        %v6102 = vadd.f32 %v6038, %v6070
        %v6103 = vadd.f32 %v6039, %v6071
        %v6104 = vadd.f32 %v6040, %v6072
        %v6105 = vadd.f32 %v6041, %v6073
        %v6106 = vadd.f32 %v6042, %v6074
        %v6107 = vadd.f32 %v6043, %v6075
        %v6108 = vadd.f32 %v6044, %v6076
        %v6109 = vadd.f32 %v6045, %v6077
        %v6110 = vadd.f32 %v6046, %v6078
        %v6111 = vadd.f32 %v6047, %v6079
        %v6112 = vadd.f32 %v6048, %v6080
        %v6113 = vadd.f32 %v6049, %v6081
        %v6114 = vadd.f32 %v6050, %v6082
        %v6115 = vadd.f32 %v6051, %v6083
        %v6116 = vadd.f32 %v6052, %v6084
        %v6117 = vadd.f32 %v6053, %v6085
        %v6118 = vadd.f32 %v6054, %v6086
        %v6119 = vadd.f32 %v6087, 1e-10
        %v6120 = vadd.f32 %v6088, 1e-10
        %v6121 = vadd.f32 %v6089, 1e-10
        %v6122 = vadd.f32 %v6090, 1e-10
        %v6123 = vadd.f32 %v6091, 1e-10
        %v6124 = vadd.f32 %v6092, 1e-10
        %v6125 = vadd.f32 %v6093, 1e-10
        %v6126 = vadd.f32 %v6094, 1e-10
        %v6127 = vadd.f32 %v6095, 1e-10
        %v6128 = vadd.f32 %v6096, 1e-10
        %v6129 = vadd.f32 %v6097, 1e-10
        %v6130 = vadd.f32 %v6098, 1e-10
        %v6131 = vadd.f32 %v6099, 1e-10
        %v6132 = vadd.f32 %v6100, 1e-10
        %v6133 = vadd.f32 %v6101, 1e-10
        %v6134 = vadd.f32 %v6102, 1e-10
        %v6135 = vadd.f32 %v6103, 1e-10
        %v6136 = vadd.f32 %v6104, 1e-10
        %v6137 = vadd.f32 %v6105, 1e-10
        %v6138 = vadd.f32 %v6106, 1e-10
        %v6139 = vadd.f32 %v6107, 1e-10
        %v6140 = vadd.f32 %v6108, 1e-10
        %v6141 = vadd.f32 %v6109, 1e-10
        %v6142 = vadd.f32 %v6110, 1e-10
        %v6143 = vadd.f32 %v6111, 1e-10
        %v6144 = vadd.f32 %v6112, 1e-10
        %v6145 = vadd.f32 %v6113, 1e-10
        %v6146 = vadd.f32 %v6114, 1e-10
        %v6147 = vadd.f32 %v6115, 1e-10
        %v6148 = vadd.f32 %v6116, 1e-10
        %v6149 = vadd.f32 %v6117, 1e-10
        %v6150 = vadd.f32 %v6118, 1e-10
        %v6151 = vmul.f32 %v5991, %v5991
        %v6152 = vmul.f32 %v5992, %v5992
        %v6153 = vmul.f32 %v5993, %v5993
        %v6154 = vmul.f32 %v5994, %v5994
        %v6155 = vmul.f32 %v5995, %v5995
        %v6156 = vmul.f32 %v5996, %v5996
        %v6157 = vmul.f32 %v5997, %v5997
        %v6158 = vmul.f32 %v5998, %v5998
        %v6159 = vmul.f32 %v5999, %v5999
        %v6160 = vmul.f32 %v6000, %v6000
        %v6161 = vmul.f32 %v6001, %v6001
        %v6162 = vmul.f32 %v6002, %v6002
        %v6163 = vmul.f32 %v6003, %v6003
        %v6164 = vmul.f32 %v6004, %v6004
        %v6165 = vmul.f32 %v6005, %v6005
        %v6166 = vmul.f32 %v6006, %v6006
        %v6167 = vmul.f32 %v6007, %v6007
        %v6168 = vmul.f32 %v6008, %v6008
        %v6169 = vmul.f32 %v6009, %v6009
        %v6170 = vmul.f32 %v6010, %v6010
        %v6171 = vmul.f32 %v6011, %v6011
        %v6172 = vmul.f32 %v6012, %v6012
        %v6173 = vmul.f32 %v6013, %v6013
        %v6174 = vmul.f32 %v6014, %v6014
        %v6175 = vmul.f32 %v6015, %v6015
        %v6176 = vmul.f32 %v6016, %v6016
        %v6177 = vmul.f32 %v6017, %v6017
        %v6178 = vmul.f32 %v6018, %v6018
        %v6179 = vmul.f32 %v6019, %v6019
        %v6180 = vmul.f32 %v6020, %v6020
        %v6181 = vmul.f32 %v6021, %v6021
        %v6182 = vmul.f32 %v6022, %v6022
        %v6183 = vadd.f32 %v6119, %v6151
        %v6184 = vadd.f32 %v6120, %v6152
        %v6185 = vadd.f32 %v6121, %v6153
        %v6186 = vadd.f32 %v6122, %v6154
        %v6187 = vadd.f32 %v6123, %v6155
        %v6188 = vadd.f32 %v6124, %v6156
        %v6189 = vadd.f32 %v6125, %v6157
        %v6190 = vadd.f32 %v6126, %v6158
        %v6191 = vadd.f32 %v6127, %v6159
        %v6192 = vadd.f32 %v6128, %v6160
        %v6193 = vadd.f32 %v6129, %v6161
        %v6194 = vadd.f32 %v6130, %v6162
        %v6195 = vadd.f32 %v6131, %v6163
        %v6196 = vadd.f32 %v6132, %v6164
        %v6197 = vadd.f32 %v6133, %v6165
        %v6198 = vadd.f32 %v6134, %v6166
        %v6199 = vadd.f32 %v6135, %v6167
        %v6200 = vadd.f32 %v6136, %v6168
        %v6201 = vadd.f32 %v6137, %v6169
        %v6202 = vadd.f32 %v6138, %v6170
        %v6203 = vadd.f32 %v6139, %v6171
        %v6204 = vadd.f32 %v6140, %v6172
        %v6205 = vadd.f32 %v6141, %v6173
        %v6206 = vadd.f32 %v6142, %v6174
        %v6207 = vadd.f32 %v6143, %v6175
        %v6208 = vadd.f32 %v6144, %v6176
        %v6209 = vadd.f32 %v6145, %v6177
        %v6210 = vadd.f32 %v6146, %v6178
        %v6211 = vadd.f32 %v6147, %v6179
        %v6212 = vadd.f32 %v6148, %v6180
        %v6213 = vadd.f32 %v6149, %v6181
        %v6214 = vadd.f32 %v6150, %v6182
        %v6215 = vrsqrt.pop %v6183
        %v6216 = vrsqrt.pop %v6184
        %v6217 = vrsqrt.pop %v6185
        %v6218 = vrsqrt.pop %v6186
        %v6219 = vrsqrt.pop %v6187
        %v6220 = vrsqrt.pop %v6188
        %v6221 = vrsqrt.pop %v6189
        %v6222 = vrsqrt.pop %v6190
        %v6223 = vrsqrt.pop %v6191
        %v6224 = vrsqrt.pop %v6192
        %v6225 = vrsqrt.pop %v6193
        %v6226 = vrsqrt.pop %v6194
        %v6227 = vrsqrt.pop %v6195
        %v6228 = vrsqrt.pop %v6196
        %v6229 = vrsqrt.pop %v6197
        %v6230 = vrsqrt.pop %v6198
        %v6231 = vrsqrt.pop %v6199
        %v6232 = vrsqrt.pop %v6200
        %v6233 = vrsqrt.pop %v6201
        %v6234 = vrsqrt.pop %v6202
        %v6235 = vrsqrt.pop %v6203
        %v6236 = vrsqrt.pop %v6204
        %v6237 = vrsqrt.pop %v6205
        %v6238 = vrsqrt.pop %v6206
        %v6239 = vrsqrt.pop %v6207
        %v6240 = vrsqrt.pop %v6208
        %v6241 = vrsqrt.pop %v6209
        %v6242 = vrsqrt.pop %v6210
        %v6243 = vrsqrt.pop %v6211
        %v6244 = vrsqrt.pop %v6212
        %v6245 = vrsqrt.pop %v6213
        %v6246 = vrsqrt.pop %v6214
        %v6247 = vrsqrt.pop %v6119
        %v6248 = vrsqrt.pop %v6120
        %v6249 = vrsqrt.pop %v6121
        %v6250 = vrsqrt.pop %v6122
        %v6251 = vrsqrt.pop %v6123
        %v6252 = vrsqrt.pop %v6124
        %v6253 = vrsqrt.pop %v6125
        %v6254 = vrsqrt.pop %v6126
        %v6255 = vrsqrt.pop %v6127
        %v6256 = vrsqrt.pop %v6128
        %v6257 = vrsqrt.pop %v6129
        %v6258 = vrsqrt.pop %v6130
        %v6259 = vrsqrt.pop %v6131
        %v6260 = vrsqrt.pop %v6132
        %v6261 = vrsqrt.pop %v6133
        %v6262 = vrsqrt.pop %v6134
        %v6263 = vrsqrt.pop %v6135
        %v6264 = vrsqrt.pop %v6136
        %v6265 = vrsqrt.pop %v6137
        %v6266 = vrsqrt.pop %v6138
        %v6267 = vrsqrt.pop %v6139
        %v6268 = vrsqrt.pop %v6140
        %v6269 = vrsqrt.pop %v6141
        %v6270 = vrsqrt.pop %v6142
        %v6271 = vrsqrt.pop %v6143
        %v6272 = vrsqrt.pop %v6144
        %v6273 = vrsqrt.pop %v6145
        %v6274 = vrsqrt.pop %v6146
        %v6275 = vrsqrt.pop %v6147
        %v6276 = vrsqrt.pop %v6148
        %v6277 = vrsqrt.pop %v6149
        %v6278 = vrsqrt.pop %v6150
        %v6279 = vmul.f32 %v6183, %v6215
        %v6280 = vmul.f32 %v6184, %v6216
        %v6281 = vmul.f32 %v6185, %v6217
        %v6282 = vmul.f32 %v6186, %v6218
        %v6283 = vmul.f32 %v6187, %v6219
        %v6284 = vmul.f32 %v6188, %v6220
        %v6285 = vmul.f32 %v6189, %v6221
        %v6286 = vmul.f32 %v6190, %v6222
        %v6287 = vmul.f32 %v6191, %v6223
        %v6288 = vmul.f32 %v6192, %v6224
        %v6289 = vmul.f32 %v6193, %v6225
        %v6290 = vmul.f32 %v6194, %v6226
        %v6291 = vmul.f32 %v6195, %v6227
        %v6292 = vmul.f32 %v6196, %v6228
        %v6293 = vmul.f32 %v6197, %v6229
        %v6294 = vmul.f32 %v6198, %v6230
        %v6295 = vmul.f32 %v6199, %v6231
        %v6296 = vmul.f32 %v6200, %v6232
        %v6297 = vmul.f32 %v6201, %v6233
        %v6298 = vmul.f32 %v6202, %v6234
        %v6299 = vmul.f32 %v6203, %v6235
        %v6300 = vmul.f32 %v6204, %v6236
        %v6301 = vmul.f32 %v6205, %v6237
        %v6302 = vmul.f32 %v6206, %v6238
        %v6303 = vmul.f32 %v6207, %v6239
        %v6304 = vmul.f32 %v6208, %v6240
        %v6305 = vmul.f32 %v6209, %v6241
        %v6306 = vmul.f32 %v6210, %v6242
        %v6307 = vmul.f32 %v6211, %v6243
        %v6308 = vmul.f32 %v6212, %v6244
        %v6309 = vmul.f32 %v6213, %v6245
        %v6310 = vmul.f32 %v6214, %v6246
        %v6311 = vmul.f32 %v6119, %v6247
        %v6312 = vmul.f32 %v6120, %v6248
        %v6313 = vmul.f32 %v6121, %v6249
        %v6314 = vmul.f32 %v6122, %v6250
        %v6315 = vmul.f32 %v6123, %v6251
        %v6316 = vmul.f32 %v6124, %v6252
        %v6317 = vmul.f32 %v6125, %v6253
        %v6318 = vmul.f32 %v6126, %v6254
        %v6319 = vmul.f32 %v6127, %v6255
        %v6320 = vmul.f32 %v6128, %v6256
        %v6321 = vmul.f32 %v6129, %v6257
        %v6322 = vmul.f32 %v6130, %v6258
        %v6323 = vmul.f32 %v6131, %v6259
        %v6324 = vmul.f32 %v6132, %v6260
        %v6325 = vmul.f32 %v6133, %v6261
        %v6326 = vmul.f32 %v6134, %v6262
        %v6327 = vmul.f32 %v6135, %v6263
        %v6328 = vmul.f32 %v6136, %v6264
        %v6329 = vmul.f32 %v6137, %v6265
        %v6330 = vmul.f32 %v6138, %v6266
        %v6331 = vmul.f32 %v6139, %v6267
        %v6332 = vmul.f32 %v6140, %v6268
        %v6333 = vmul.f32 %v6141, %v6269
        %v6334 = vmul.f32 %v6142, %v6270
        %v6335 = vmul.f32 %v6143, %v6271
        %v6336 = vmul.f32 %v6144, %v6272
        %v6337 = vmul.f32 %v6145, %v6273
        %v6338 = vmul.f32 %v6146, %v6274
        %v6339 = vmul.f32 %v6147, %v6275
        %v6340 = vmul.f32 %v6148, %v6276
        %v6341 = vmul.f32 %v6149, %v6277
        %v6342 = vmul.f32 %v6150, %v6278
        %vm6343 = vcmask 64512
        %v6344 = vsel %vm6343, %v6279, -inf
        %6345 = vmax.xlane.f32.xlu0 %v6344
        %v6346 = vpop.xlane.xlu0 %6345
        %v6347 = vsel %vm6343, %v6280, -inf
        %6348 = vmax.xlane.f32.xlu0 %v6347
        %v6349 = vpop.xlane.xlu0 %6348
        %v6350 = vsel %vm6343, %v6281, -inf
        %6351 = vmax.xlane.f32.xlu0 %v6350
        %v6352 = vpop.xlane.xlu0 %6351
        %v6353 = vsel %vm6343, %v6282, -inf
        %6354 = vmax.xlane.f32.xlu0 %v6353
        %v6355 = vpop.xlane.xlu0 %6354
        %v6356 = vsel %vm6343, %v6283, -inf
        %6357 = vmax.xlane.f32.xlu0 %v6356
        %v6358 = vpop.xlane.xlu0 %6357
        %v6359 = vsel %vm6343, %v6284, -inf
        %6360 = vmax.xlane.f32.xlu0 %v6359
        %v6361 = vpop.xlane.xlu0 %6360
        %v6362 = vsel %vm6343, %v6285, -inf
        %6363 = vmax.xlane.f32.xlu0 %v6362
        %v6364 = vpop.xlane.xlu0 %6363
        %v6365 = vsel %vm6343, %v6286, -inf
        %6366 = vmax.xlane.f32.xlu0 %v6365
        %v6367 = vpop.xlane.xlu0 %6366
        %v6368 = vsel %vm6343, %v6287, -inf
        %6369 = vmax.xlane.f32.xlu0 %v6368
        %v6370 = vpop.xlane.xlu0 %6369
        %v6371 = vsel %vm6343, %v6288, -inf
        %6372 = vmax.xlane.f32.xlu0 %v6371
        %v6373 = vpop.xlane.xlu0 %6372
        %v6374 = vsel %vm6343, %v6289, -inf
        %6375 = vmax.xlane.f32.xlu0 %v6374
        %v6376 = vpop.xlane.xlu0 %6375
        %v6377 = vsel %vm6343, %v6290, -inf
        %6378 = vmax.xlane.f32.xlu0 %v6377
        %v6379 = vpop.xlane.xlu0 %6378
        %v6380 = vsel %vm6343, %v6291, -inf
        %6381 = vmax.xlane.f32.xlu0 %v6380
        %v6382 = vpop.xlane.xlu0 %6381
        %v6383 = vsel %vm6343, %v6292, -inf
        %6384 = vmax.xlane.f32.xlu0 %v6383
        %v6385 = vpop.xlane.xlu0 %6384
        %v6386 = vsel %vm6343, %v6293, -inf
        %6387 = vmax.xlane.f32.xlu0 %v6386
        %v6388 = vpop.xlane.xlu0 %6387
        %v6389 = vsel %vm6343, %v6294, -inf
        %6390 = vmax.xlane.f32.xlu0 %v6389
        %v6391 = vpop.xlane.xlu0 %6390
        %v6392 = vsel %vm6343, %v6295, -inf
        %6393 = vmax.xlane.f32.xlu0 %v6392
        %v6394 = vpop.xlane.xlu0 %6393
        %v6395 = vsel %vm6343, %v6296, -inf
        %6396 = vmax.xlane.f32.xlu0 %v6395
        %v6397 = vpop.xlane.xlu0 %6396
        %v6398 = vsel %vm6343, %v6297, -inf
        %6399 = vmax.xlane.f32.xlu0 %v6398
        %v6400 = vpop.xlane.xlu0 %6399
        %v6401 = vsel %vm6343, %v6298, -inf
        %6402 = vmax.xlane.f32.xlu0 %v6401
        %v6403 = vpop.xlane.xlu0 %6402
        %v6404 = vsel %vm6343, %v6299, -inf
        %6405 = vmax.xlane.f32.xlu0 %v6404
        %v6406 = vpop.xlane.xlu0 %6405
        %v6407 = vsel %vm6343, %v6300, -inf
        %6408 = vmax.xlane.f32.xlu0 %v6407
        %v6409 = vpop.xlane.xlu0 %6408
        %v6410 = vsel %vm6343, %v6301, -inf
        %6411 = vmax.xlane.f32.xlu0 %v6410
        %v6412 = vpop.xlane.xlu0 %6411
        %v6413 = vsel %vm6343, %v6302, -inf
        %6414 = vmax.xlane.f32.xlu0 %v6413
        %v6415 = vpop.xlane.xlu0 %6414
        %v6416 = vsel %vm6343, %v6303, -inf
        %6417 = vmax.xlane.f32.xlu0 %v6416
        %v6418 = vpop.xlane.xlu0 %6417
        %v6419 = vsel %vm6343, %v6304, -inf
        %6420 = vmax.xlane.f32.xlu0 %v6419
        %v6421 = vpop.xlane.xlu0 %6420
        %v6422 = vsel %vm6343, %v6305, -inf
        %6423 = vmax.xlane.f32.xlu0 %v6422
        %v6424 = vpop.xlane.xlu0 %6423
        %v6425 = vsel %vm6343, %v6306, -inf
        %6426 = vmax.xlane.f32.xlu0 %v6425
        %v6427 = vpop.xlane.xlu0 %6426
        %v6428 = vsel %vm6343, %v6307, -inf
        %6429 = vmax.xlane.f32.xlu0 %v6428
        %v6430 = vpop.xlane.xlu0 %6429
        %v6431 = vsel %vm6343, %v6308, -inf
        %6432 = vmax.xlane.f32.xlu0 %v6431
        %v6433 = vpop.xlane.xlu0 %6432
        %v6434 = vsel %vm6343, %v6309, -inf
        %6435 = vmax.xlane.f32.xlu0 %v6434
        %v6436 = vpop.xlane.xlu0 %6435
        %v6437 = vsel %vm6343, %v6310, -inf
        %6438 = vmax.xlane.f32.xlu0 %v6437
        %v6439 = vpop.xlane.xlu0 %6438
        %v6440 = vrot.slane %v6346, 4
        %v6441 = vmax.f32 %v6346, %v6440
        %v6442 = vrot.slane %v6441, 2
        %v6443 = vmax.f32 %v6441, %v6442
        %v6444 = vrot.slane %v6443, 1
        %v6445 = vmax.f32 %v6443, %v6444
        %v6446 = vrot.slane %v6349, 4
        %v6447 = vmax.f32 %v6349, %v6446
        %v6448 = vrot.slane %v6447, 2
        %v6449 = vmax.f32 %v6447, %v6448
        %v6450 = vrot.slane %v6449, 1
        %v6451 = vmax.f32 %v6449, %v6450
        %v6452 = vrot.slane %v6352, 4
        %v6453 = vmax.f32 %v6352, %v6452
        %v6454 = vrot.slane %v6453, 2
        %v6455 = vmax.f32 %v6453, %v6454
        %v6456 = vrot.slane %v6455, 1
        %v6457 = vmax.f32 %v6455, %v6456
        %v6458 = vrot.slane %v6355, 4
        %v6459 = vmax.f32 %v6355, %v6458
        %v6460 = vrot.slane %v6459, 2
        %v6461 = vmax.f32 %v6459, %v6460
        %v6462 = vrot.slane %v6461, 1
        %v6463 = vmax.f32 %v6461, %v6462
        %v6464 = vrot.slane %v6358, 4
        %v6465 = vmax.f32 %v6358, %v6464
        %v6466 = vrot.slane %v6465, 2
        %v6467 = vmax.f32 %v6465, %v6466
        %v6468 = vrot.slane %v6467, 1
        %v6469 = vmax.f32 %v6467, %v6468
        %v6470 = vrot.slane %v6361, 4
        %v6471 = vmax.f32 %v6361, %v6470
        %v6472 = vrot.slane %v6471, 2
        %v6473 = vmax.f32 %v6471, %v6472
        %v6474 = vrot.slane %v6473, 1
        %v6475 = vmax.f32 %v6473, %v6474
        %v6476 = vrot.slane %v6364, 4
        %v6477 = vmax.f32 %v6364, %v6476
        %v6478 = vrot.slane %v6477, 2
        %v6479 = vmax.f32 %v6477, %v6478
        %v6480 = vrot.slane %v6479, 1
        %v6481 = vmax.f32 %v6479, %v6480
        %v6482 = vrot.slane %v6367, 4
        %v6483 = vmax.f32 %v6367, %v6482
        %v6484 = vrot.slane %v6483, 2
        %v6485 = vmax.f32 %v6483, %v6484
        %v6486 = vrot.slane %v6485, 1
        %v6487 = vmax.f32 %v6485, %v6486
        %v6488 = vrot.slane %v6370, 4
        %v6489 = vmax.f32 %v6370, %v6488
        %v6490 = vrot.slane %v6489, 2
        %v6491 = vmax.f32 %v6489, %v6490
        %v6492 = vrot.slane %v6491, 1
        %v6493 = vmax.f32 %v6491, %v6492
        %v6494 = vrot.slane %v6373, 4
        %v6495 = vmax.f32 %v6373, %v6494
        %v6496 = vrot.slane %v6495, 2
        %v6497 = vmax.f32 %v6495, %v6496
        %v6498 = vrot.slane %v6497, 1
        %v6499 = vmax.f32 %v6497, %v6498
        %v6500 = vrot.slane %v6376, 4
        %v6501 = vmax.f32 %v6376, %v6500
        %v6502 = vrot.slane %v6501, 2
        %v6503 = vmax.f32 %v6501, %v6502
        %v6504 = vrot.slane %v6503, 1
        %v6505 = vmax.f32 %v6503, %v6504
        %v6506 = vrot.slane %v6379, 4
        %v6507 = vmax.f32 %v6379, %v6506
        %v6508 = vrot.slane %v6507, 2
        %v6509 = vmax.f32 %v6507, %v6508
        %v6510 = vrot.slane %v6509, 1
        %v6511 = vmax.f32 %v6509, %v6510
        %v6512 = vrot.slane %v6382, 4
        %v6513 = vmax.f32 %v6382, %v6512
        %v6514 = vrot.slane %v6513, 2
        %v6515 = vmax.f32 %v6513, %v6514
        %v6516 = vrot.slane %v6515, 1
        %v6517 = vmax.f32 %v6515, %v6516
        %v6518 = vrot.slane %v6385, 4
        %v6519 = vmax.f32 %v6385, %v6518
        %v6520 = vrot.slane %v6519, 2
        %v6521 = vmax.f32 %v6519, %v6520
        %v6522 = vrot.slane %v6521, 1
        %v6523 = vmax.f32 %v6521, %v6522
        %v6524 = vrot.slane %v6388, 4
        %v6525 = vmax.f32 %v6388, %v6524
        %v6526 = vrot.slane %v6525, 2
        %v6527 = vmax.f32 %v6525, %v6526
        %v6528 = vrot.slane %v6527, 1
        %v6529 = vmax.f32 %v6527, %v6528
        %v6530 = vrot.slane %v6391, 4
        %v6531 = vmax.f32 %v6391, %v6530
        %v6532 = vrot.slane %v6531, 2
        %v6533 = vmax.f32 %v6531, %v6532
        %v6534 = vrot.slane %v6533, 1
        %v6535 = vmax.f32 %v6533, %v6534
        %v6536 = vrot.slane %v6394, 4
        %v6537 = vmax.f32 %v6394, %v6536
        %v6538 = vrot.slane %v6537, 2
        %v6539 = vmax.f32 %v6537, %v6538
        %v6540 = vrot.slane %v6539, 1
        %v6541 = vmax.f32 %v6539, %v6540
        %v6542 = vrot.slane %v6397, 4
        %v6543 = vmax.f32 %v6397, %v6542
        %v6544 = vrot.slane %v6543, 2
        %v6545 = vmax.f32 %v6543, %v6544
        %v6546 = vrot.slane %v6545, 1
        %v6547 = vmax.f32 %v6545, %v6546
        %v6548 = vrot.slane %v6400, 4
        %v6549 = vmax.f32 %v6400, %v6548
        %v6550 = vrot.slane %v6549, 2
        %v6551 = vmax.f32 %v6549, %v6550
        %v6552 = vrot.slane %v6551, 1
        %v6553 = vmax.f32 %v6551, %v6552
        %v6554 = vrot.slane %v6403, 4
        %v6555 = vmax.f32 %v6403, %v6554
        %v6556 = vrot.slane %v6555, 2
        %v6557 = vmax.f32 %v6555, %v6556
        %v6558 = vrot.slane %v6557, 1
        %v6559 = vmax.f32 %v6557, %v6558
        %v6560 = vrot.slane %v6406, 4
        %v6561 = vmax.f32 %v6406, %v6560
        %v6562 = vrot.slane %v6561, 2
        %v6563 = vmax.f32 %v6561, %v6562
        %v6564 = vrot.slane %v6563, 1
        %v6565 = vmax.f32 %v6563, %v6564
        %v6566 = vrot.slane %v6409, 4
        %v6567 = vmax.f32 %v6409, %v6566
        %v6568 = vrot.slane %v6567, 2
        %v6569 = vmax.f32 %v6567, %v6568
        %v6570 = vrot.slane %v6569, 1
        %v6571 = vmax.f32 %v6569, %v6570
        %v6572 = vrot.slane %v6412, 4
        %v6573 = vmax.f32 %v6412, %v6572
        %v6574 = vrot.slane %v6573, 2
        %v6575 = vmax.f32 %v6573, %v6574
        %v6576 = vrot.slane %v6575, 1
        %v6577 = vmax.f32 %v6575, %v6576
        %v6578 = vrot.slane %v6415, 4
        %v6579 = vmax.f32 %v6415, %v6578
        %v6580 = vrot.slane %v6579, 2
        %v6581 = vmax.f32 %v6579, %v6580
        %v6582 = vrot.slane %v6581, 1
        %v6583 = vmax.f32 %v6581, %v6582
        %v6584 = vrot.slane %v6418, 4
        %v6585 = vmax.f32 %v6418, %v6584
        %v6586 = vrot.slane %v6585, 2
        %v6587 = vmax.f32 %v6585, %v6586
        %v6588 = vrot.slane %v6587, 1
        %v6589 = vmax.f32 %v6587, %v6588
        %v6590 = vrot.slane %v6421, 4
        %v6591 = vmax.f32 %v6421, %v6590
        %v6592 = vrot.slane %v6591, 2
        %v6593 = vmax.f32 %v6591, %v6592
        %v6594 = vrot.slane %v6593, 1
        %v6595 = vmax.f32 %v6593, %v6594
        %v6596 = vrot.slane %v6424, 4
        %v6597 = vmax.f32 %v6424, %v6596
        %v6598 = vrot.slane %v6597, 2
        %v6599 = vmax.f32 %v6597, %v6598
        %v6600 = vrot.slane %v6599, 1
        %v6601 = vmax.f32 %v6599, %v6600
        %v6602 = vrot.slane %v6427, 4
        %v6603 = vmax.f32 %v6427, %v6602
        %v6604 = vrot.slane %v6603, 2
        %v6605 = vmax.f32 %v6603, %v6604
        %v6606 = vrot.slane %v6605, 1
        %v6607 = vmax.f32 %v6605, %v6606
        %v6608 = vrot.slane %v6430, 4
        %v6609 = vmax.f32 %v6430, %v6608
        %v6610 = vrot.slane %v6609, 2
        %v6611 = vmax.f32 %v6609, %v6610
        %v6612 = vrot.slane %v6611, 1
        %v6613 = vmax.f32 %v6611, %v6612
        %v6614 = vrot.slane %v6433, 4
        %v6615 = vmax.f32 %v6433, %v6614
        %v6616 = vrot.slane %v6615, 2
        %v6617 = vmax.f32 %v6615, %v6616
        %v6618 = vrot.slane %v6617, 1
        %v6619 = vmax.f32 %v6617, %v6618
        %v6620 = vrot.slane %v6436, 4
        %v6621 = vmax.f32 %v6436, %v6620
        %v6622 = vrot.slane %v6621, 2
        %v6623 = vmax.f32 %v6621, %v6622
        %v6624 = vrot.slane %v6623, 1
        %v6625 = vmax.f32 %v6623, %v6624
        %v6626 = vrot.slane %v6439, 4
        %v6627 = vmax.f32 %v6439, %v6626
        %v6628 = vrot.slane %v6627, 2
        %v6629 = vmax.f32 %v6627, %v6628
        %v6630 = vrot.slane %v6629, 1
        %v6631 = vmax.f32 %v6629, %v6630
        %v6632 = vrcp.pop %v6445
        %v6633 = vrcp.pop %v6451
        %v6634 = vrcp.pop %v6457
        %v6635 = vrcp.pop %v6463
        %v6636 = vrcp.pop %v6469
        %v6637 = vrcp.pop %v6475
        %v6638 = vrcp.pop %v6481
        %v6639 = vrcp.pop %v6487
        %v6640 = vrcp.pop %v6493
        %v6641 = vrcp.pop %v6499
        %v6642 = vrcp.pop %v6505
        %v6643 = vrcp.pop %v6511
        %v6644 = vrcp.pop %v6517
        %v6645 = vrcp.pop %v6523
        %v6646 = vrcp.pop %v6529
        %v6647 = vrcp.pop %v6535
        %v6648 = vrcp.pop %v6541
        %v6649 = vrcp.pop %v6547
        %v6650 = vrcp.pop %v6553
        %v6651 = vrcp.pop %v6559
        %v6652 = vrcp.pop %v6565
        %v6653 = vrcp.pop %v6571
        %v6654 = vrcp.pop %v6577
        %v6655 = vrcp.pop %v6583
        %v6656 = vrcp.pop %v6589
        %v6657 = vrcp.pop %v6595
        %v6658 = vrcp.pop %v6601
        %v6659 = vrcp.pop %v6607
        %v6660 = vrcp.pop %v6613
        %v6661 = vrcp.pop %v6619
        %v6662 = vrcp.pop %v6625
        %v6663 = vrcp.pop %v6631
        %v6664 = vmul.f32 %v6279, %v6632
        %v6665 = vmul.f32 %v6280, %v6633
        %v6666 = vmul.f32 %v6281, %v6634
        %v6667 = vmul.f32 %v6282, %v6635
        %v6668 = vmul.f32 %v6283, %v6636
        %v6669 = vmul.f32 %v6284, %v6637
        %v6670 = vmul.f32 %v6285, %v6638
        %v6671 = vmul.f32 %v6286, %v6639
        %v6672 = vmul.f32 %v6287, %v6640
        %v6673 = vmul.f32 %v6288, %v6641
        %v6674 = vmul.f32 %v6289, %v6642
        %v6675 = vmul.f32 %v6290, %v6643
        %v6676 = vmul.f32 %v6291, %v6644
        %v6677 = vmul.f32 %v6292, %v6645
        %v6678 = vmul.f32 %v6293, %v6646
        %v6679 = vmul.f32 %v6294, %v6647
        %v6680 = vmul.f32 %v6295, %v6648
        %v6681 = vmul.f32 %v6296, %v6649
        %v6682 = vmul.f32 %v6297, %v6650
        %v6683 = vmul.f32 %v6298, %v6651
        %v6684 = vmul.f32 %v6299, %v6652
        %v6685 = vmul.f32 %v6300, %v6653
        %v6686 = vmul.f32 %v6301, %v6654
        %v6687 = vmul.f32 %v6302, %v6655
        %v6688 = vmul.f32 %v6303, %v6656
        %v6689 = vmul.f32 %v6304, %v6657
        %v6690 = vmul.f32 %v6305, %v6658
        %v6691 = vmul.f32 %v6306, %v6659
        %v6692 = vmul.f32 %v6307, %v6660
        %v6693 = vmul.f32 %v6308, %v6661
        %v6694 = vmul.f32 %v6309, %v6662
        %v6695 = vmul.f32 %v6310, %v6663
        %v6696 = vmul.f32 %v5991, %v6215
        %v6697 = vmul.f32 %v5992, %v6216
        %v6698 = vmul.f32 %v5993, %v6217
        %v6699 = vmul.f32 %v5994, %v6218
        %v6700 = vmul.f32 %v5995, %v6219
        %v6701 = vmul.f32 %v5996, %v6220
        %v6702 = vmul.f32 %v5997, %v6221
        %v6703 = vmul.f32 %v5998, %v6222
        %v6704 = vmul.f32 %v5999, %v6223
        %v6705 = vmul.f32 %v6000, %v6224
        %v6706 = vmul.f32 %v6001, %v6225
        %v6707 = vmul.f32 %v6002, %v6226
        %v6708 = vmul.f32 %v6003, %v6227
        %v6709 = vmul.f32 %v6004, %v6228
        %v6710 = vmul.f32 %v6005, %v6229
        %v6711 = vmul.f32 %v6006, %v6230
        %v6712 = vmul.f32 %v6007, %v6231
        %v6713 = vmul.f32 %v6008, %v6232
        %v6714 = vmul.f32 %v6009, %v6233
        %v6715 = vmul.f32 %v6010, %v6234
        %v6716 = vmul.f32 %v6011, %v6235
        %v6717 = vmul.f32 %v6012, %v6236
        %v6718 = vmul.f32 %v6013, %v6237
        %v6719 = vmul.f32 %v6014, %v6238
        %v6720 = vmul.f32 %v6015, %v6239
        %v6721 = vmul.f32 %v6016, %v6240
        %v6722 = vmul.f32 %v6017, %v6241
        %v6723 = vmul.f32 %v6018, %v6242
        %v6724 = vmul.f32 %v6019, %v6243
        %v6725 = vmul.f32 %v6020, %v6244
        %v6726 = vmul.f32 %v6021, %v6245
        %v6727 = vmul.f32 %v6022, %v6246
        %v6728 = vmul.f32 %v6311, %v6215
        %v6729 = vmul.f32 %v6312, %v6216
        %v6730 = vmul.f32 %v6313, %v6217
        %v6731 = vmul.f32 %v6314, %v6218
        %v6732 = vmul.f32 %v6315, %v6219
        %v6733 = vmul.f32 %v6316, %v6220
        %v6734 = vmul.f32 %v6317, %v6221
        %v6735 = vmul.f32 %v6318, %v6222
        %v6736 = vmul.f32 %v6319, %v6223
        %v6737 = vmul.f32 %v6320, %v6224
        %v6738 = vmul.f32 %v6321, %v6225
        %v6739 = vmul.f32 %v6322, %v6226
        %v6740 = vmul.f32 %v6323, %v6227
        %v6741 = vmul.f32 %v6324, %v6228
        %v6742 = vmul.f32 %v6325, %v6229
        %v6743 = vmul.f32 %v6326, %v6230
        %v6744 = vmul.f32 %v6327, %v6231
        %v6745 = vmul.f32 %v6328, %v6232
        %v6746 = vmul.f32 %v6329, %v6233
        %v6747 = vmul.f32 %v6330, %v6234
        %v6748 = vmul.f32 %v6331, %v6235
        %v6749 = vmul.f32 %v6332, %v6236
        %v6750 = vmul.f32 %v6333, %v6237
        %v6751 = vmul.f32 %v6334, %v6238
        %v6752 = vmul.f32 %v6335, %v6239
        %v6753 = vmul.f32 %v6336, %v6240
        %v6754 = vmul.f32 %v6337, %v6241
        %v6755 = vmul.f32 %v6338, %v6242
        %v6756 = vmul.f32 %v6339, %v6243
        %v6757 = vmul.f32 %v6340, %v6244
        %v6758 = vmul.f32 %v6341, %v6245
        %v6759 = vmul.f32 %v6342, %v6246
        %v6760 = vmul.f32 %v5703, %v6247
        %v6761 = vmul.f32 %v5704, %v6248
        %v6762 = vmul.f32 %v5705, %v6249
        %v6763 = vmul.f32 %v5706, %v6250
        %v6764 = vmul.f32 %v5707, %v6251
        %v6765 = vmul.f32 %v5708, %v6252
        %v6766 = vmul.f32 %v5709, %v6253
        %v6767 = vmul.f32 %v5710, %v6254
        %v6768 = vmul.f32 %v5711, %v6255
        %v6769 = vmul.f32 %v5712, %v6256
        %v6770 = vmul.f32 %v5713, %v6257
        %v6771 = vmul.f32 %v5714, %v6258
        %v6772 = vmul.f32 %v5715, %v6259
        %v6773 = vmul.f32 %v5716, %v6260
        %v6774 = vmul.f32 %v5717, %v6261
        %v6775 = vmul.f32 %v5718, %v6262
        %v6776 = vmul.f32 %v5719, %v6263
        %v6777 = vmul.f32 %v5720, %v6264
        %v6778 = vmul.f32 %v5721, %v6265
        %v6779 = vmul.f32 %v5722, %v6266
        %v6780 = vmul.f32 %v5723, %v6267
        %v6781 = vmul.f32 %v5724, %v6268
        %v6782 = vmul.f32 %v5725, %v6269
        %v6783 = vmul.f32 %v5726, %v6270
        %v6784 = vmul.f32 %v5727, %v6271
        %v6785 = vmul.f32 %v5728, %v6272
        %v6786 = vmul.f32 %v5729, %v6273
        %v6787 = vmul.f32 %v5730, %v6274
        %v6788 = vmul.f32 %v5731, %v6275
        %v6789 = vmul.f32 %v5732, %v6276
        %v6790 = vmul.f32 %v5733, %v6277
        %v6791 = vmul.f32 %v5734, %v6278
        %v6792 = vmul.f32 %v5415, %v6247
        %v6793 = vmul.f32 %v5416, %v6248
        %v6794 = vmul.f32 %v5417, %v6249
        %v6795 = vmul.f32 %v5418, %v6250
        %v6796 = vmul.f32 %v5419, %v6251
        %v6797 = vmul.f32 %v5420, %v6252
        %v6798 = vmul.f32 %v5421, %v6253
        %v6799 = vmul.f32 %v5422, %v6254
        %v6800 = vmul.f32 %v5423, %v6255
        %v6801 = vmul.f32 %v5424, %v6256
        %v6802 = vmul.f32 %v5425, %v6257
        %v6803 = vmul.f32 %v5426, %v6258
        %v6804 = vmul.f32 %v5427, %v6259
        %v6805 = vmul.f32 %v5428, %v6260
        %v6806 = vmul.f32 %v5429, %v6261
        %v6807 = vmul.f32 %v5430, %v6262
        %v6808 = vmul.f32 %v5431, %v6263
        %v6809 = vmul.f32 %v5432, %v6264
        %v6810 = vmul.f32 %v5433, %v6265
        %v6811 = vmul.f32 %v5434, %v6266
        %v6812 = vmul.f32 %v5435, %v6267
        %v6813 = vmul.f32 %v5436, %v6268
        %v6814 = vmul.f32 %v5437, %v6269
        %v6815 = vmul.f32 %v5438, %v6270
        %v6816 = vmul.f32 %v5439, %v6271
        %v6817 = vmul.f32 %v5440, %v6272
        %v6818 = vmul.f32 %v5441, %v6273
        %v6819 = vmul.f32 %v5442, %v6274
        %v6820 = vmul.f32 %v5443, %v6275
        %v6821 = vmul.f32 %v5444, %v6276
        %v6822 = vmul.f32 %v5445, %v6277
        %v6823 = vmul.f32 %v5446, %v6278
        %6856 = vrot.lane.b32.xlu0 %v6696, 8
        %v6857 = vpop.permute.xlu0 %6856
        %6858 = vrot.lane.b32.xlu0 %v6697, 8
        %v6859 = vpop.permute.xlu0 %6858
        %6860 = vrot.lane.b32.xlu0 %v6698, 8
        %v6861 = vpop.permute.xlu0 %6860
        %6862 = vrot.lane.b32.xlu0 %v6699, 8
        %v6863 = vpop.permute.xlu0 %6862
        %6864 = vrot.lane.b32.xlu0 %v6700, 8
        %v6865 = vpop.permute.xlu0 %6864
        %6866 = vrot.lane.b32.xlu0 %v6701, 8
        %v6867 = vpop.permute.xlu0 %6866
        %6868 = vrot.lane.b32.xlu0 %v6702, 8
        %v6869 = vpop.permute.xlu0 %6868
        %6870 = vrot.lane.b32.xlu0 %v6703, 8
        %v6871 = vpop.permute.xlu0 %6870
        %6872 = vrot.lane.b32.xlu0 %v6704, 8
        %v6873 = vpop.permute.xlu0 %6872
        %6874 = vrot.lane.b32.xlu0 %v6705, 8
        %v6875 = vpop.permute.xlu0 %6874
        %6876 = vrot.lane.b32.xlu0 %v6706, 8
        %v6877 = vpop.permute.xlu0 %6876
        %6878 = vrot.lane.b32.xlu0 %v6707, 8
        %v6879 = vpop.permute.xlu0 %6878
        %6880 = vrot.lane.b32.xlu0 %v6708, 8
        %v6881 = vpop.permute.xlu0 %6880
        %6882 = vrot.lane.b32.xlu0 %v6709, 8
        %v6883 = vpop.permute.xlu0 %6882
        %6884 = vrot.lane.b32.xlu0 %v6710, 8
        %v6885 = vpop.permute.xlu0 %6884
        %6886 = vrot.lane.b32.xlu0 %v6711, 8
        %v6887 = vpop.permute.xlu0 %6886
        %6888 = vrot.lane.b32.xlu0 %v6712, 8
        %v6889 = vpop.permute.xlu0 %6888
        %6890 = vrot.lane.b32.xlu0 %v6713, 8
        %v6891 = vpop.permute.xlu0 %6890
        %6892 = vrot.lane.b32.xlu0 %v6714, 8
        %v6893 = vpop.permute.xlu0 %6892
        %6894 = vrot.lane.b32.xlu0 %v6715, 8
        %v6895 = vpop.permute.xlu0 %6894
        %6896 = vrot.lane.b32.xlu0 %v6716, 8
        %v6897 = vpop.permute.xlu0 %6896
        %6898 = vrot.lane.b32.xlu0 %v6717, 8
        %v6899 = vpop.permute.xlu0 %6898
        %6900 = vrot.lane.b32.xlu0 %v6718, 8
        %v6901 = vpop.permute.xlu0 %6900
        %6902 = vrot.lane.b32.xlu0 %v6719, 8
        %v6903 = vpop.permute.xlu0 %6902
        %6904 = vrot.lane.b32.xlu0 %v6720, 8
        %v6905 = vpop.permute.xlu0 %6904
        %6906 = vrot.lane.b32.xlu0 %v6721, 8
        %v6907 = vpop.permute.xlu0 %6906
        %6908 = vrot.lane.b32.xlu0 %v6722, 8
        %v6909 = vpop.permute.xlu0 %6908
        %6910 = vrot.lane.b32.xlu0 %v6723, 8
        %v6911 = vpop.permute.xlu0 %6910
        %6912 = vrot.lane.b32.xlu0 %v6724, 8
        %v6913 = vpop.permute.xlu0 %6912
        %6914 = vrot.lane.b32.xlu0 %v6725, 8
        %v6915 = vpop.permute.xlu0 %6914
        %6916 = vrot.lane.b32.xlu0 %v6726, 8
        %v6917 = vpop.permute.xlu0 %6916
        %6918 = vrot.lane.b32.xlu0 %v6727, 8
        %v6919 = vpop.permute.xlu0 %6918
        %6984 = vrot.lane.b32.xlu0 %v6728, 16
        %v6985 = vpop.permute.xlu0 %6984
        %6986 = vrot.lane.b32.xlu0 %v6729, 16
        %v6987 = vpop.permute.xlu0 %6986
        %6988 = vrot.lane.b32.xlu0 %v6730, 16
        %v6989 = vpop.permute.xlu0 %6988
        %6990 = vrot.lane.b32.xlu0 %v6731, 16
        %v6991 = vpop.permute.xlu0 %6990
        %6992 = vrot.lane.b32.xlu0 %v6732, 16
        %v6993 = vpop.permute.xlu0 %6992
        %6994 = vrot.lane.b32.xlu0 %v6733, 16
        %v6995 = vpop.permute.xlu0 %6994
        %6996 = vrot.lane.b32.xlu0 %v6734, 16
        %v6997 = vpop.permute.xlu0 %6996
        %6998 = vrot.lane.b32.xlu0 %v6735, 16
        %v6999 = vpop.permute.xlu0 %6998
        %7000 = vrot.lane.b32.xlu0 %v6736, 16
        %v7001 = vpop.permute.xlu0 %7000
        %7002 = vrot.lane.b32.xlu0 %v6737, 16
        %v7003 = vpop.permute.xlu0 %7002
        %7004 = vrot.lane.b32.xlu0 %v6738, 16
        %v7005 = vpop.permute.xlu0 %7004
        %7006 = vrot.lane.b32.xlu0 %v6739, 16
        %v7007 = vpop.permute.xlu0 %7006
        %7008 = vrot.lane.b32.xlu0 %v6740, 16
        %v7009 = vpop.permute.xlu0 %7008
        %7010 = vrot.lane.b32.xlu0 %v6741, 16
        %v7011 = vpop.permute.xlu0 %7010
        %7012 = vrot.lane.b32.xlu0 %v6742, 16
        %v7013 = vpop.permute.xlu0 %7012
        %7014 = vrot.lane.b32.xlu0 %v6743, 16
        %v7015 = vpop.permute.xlu0 %7014
        %7016 = vrot.lane.b32.xlu0 %v6744, 16
        %v7017 = vpop.permute.xlu0 %7016
        %7018 = vrot.lane.b32.xlu0 %v6745, 16
        %v7019 = vpop.permute.xlu0 %7018
        %7020 = vrot.lane.b32.xlu0 %v6746, 16
        %v7021 = vpop.permute.xlu0 %7020
        %7022 = vrot.lane.b32.xlu0 %v6747, 16
        %v7023 = vpop.permute.xlu0 %7022
        %7024 = vrot.lane.b32.xlu0 %v6748, 16
        %v7025 = vpop.permute.xlu0 %7024
        %7026 = vrot.lane.b32.xlu0 %v6749, 16
        %v7027 = vpop.permute.xlu0 %7026
        %7028 = vrot.lane.b32.xlu0 %v6750, 16
        %v7029 = vpop.permute.xlu0 %7028
        %7030 = vrot.lane.b32.xlu0 %v6751, 16
        %v7031 = vpop.permute.xlu0 %7030
        %7032 = vrot.lane.b32.xlu0 %v6752, 16
        %v7033 = vpop.permute.xlu0 %7032
        %7034 = vrot.lane.b32.xlu0 %v6753, 16
        %v7035 = vpop.permute.xlu0 %7034
        %7036 = vrot.lane.b32.xlu0 %v6754, 16
        %v7037 = vpop.permute.xlu0 %7036
        %7038 = vrot.lane.b32.xlu0 %v6755, 16
        %v7039 = vpop.permute.xlu0 %7038
        %7040 = vrot.lane.b32.xlu0 %v6756, 16
        %v7041 = vpop.permute.xlu0 %7040
        %7042 = vrot.lane.b32.xlu0 %v6757, 16
        %v7043 = vpop.permute.xlu0 %7042
        %7044 = vrot.lane.b32.xlu0 %v6758, 16
        %v7045 = vpop.permute.xlu0 %7044
        %7046 = vrot.lane.b32.xlu0 %v6759, 16
        %v7047 = vpop.permute.xlu0 %7046
        %7112 = vrot.lane.b32.xlu0 %v6760, 24
        %v7113 = vpop.permute.xlu0 %7112
        %7114 = vrot.lane.b32.xlu0 %v6761, 24
        %v7115 = vpop.permute.xlu0 %7114
        %7116 = vrot.lane.b32.xlu0 %v6762, 24
        %v7117 = vpop.permute.xlu0 %7116
        %7118 = vrot.lane.b32.xlu0 %v6763, 24
        %v7119 = vpop.permute.xlu0 %7118
        %7120 = vrot.lane.b32.xlu0 %v6764, 24
        %v7121 = vpop.permute.xlu0 %7120
        %7122 = vrot.lane.b32.xlu0 %v6765, 24
        %v7123 = vpop.permute.xlu0 %7122
        %7124 = vrot.lane.b32.xlu0 %v6766, 24
        %v7125 = vpop.permute.xlu0 %7124
        %7126 = vrot.lane.b32.xlu0 %v6767, 24
        %v7127 = vpop.permute.xlu0 %7126
        %7128 = vrot.lane.b32.xlu0 %v6768, 24
        %v7129 = vpop.permute.xlu0 %7128
        %7130 = vrot.lane.b32.xlu0 %v6769, 24
        %v7131 = vpop.permute.xlu0 %7130
        %7132 = vrot.lane.b32.xlu0 %v6770, 24
        %v7133 = vpop.permute.xlu0 %7132
        %7134 = vrot.lane.b32.xlu0 %v6771, 24
        %v7135 = vpop.permute.xlu0 %7134
        %7136 = vrot.lane.b32.xlu0 %v6772, 24
        %v7137 = vpop.permute.xlu0 %7136
        %7138 = vrot.lane.b32.xlu0 %v6773, 24
        %v7139 = vpop.permute.xlu0 %7138
        %7140 = vrot.lane.b32.xlu0 %v6774, 24
        %v7141 = vpop.permute.xlu0 %7140
        %7142 = vrot.lane.b32.xlu0 %v6775, 24
        %v7143 = vpop.permute.xlu0 %7142
        %7144 = vrot.lane.b32.xlu0 %v6776, 24
        %v7145 = vpop.permute.xlu0 %7144
        %7146 = vrot.lane.b32.xlu0 %v6777, 24
        %v7147 = vpop.permute.xlu0 %7146
        %7148 = vrot.lane.b32.xlu0 %v6778, 24
        %v7149 = vpop.permute.xlu0 %7148
        %7150 = vrot.lane.b32.xlu0 %v6779, 24
        %v7151 = vpop.permute.xlu0 %7150
        %7152 = vrot.lane.b32.xlu0 %v6780, 24
        %v7153 = vpop.permute.xlu0 %7152
        %7154 = vrot.lane.b32.xlu0 %v6781, 24
        %v7155 = vpop.permute.xlu0 %7154
        %7156 = vrot.lane.b32.xlu0 %v6782, 24
        %v7157 = vpop.permute.xlu0 %7156
        %7158 = vrot.lane.b32.xlu0 %v6783, 24
        %v7159 = vpop.permute.xlu0 %7158
        %7160 = vrot.lane.b32.xlu0 %v6784, 24
        %v7161 = vpop.permute.xlu0 %7160
        %7162 = vrot.lane.b32.xlu0 %v6785, 24
        %v7163 = vpop.permute.xlu0 %7162
        %7164 = vrot.lane.b32.xlu0 %v6786, 24
        %v7165 = vpop.permute.xlu0 %7164
        %7166 = vrot.lane.b32.xlu0 %v6787, 24
        %v7167 = vpop.permute.xlu0 %7166
        %7168 = vrot.lane.b32.xlu0 %v6788, 24
        %v7169 = vpop.permute.xlu0 %7168
        %7170 = vrot.lane.b32.xlu0 %v6789, 24
        %v7171 = vpop.permute.xlu0 %7170
        %7172 = vrot.lane.b32.xlu0 %v6790, 24
        %v7173 = vpop.permute.xlu0 %7172
        %7174 = vrot.lane.b32.xlu0 %v6791, 24
        %v7175 = vpop.permute.xlu0 %7174
        %7240 = vrot.lane.b32.xlu0 %v6792, 32
        %v7241 = vpop.permute.xlu0 %7240
        %7242 = vrot.lane.b32.xlu0 %v6793, 32
        %v7243 = vpop.permute.xlu0 %7242
        %7244 = vrot.lane.b32.xlu0 %v6794, 32
        %v7245 = vpop.permute.xlu0 %7244
        %7246 = vrot.lane.b32.xlu0 %v6795, 32
        %v7247 = vpop.permute.xlu0 %7246
        %7248 = vrot.lane.b32.xlu0 %v6796, 32
        %v7249 = vpop.permute.xlu0 %7248
        %7250 = vrot.lane.b32.xlu0 %v6797, 32
        %v7251 = vpop.permute.xlu0 %7250
        %7252 = vrot.lane.b32.xlu0 %v6798, 32
        %v7253 = vpop.permute.xlu0 %7252
        %7254 = vrot.lane.b32.xlu0 %v6799, 32
        %v7255 = vpop.permute.xlu0 %7254
        %7256 = vrot.lane.b32.xlu0 %v6800, 32
        %v7257 = vpop.permute.xlu0 %7256
        %7258 = vrot.lane.b32.xlu0 %v6801, 32
        %v7259 = vpop.permute.xlu0 %7258
        %7260 = vrot.lane.b32.xlu0 %v6802, 32
        %v7261 = vpop.permute.xlu0 %7260
        %7262 = vrot.lane.b32.xlu0 %v6803, 32
        %v7263 = vpop.permute.xlu0 %7262
        %7264 = vrot.lane.b32.xlu0 %v6804, 32
        %v7265 = vpop.permute.xlu0 %7264
        %7266 = vrot.lane.b32.xlu0 %v6805, 32
        %v7267 = vpop.permute.xlu0 %7266
        %7268 = vrot.lane.b32.xlu0 %v6806, 32
        %v7269 = vpop.permute.xlu0 %7268
        %7270 = vrot.lane.b32.xlu0 %v6807, 32
        %v7271 = vpop.permute.xlu0 %7270
        %7272 = vrot.lane.b32.xlu0 %v6808, 32
        %v7273 = vpop.permute.xlu0 %7272
        %7274 = vrot.lane.b32.xlu0 %v6809, 32
        %v7275 = vpop.permute.xlu0 %7274
        %7276 = vrot.lane.b32.xlu0 %v6810, 32
        %v7277 = vpop.permute.xlu0 %7276
        %7278 = vrot.lane.b32.xlu0 %v6811, 32
        %v7279 = vpop.permute.xlu0 %7278
        %7280 = vrot.lane.b32.xlu0 %v6812, 32
        %v7281 = vpop.permute.xlu0 %7280
        %7282 = vrot.lane.b32.xlu0 %v6813, 32
        %v7283 = vpop.permute.xlu0 %7282
        %7284 = vrot.lane.b32.xlu0 %v6814, 32
        %v7285 = vpop.permute.xlu0 %7284
        %7286 = vrot.lane.b32.xlu0 %v6815, 32
        %v7287 = vpop.permute.xlu0 %7286
        %7288 = vrot.lane.b32.xlu0 %v6816, 32
        %v7289 = vpop.permute.xlu0 %7288
        %7290 = vrot.lane.b32.xlu0 %v6817, 32
        %v7291 = vpop.permute.xlu0 %7290
        %7292 = vrot.lane.b32.xlu0 %v6818, 32
        %v7293 = vpop.permute.xlu0 %7292
        %7294 = vrot.lane.b32.xlu0 %v6819, 32
        %v7295 = vpop.permute.xlu0 %7294
        %7296 = vrot.lane.b32.xlu0 %v6820, 32
        %v7297 = vpop.permute.xlu0 %7296
        %7298 = vrot.lane.b32.xlu0 %v6821, 32
        %v7299 = vpop.permute.xlu0 %7298
        %7300 = vrot.lane.b32.xlu0 %v6822, 32
        %v7301 = vpop.permute.xlu0 %7300
        %7302 = vrot.lane.b32.xlu0 %v6823, 32
        %v7303 = vpop.permute.xlu0 %7302
        %v7336 = vsel %vm6343, %v6664, %v6857
        %v7337 = vsel %vm6343, %v6665, %v6859
        %v7338 = vsel %vm6343, %v6666, %v6861
        %v7339 = vsel %vm6343, %v6667, %v6863
        %v7340 = vsel %vm6343, %v6668, %v6865
        %v7341 = vsel %vm6343, %v6669, %v6867
        %v7342 = vsel %vm6343, %v6670, %v6869
        %v7343 = vsel %vm6343, %v6671, %v6871
        %v7344 = vsel %vm6343, %v6672, %v6873
        %v7345 = vsel %vm6343, %v6673, %v6875
        %v7346 = vsel %vm6343, %v6674, %v6877
        %v7347 = vsel %vm6343, %v6675, %v6879
        %v7348 = vsel %vm6343, %v6676, %v6881
        %v7349 = vsel %vm6343, %v6677, %v6883
        %v7350 = vsel %vm6343, %v6678, %v6885
        %v7351 = vsel %vm6343, %v6679, %v6887
        %v7352 = vsel %vm6343, %v6680, %v6889
        %v7353 = vsel %vm6343, %v6681, %v6891
        %v7354 = vsel %vm6343, %v6682, %v6893
        %v7355 = vsel %vm6343, %v6683, %v6895
        %v7356 = vsel %vm6343, %v6684, %v6897
        %v7357 = vsel %vm6343, %v6685, %v6899
        %v7358 = vsel %vm6343, %v6686, %v6901
        %v7359 = vsel %vm6343, %v6687, %v6903
        %v7360 = vsel %vm6343, %v6688, %v6905
        %v7361 = vsel %vm6343, %v6689, %v6907
        %v7362 = vsel %vm6343, %v6690, %v6909
        %v7363 = vsel %vm6343, %v6691, %v6911
        %v7364 = vsel %vm6343, %v6692, %v6913
        %v7365 = vsel %vm6343, %v6693, %v6915
        %v7366 = vsel %vm6343, %v6694, %v6917
        %v7367 = vsel %vm6343, %v6695, %v6919
        %vm7368 = vcmask 130048
        %v7369 = vsel %vm7368, %v7336, %v6985
        %v7370 = vsel %vm7368, %v7337, %v6987
        %v7371 = vsel %vm7368, %v7338, %v6989
        %v7372 = vsel %vm7368, %v7339, %v6991
        %v7373 = vsel %vm7368, %v7340, %v6993
        %v7374 = vsel %vm7368, %v7341, %v6995
        %v7375 = vsel %vm7368, %v7342, %v6997
        %v7376 = vsel %vm7368, %v7343, %v6999
        %v7377 = vsel %vm7368, %v7344, %v7001
        %v7378 = vsel %vm7368, %v7345, %v7003
        %v7379 = vsel %vm7368, %v7346, %v7005
        %v7380 = vsel %vm7368, %v7347, %v7007
        %v7381 = vsel %vm7368, %v7348, %v7009
        %v7382 = vsel %vm7368, %v7349, %v7011
        %v7383 = vsel %vm7368, %v7350, %v7013
        %v7384 = vsel %vm7368, %v7351, %v7015
        %v7385 = vsel %vm7368, %v7352, %v7017
        %v7386 = vsel %vm7368, %v7353, %v7019
        %v7387 = vsel %vm7368, %v7354, %v7021
        %v7388 = vsel %vm7368, %v7355, %v7023
        %v7389 = vsel %vm7368, %v7356, %v7025
        %v7390 = vsel %vm7368, %v7357, %v7027
        %v7391 = vsel %vm7368, %v7358, %v7029
        %v7392 = vsel %vm7368, %v7359, %v7031
        %v7393 = vsel %vm7368, %v7360, %v7033
        %v7394 = vsel %vm7368, %v7361, %v7035
        %v7395 = vsel %vm7368, %v7362, %v7037
        %v7396 = vsel %vm7368, %v7363, %v7039
        %v7397 = vsel %vm7368, %v7364, %v7041
        %v7398 = vsel %vm7368, %v7365, %v7043
        %v7399 = vsel %vm7368, %v7366, %v7045
        %v7400 = vsel %vm7368, %v7367, %v7047
        %vm7401 = vcmask 195584
        %v7402 = vsel %vm7401, %v7369, %v7113
        %v7403 = vsel %vm7401, %v7370, %v7115
        %v7404 = vsel %vm7401, %v7371, %v7117
        %v7405 = vsel %vm7401, %v7372, %v7119
        %v7406 = vsel %vm7401, %v7373, %v7121
        %v7407 = vsel %vm7401, %v7374, %v7123
        %v7408 = vsel %vm7401, %v7375, %v7125
        %v7409 = vsel %vm7401, %v7376, %v7127
        %v7410 = vsel %vm7401, %v7377, %v7129
        %v7411 = vsel %vm7401, %v7378, %v7131
        %v7412 = vsel %vm7401, %v7379, %v7133
        %v7413 = vsel %vm7401, %v7380, %v7135
        %v7414 = vsel %vm7401, %v7381, %v7137
        %v7415 = vsel %vm7401, %v7382, %v7139
        %v7416 = vsel %vm7401, %v7383, %v7141
        %v7417 = vsel %vm7401, %v7384, %v7143
        %v7418 = vsel %vm7401, %v7385, %v7145
        %v7419 = vsel %vm7401, %v7386, %v7147
        %v7420 = vsel %vm7401, %v7387, %v7149
        %v7421 = vsel %vm7401, %v7388, %v7151
        %v7422 = vsel %vm7401, %v7389, %v7153
        %v7423 = vsel %vm7401, %v7390, %v7155
        %v7424 = vsel %vm7401, %v7391, %v7157
        %v7425 = vsel %vm7401, %v7392, %v7159
        %v7426 = vsel %vm7401, %v7393, %v7161
        %v7427 = vsel %vm7401, %v7394, %v7163
        %v7428 = vsel %vm7401, %v7395, %v7165
        %v7429 = vsel %vm7401, %v7396, %v7167
        %v7430 = vsel %vm7401, %v7397, %v7169
        %v7431 = vsel %vm7401, %v7398, %v7171
        %v7432 = vsel %vm7401, %v7399, %v7173
        %v7433 = vsel %vm7401, %v7400, %v7175
        %vm7434 = vcmask 261120
        %v7435 = vsel %vm7434, %v7402, %v7241
        %v7436 = vsel %vm7434, %v7403, %v7243
        %v7437 = vsel %vm7434, %v7404, %v7245
        %v7438 = vsel %vm7434, %v7405, %v7247
        %v7439 = vsel %vm7434, %v7406, %v7249
        %v7440 = vsel %vm7434, %v7407, %v7251
        %v7441 = vsel %vm7434, %v7408, %v7253
        %v7442 = vsel %vm7434, %v7409, %v7255
        %v7443 = vsel %vm7434, %v7410, %v7257
        %v7444 = vsel %vm7434, %v7411, %v7259
        %v7445 = vsel %vm7434, %v7412, %v7261
        %v7446 = vsel %vm7434, %v7413, %v7263
        %v7447 = vsel %vm7434, %v7414, %v7265
        %v7448 = vsel %vm7434, %v7415, %v7267
        %v7449 = vsel %vm7434, %v7416, %v7269
        %v7450 = vsel %vm7434, %v7417, %v7271
        %v7451 = vsel %vm7434, %v7418, %v7273
        %v7452 = vsel %vm7434, %v7419, %v7275
        %v7453 = vsel %vm7434, %v7420, %v7277
        %v7454 = vsel %vm7434, %v7421, %v7279
        %v7455 = vsel %vm7434, %v7422, %v7281
        %v7456 = vsel %vm7434, %v7423, %v7283
        %v7457 = vsel %vm7434, %v7424, %v7285
        %v7458 = vsel %vm7434, %v7425, %v7287
        %v7459 = vsel %vm7434, %v7426, %v7289
        %v7460 = vsel %vm7434, %v7427, %v7291
        %v7461 = vsel %vm7434, %v7428, %v7293
        %v7462 = vsel %vm7434, %v7429, %v7295
        %v7463 = vsel %vm7434, %v7430, %v7297
        %v7464 = vsel %vm7434, %v7431, %v7299
        %v7465 = vsel %vm7434, %v7432, %v7301
        %v7466 = vsel %vm7434, %v7433, %v7303
        %v7467 = vld [vmem:[%s8] sm:$0xff]
        %v7468 = vld [vmem:[%s8 + $0x8] sm:$0xff]
        %v7469 = vld [vmem:[%s8 + $0x10] sm:$0xff]
        %v7470 = vld [vmem:[%s8 + $0x18] sm:$0xff]
        %v7471 = vld [vmem:[%s8 + $0x20] sm:$0xff]
        %v7472 = vld [vmem:[%s8 + $0x28] sm:$0xff]
        %v7473 = vld [vmem:[%s8 + $0x30] sm:$0xff]
        %v7474 = vld [vmem:[%s8 + $0x38] sm:$0xff]
        %v7475 = vld [vmem:[%s8 + $0x40] sm:$0xff]
        %v7476 = vld [vmem:[%s8 + $0x48] sm:$0xff]
        %v7477 = vld [vmem:[%s8 + $0x50] sm:$0xff]
        %v7478 = vld [vmem:[%s8 + $0x58] sm:$0xff]
        %v7479 = vld [vmem:[%s8 + $0x60] sm:$0xff]
        %v7480 = vld [vmem:[%s8 + $0x68] sm:$0xff]
        %v7481 = vld [vmem:[%s8 + $0x70] sm:$0xff]
        %v7482 = vld [vmem:[%s8 + $0x78] sm:$0xff]
        %v7483 = vld [vmem:[%s9] sm:$0xff]
        %v7484 = vld [vmem:[%s9 + $0x8] sm:$0xff]
        %v7485 = vld [vmem:[%s9 + $0x10] sm:$0xff]
        %v7486 = vld [vmem:[%s9 + $0x18] sm:$0xff]
        %v7487 = vld [vmem:[%s9 + $0x20] sm:$0xff]
        %vm7488 = vcmask 326656
        %v7490 = vsel %vm7488, %v7435, 0
        %v7493 = vsel %vm7488, %v7436, 0
        %v7496 = vsel %vm7488, %v7437, 0
        %v7499 = vsel %vm7488, %v7438, 0
        %v7502 = vsel %vm7488, %v7439, 0
        %v7505 = vsel %vm7488, %v7440, 0
        %v7508 = vsel %vm7488, %v7441, 0
        %v7511 = vsel %vm7488, %v7442, 0
        %v7514 = vsel %vm7488, %v7443, 0
        %v7517 = vsel %vm7488, %v7444, 0
        %v7520 = vsel %vm7488, %v7445, 0
        %v7523 = vsel %vm7488, %v7446, 0
        %v7526 = vsel %vm7488, %v7447, 0
        %v7529 = vsel %vm7488, %v7448, 0
        %v7532 = vsel %vm7488, %v7449, 0
        %v7535 = vsel %vm7488, %v7450, 0
        %v7538 = vsel %vm7488, %v7451, 0
        %v7541 = vsel %vm7488, %v7452, 0
        %v7544 = vsel %vm7488, %v7453, 0
        %v7547 = vsel %vm7488, %v7454, 0
        %v7550 = vsel %vm7488, %v7455, 0
        %v7553 = vsel %vm7488, %v7456, 0
        %v7556 = vsel %vm7488, %v7457, 0
        %v7559 = vsel %vm7488, %v7458, 0
        %v7562 = vsel %vm7488, %v7459, 0
        %v7565 = vsel %vm7488, %v7460, 0
        %v7568 = vsel %vm7488, %v7461, 0
        %v7571 = vsel %vm7488, %v7462, 0
        %v7574 = vsel %vm7488, %v7463, 0
        %v7577 = vsel %vm7488, %v7464, 0
        %v7580 = vsel %vm7488, %v7465, 0
        %v7583 = vsel %vm7488, %v7466, 0
        %7585 = vmatprep.subr.mxu0 0.0
        %7586 = vmatpush1.msra.mxu0 %v7483
        %7587 = vmatprep.subr.mxu0 0.0
        %7588 = vmatpush1.msra.mxu0 %v7484
        %7589 = vmatprep.subr.mxu0 0.0
        %7590 = vmatpush1.msra.mxu0 %v7485
        %7591 = vmatprep.subr.mxu0 0.0
        %7592 = vmatpush1.msra.mxu0 %v7486
        %7593 = vmatprep.subr.mxu0 0.0
        %7594 = vmatpush1.msra.mxu0 %v7487
        %7595 = vmatprep.subr.mxu0 0.0
        %7596 = vmatpush1.msra.mxu0 0.0
        %7597 = vmatprep.subr.mxu0 0.0
        %7598 = vmatpush1.msra.mxu0 0.0
        %7599 = vmatprep.subr.mxu0 0.0
        %7600 = vmatpush1.msra.mxu0 0.0
        %7601 = vmatprep.subr.mxu0 0.0
        %7602 = vmatpush1.msra.mxu0 0.0
        %7603 = vmatprep.subr.mxu0 0.0
        %7604 = vmatpush1.msra.mxu0 0.0
        %7605 = vmatprep.subr.mxu0 0.0
        %7606 = vmatpush1.msra.mxu0 0.0
        %7607 = vmatprep.subr.mxu0 0.0
        %7608 = vmatpush1.msra.mxu0 0.0
        %7609 = vmatprep.subr.mxu0 0.0
        %7610 = vmatpush1.msra.mxu0 0.0
        %7611 = vmatprep.subr.mxu0 0.0
        %7612 = vmatpush1.msra.mxu0 0.0
        %7613 = vmatprep.subr.mxu0 0.0
        %7614 = vmatpush1.msra.mxu0 0.0
        %7615 = vmatprep.subr.mxu0 0.0
        %7616 = vmatpush1.msra.mxu0 0.0
        %7617 = vmatprep.subr.mxu0 0.0
        %7618 = vmatpush1.msra.mxu0 0.0
        %7619 = vmatprep.subr.mxu0 0.0
        %7620 = vmatpush1.msra.mxu0 0.0
        %7621 = vmatprep.subr.mxu0 0.0
        %7622 = vmatpush1.msra.mxu0 0.0
        %7623 = vmatprep.subr.mxu0 0.0
        %7624 = vmatpush1.msra.mxu0 0.0
        %7625 = vmatprep.subr.mxu0 0.0
        %7626 = vmatpush1.msra.mxu0 0.0
        %7627 = vmatprep.subr.mxu0 0.0
        %7628 = vmatpush1.msra.mxu0 0.0
        %7629 = vmatprep.subr.mxu0 0.0
        %7630 = vmatpush1.msra.mxu0 0.0
        %7631 = vmatprep.subr.mxu0 0.0
        %7632 = vmatpush1.msra.mxu0 0.0
        %7633 = vmatprep.subr.mxu0 0.0
        %7634 = vmatpush1.msra.mxu0 0.0
        %7635 = vmatprep.subr.mxu0 0.0
        %7636 = vmatpush1.msra.mxu0 0.0
        %7637 = vmatprep.subr.mxu0 0.0
        %7638 = vmatpush1.msra.mxu0 0.0
        %7639 = vmatprep.subr.mxu0 0.0
        %7640 = vmatpush1.msra.mxu0 0.0
        %7641 = vmatprep.subr.mxu0 0.0
        %7642 = vmatpush1.msra.mxu0 0.0
        %7643 = vmatprep.subr.mxu0 0.0
        %7644 = vmatpush1.msra.mxu0 0.0
        %7645 = vmatprep.subr.mxu0 0.0
        %7646 = vmatpush1.msra.mxu0 0.0
        %7647 = vmatprep.subr.mxu0 0.0
        %7648 = vmatpush1.msra.mxu0 0.0
        %7649 = vmatprep.mubr.f32.mxu0 0.0
        %7650 = vmatmul.mubr.f32.gmra.mrb[0].mxu0 %v7490
        %v7651 = vpop.f32.mrb[0].mxu0
        %v7652 = vadd.f32 0.0, %v7651
        %v7653 = vpop.f32.mrb[0].mxu0
        %7654 = vmatprep.mubr.f32.mxu0 0.0
        %7655 = vmatmul.mubr.f32.gmra.mrb[0].mxu0 %v7493
        %v7656 = vpop.f32.mrb[0].mxu0
        %v7657 = vadd.f32 0.0, %v7656
        %v7658 = vpop.f32.mrb[0].mxu0
        %7659 = vmatprep.mubr.f32.mxu0 0.0
        %7660 = vmatmul.mubr.f32.gmra.mrb[0].mxu0 %v7496
        %v7661 = vpop.f32.mrb[0].mxu0
        %v7662 = vadd.f32 0.0, %v7661
        %v7663 = vpop.f32.mrb[0].mxu0
        %7664 = vmatprep.mubr.f32.mxu0 0.0
        %7665 = vmatmul.mubr.f32.gmra.mrb[0].mxu0 %v7499
        %v7666 = vpop.f32.mrb[0].mxu0
        %v7667 = vadd.f32 0.0, %v7666
        %v7668 = vpop.f32.mrb[0].mxu0
        %7669 = vmatprep.mubr.f32.mxu0 0.0
        %7670 = vmatmul.mubr.f32.gmra.mrb[0].mxu0 %v7502
        %v7671 = vpop.f32.mrb[0].mxu0
        %v7672 = vadd.f32 0.0, %v7671
        %v7673 = vpop.f32.mrb[0].mxu0
        %7674 = vmatprep.mubr.f32.mxu0 0.0
        %7675 = vmatmul.mubr.f32.gmra.mrb[0].mxu0 %v7505
        %v7676 = vpop.f32.mrb[0].mxu0
        %v7677 = vadd.f32 0.0, %v7676
        %v7678 = vpop.f32.mrb[0].mxu0
        %7679 = vmatprep.mubr.f32.mxu0 0.0
        %7680 = vmatmul.mubr.f32.gmra.mrb[0].mxu0 %v7508
        %v7681 = vpop.f32.mrb[0].mxu0
        %v7682 = vadd.f32 0.0, %v7681
        %v7683 = vpop.f32.mrb[0].mxu0
        %7684 = vmatprep.mubr.f32.mxu0 0.0
        %7685 = vmatmul.mubr.f32.gmra.mrb[0].mxu0 %v7511
        %v7686 = vpop.f32.mrb[0].mxu0
        %v7687 = vadd.f32 0.0, %v7686
        %v7688 = vpop.f32.mrb[0].mxu0
        %7689 = vmatprep.mubr.f32.mxu0 0.0
        %7690 = vmatmul.mubr.f32.gmra.mrb[0].mxu0 %v7514
        %v7691 = vpop.f32.mrb[0].mxu0
        %v7692 = vadd.f32 0.0, %v7691
        %v7693 = vpop.f32.mrb[0].mxu0
        %7694 = vmatprep.mubr.f32.mxu0 0.0
        %7695 = vmatmul.mubr.f32.gmra.mrb[0].mxu0 %v7517
        %v7696 = vpop.f32.mrb[0].mxu0
        %v7697 = vadd.f32 0.0, %v7696
        %v7698 = vpop.f32.mrb[0].mxu0
        %7699 = vmatprep.mubr.f32.mxu0 0.0
        %7700 = vmatmul.mubr.f32.gmra.mrb[0].mxu0 %v7520
        %v7701 = vpop.f32.mrb[0].mxu0
        %v7702 = vadd.f32 0.0, %v7701
        %v7703 = vpop.f32.mrb[0].mxu0
        %7704 = vmatprep.mubr.f32.mxu0 0.0
        %7705 = vmatmul.mubr.f32.gmra.mrb[0].mxu0 %v7523
        %v7706 = vpop.f32.mrb[0].mxu0
        %v7707 = vadd.f32 0.0, %v7706
        %v7708 = vpop.f32.mrb[0].mxu0
        %7709 = vmatprep.mubr.f32.mxu0 0.0
        %7710 = vmatmul.mubr.f32.gmra.mrb[0].mxu0 %v7526
        %v7711 = vpop.f32.mrb[0].mxu0
        %v7712 = vadd.f32 0.0, %v7711
        %v7713 = vpop.f32.mrb[0].mxu0
        %7714 = vmatprep.mubr.f32.mxu0 0.0
        %7715 = vmatmul.mubr.f32.gmra.mrb[0].mxu0 %v7529
        %v7716 = vpop.f32.mrb[0].mxu0
        %v7717 = vadd.f32 0.0, %v7716
        %v7718 = vpop.f32.mrb[0].mxu0
        %7719 = vmatprep.mubr.f32.mxu0 0.0
        %7720 = vmatmul.mubr.f32.gmra.mrb[0].mxu0 %v7532
        %v7721 = vpop.f32.mrb[0].mxu0
        %v7722 = vadd.f32 0.0, %v7721
        %v7723 = vpop.f32.mrb[0].mxu0
        %7724 = vmatprep.mubr.f32.mxu0 0.0
        %7725 = vmatmul.mubr.f32.gmra.mrb[0].mxu0 %v7535
        %v7726 = vpop.f32.mrb[0].mxu0
        %v7727 = vadd.f32 0.0, %v7726
        %v7728 = vpop.f32.mrb[0].mxu0
        %7729 = vmatprep.mubr.f32.mxu0 0.0
        %7730 = vmatmul.mubr.f32.gmra.mrb[0].mxu0 %v7538
        %v7731 = vpop.f32.mrb[0].mxu0
        %v7732 = vadd.f32 0.0, %v7731
        %v7733 = vpop.f32.mrb[0].mxu0
        %7734 = vmatprep.mubr.f32.mxu0 0.0
        %7735 = vmatmul.mubr.f32.gmra.mrb[0].mxu0 %v7541
        %v7736 = vpop.f32.mrb[0].mxu0
        %v7737 = vadd.f32 0.0, %v7736
        %v7738 = vpop.f32.mrb[0].mxu0
        %7739 = vmatprep.mubr.f32.mxu0 0.0
        %7740 = vmatmul.mubr.f32.gmra.mrb[0].mxu0 %v7544
        %v7741 = vpop.f32.mrb[0].mxu0
        %v7742 = vadd.f32 0.0, %v7741
        %v7743 = vpop.f32.mrb[0].mxu0
        %7744 = vmatprep.mubr.f32.mxu0 0.0
        %7745 = vmatmul.mubr.f32.gmra.mrb[0].mxu0 %v7547
        %v7746 = vpop.f32.mrb[0].mxu0
        %v7747 = vadd.f32 0.0, %v7746
        %v7748 = vpop.f32.mrb[0].mxu0
        %7749 = vmatprep.mubr.f32.mxu0 0.0
        %7750 = vmatmul.mubr.f32.gmra.mrb[0].mxu0 %v7550
        %v7751 = vpop.f32.mrb[0].mxu0
        %v7752 = vadd.f32 0.0, %v7751
        %v7753 = vpop.f32.mrb[0].mxu0
        %7754 = vmatprep.mubr.f32.mxu0 0.0
        %7755 = vmatmul.mubr.f32.gmra.mrb[0].mxu0 %v7553
        %v7756 = vpop.f32.mrb[0].mxu0
        %v7757 = vadd.f32 0.0, %v7756
        %v7758 = vpop.f32.mrb[0].mxu0
        %7759 = vmatprep.mubr.f32.mxu0 0.0
        %7760 = vmatmul.mubr.f32.gmra.mrb[0].mxu0 %v7556
        %v7761 = vpop.f32.mrb[0].mxu0
        %v7762 = vadd.f32 0.0, %v7761
        %v7763 = vpop.f32.mrb[0].mxu0
        %7764 = vmatprep.mubr.f32.mxu0 0.0
        %7765 = vmatmul.mubr.f32.gmra.mrb[0].mxu0 %v7559
        %v7766 = vpop.f32.mrb[0].mxu0
        %v7767 = vadd.f32 0.0, %v7766
        %v7768 = vpop.f32.mrb[0].mxu0
        %7769 = vmatprep.mubr.f32.mxu0 0.0
        %7770 = vmatmul.mubr.f32.gmra.mrb[0].mxu0 %v7562
        %v7771 = vpop.f32.mrb[0].mxu0
        %v7772 = vadd.f32 0.0, %v7771
        %v7773 = vpop.f32.mrb[0].mxu0
        %7774 = vmatprep.mubr.f32.mxu0 0.0
        %7775 = vmatmul.mubr.f32.gmra.mrb[0].mxu0 %v7565
        %v7776 = vpop.f32.mrb[0].mxu0
        %v7777 = vadd.f32 0.0, %v7776
        %v7778 = vpop.f32.mrb[0].mxu0
        %7779 = vmatprep.mubr.f32.mxu0 0.0
        %7780 = vmatmul.mubr.f32.gmra.mrb[0].mxu0 %v7568
        %v7781 = vpop.f32.mrb[0].mxu0
        %v7782 = vadd.f32 0.0, %v7781
        %v7783 = vpop.f32.mrb[0].mxu0
        %7784 = vmatprep.mubr.f32.mxu0 0.0
        %7785 = vmatmul.mubr.f32.gmra.mrb[0].mxu0 %v7571
        %v7786 = vpop.f32.mrb[0].mxu0
        %v7787 = vadd.f32 0.0, %v7786
        %v7788 = vpop.f32.mrb[0].mxu0
        %7789 = vmatprep.mubr.f32.mxu0 0.0
        %7790 = vmatmul.mubr.f32.gmra.mrb[0].mxu0 %v7574
        %v7791 = vpop.f32.mrb[0].mxu0
        %v7792 = vadd.f32 0.0, %v7791
        %v7793 = vpop.f32.mrb[0].mxu0
        %7794 = vmatprep.mubr.f32.mxu0 0.0
        %7795 = vmatmul.mubr.f32.gmra.mrb[0].mxu0 %v7577
        %v7796 = vpop.f32.mrb[0].mxu0
        %v7797 = vadd.f32 0.0, %v7796
        %v7798 = vpop.f32.mrb[0].mxu0
        %7799 = vmatprep.mubr.f32.mxu0 0.0
        %7800 = vmatmul.mubr.f32.gmra.mrb[0].mxu0 %v7580
        %v7801 = vpop.f32.mrb[0].mxu0
        %v7802 = vadd.f32 0.0, %v7801
        %v7803 = vpop.f32.mrb[0].mxu0
        %7804 = vmatprep.mubr.f32.mxu0 0.0
        %7805 = vmatmul.mubr.f32.gmra.mrb[0].mxu0 %v7583
        %v7806 = vpop.f32.mrb[0].mxu0
        %v7807 = vadd.f32 0.0, %v7806
        %v7808 = vpop.f32.mrb[0].mxu0
        %7809 = vdwg.mxu0
        %7810 = vmatprep.subr.mxu0 0.0
        %7811 = vmatpush1.msra.mxu0 %v7467
        %7812 = vmatprep.subr.mxu0 0.0
        %7813 = vmatpush1.msra.mxu0 %v7468
        %7814 = vmatprep.subr.mxu0 0.0
        %7815 = vmatpush1.msra.mxu0 %v7469
        %7816 = vmatprep.subr.mxu0 0.0
        %7817 = vmatpush1.msra.mxu0 %v7470
        %7818 = vmatprep.subr.mxu0 0.0
        %7819 = vmatpush1.msra.mxu0 %v7471
        %7820 = vmatprep.subr.mxu0 0.0
        %7821 = vmatpush1.msra.mxu0 %v7472
        %7822 = vmatprep.subr.mxu0 0.0
        %7823 = vmatpush1.msra.mxu0 %v7473
        %7824 = vmatprep.subr.mxu0 0.0
        %7825 = vmatpush1.msra.mxu0 %v7474
        %7826 = vmatprep.subr.mxu0 0.0
        %7827 = vmatpush1.msra.mxu0 %v7475
        %7828 = vmatprep.subr.mxu0 0.0
        %7829 = vmatpush1.msra.mxu0 %v7476
        %7830 = vmatprep.subr.mxu0 0.0
        %7831 = vmatpush1.msra.mxu0 %v7477
        %7832 = vmatprep.subr.mxu0 0.0
        %7833 = vmatpush1.msra.mxu0 %v7478
        %7834 = vmatprep.subr.mxu0 0.0
        %7835 = vmatpush1.msra.mxu0 %v7479
        %7836 = vmatprep.subr.mxu0 0.0
        %7837 = vmatpush1.msra.mxu0 %v7480
        %7838 = vmatprep.subr.mxu0 0.0
        %7839 = vmatpush1.msra.mxu0 %v7481
        %7840 = vmatprep.subr.mxu0 0.0
        %7841 = vmatpush1.msra.mxu0 %v7482
        %7842 = vmatprep.subr.mxu0 0.0
        %7843 = vmatpush1.msra.mxu0 0.0
        %7844 = vmatprep.subr.mxu0 0.0
        %7845 = vmatpush1.msra.mxu0 0.0
        %7846 = vmatprep.subr.mxu0 0.0
        %7847 = vmatpush1.msra.mxu0 0.0
        %7848 = vmatprep.subr.mxu0 0.0
        %7849 = vmatpush1.msra.mxu0 0.0
        %7850 = vmatprep.subr.mxu0 0.0
        %7851 = vmatpush1.msra.mxu0 0.0
        %7852 = vmatprep.subr.mxu0 0.0
        %7853 = vmatpush1.msra.mxu0 0.0
        %7854 = vmatprep.subr.mxu0 0.0
        %7855 = vmatpush1.msra.mxu0 0.0
        %7856 = vmatprep.subr.mxu0 0.0
        %7857 = vmatpush1.msra.mxu0 0.0
        %7858 = vmatprep.subr.mxu0 0.0
        %7859 = vmatpush1.msra.mxu0 0.0
        %7860 = vmatprep.subr.mxu0 0.0
        %7861 = vmatpush1.msra.mxu0 0.0
        %7862 = vmatprep.subr.mxu0 0.0
        %7863 = vmatpush1.msra.mxu0 0.0
        %7864 = vmatprep.subr.mxu0 0.0
        %7865 = vmatpush1.msra.mxu0 0.0
        %7866 = vmatprep.subr.mxu0 0.0
        %7867 = vmatpush1.msra.mxu0 0.0
        %7868 = vmatprep.subr.mxu0 0.0
        %7869 = vmatpush1.msra.mxu0 0.0
        %7870 = vmatprep.subr.mxu0 0.0
        %7871 = vmatpush1.msra.mxu0 0.0
        %7872 = vmatprep.subr.mxu0 0.0
        %7873 = vmatpush1.msra.mxu0 0.0
        %7874 = vmatprep.mubr.f32.mxu0 0.0
        %7875 = vmatmul.mubr.f32.gmra.mrb[0].mxu0 %v5031
        %v7876 = vpop.f32.mrb[0].mxu0
        %v7877 = vadd.f32 %v7652, %v7876
        %v7878 = vpop.f32.mrb[0].mxu0
        %7879 = vmatprep.mubr.f32.mxu0 0.0
        %7880 = vmatmul.mubr.f32.gmra.mrb[0].mxu0 %v5032
        %v7881 = vpop.f32.mrb[0].mxu0
        %v7882 = vadd.f32 %v7657, %v7881
        %v7883 = vpop.f32.mrb[0].mxu0
        %7884 = vmatprep.mubr.f32.mxu0 0.0
        %7885 = vmatmul.mubr.f32.gmra.mrb[0].mxu0 %v5033
        %v7886 = vpop.f32.mrb[0].mxu0
        %v7887 = vadd.f32 %v7662, %v7886
        %v7888 = vpop.f32.mrb[0].mxu0
        %7889 = vmatprep.mubr.f32.mxu0 0.0
        %7890 = vmatmul.mubr.f32.gmra.mrb[0].mxu0 %v5034
        %v7891 = vpop.f32.mrb[0].mxu0
        %v7892 = vadd.f32 %v7667, %v7891
        %v7893 = vpop.f32.mrb[0].mxu0
        %7894 = vmatprep.mubr.f32.mxu0 0.0
        %7895 = vmatmul.mubr.f32.gmra.mrb[0].mxu0 %v5035
        %v7896 = vpop.f32.mrb[0].mxu0
        %v7897 = vadd.f32 %v7672, %v7896
        %v7898 = vpop.f32.mrb[0].mxu0
        %7899 = vmatprep.mubr.f32.mxu0 0.0
        %7900 = vmatmul.mubr.f32.gmra.mrb[0].mxu0 %v5036
        %v7901 = vpop.f32.mrb[0].mxu0
        %v7902 = vadd.f32 %v7677, %v7901
        %v7903 = vpop.f32.mrb[0].mxu0
        %7904 = vmatprep.mubr.f32.mxu0 0.0
        %7905 = vmatmul.mubr.f32.gmra.mrb[0].mxu0 %v5037
        %v7906 = vpop.f32.mrb[0].mxu0
        %v7907 = vadd.f32 %v7682, %v7906
        %v7908 = vpop.f32.mrb[0].mxu0
        %7909 = vmatprep.mubr.f32.mxu0 0.0
        %7910 = vmatmul.mubr.f32.gmra.mrb[0].mxu0 %v5038
        %v7911 = vpop.f32.mrb[0].mxu0
        %v7912 = vadd.f32 %v7687, %v7911
        %v7913 = vpop.f32.mrb[0].mxu0
        %7914 = vmatprep.mubr.f32.mxu0 0.0
        %7915 = vmatmul.mubr.f32.gmra.mrb[0].mxu0 %v5039
        %v7916 = vpop.f32.mrb[0].mxu0
        %v7917 = vadd.f32 %v7692, %v7916
        %v7918 = vpop.f32.mrb[0].mxu0
        %7919 = vmatprep.mubr.f32.mxu0 0.0
        %7920 = vmatmul.mubr.f32.gmra.mrb[0].mxu0 %v5040
        %v7921 = vpop.f32.mrb[0].mxu0
        %v7922 = vadd.f32 %v7697, %v7921
        %v7923 = vpop.f32.mrb[0].mxu0
        %7924 = vmatprep.mubr.f32.mxu0 0.0
        %7925 = vmatmul.mubr.f32.gmra.mrb[0].mxu0 %v5041
        %v7926 = vpop.f32.mrb[0].mxu0
        %v7927 = vadd.f32 %v7702, %v7926
        %v7928 = vpop.f32.mrb[0].mxu0
        %7929 = vmatprep.mubr.f32.mxu0 0.0
        %7930 = vmatmul.mubr.f32.gmra.mrb[0].mxu0 %v5042
        %v7931 = vpop.f32.mrb[0].mxu0
        %v7932 = vadd.f32 %v7707, %v7931
        %v7933 = vpop.f32.mrb[0].mxu0
        %7934 = vmatprep.mubr.f32.mxu0 0.0
        %7935 = vmatmul.mubr.f32.gmra.mrb[0].mxu0 %v5043
        %v7936 = vpop.f32.mrb[0].mxu0
        %v7937 = vadd.f32 %v7712, %v7936
        %v7938 = vpop.f32.mrb[0].mxu0
        %7939 = vmatprep.mubr.f32.mxu0 0.0
        %7940 = vmatmul.mubr.f32.gmra.mrb[0].mxu0 %v5044
        %v7941 = vpop.f32.mrb[0].mxu0
        %v7942 = vadd.f32 %v7717, %v7941
        %v7943 = vpop.f32.mrb[0].mxu0
        %7944 = vmatprep.mubr.f32.mxu0 0.0
        %7945 = vmatmul.mubr.f32.gmra.mrb[0].mxu0 %v5045
        %v7946 = vpop.f32.mrb[0].mxu0
        %v7947 = vadd.f32 %v7722, %v7946
        %v7948 = vpop.f32.mrb[0].mxu0
        %7949 = vmatprep.mubr.f32.mxu0 0.0
        %7950 = vmatmul.mubr.f32.gmra.mrb[0].mxu0 %v5046
        %v7951 = vpop.f32.mrb[0].mxu0
        %v7952 = vadd.f32 %v7727, %v7951
        %v7953 = vpop.f32.mrb[0].mxu0
        %7954 = vmatprep.mubr.f32.mxu0 0.0
        %7955 = vmatmul.mubr.f32.gmra.mrb[0].mxu0 %v5047
        %v7956 = vpop.f32.mrb[0].mxu0
        %v7957 = vadd.f32 %v7732, %v7956
        %v7958 = vpop.f32.mrb[0].mxu0
        %7959 = vmatprep.mubr.f32.mxu0 0.0
        %7960 = vmatmul.mubr.f32.gmra.mrb[0].mxu0 %v5048
        %v7961 = vpop.f32.mrb[0].mxu0
        %v7962 = vadd.f32 %v7737, %v7961
        %v7963 = vpop.f32.mrb[0].mxu0
        %7964 = vmatprep.mubr.f32.mxu0 0.0
        %7965 = vmatmul.mubr.f32.gmra.mrb[0].mxu0 %v5049
        %v7966 = vpop.f32.mrb[0].mxu0
        %v7967 = vadd.f32 %v7742, %v7966
        %v7968 = vpop.f32.mrb[0].mxu0
        %7969 = vmatprep.mubr.f32.mxu0 0.0
        %7970 = vmatmul.mubr.f32.gmra.mrb[0].mxu0 %v5050
        %v7971 = vpop.f32.mrb[0].mxu0
        %v7972 = vadd.f32 %v7747, %v7971
        %v7973 = vpop.f32.mrb[0].mxu0
        %7974 = vmatprep.mubr.f32.mxu0 0.0
        %7975 = vmatmul.mubr.f32.gmra.mrb[0].mxu0 %v5051
        %v7976 = vpop.f32.mrb[0].mxu0
        %v7977 = vadd.f32 %v7752, %v7976
        %v7978 = vpop.f32.mrb[0].mxu0
        %7979 = vmatprep.mubr.f32.mxu0 0.0
        %7980 = vmatmul.mubr.f32.gmra.mrb[0].mxu0 %v5052
        %v7981 = vpop.f32.mrb[0].mxu0
        %v7982 = vadd.f32 %v7757, %v7981
        %v7983 = vpop.f32.mrb[0].mxu0
        %7984 = vmatprep.mubr.f32.mxu0 0.0
        %7985 = vmatmul.mubr.f32.gmra.mrb[0].mxu0 %v5053
        %v7986 = vpop.f32.mrb[0].mxu0
        %v7987 = vadd.f32 %v7762, %v7986
        %v7988 = vpop.f32.mrb[0].mxu0
        %7989 = vmatprep.mubr.f32.mxu0 0.0
        %7990 = vmatmul.mubr.f32.gmra.mrb[0].mxu0 %v5054
        %v7991 = vpop.f32.mrb[0].mxu0
        %v7992 = vadd.f32 %v7767, %v7991
        %v7993 = vpop.f32.mrb[0].mxu0
        %7994 = vmatprep.mubr.f32.mxu0 0.0
        %7995 = vmatmul.mubr.f32.gmra.mrb[0].mxu0 %v5055
        %v7996 = vpop.f32.mrb[0].mxu0
        %v7997 = vadd.f32 %v7772, %v7996
        %v7998 = vpop.f32.mrb[0].mxu0
        %7999 = vmatprep.mubr.f32.mxu0 0.0
        %8000 = vmatmul.mubr.f32.gmra.mrb[0].mxu0 %v5056
        %v8001 = vpop.f32.mrb[0].mxu0
        %v8002 = vadd.f32 %v7777, %v8001
        %v8003 = vpop.f32.mrb[0].mxu0
        %8004 = vmatprep.mubr.f32.mxu0 0.0
        %8005 = vmatmul.mubr.f32.gmra.mrb[0].mxu0 %v5057
        %v8006 = vpop.f32.mrb[0].mxu0
        %v8007 = vadd.f32 %v7782, %v8006
        %v8008 = vpop.f32.mrb[0].mxu0
        %8009 = vmatprep.mubr.f32.mxu0 0.0
        %8010 = vmatmul.mubr.f32.gmra.mrb[0].mxu0 %v5058
        %v8011 = vpop.f32.mrb[0].mxu0
        %v8012 = vadd.f32 %v7787, %v8011
        %v8013 = vpop.f32.mrb[0].mxu0
        %8014 = vmatprep.mubr.f32.mxu0 0.0
        %8015 = vmatmul.mubr.f32.gmra.mrb[0].mxu0 %v5059
        %v8016 = vpop.f32.mrb[0].mxu0
        %v8017 = vadd.f32 %v7792, %v8016
        %v8018 = vpop.f32.mrb[0].mxu0
        %8019 = vmatprep.mubr.f32.mxu0 0.0
        %8020 = vmatmul.mubr.f32.gmra.mrb[0].mxu0 %v5060
        %v8021 = vpop.f32.mrb[0].mxu0
        %v8022 = vadd.f32 %v7797, %v8021
        %v8023 = vpop.f32.mrb[0].mxu0
        %8024 = vmatprep.mubr.f32.mxu0 0.0
        %8025 = vmatmul.mubr.f32.gmra.mrb[0].mxu0 %v5061
        %v8026 = vpop.f32.mrb[0].mxu0
        %v8027 = vadd.f32 %v7802, %v8026
        %v8028 = vpop.f32.mrb[0].mxu0
        %8029 = vmatprep.mubr.f32.mxu0 0.0
        %8030 = vmatmul.mubr.f32.gmra.mrb[0].mxu0 %v5062
        %v8031 = vpop.f32.mrb[0].mxu0
        %v8032 = vadd.f32 %v7807, %v8031
        %v8033 = vpop.f32.mrb[0].mxu0
        %8034 = vdwg.mxu0
        %v8035 = vld [vmem:[%s10] sm:$0x1]
        %v8037 = vlaneseq
        %v8038 = vshrl.u32 %v8037, 7
        %v8039 = vsub.s32 0, %v8038
        %v8040 = vrot.slane %v8035, %v8039
        %v8042 = vadd.f32 %v7877, %v8040
        %v8043 = vadd.f32 %v7882, %v8040
        %v8044 = vadd.f32 %v7887, %v8040
        %v8045 = vadd.f32 %v7892, %v8040
        %v8046 = vadd.f32 %v7897, %v8040
        %v8047 = vadd.f32 %v7902, %v8040
        %v8048 = vadd.f32 %v7907, %v8040
        %v8049 = vadd.f32 %v7912, %v8040
        %v8050 = vadd.f32 %v7917, %v8040
        %v8051 = vadd.f32 %v7922, %v8040
        %v8052 = vadd.f32 %v7927, %v8040
        %v8053 = vadd.f32 %v7932, %v8040
        %v8054 = vadd.f32 %v7937, %v8040
        %v8055 = vadd.f32 %v7942, %v8040
        %v8056 = vadd.f32 %v7947, %v8040
        %v8057 = vadd.f32 %v7952, %v8040
        %v8058 = vadd.f32 %v7957, %v8040
        %v8059 = vadd.f32 %v7962, %v8040
        %v8060 = vadd.f32 %v7967, %v8040
        %v8061 = vadd.f32 %v7972, %v8040
        %v8062 = vadd.f32 %v7977, %v8040
        %v8063 = vadd.f32 %v7982, %v8040
        %v8064 = vadd.f32 %v7987, %v8040
        %v8065 = vadd.f32 %v7992, %v8040
        %v8066 = vadd.f32 %v7997, %v8040
        %v8067 = vadd.f32 %v8002, %v8040
        %v8068 = vadd.f32 %v8007, %v8040
        %v8069 = vadd.f32 %v8012, %v8040
        %v8070 = vadd.f32 %v8017, %v8040
        %v8071 = vadd.f32 %v8022, %v8040
        %v8072 = vadd.f32 %v8027, %v8040
        %v8073 = vadd.f32 %v8032, %v8040
        %8074 = vst [vmem:[%s847] sm:$0xff] %v8042
        %8075 = vst [vmem:[%s847 + $0x8] sm:$0xff] %v8043
        %8076 = vst [vmem:[%s847 + $0x10] sm:$0xff] %v8044
        %8077 = vst [vmem:[%s847 + $0x18] sm:$0xff] %v8045
        %8078 = vst [vmem:[%s847 + $0x20] sm:$0xff] %v8046
        %8079 = vst [vmem:[%s847 + $0x28] sm:$0xff] %v8047
        %8080 = vst [vmem:[%s847 + $0x30] sm:$0xff] %v8048
        %8081 = vst [vmem:[%s847 + $0x38] sm:$0xff] %v8049
        %8082 = vst [vmem:[%s847 + $0x40] sm:$0xff] %v8050
        %8083 = vst [vmem:[%s847 + $0x48] sm:$0xff] %v8051
        %8084 = vst [vmem:[%s847 + $0x50] sm:$0xff] %v8052
        %8085 = vst [vmem:[%s847 + $0x58] sm:$0xff] %v8053
        %8086 = vst [vmem:[%s847 + $0x60] sm:$0xff] %v8054
        %8087 = vst [vmem:[%s847 + $0x68] sm:$0xff] %v8055
        %8088 = vst [vmem:[%s847 + $0x70] sm:$0xff] %v8056
        %8089 = vst [vmem:[%s847 + $0x78] sm:$0xff] %v8057
        %8090 = vst [vmem:[%s847 + $0x80] sm:$0xff] %v8058
        %8091 = vst [vmem:[%s847 + $0x88] sm:$0xff] %v8059
        %8092 = vst [vmem:[%s847 + $0x90] sm:$0xff] %v8060
        %8093 = vst [vmem:[%s847 + $0x98] sm:$0xff] %v8061
        %8094 = vst [vmem:[%s847 + $0xa0] sm:$0xff] %v8062
        %8095 = vst [vmem:[%s847 + $0xa8] sm:$0xff] %v8063
        %8096 = vst [vmem:[%s847 + $0xb0] sm:$0xff] %v8064
        %8097 = vst [vmem:[%s847 + $0xb8] sm:$0xff] %v8065
        %8098 = vst [vmem:[%s847 + $0xc0] sm:$0xff] %v8066
        %8099 = vst [vmem:[%s847 + $0xc8] sm:$0xff] %v8067
        %8100 = vst [vmem:[%s847 + $0xd0] sm:$0xff] %v8068
        %8101 = vst [vmem:[%s847 + $0xd8] sm:$0xff] %v8069
        %8102 = vst [vmem:[%s847 + $0xe0] sm:$0xff] %v8070
        %8103 = vst [vmem:[%s847 + $0xe8] sm:$0xff] %v8071
        %8104 = vst [vmem:[%s847 + $0xf0] sm:$0xff] %v8072
        %8105 = vst [vmem:[%s847 + $0xf8] sm:$0xff] %v8073
        %s8106 = sand.u32 %s284, 1
        %s8107 = scalar_lea.sflag [#allocation4], %s8106
        %s8108 = sand.u32 %s284, 1
        %s8109 = smul.addr %s8108, 256
        %s8110 = scalar_lea.vmem [#allocation3], %s8109
        // Predicated region
        $region103: #{tpu_custom_call.1} parent=97 // pred_check
          %p8111 = pneg %p294
        $region104: #{tpu_custom_call.1} parent=97 // pred_check_branch
          %8113 = sbr.rel (%p8111) target = $region106
        $region105: #{tpu_custom_call.1} parent=97 // pred_region
          %s8114 = smul.u32 32, %s25
          %s8116 = ssub.s32 4096, 4096
          %8117 = vsyncadd %s8107, %s8116
          %s8118 = smul.addr %s8114, 128
          %s8119 = scalar_lea.hbm %s11, %s8118
          %s8120 = sshll.u32 %s8110, 4
          %s8121 = int_to_ptr.vmem [resolvable:$true] %s8120
          %8126 = dma.vmem_to_hbm [thread:$0]  %s8121, 4096, %s8119, %s8107, 128, 128, 8
        $region106: #{tpu_custom_call.1} parent=97 // pred_fallthru
          _
      $region98: #{tpu_custom_call.1} parent=5 // pred_fallthru
        _
      %p8127 = scmp.le.s32.totalorder 2, %s20
      // Predicated region
      $region107: #{tpu_custom_call.1} parent=5 // pred_check
        %p8128 = pneg %p8127
      $region108: #{tpu_custom_call.1} parent=5 // pred_check_branch
        %8130 = sbr.rel (%p8128) target = $region110
      $region109: #{tpu_custom_call.1} parent=5 // pred_region
        %s8131 = ssub.s32 %s20, 2
        // Predicated region
        $region111: #{tpu_custom_call.1} parent=109 // pred_check
          %p8132 = pneg %p300
        $region112: #{tpu_custom_call.1} parent=109 // pred_check_branch
          %8134 = sbr.rel (%p8132) target = $region114
        $region113: #{tpu_custom_call.1} parent=109 // pred_region
          %s8135 = sand.u32 %s285, 1
          %s8136 = scalar_lea.sflag [#allocation4], %s8135
          %s8137 = sand.u32 %s285, 1
          %s8138 = smul.addr %s8137, 256
          %s8139 = scalar_lea.vmem [#allocation3], %s8138
          %8140 = dma.done %s8136, 4096
        $region114: #{tpu_custom_call.1} parent=109 // pred_fallthru
          _
      $region110: #{tpu_custom_call.1} parent=5 // pred_fallthru
        _
    $region6: #{tpu_custom_call.1} parent=1 // loop_footer
      %s24 = sadd.s32 1, %s20
    $region7: #{tpu_custom_call.1} parent=1 // loop_footer_branch
      %19 = sbr.rel target = $region3
    $region8: #{tpu_custom_call.1} parent=1 // loop_exit
      _
    %8141 = vsyncpa [#allocation4], 1
    %s8142 = scalar_lea.sflag [#allocation4], 1
    %8143 = vsyncpa %s8142, 1

</llo_original>
